<compile_context>
chip_gen: v5e
topology: v5e:2x2
jax: 0.10.0
libtpu: 0.0.40
codegen_flags: <defaults>
</compile_context>

<pallas_src>
import jax
import jax.numpy as jnp
from jax import lax
from jax.experimental import pallas as pl
from jax.experimental.pallas import tpu as pltpu


def _round_up(n, m):
    return ((n + m - 1) // m) * m


def _full_spec(shape):
    n = len(shape)
    return pl.BlockSpec(shape, lambda i: (0,) * n)


# ------------------------------ fused forward --------------------------------
@jax.jit
def lstm_reg_forward(x, params):
    """x: (S, B, input_size) -> (S, B, output_size)."""
    S, B, I = x.shape
    layers = params["lstm_layers"]
    assert len(layers) == 3, "this fused kernel is specialized to num_layers=3"
    reg_w, reg_b = params["reg_w"], params["reg_b"]
    H = layers[0][1].shape[0]
    O = reg_w.shape[1]

    BP = _round_up(B, 8)       # pad batch to full sublane groups (8)
    IP = _round_up(I, 8)       # pad layer-0 feature dim with zero columns
    SB = S * BP                # flattened (time-major) row count

    # --- host-side (XLA) data prep: pad + flatten so everything the kernel
    # touches is 2-D (or gate-major 3-D) and 8-aligned. Row r = t*BP + b. ---
    x_flat = jnp.pad(x, ((0, 0), (0, BP - B), (0, IP - I))).reshape(SB, IP)

    def split_gates(w_hh):     # (H, 4H) -> (4, H, H), gate-major (i, f, g, o)
        return w_hh.reshape(H, 4, H).transpose(1, 0, 2)

    w_ih = [jnp.pad(layers[0][0], ((0, IP - I), (0, 0))),  # (IP, 4H)
            layers[1][0], layers[2][0]]                    # (H, 4H)
    w_hh = [split_gates(l[1]) for l in layers]             # (4, H, H)
    biases = [l[2] for l in layers]                        # (1, 4H)

    def kernel(x_ref,
               wih0_ref, whh0_ref, b0_ref,
               wih1_ref, whh1_ref, b1_ref,
               wih2_ref, whh2_ref, b2_ref,
               wr_ref, br_ref,
               y_ref,
               gx_scr, act_a, act_b):

        def run_layer(x2d, wih_ref, whh_ref, b_ref, out_ref):
            # (1) Hoisted, non-recurrent input projection for ALL timesteps:
            #     one (SB, in) @ (in, 4H) matmul, bias folded in here (so the
            #     bias broadcast never re-runs inside the serial loop).
            gx = (jnp.dot(x2d, wih_ref[...],
                          preferred_element_type=jnp.float32) + b_ref[...])
            # (2) Split the 4H gate axis once per layer (NOT per timestep) so
            #     the recurrence never lane-slices a (BP, 4H) vreg.
            for g in range(4):
                gx_scr[g] = gx[:, g * H:(g + 1) * H]

            # (3) Serial recurrence: critical path per step is one small
            #     (BP,H)@(H,H) dot per gate + VPU/EUP pointwise work.  h/c are
            #     loop-carried values (vreg resident); layer output goes to a
            #     VMEM scratch, never to HBM.
            def step(t, carry):
                h, c = carry
                r0 = pl.multiple_of(t * BP, BP)

                def gate(g):
                    return (gx_scr[g, pl.ds(r0, BP), :]
                            + jnp.dot(h, whh_ref[g],
                                      preferred_element_type=jnp.float32))

                i_t = jax.nn.sigmoid(gate(0))
                f_t = jax.nn.sigmoid(gate(1))
                g_t = jnp.tanh(gate(2))
                o_t = jax.nn.sigmoid(gate(3))
                c_n = f_t * c + i_t * g_t
                h_n = o_t * jnp.tanh(c_n)
                out_ref[pl.ds(r0, BP), :] = h_n
                return h_n, c_n

            z = jnp.zeros((BP, H), jnp.float32)
            lax.fori_loop(0, S, step, (z, z), unroll=True)

        # Three stacked layers, ping-ponging activation scratch buffers.
        run_layer(x_ref[...], wih0_ref, whh0_ref, b0_ref, act_a)
        run_layer(act_a[...], wih1_ref, whh1_ref, b1_ref, act_b)
        run_layer(act_b[...], wih2_ref, whh2_ref, b2_ref, act_a)

        # (4) Fused Linear head: the (SB, O) result is the only HBM write and
        #     it happens exactly once, at the very end.
        y_ref[...] = (jnp.dot(act_a[...], wr_ref[...],
                              preferred_element_type=jnp.float32)
                      + br_ref[...]).astype(y_ref.dtype)

    in_arrays = (x_flat,
                 w_ih[0], w_hh[0], biases[0],
                 w_ih[1], w_hh[1], biases[1],
                 w_ih[2], w_hh[2], biases[2],
                 reg_w, reg_b)

    y_flat = pl.pallas_call(
        kernel,
        out_shape=jax.ShapeDtypeStruct((SB, O), jnp.float32),
        grid_spec=pltpu.PrefetchScalarGridSpec(
            num_scalar_prefetch=0,
            grid=(1,),                                   # single fused call
            in_specs=[_full_spec(a.shape) for a in in_arrays],
            out_specs=_full_spec((SB, O)),
            scratch_shapes=[
                pltpu.VMEM((4, SB, H), jnp.float32),     # per-gate x-projection
                pltpu.VMEM((SB, H), jnp.float32),        # layer activations (ping)
                pltpu.VMEM((SB, H), jnp.float32),        # layer activations (pong)
            ],
        ),
        compiler_params=pltpu.CompilerParams(
            dimension_semantics=("arbitrary",),          # recurrence is serial
        ),
    )(*in_arrays)

    # Un-flatten and drop the batch padding.  Matches x.view(s*b,h)->view(s,b,-1).
    return y_flat.reshape(S, BP, O)[:, :B, :]


# ------------------------------ params / reference ---------------------------
def init_params(key, input_size, hidden_size, output_size=1, num_layers=3):
    """Deterministic PyTorch-style U(-1/sqrt(H), 1/sqrt(H)) init."""
    k = 1.0 / jnp.sqrt(jnp.float32(hidden_size))
    layers = []
    for layer in range(num_layers):
        in_dim = input_size if layer == 0 else hidden_size
        key, k1, k2, k3, k4 = jax.random.split(key, 5)
        # Stored pre-transposed relative to PyTorch: (in_dim, 4H) / (H, 4H).
        w_ih = jax.random.uniform(k1, (in_dim, 4 * hidden_size), jnp.float32, -k, k)
        w_hh = jax.random.uniform(k2, (hidden_size, 4 * hidden_size), jnp.float32, -k, k)
        b_ih = jax.random.uniform(k3, (4 * hidden_size,), jnp.float32, -k, k)
        b_hh = jax.random.uniform(k4, (4 * hidden_size,), jnp.float32, -k, k)
        bias = (b_ih + b_hh).reshape(1, 4 * hidden_size)
        layers.append((w_ih, w_hh, bias))
    key, k5, k6 = jax.random.split(key, 3)
    reg_w = jax.random.uniform(k5, (hidden_size, output_size), jnp.float32, -k, k)
    reg_b = jax.random.uniform(k6, (1, output_size), jnp.float32, -k, k)
    return {"lstm_layers": layers, "reg_w": reg_w, "reg_b": reg_b}


def _lstm_reg_reference(x, params):
    """Pure-JAX reference (lax.scan) for a correctness check."""
    h = x
    for (w_ih, w_hh, bias) in params["lstm_layers"]:
        B = h.shape[1]
        Hd = w_hh.shape[0]

        def step(carry, x_t, w_ih=w_ih, w_hh=w_hh, bias=bias):
            hp, cp = carry
            gates = x_t @ w_ih + hp @ w_hh + bias
            i, f, g, o = jnp.split(gates, 4, axis=-1)
            i, f, o = jax.nn.sigmoid(i), jax.nn.sigmoid(f), jax.nn.sigmoid(o)
            g = jnp.tanh(g)
            c = f * cp + i * g
            hn = o * jnp.tanh(c)
            return (hn, c), hn

        init = (jnp.zeros((B, Hd), jnp.float32), jnp.zeros((B, Hd), jnp.float32))
        _, h = lax.scan(step, init, h)
    S, B, Hd = h.shape
    out = h.reshape(S * B, Hd) @ params["reg_w"] + params["reg_b"]
    return out.reshape(S, B, -1)


# ----------------------------------- main -------------------------------------
if __name__ == "__main__":
    SEQ, BATCH, INPUT, HIDDEN, OUTPUT, LAYERS = 8, 2, 4, 32, 1, 3

    root = jax.random.PRNGKey(0)
    k_param, k_x = jax.random.split(root)
    params = init_params(k_param, INPUT, HIDDEN, OUTPUT, LAYERS)
    x = jax.random.normal(k_x, (SEQ, BATCH, INPUT), jnp.float32)

    y = jax.block_until_ready(lstm_reg_forward(x, params))

    assert y.shape == (SEQ, BATCH, OUTPUT), y.shape
    assert bool(jnp.all(jnp.isfinite(y)))

    y_ref = _lstm_reg_reference(x, params)
    max_err = float(jnp.max(jnp.abs(y - y_ref)))
    assert max_err < 1e-2, f"mismatch vs reference: max abs err {max_err}"

    print("KERNEL_OK")
</pallas_src>

<mosaic_0001>
module attributes {stable_mosaic.version = 11 : i64} {
  func.func @kernel(%arg0: i32, %arg1: memref<64x8xf32, #tpu.memory_space<vmem>>, %arg2: memref<8x128xf32, #tpu.memory_space<vmem>>, %arg3: memref<4x32x32xf32, #tpu.memory_space<vmem>>, %arg4: memref<1x128xf32, #tpu.memory_space<vmem>>, %arg5: memref<32x128xf32, #tpu.memory_space<vmem>>, %arg6: memref<4x32x32xf32, #tpu.memory_space<vmem>>, %arg7: memref<1x128xf32, #tpu.memory_space<vmem>>, %arg8: memref<32x128xf32, #tpu.memory_space<vmem>>, %arg9: memref<4x32x32xf32, #tpu.memory_space<vmem>>, %arg10: memref<1x128xf32, #tpu.memory_space<vmem>>, %arg11: memref<32x1xf32, #tpu.memory_space<vmem>>, %arg12: memref<1x1xf32, #tpu.memory_space<vmem>>, %arg13: memref<64x1xf32, #tpu.memory_space<vmem>>, %arg14: memref<4x64x32xf32, #tpu.memory_space<vmem>>, %arg15: memref<64x32xf32, #tpu.memory_space<vmem>>, %arg16: memref<64x32xf32, #tpu.memory_space<vmem>>) attributes {dimension_semantics = [#tpu.dimension_semantics<arbitrary>], iteration_bounds = array<i64: 1>, scalar_prefetch = 0 : i64, scratch_operands = 3 : i64, tpu.core_type = #tpu.core_type<tc>, window_params = [{pipeline_mode = #tpu.pipeline_mode<synchronous>, transform_indices = @transform_0, window_bounds = array<i64: 64, 8>}, {pipeline_mode = #tpu.pipeline_mode<synchronous>, transform_indices = @transform_1, window_bounds = array<i64: 8, 128>}, {pipeline_mode = #tpu.pipeline_mode<synchronous>, transform_indices = @transform_2, window_bounds = array<i64: 4, 32, 32>}, {pipeline_mode = #tpu.pipeline_mode<synchronous>, transform_indices = @transform_3, window_bounds = array<i64: 1, 128>}, {pipeline_mode = #tpu.pipeline_mode<synchronous>, transform_indices = @transform_4, window_bounds = array<i64: 32, 128>}, {pipeline_mode = #tpu.pipeline_mode<synchronous>, transform_indices = @transform_5, window_bounds = array<i64: 4, 32, 32>}, {pipeline_mode = #tpu.pipeline_mode<synchronous>, transform_indices = @transform_6, window_bounds = array<i64: 1, 128>}, {pipeline_mode = #tpu.pipeline_mode<synchronous>, transform_indices = @transform_7, window_bounds = array<i64: 32, 128>}, {pipeline_mode = #tpu.pipeline_mode<synchronous>, transform_indices = @transform_8, window_bounds = array<i64: 4, 32, 32>}, {pipeline_mode = #tpu.pipeline_mode<synchronous>, transform_indices = @transform_9, window_bounds = array<i64: 1, 128>}, {pipeline_mode = #tpu.pipeline_mode<synchronous>, transform_indices = @transform_10, window_bounds = array<i64: 32, 1>}, {pipeline_mode = #tpu.pipeline_mode<synchronous>, transform_indices = @transform_11, window_bounds = array<i64: 1, 1>}, {pipeline_mode = #tpu.pipeline_mode<synchronous>, transform_indices = @transform_12, window_bounds = array<i64: 64, 1>}]} {
    %c0 = arith.constant 0 : index
    %c0_0 = arith.constant 0 : index
    %0 = vector.load %arg1[%c0, %c0_0] : memref<64x8xf32, #tpu.memory_space<vmem>>, vector<64x8xf32>
    %c0_1 = arith.constant 0 : index
    %c0_2 = arith.constant 0 : index
    %1 = vector.load %arg2[%c0_1, %c0_2] : memref<8x128xf32, #tpu.memory_space<vmem>>, vector<8x128xf32>
    %cst = arith.constant dense<0.000000e+00> : vector<64x128xf32>
    %2 = tpu.matmul %0, %1, %cst {dimension_numbers = #tpu.dot_dimension_numbers<[1], [0], [0], [1], [0, 0, 1, 1], [], []>} : vector<64x8xf32>, vector<8x128xf32>, vector<64x128xf32> -> vector<64x128xf32>
    %c0_3 = arith.constant 0 : index
    %c0_4 = arith.constant 0 : index
    %3 = vector.load %arg4[%c0_3, %c0_4] : memref<1x128xf32, #tpu.memory_space<vmem>>, vector<1x128xf32>
    %4 = vector.broadcast %3 : vector<1x128xf32> to vector<64x128xf32>
    %5 = arith.addf %2, %4 : vector<64x128xf32>
    %6 = vector.extract_strided_slice %5 {offsets = [0, 0], sizes = [64, 32], strides = [1, 1]} : vector<64x128xf32> to vector<64x32xf32>
    %c0_5 = arith.constant 0 : index
    %c0_6 = arith.constant 0 : index
    %c0_7 = arith.constant 0 : index
    %7 = vector.load %arg14[%c0_5, %c0_6, %c0_7] : memref<4x64x32xf32, #tpu.memory_space<vmem>>, vector<1x64x32xf32>
    %8 = vector.shape_cast %7 : vector<1x64x32xf32> to vector<64x32xf32>
    %9 = vector.shape_cast %6 : vector<64x32xf32> to vector<1x64x32xf32>
    tpu.vector_store %arg14[%c0_5, %c0_6, %c0_7], %9 {strides = array<i32>} : memref<4x64x32xf32, #tpu.memory_space<vmem>>, vector<1x64x32xf32>,
    %10 = vector.extract_strided_slice %5 {offsets = [0, 32], sizes = [64, 32], strides = [1, 1]} : vector<64x128xf32> to vector<64x32xf32>
    %c1 = arith.constant 1 : index
    %c0_8 = arith.constant 0 : index
    %c0_9 = arith.constant 0 : index
    %11 = vector.load %arg14[%c1, %c0_8, %c0_9] : memref<4x64x32xf32, #tpu.memory_space<vmem>>, vector<1x64x32xf32>
    %12 = vector.shape_cast %11 : vector<1x64x32xf32> to vector<64x32xf32>
    %13 = vector.shape_cast %10 : vector<64x32xf32> to vector<1x64x32xf32>
    tpu.vector_store %arg14[%c1, %c0_8, %c0_9], %13 {strides = array<i32>} : memref<4x64x32xf32, #tpu.memory_space<vmem>>, vector<1x64x32xf32>,
    %14 = vector.extract_strided_slice %5 {offsets = [0, 64], sizes = [64, 32], strides = [1, 1]} : vector<64x128xf32> to vector<64x32xf32>
    %c2 = arith.constant 2 : index
    %c0_10 = arith.constant 0 : index
    %c0_11 = arith.constant 0 : index
    %15 = vector.load %arg14[%c2, %c0_10, %c0_11] : memref<4x64x32xf32, #tpu.memory_space<vmem>>, vector<1x64x32xf32>
    %16 = vector.shape_cast %15 : vector<1x64x32xf32> to vector<64x32xf32>
    %17 = vector.shape_cast %14 : vector<64x32xf32> to vector<1x64x32xf32>
    tpu.vector_store %arg14[%c2, %c0_10, %c0_11], %17 {strides = array<i32>} : memref<4x64x32xf32, #tpu.memory_space<vmem>>, vector<1x64x32xf32>,
    %18 = vector.extract_strided_slice %5 {offsets = [0, 96], sizes = [64, 32], strides = [1, 1]} : vector<64x128xf32> to vector<64x32xf32>
    %c3 = arith.constant 3 : index
    %c0_12 = arith.constant 0 : index
    %c0_13 = arith.constant 0 : index
    %19 = vector.load %arg14[%c3, %c0_12, %c0_13] : memref<4x64x32xf32, #tpu.memory_space<vmem>>, vector<1x64x32xf32>
    %20 = vector.shape_cast %19 : vector<1x64x32xf32> to vector<64x32xf32>
    %21 = vector.shape_cast %18 : vector<64x32xf32> to vector<1x64x32xf32>
    tpu.vector_store %arg14[%c3, %c0_12, %c0_13], %21 {strides = array<i32>} : memref<4x64x32xf32, #tpu.memory_space<vmem>>, vector<1x64x32xf32>,
    %cst_14 = arith.constant 0.000000e+00 : f32
    %22 = vector.broadcast %cst_14 : f32 to vector<8x32xf32>
    %c0_i32 = arith.constant 0 : i32
    %c8_i32 = arith.constant 8 : i32
    %23 = arith.muli %c0_i32, %c8_i32 : i32
    %24 = tpu.assume_multiple %23, 8 : i32
    %c0_15 = arith.constant 0 : index
    %25 = arith.index_cast %24 : i32 to index
    %c0_16 = arith.constant 0 : index
    %26 = vector.load %arg14[%c0_15, %25, %c0_16] : memref<4x64x32xf32, #tpu.memory_space<vmem>>, vector<1x8x32xf32>
    %27 = vector.shape_cast %26 : vector<1x8x32xf32> to vector<8x32xf32>
    %c0_17 = arith.constant 0 : index
    %c0_18 = arith.constant 0 : index
    %c0_19 = arith.constant 0 : index
    %28 = vector.load %arg3[%c0_17, %c0_18, %c0_19] : memref<4x32x32xf32, #tpu.memory_space<vmem>>, vector<1x32x32xf32>
    %29 = vector.shape_cast %28 : vector<1x32x32xf32> to vector<32x32xf32>
    %cst_20 = arith.constant dense<0.000000e+00> : vector<8x32xf32>
    %30 = tpu.matmul %22, %29, %cst_20 {dimension_numbers = #tpu.dot_dimension_numbers<[1], [0], [0], [1], [0, 0, 1, 1], [], []>} : vector<8x32xf32>, vector<32x32xf32>, vector<8x32xf32> -> vector<8x32xf32>
    %31 = arith.addf %27, %30 : vector<8x32xf32>
    %32 = arith.negf %31 : vector<8x32xf32>
    %33 = math.exp %32 : vector<8x32xf32>
    %cst_21 = arith.constant 1.000000e+00 : f32
    %34 = vector.broadcast %cst_21 : f32 to vector<8x32xf32>
    %35 = arith.addf %34, %33 : vector<8x32xf32>
    %36 = arith.divf %34, %35 : vector<8x32xf32>
    %c1_22 = arith.constant 1 : index
    %37 = arith.index_cast %24 : i32 to index
    %c0_23 = arith.constant 0 : index
    %38 = vector.load %arg14[%c1_22, %37, %c0_23] : memref<4x64x32xf32, #tpu.memory_space<vmem>>, vector<1x8x32xf32>
    %39 = vector.shape_cast %38 : vector<1x8x32xf32> to vector<8x32xf32>
    %c1_24 = arith.constant 1 : index
    %c0_25 = arith.constant 0 : index
    %c0_26 = arith.constant 0 : index
    %40 = vector.load %arg3[%c1_24, %c0_25, %c0_26] : memref<4x32x32xf32, #tpu.memory_space<vmem>>, vector<1x32x32xf32>
    %41 = vector.shape_cast %40 : vector<1x32x32xf32> to vector<32x32xf32>
    %cst_27 = arith.constant dense<0.000000e+00> : vector<8x32xf32>
    %42 = tpu.matmul %22, %41, %cst_27 {dimension_numbers = #tpu.dot_dimension_numbers<[1], [0], [0], [1], [0, 0, 1, 1], [], []>} : vector<8x32xf32>, vector<32x32xf32>, vector<8x32xf32> -> vector<8x32xf32>
    %43 = arith.addf %39, %42 : vector<8x32xf32>
    %44 = arith.negf %43 : vector<8x32xf32>
    %45 = math.exp %44 : vector<8x32xf32>
    %cst_28 = arith.constant 1.000000e+00 : f32
    %46 = vector.broadcast %cst_28 : f32 to vector<8x32xf32>
    %47 = arith.addf %46, %45 : vector<8x32xf32>
    %48 = arith.divf %46, %47 : vector<8x32xf32>
    %c2_29 = arith.constant 2 : index
    %49 = arith.index_cast %24 : i32 to index
    %c0_30 = arith.constant 0 : index
    %50 = vector.load %arg14[%c2_29, %49, %c0_30] : memref<4x64x32xf32, #tpu.memory_space<vmem>>, vector<1x8x32xf32>
    %51 = vector.shape_cast %50 : vector<1x8x32xf32> to vector<8x32xf32>
    %c2_31 = arith.constant 2 : index
    %c0_32 = arith.constant 0 : index
    %c0_33 = arith.constant 0 : index
    %52 = vector.load %arg3[%c2_31, %c0_32, %c0_33] : memref<4x32x32xf32, #tpu.memory_space<vmem>>, vector<1x32x32xf32>
    %53 = vector.shape_cast %52 : vector<1x32x32xf32> to vector<32x32xf32>
    %cst_34 = arith.constant dense<0.000000e+00> : vector<8x32xf32>
    %54 = tpu.matmul %22, %53, %cst_34 {dimension_numbers = #tpu.dot_dimension_numbers<[1], [0], [0], [1], [0, 0, 1, 1], [], []>} : vector<8x32xf32>, vector<32x32xf32>, vector<8x32xf32> -> vector<8x32xf32>
    %55 = arith.addf %51, %54 : vector<8x32xf32>
    %56 = math.tanh %55 : vector<8x32xf32>
    %c3_35 = arith.constant 3 : index
    %57 = arith.index_cast %24 : i32 to index
    %c0_36 = arith.constant 0 : index
    %58 = vector.load %arg14[%c3_35, %57, %c0_36] : memref<4x64x32xf32, #tpu.memory_space<vmem>>, vector<1x8x32xf32>
    %59 = vector.shape_cast %58 : vector<1x8x32xf32> to vector<8x32xf32>
    %c3_37 = arith.constant 3 : index
    %c0_38 = arith.constant 0 : index
    %c0_39 = arith.constant 0 : index
    %60 = vector.load %arg3[%c3_37, %c0_38, %c0_39] : memref<4x32x32xf32, #tpu.memory_space<vmem>>, vector<1x32x32xf32>
    %61 = vector.shape_cast %60 : vector<1x32x32xf32> to vector<32x32xf32>
    %cst_40 = arith.constant dense<0.000000e+00> : vector<8x32xf32>
    %62 = tpu.matmul %22, %61, %cst_40 {dimension_numbers = #tpu.dot_dimension_numbers<[1], [0], [0], [1], [0, 0, 1, 1], [], []>} : vector<8x32xf32>, vector<32x32xf32>, vector<8x32xf32> -> vector<8x32xf32>
    %63 = arith.addf %59, %62 : vector<8x32xf32>
    %64 = arith.negf %63 : vector<8x32xf32>
    %65 = math.exp %64 : vector<8x32xf32>
    %cst_41 = arith.constant 1.000000e+00 : f32
    %66 = vector.broadcast %cst_41 : f32 to vector<8x32xf32>
    %67 = arith.addf %66, %65 : vector<8x32xf32>
    %68 = arith.divf %66, %67 : vector<8x32xf32>
    %69 = arith.mulf %48, %22 : vector<8x32xf32>
    %70 = arith.mulf %36, %56 : vector<8x32xf32>
    %71 = arith.addf %69, %70 : vector<8x32xf32>
    %72 = math.tanh %71 : vector<8x32xf32>
    %73 = arith.mulf %68, %72 : vector<8x32xf32>
    %74 = arith.index_cast %24 : i32 to index
    %c0_42 = arith.constant 0 : index
    %75 = vector.load %arg15[%74, %c0_42] : memref<64x32xf32, #tpu.memory_space<vmem>>, vector<8x32xf32>
    tpu.vector_store %arg15[%74, %c0_42], %73 {strides = array<i32>} : memref<64x32xf32, #tpu.memory_space<vmem>>, vector<8x32xf32>,
    %c1_i32 = arith.constant 1 : i32
    %c8_i32_43 = arith.constant 8 : i32
    %76 = arith.muli %c1_i32, %c8_i32_43 : i32
    %77 = tpu.assume_multiple %76, 8 : i32
    %c0_44 = arith.constant 0 : index
    %78 = arith.index_cast %77 : i32 to index
    %c0_45 = arith.constant 0 : index
    %79 = vector.load %arg14[%c0_44, %78, %c0_45] : memref<4x64x32xf32, #tpu.memory_space<vmem>>, vector<1x8x32xf32>
    %80 = vector.shape_cast %79 : vector<1x8x32xf32> to vector<8x32xf32>
    %c0_46 = arith.constant 0 : index
    %c0_47 = arith.constant 0 : index
    %c0_48 = arith.constant 0 : index
    %81 = vector.load %arg3[%c0_46, %c0_47, %c0_48] : memref<4x32x32xf32, #tpu.memory_space<vmem>>, vector<1x32x32xf32>
    %82 = vector.shape_cast %81 : vector<1x32x32xf32> to vector<32x32xf32>
    %cst_49 = arith.constant dense<0.000000e+00> : vector<8x32xf32>
    %83 = tpu.matmul %73, %82, %cst_49 {dimension_numbers = #tpu.dot_dimension_numbers<[1], [0], [0], [1], [0, 0, 1, 1], [], []>} : vector<8x32xf32>, vector<32x32xf32>, vector<8x32xf32> -> vector<8x32xf32>
    %84 = arith.addf %80, %83 : vector<8x32xf32>
    %85 = arith.negf %84 : vector<8x32xf32>
    %86 = math.exp %85 : vector<8x32xf32>
    %cst_50 = arith.constant 1.000000e+00 : f32
    %87 = vector.broadcast %cst_50 : f32 to vector<8x32xf32>
    %88 = arith.addf %87, %86 : vector<8x32xf32>
    %89 = arith.divf %87, %88 : vector<8x32xf32>
    %c1_51 = arith.constant 1 : index
    %90 = arith.index_cast %77 : i32 to index
    %c0_52 = arith.constant 0 : index
    %91 = vector.load %arg14[%c1_51, %90, %c0_52] : memref<4x64x32xf32, #tpu.memory_space<vmem>>, vector<1x8x32xf32>
    %92 = vector.shape_cast %91 : vector<1x8x32xf32> to vector<8x32xf32>
    %c1_53 = arith.constant 1 : index
    %c0_54 = arith.constant 0 : index
    %c0_55 = arith.constant 0 : index
    %93 = vector.load %arg3[%c1_53, %c0_54, %c0_55] : memref<4x32x32xf32, #tpu.memory_space<vmem>>, vector<1x32x32xf32>
    %94 = vector.shape_cast %93 : vector<1x32x32xf32> to vector<32x32xf32>
    %cst_56 = arith.constant dense<0.000000e+00> : vector<8x32xf32>
    %95 = tpu.matmul %73, %94, %cst_56 {dimension_numbers = #tpu.dot_dimension_numbers<[1], [0], [0], [1], [0, 0, 1, 1], [], []>} : vector<8x32xf32>, vector<32x32xf32>, vector<8x32xf32> -> vector<8x32xf32>
    %96 = arith.addf %92, %95 : vector<8x32xf32>
    %97 = arith.negf %96 : vector<8x32xf32>
    %98 = math.exp %97 : vector<8x32xf32>
    %cst_57 = arith.constant 1.000000e+00 : f32
    %99 = vector.broadcast %cst_57 : f32 to vector<8x32xf32>
    %100 = arith.addf %99, %98 : vector<8x32xf32>
    %101 = arith.divf %99, %100 : vector<8x32xf32>
    %c2_58 = arith.constant 2 : index
    %102 = arith.index_cast %77 : i32 to index
    %c0_59 = arith.constant 0 : index
    %103 = vector.load %arg14[%c2_58, %102, %c0_59] : memref<4x64x32xf32, #tpu.memory_space<vmem>>, vector<1x8x32xf32>
    %104 = vector.shape_cast %103 : vector<1x8x32xf32> to vector<8x32xf32>
    %c2_60 = arith.constant 2 : index
    %c0_61 = arith.constant 0 : index
    %c0_62 = arith.constant 0 : index
    %105 = vector.load %arg3[%c2_60, %c0_61, %c0_62] : memref<4x32x32xf32, #tpu.memory_space<vmem>>, vector<1x32x32xf32>
    %106 = vector.shape_cast %105 : vector<1x32x32xf32> to vector<32x32xf32>
    %cst_63 = arith.constant dense<0.000000e+00> : vector<8x32xf32>
    %107 = tpu.matmul %73, %106, %cst_63 {dimension_numbers = #tpu.dot_dimension_numbers<[1], [0], [0], [1], [0, 0, 1, 1], [], []>} : vector<8x32xf32>, vector<32x32xf32>, vector<8x32xf32> -> vector<8x32xf32>
    %108 = arith.addf %104, %107 : vector<8x32xf32>
    %109 = math.tanh %108 : vector<8x32xf32>
    %c3_64 = arith.constant 3 : index
    %110 = arith.index_cast %77 : i32 to index
    %c0_65 = arith.constant 0 : index
    %111 = vector.load %arg14[%c3_64, %110, %c0_65] : memref<4x64x32xf32, #tpu.memory_space<vmem>>, vector<1x8x32xf32>
    %112 = vector.shape_cast %111 : vector<1x8x32xf32> to vector<8x32xf32>
    %c3_66 = arith.constant 3 : index
    %c0_67 = arith.constant 0 : index
    %c0_68 = arith.constant 0 : index
    %113 = vector.load %arg3[%c3_66, %c0_67, %c0_68] : memref<4x32x32xf32, #tpu.memory_space<vmem>>, vector<1x32x32xf32>
    %114 = vector.shape_cast %113 : vector<1x32x32xf32> to vector<32x32xf32>
    %cst_69 = arith.constant dense<0.000000e+00> : vector<8x32xf32>
    %115 = tpu.matmul %73, %114, %cst_69 {dimension_numbers = #tpu.dot_dimension_numbers<[1], [0], [0], [1], [0, 0, 1, 1], [], []>} : vector<8x32xf32>, vector<32x32xf32>, vector<8x32xf32> -> vector<8x32xf32>
    %116 = arith.addf %112, %115 : vector<8x32xf32>
    %117 = arith.negf %116 : vector<8x32xf32>
    %118 = math.exp %117 : vector<8x32xf32>
    %cst_70 = arith.constant 1.000000e+00 : f32
    %119 = vector.broadcast %cst_70 : f32 to vector<8x32xf32>
    %120 = arith.addf %119, %118 : vector<8x32xf32>
    %121 = arith.divf %119, %120 : vector<8x32xf32>
    %122 = arith.mulf %101, %71 : vector<8x32xf32>
    %123 = arith.mulf %89, %109 : vector<8x32xf32>
    %124 = arith.addf %122, %123 : vector<8x32xf32>
    %125 = math.tanh %124 : vector<8x32xf32>
    %126 = arith.mulf %121, %125 : vector<8x32xf32>
    %127 = arith.index_cast %77 : i32 to index
    %c0_71 = arith.constant 0 : index
    %128 = vector.load %arg15[%127, %c0_71] : memref<64x32xf32, #tpu.memory_space<vmem>>, vector<8x32xf32>
    tpu.vector_store %arg15[%127, %c0_71], %126 {strides = array<i32>} : memref<64x32xf32, #tpu.memory_space<vmem>>, vector<8x32xf32>,
    %c2_i32 = arith.constant 2 : i32
    %c8_i32_72 = arith.constant 8 : i32
    %129 = arith.muli %c2_i32, %c8_i32_72 : i32
    %130 = tpu.assume_multiple %129, 8 : i32
    %c0_73 = arith.constant 0 : index
    %131 = arith.index_cast %130 : i32 to index
    %c0_74 = arith.constant 0 : index
    %132 = vector.load %arg14[%c0_73, %131, %c0_74] : memref<4x64x32xf32, #tpu.memory_space<vmem>>, vector<1x8x32xf32>
    %133 = vector.shape_cast %132 : vector<1x8x32xf32> to vector<8x32xf32>
    %c0_75 = arith.constant 0 : index
    %c0_76 = arith.constant 0 : index
    %c0_77 = arith.constant 0 : index
    %134 = vector.load %arg3[%c0_75, %c0_76, %c0_77] : memref<4x32x32xf32, #tpu.memory_space<vmem>>, vector<1x32x32xf32>
    %135 = vector.shape_cast %134 : vector<1x32x32xf32> to vector<32x32xf32>
    %cst_78 = arith.constant dense<0.000000e+00> : vector<8x32xf32>
    %136 = tpu.matmul %126, %135, %cst_78 {dimension_numbers = #tpu.dot_dimension_numbers<[1], [0], [0], [1], [0, 0, 1, 1], [], []>} : vector<8x32xf32>, vector<32x32xf32>, vector<8x32xf32> -> vector<8x32xf32>
    %137 = arith.addf %133, %136 : vector<8x32xf32>
    %138 = arith.negf %137 : vector<8x32xf32>
    %139 = math.exp %138 : vector<8x32xf32>
    %cst_79 = arith.constant 1.000000e+00 : f32
    %140 = vector.broadcast %cst_79 : f32 to vector<8x32xf32>
    %141 = arith.addf %140, %139 : vector<8x32xf32>
    %142 = arith.divf %140, %141 : vector<8x32xf32>
    %c1_80 = arith.constant 1 : index
    %143 = arith.index_cast %130 : i32 to index
    %c0_81 = arith.constant 0 : index
    %144 = vector.load %arg14[%c1_80, %143, %c0_81] : memref<4x64x32xf32, #tpu.memory_space<vmem>>, vector<1x8x32xf32>
    %145 = vector.shape_cast %144 : vector<1x8x32xf32> to vector<8x32xf32>
    %c1_82 = arith.constant 1 : index
    %c0_83 = arith.constant 0 : index
    %c0_84 = arith.constant 0 : index
    %146 = vector.load %arg3[%c1_82, %c0_83, %c0_84] : memref<4x32x32xf32, #tpu.memory_space<vmem>>, vector<1x32x32xf32>
    %147 = vector.shape_cast %146 : vector<1x32x32xf32> to vector<32x32xf32>
    %cst_85 = arith.constant dense<0.000000e+00> : vector<8x32xf32>
    %148 = tpu.matmul %126, %147, %cst_85 {dimension_numbers = #tpu.dot_dimension_numbers<[1], [0], [0], [1], [0, 0, 1, 1], [], []>} : vector<8x32xf32>, vector<32x32xf32>, vector<8x32xf32> -> vector<8x32xf32>
    %149 = arith.addf %145, %148 : vector<8x32xf32>
    %150 = arith.negf %149 : vector<8x32xf32>
    %151 = math.exp %150 : vector<8x32xf32>
    %cst_86 = arith.constant 1.000000e+00 : f32
    %152 = vector.broadcast %cst_86 : f32 to vector<8x32xf32>
    %153 = arith.addf %152, %151 : vector<8x32xf32>
    %154 = arith.divf %152, %153 : vector<8x32xf32>
    %c2_87 = arith.constant 2 : index
    %155 = arith.index_cast %130 : i32 to index
    %c0_88 = arith.constant 0 : index
    %156 = vector.load %arg14[%c2_87, %155, %c0_88] : memref<4x64x32xf32, #tpu.memory_space<vmem>>, vector<1x8x32xf32>
    %157 = vector.shape_cast %156 : vector<1x8x32xf32> to vector<8x32xf32>
    %c2_89 = arith.constant 2 : index
    %c0_90 = arith.constant 0 : index
    %c0_91 = arith.constant 0 : index
    %158 = vector.load %arg3[%c2_89, %c0_90, %c0_91] : memref<4x32x32xf32, #tpu.memory_space<vmem>>, vector<1x32x32xf32>
    %159 = vector.shape_cast %158 : vector<1x32x32xf32> to vector<32x32xf32>
    %cst_92 = arith.constant dense<0.000000e+00> : vector<8x32xf32>
    %160 = tpu.matmul %126, %159, %cst_92 {dimension_numbers = #tpu.dot_dimension_numbers<[1], [0], [0], [1], [0, 0, 1, 1], [], []>} : vector<8x32xf32>, vector<32x32xf32>, vector<8x32xf32> -> vector<8x32xf32>
    %161 = arith.addf %157, %160 : vector<8x32xf32>
    %162 = math.tanh %161 : vector<8x32xf32>
    %c3_93 = arith.constant 3 : index
    %163 = arith.index_cast %130 : i32 to index
    %c0_94 = arith.constant 0 : index
    %164 = vector.load %arg14[%c3_93, %163, %c0_94] : memref<4x64x32xf32, #tpu.memory_space<vmem>>, vector<1x8x32xf32>
    %165 = vector.shape_cast %164 : vector<1x8x32xf32> to vector<8x32xf32>
    %c3_95 = arith.constant 3 : index
    %c0_96 = arith.constant 0 : index
    %c0_97 = arith.constant 0 : index
    %166 = vector.load %arg3[%c3_95, %c0_96, %c0_97] : memref<4x32x32xf32, #tpu.memory_space<vmem>>, vector<1x32x32xf32>
    %167 = vector.shape_cast %166 : vector<1x32x32xf32> to vector<32x32xf32>
    %cst_98 = arith.constant dense<0.000000e+00> : vector<8x32xf32>
    %168 = tpu.matmul %126, %167, %cst_98 {dimension_numbers = #tpu.dot_dimension_numbers<[1], [0], [0], [1], [0, 0, 1, 1], [], []>} : vector<8x32xf32>, vector<32x32xf32>, vector<8x32xf32> -> vector<8x32xf32>
    %169 = arith.addf %165, %168 : vector<8x32xf32>
    %170 = arith.negf %169 : vector<8x32xf32>
    %171 = math.exp %170 : vector<8x32xf32>
    %cst_99 = arith.constant 1.000000e+00 : f32
    %172 = vector.broadcast %cst_99 : f32 to vector<8x32xf32>
    %173 = arith.addf %172, %171 : vector<8x32xf32>
    %174 = arith.divf %172, %173 : vector<8x32xf32>
    %175 = arith.mulf %154, %124 : vector<8x32xf32>
    %176 = arith.mulf %142, %162 : vector<8x32xf32>
    %177 = arith.addf %175, %176 : vector<8x32xf32>
    %178 = math.tanh %177 : vector<8x32xf32>
    %179 = arith.mulf %174, %178 : vector<8x32xf32>
    %180 = arith.index_cast %130 : i32 to index
    %c0_100 = arith.constant 0 : index
    %181 = vector.load %arg15[%180, %c0_100] : memref<64x32xf32, #tpu.memory_space<vmem>>, vector<8x32xf32>
    tpu.vector_store %arg15[%180, %c0_100], %179 {strides = array<i32>} : memref<64x32xf32, #tpu.memory_space<vmem>>, vector<8x32xf32>,
    %c3_i32 = arith.constant 3 : i32
    %c8_i32_101 = arith.constant 8 : i32
    %182 = arith.muli %c3_i32, %c8_i32_101 : i32
    %183 = tpu.assume_multiple %182, 8 : i32
    %c0_102 = arith.constant 0 : index
    %184 = arith.index_cast %183 : i32 to index
    %c0_103 = arith.constant 0 : index
    %185 = vector.load %arg14[%c0_102, %184, %c0_103] : memref<4x64x32xf32, #tpu.memory_space<vmem>>, vector<1x8x32xf32>
    %186 = vector.shape_cast %185 : vector<1x8x32xf32> to vector<8x32xf32>
    %c0_104 = arith.constant 0 : index
    %c0_105 = arith.constant 0 : index
    %c0_106 = arith.constant 0 : index
    %187 = vector.load %arg3[%c0_104, %c0_105, %c0_106] : memref<4x32x32xf32, #tpu.memory_space<vmem>>, vector<1x32x32xf32>
    %188 = vector.shape_cast %187 : vector<1x32x32xf32> to vector<32x32xf32>
    %cst_107 = arith.constant dense<0.000000e+00> : vector<8x32xf32>
    %189 = tpu.matmul %179, %188, %cst_107 {dimension_numbers = #tpu.dot_dimension_numbers<[1], [0], [0], [1], [0, 0, 1, 1], [], []>} : vector<8x32xf32>, vector<32x32xf32>, vector<8x32xf32> -> vector<8x32xf32>
    %190 = arith.addf %186, %189 : vector<8x32xf32>
    %191 = arith.negf %190 : vector<8x32xf32>
    %192 = math.exp %191 : vector<8x32xf32>
    %cst_108 = arith.constant 1.000000e+00 : f32
    %193 = vector.broadcast %cst_108 : f32 to vector<8x32xf32>
    %194 = arith.addf %193, %192 : vector<8x32xf32>
    %195 = arith.divf %193, %194 : vector<8x32xf32>
    %c1_109 = arith.constant 1 : index
    %196 = arith.index_cast %183 : i32 to index
    %c0_110 = arith.constant 0 : index
    %197 = vector.load %arg14[%c1_109, %196, %c0_110] : memref<4x64x32xf32, #tpu.memory_space<vmem>>, vector<1x8x32xf32>
    %198 = vector.shape_cast %197 : vector<1x8x32xf32> to vector<8x32xf32>
    %c1_111 = arith.constant 1 : index
    %c0_112 = arith.constant 0 : index
    %c0_113 = arith.constant 0 : index
    %199 = vector.load %arg3[%c1_111, %c0_112, %c0_113] : memref<4x32x32xf32, #tpu.memory_space<vmem>>, vector<1x32x32xf32>
    %200 = vector.shape_cast %199 : vector<1x32x32xf32> to vector<32x32xf32>
    %cst_114 = arith.constant dense<0.000000e+00> : vector<8x32xf32>
    %201 = tpu.matmul %179, %200, %cst_114 {dimension_numbers = #tpu.dot_dimension_numbers<[1], [0], [0], [1], [0, 0, 1, 1], [], []>} : vector<8x32xf32>, vector<32x32xf32>, vector<8x32xf32> -> vector<8x32xf32>
    %202 = arith.addf %198, %201 : vector<8x32xf32>
    %203 = arith.negf %202 : vector<8x32xf32>
    %204 = math.exp %203 : vector<8x32xf32>
    %cst_115 = arith.constant 1.000000e+00 : f32
    %205 = vector.broadcast %cst_115 : f32 to vector<8x32xf32>
    %206 = arith.addf %205, %204 : vector<8x32xf32>
    %207 = arith.divf %205, %206 : vector<8x32xf32>
    %c2_116 = arith.constant 2 : index
    %208 = arith.index_cast %183 : i32 to index
    %c0_117 = arith.constant 0 : index
    %209 = vector.load %arg14[%c2_116, %208, %c0_117] : memref<4x64x32xf32, #tpu.memory_space<vmem>>, vector<1x8x32xf32>
    %210 = vector.shape_cast %209 : vector<1x8x32xf32> to vector<8x32xf32>
    %c2_118 = arith.constant 2 : index
    %c0_119 = arith.constant 0 : index
    %c0_120 = arith.constant 0 : index
    %211 = vector.load %arg3[%c2_118, %c0_119, %c0_120] : memref<4x32x32xf32, #tpu.memory_space<vmem>>, vector<1x32x32xf32>
    %212 = vector.shape_cast %211 : vector<1x32x32xf32> to vector<32x32xf32>
    %cst_121 = arith.constant dense<0.000000e+00> : vector<8x32xf32>
    %213 = tpu.matmul %179, %212, %cst_121 {dimension_numbers = #tpu.dot_dimension_numbers<[1], [0], [0], [1], [0, 0, 1, 1], [], []>} : vector<8x32xf32>, vector<32x32xf32>, vector<8x32xf32> -> vector<8x32xf32>
    %214 = arith.addf %210, %213 : vector<8x32xf32>
    %215 = math.tanh %214 : vector<8x32xf32>
    %c3_122 = arith.constant 3 : index
    %216 = arith.index_cast %183 : i32 to index
    %c0_123 = arith.constant 0 : index
    %217 = vector.load %arg14[%c3_122, %216, %c0_123] : memref<4x64x32xf32, #tpu.memory_space<vmem>>, vector<1x8x32xf32>
    %218 = vector.shape_cast %217 : vector<1x8x32xf32> to vector<8x32xf32>
    %c3_124 = arith.constant 3 : index
    %c0_125 = arith.constant 0 : index
    %c0_126 = arith.constant 0 : index
    %219 = vector.load %arg3[%c3_124, %c0_125, %c0_126] : memref<4x32x32xf32, #tpu.memory_space<vmem>>, vector<1x32x32xf32>
    %220 = vector.shape_cast %219 : vector<1x32x32xf32> to vector<32x32xf32>
    %cst_127 = arith.constant dense<0.000000e+00> : vector<8x32xf32>
    %221 = tpu.matmul %179, %220, %cst_127 {dimension_numbers = #tpu.dot_dimension_numbers<[1], [0], [0], [1], [0, 0, 1, 1], [], []>} : vector<8x32xf32>, vector<32x32xf32>, vector<8x32xf32> -> vector<8x32xf32>
    %222 = arith.addf %218, %221 : vector<8x32xf32>
    %223 = arith.negf %222 : vector<8x32xf32>
    %224 = math.exp %223 : vector<8x32xf32>
    %cst_128 = arith.constant 1.000000e+00 : f32
    %225 = vector.broadcast %cst_128 : f32 to vector<8x32xf32>
    %226 = arith.addf %225, %224 : vector<8x32xf32>
    %227 = arith.divf %225, %226 : vector<8x32xf32>
    %228 = arith.mulf %207, %177 : vector<8x32xf32>
    %229 = arith.mulf %195, %215 : vector<8x32xf32>
    %230 = arith.addf %228, %229 : vector<8x32xf32>
    %231 = math.tanh %230 : vector<8x32xf32>
    %232 = arith.mulf %227, %231 : vector<8x32xf32>
    %233 = arith.index_cast %183 : i32 to index
    %c0_129 = arith.constant 0 : index
    %234 = vector.load %arg15[%233, %c0_129] : memref<64x32xf32, #tpu.memory_space<vmem>>, vector<8x32xf32>
    tpu.vector_store %arg15[%233, %c0_129], %232 {strides = array<i32>} : memref<64x32xf32, #tpu.memory_space<vmem>>, vector<8x32xf32>,
    %c4_i32 = arith.constant 4 : i32
    %c8_i32_130 = arith.constant 8 : i32
    %235 = arith.muli %c4_i32, %c8_i32_130 : i32
    %236 = tpu.assume_multiple %235, 8 : i32
    %c0_131 = arith.constant 0 : index
    %237 = arith.index_cast %236 : i32 to index
    %c0_132 = arith.constant 0 : index
    %238 = vector.load %arg14[%c0_131, %237, %c0_132] : memref<4x64x32xf32, #tpu.memory_space<vmem>>, vector<1x8x32xf32>
    %239 = vector.shape_cast %238 : vector<1x8x32xf32> to vector<8x32xf32>
    %c0_133 = arith.constant 0 : index
    %c0_134 = arith.constant 0 : index
    %c0_135 = arith.constant 0 : index
    %240 = vector.load %arg3[%c0_133, %c0_134, %c0_135] : memref<4x32x32xf32, #tpu.memory_space<vmem>>, vector<1x32x32xf32>
    %241 = vector.shape_cast %240 : vector<1x32x32xf32> to vector<32x32xf32>
    %cst_136 = arith.constant dense<0.000000e+00> : vector<8x32xf32>
    %242 = tpu.matmul %232, %241, %cst_136 {dimension_numbers = #tpu.dot_dimension_numbers<[1], [0], [0], [1], [0, 0, 1, 1], [], []>} : vector<8x32xf32>, vector<32x32xf32>, vector<8x32xf32> -> vector<8x32xf32>
    %243 = arith.addf %239, %242 : vector<8x32xf32>
    %244 = arith.negf %243 : vector<8x32xf32>
    %245 = math.exp %244 : vector<8x32xf32>
    %cst_137 = arith.constant 1.000000e+00 : f32
    %246 = vector.broadcast %cst_137 : f32 to vector<8x32xf32>
    %247 = arith.addf %246, %245 : vector<8x32xf32>
    %248 = arith.divf %246, %247 : vector<8x32xf32>
    %c1_138 = arith.constant 1 : index
    %249 = arith.index_cast %236 : i32 to index
    %c0_139 = arith.constant 0 : index
    %250 = vector.load %arg14[%c1_138, %249, %c0_139] : memref<4x64x32xf32, #tpu.memory_space<vmem>>, vector<1x8x32xf32>
    %251 = vector.shape_cast %250 : vector<1x8x32xf32> to vector<8x32xf32>
    %c1_140 = arith.constant 1 : index
    %c0_141 = arith.constant 0 : index
    %c0_142 = arith.constant 0 : index
    %252 = vector.load %arg3[%c1_140, %c0_141, %c0_142] : memref<4x32x32xf32, #tpu.memory_space<vmem>>, vector<1x32x32xf32>
    %253 = vector.shape_cast %252 : vector<1x32x32xf32> to vector<32x32xf32>
    %cst_143 = arith.constant dense<0.000000e+00> : vector<8x32xf32>
    %254 = tpu.matmul %232, %253, %cst_143 {dimension_numbers = #tpu.dot_dimension_numbers<[1], [0], [0], [1], [0, 0, 1, 1], [], []>} : vector<8x32xf32>, vector<32x32xf32>, vector<8x32xf32> -> vector<8x32xf32>
    %255 = arith.addf %251, %254 : vector<8x32xf32>
    %256 = arith.negf %255 : vector<8x32xf32>
    %257 = math.exp %256 : vector<8x32xf32>
    %cst_144 = arith.constant 1.000000e+00 : f32
    %258 = vector.broadcast %cst_144 : f32 to vector<8x32xf32>
    %259 = arith.addf %258, %257 : vector<8x32xf32>
    %260 = arith.divf %258, %259 : vector<8x32xf32>
    %c2_145 = arith.constant 2 : index
    %261 = arith.index_cast %236 : i32 to index
    %c0_146 = arith.constant 0 : index
    %262 = vector.load %arg14[%c2_145, %261, %c0_146] : memref<4x64x32xf32, #tpu.memory_space<vmem>>, vector<1x8x32xf32>
    %263 = vector.shape_cast %262 : vector<1x8x32xf32> to vector<8x32xf32>
    %c2_147 = arith.constant 2 : index
    %c0_148 = arith.constant 0 : index
    %c0_149 = arith.constant 0 : index
    %264 = vector.load %arg3[%c2_147, %c0_148, %c0_149] : memref<4x32x32xf32, #tpu.memory_space<vmem>>, vector<1x32x32xf32>
    %265 = vector.shape_cast %264 : vector<1x32x32xf32> to vector<32x32xf32>
    %cst_150 = arith.constant dense<0.000000e+00> : vector<8x32xf32>
    %266 = tpu.matmul %232, %265, %cst_150 {dimension_numbers = #tpu.dot_dimension_numbers<[1], [0], [0], [1], [0, 0, 1, 1], [], []>} : vector<8x32xf32>, vector<32x32xf32>, vector<8x32xf32> -> vector<8x32xf32>
    %267 = arith.addf %263, %266 : vector<8x32xf32>
    %268 = math.tanh %267 : vector<8x32xf32>
    %c3_151 = arith.constant 3 : index
    %269 = arith.index_cast %236 : i32 to index
    %c0_152 = arith.constant 0 : index
    %270 = vector.load %arg14[%c3_151, %269, %c0_152] : memref<4x64x32xf32, #tpu.memory_space<vmem>>, vector<1x8x32xf32>
    %271 = vector.shape_cast %270 : vector<1x8x32xf32> to vector<8x32xf32>
    %c3_153 = arith.constant 3 : index
    %c0_154 = arith.constant 0 : index
    %c0_155 = arith.constant 0 : index
    %272 = vector.load %arg3[%c3_153, %c0_154, %c0_155] : memref<4x32x32xf32, #tpu.memory_space<vmem>>, vector<1x32x32xf32>
    %273 = vector.shape_cast %272 : vector<1x32x32xf32> to vector<32x32xf32>
    %cst_156 = arith.constant dense<0.000000e+00> : vector<8x32xf32>
    %274 = tpu.matmul %232, %273, %cst_156 {dimension_numbers = #tpu.dot_dimension_numbers<[1], [0], [0], [1], [0, 0, 1, 1], [], []>} : vector<8x32xf32>, vector<32x32xf32>, vector<8x32xf32> -> vector<8x32xf32>
    %275 = arith.addf %271, %274 : vector<8x32xf32>
    %276 = arith.negf %275 : vector<8x32xf32>
    %277 = math.exp %276 : vector<8x32xf32>
    %cst_157 = arith.constant 1.000000e+00 : f32
    %278 = vector.broadcast %cst_157 : f32 to vector<8x32xf32>
    %279 = arith.addf %278, %277 : vector<8x32xf32>
    %280 = arith.divf %278, %279 : vector<8x32xf32>
    %281 = arith.mulf %260, %230 : vector<8x32xf32>
    %282 = arith.mulf %248, %268 : vector<8x32xf32>
    %283 = arith.addf %281, %282 : vector<8x32xf32>
    %284 = math.tanh %283 : vector<8x32xf32>
    %285 = arith.mulf %280, %284 : vector<8x32xf32>
    %286 = arith.index_cast %236 : i32 to index
    %c0_158 = arith.constant 0 : index
    %287 = vector.load %arg15[%286, %c0_158] : memref<64x32xf32, #tpu.memory_space<vmem>>, vector<8x32xf32>
    tpu.vector_store %arg15[%286, %c0_158], %285 {strides = array<i32>} : memref<64x32xf32, #tpu.memory_space<vmem>>, vector<8x32xf32>,
    %c5_i32 = arith.constant 5 : i32
    %c8_i32_159 = arith.constant 8 : i32
    %288 = arith.muli %c5_i32, %c8_i32_159 : i32
    %289 = tpu.assume_multiple %288, 8 : i32
    %c0_160 = arith.constant 0 : index
    %290 = arith.index_cast %289 : i32 to index
    %c0_161 = arith.constant 0 : index
    %291 = vector.load %arg14[%c0_160, %290, %c0_161] : memref<4x64x32xf32, #tpu.memory_space<vmem>>, vector<1x8x32xf32>
    %292 = vector.shape_cast %291 : vector<1x8x32xf32> to vector<8x32xf32>
    %c0_162 = arith.constant 0 : index
    %c0_163 = arith.constant 0 : index
    %c0_164 = arith.constant 0 : index
    %293 = vector.load %arg3[%c0_162, %c0_163, %c0_164] : memref<4x32x32xf32, #tpu.memory_space<vmem>>, vector<1x32x32xf32>
    %294 = vector.shape_cast %293 : vector<1x32x32xf32> to vector<32x32xf32>
    %cst_165 = arith.constant dense<0.000000e+00> : vector<8x32xf32>
    %295 = tpu.matmul %285, %294, %cst_165 {dimension_numbers = #tpu.dot_dimension_numbers<[1], [0], [0], [1], [0, 0, 1, 1], [], []>} : vector<8x32xf32>, vector<32x32xf32>, vector<8x32xf32> -> vector<8x32xf32>
    %296 = arith.addf %292, %295 : vector<8x32xf32>
    %297 = arith.negf %296 : vector<8x32xf32>
    %298 = math.exp %297 : vector<8x32xf32>
    %cst_166 = arith.constant 1.000000e+00 : f32
    %299 = vector.broadcast %cst_166 : f32 to vector<8x32xf32>
    %300 = arith.addf %299, %298 : vector<8x32xf32>
    %301 = arith.divf %299, %300 : vector<8x32xf32>
    %c1_167 = arith.constant 1 : index
    %302 = arith.index_cast %289 : i32 to index
    %c0_168 = arith.constant 0 : index
    %303 = vector.load %arg14[%c1_167, %302, %c0_168] : memref<4x64x32xf32, #tpu.memory_space<vmem>>, vector<1x8x32xf32>
    %304 = vector.shape_cast %303 : vector<1x8x32xf32> to vector<8x32xf32>
    %c1_169 = arith.constant 1 : index
    %c0_170 = arith.constant 0 : index
    %c0_171 = arith.constant 0 : index
    %305 = vector.load %arg3[%c1_169, %c0_170, %c0_171] : memref<4x32x32xf32, #tpu.memory_space<vmem>>, vector<1x32x32xf32>
    %306 = vector.shape_cast %305 : vector<1x32x32xf32> to vector<32x32xf32>
    %cst_172 = arith.constant dense<0.000000e+00> : vector<8x32xf32>
    %307 = tpu.matmul %285, %306, %cst_172 {dimension_numbers = #tpu.dot_dimension_numbers<[1], [0], [0], [1], [0, 0, 1, 1], [], []>} : vector<8x32xf32>, vector<32x32xf32>, vector<8x32xf32> -> vector<8x32xf32>
    %308 = arith.addf %304, %307 : vector<8x32xf32>
    %309 = arith.negf %308 : vector<8x32xf32>
    %310 = math.exp %309 : vector<8x32xf32>
    %cst_173 = arith.constant 1.000000e+00 : f32
    %311 = vector.broadcast %cst_173 : f32 to vector<8x32xf32>
    %312 = arith.addf %311, %310 : vector<8x32xf32>
    %313 = arith.divf %311, %312 : vector<8x32xf32>
    %c2_174 = arith.constant 2 : index
    %314 = arith.index_cast %289 : i32 to index
    %c0_175 = arith.constant 0 : index
    %315 = vector.load %arg14[%c2_174, %314, %c0_175] : memref<4x64x32xf32, #tpu.memory_space<vmem>>, vector<1x8x32xf32>
    %316 = vector.shape_cast %315 : vector<1x8x32xf32> to vector<8x32xf32>
    %c2_176 = arith.constant 2 : index
    %c0_177 = arith.constant 0 : index
    %c0_178 = arith.constant 0 : index
    %317 = vector.load %arg3[%c2_176, %c0_177, %c0_178] : memref<4x32x32xf32, #tpu.memory_space<vmem>>, vector<1x32x32xf32>
    %318 = vector.shape_cast %317 : vector<1x32x32xf32> to vector<32x32xf32>
    %cst_179 = arith.constant dense<0.000000e+00> : vector<8x32xf32>
    %319 = tpu.matmul %285, %318, %cst_179 {dimension_numbers = #tpu.dot_dimension_numbers<[1], [0], [0], [1], [0, 0, 1, 1], [], []>} : vector<8x32xf32>, vector<32x32xf32>, vector<8x32xf32> -> vector<8x32xf32>
    %320 = arith.addf %316, %319 : vector<8x32xf32>
    %321 = math.tanh %320 : vector<8x32xf32>
    %c3_180 = arith.constant 3 : index
    %322 = arith.index_cast %289 : i32 to index
    %c0_181 = arith.constant 0 : index
    %323 = vector.load %arg14[%c3_180, %322, %c0_181] : memref<4x64x32xf32, #tpu.memory_space<vmem>>, vector<1x8x32xf32>
    %324 = vector.shape_cast %323 : vector<1x8x32xf32> to vector<8x32xf32>
    %c3_182 = arith.constant 3 : index
    %c0_183 = arith.constant 0 : index
    %c0_184 = arith.constant 0 : index
    %325 = vector.load %arg3[%c3_182, %c0_183, %c0_184] : memref<4x32x32xf32, #tpu.memory_space<vmem>>, vector<1x32x32xf32>
    %326 = vector.shape_cast %325 : vector<1x32x32xf32> to vector<32x32xf32>
    %cst_185 = arith.constant dense<0.000000e+00> : vector<8x32xf32>
    %327 = tpu.matmul %285, %326, %cst_185 {dimension_numbers = #tpu.dot_dimension_numbers<[1], [0], [0], [1], [0, 0, 1, 1], [], []>} : vector<8x32xf32>, vector<32x32xf32>, vector<8x32xf32> -> vector<8x32xf32>
    %328 = arith.addf %324, %327 : vector<8x32xf32>
    %329 = arith.negf %328 : vector<8x32xf32>
    %330 = math.exp %329 : vector<8x32xf32>
    %cst_186 = arith.constant 1.000000e+00 : f32
    %331 = vector.broadcast %cst_186 : f32 to vector<8x32xf32>
    %332 = arith.addf %331, %330 : vector<8x32xf32>
    %333 = arith.divf %331, %332 : vector<8x32xf32>
    %334 = arith.mulf %313, %283 : vector<8x32xf32>
    %335 = arith.mulf %301, %321 : vector<8x32xf32>
    %336 = arith.addf %334, %335 : vector<8x32xf32>
    %337 = math.tanh %336 : vector<8x32xf32>
    %338 = arith.mulf %333, %337 : vector<8x32xf32>
    %339 = arith.index_cast %289 : i32 to index
    %c0_187 = arith.constant 0 : index
    %340 = vector.load %arg15[%339, %c0_187] : memref<64x32xf32, #tpu.memory_space<vmem>>, vector<8x32xf32>
    tpu.vector_store %arg15[%339, %c0_187], %338 {strides = array<i32>} : memref<64x32xf32, #tpu.memory_space<vmem>>, vector<8x32xf32>,
    %c6_i32 = arith.constant 6 : i32
    %c8_i32_188 = arith.constant 8 : i32
    %341 = arith.muli %c6_i32, %c8_i32_188 : i32
    %342 = tpu.assume_multiple %341, 8 : i32
    %c0_189 = arith.constant 0 : index
    %343 = arith.index_cast %342 : i32 to index
    %c0_190 = arith.constant 0 : index
    %344 = vector.load %arg14[%c0_189, %343, %c0_190] : memref<4x64x32xf32, #tpu.memory_space<vmem>>, vector<1x8x32xf32>
    %345 = vector.shape_cast %344 : vector<1x8x32xf32> to vector<8x32xf32>
    %c0_191 = arith.constant 0 : index
    %c0_192 = arith.constant 0 : index
    %c0_193 = arith.constant 0 : index
    %346 = vector.load %arg3[%c0_191, %c0_192, %c0_193] : memref<4x32x32xf32, #tpu.memory_space<vmem>>, vector<1x32x32xf32>
    %347 = vector.shape_cast %346 : vector<1x32x32xf32> to vector<32x32xf32>
    %cst_194 = arith.constant dense<0.000000e+00> : vector<8x32xf32>
    %348 = tpu.matmul %338, %347, %cst_194 {dimension_numbers = #tpu.dot_dimension_numbers<[1], [0], [0], [1], [0, 0, 1, 1], [], []>} : vector<8x32xf32>, vector<32x32xf32>, vector<8x32xf32> -> vector<8x32xf32>
    %349 = arith.addf %345, %348 : vector<8x32xf32>
    %350 = arith.negf %349 : vector<8x32xf32>
    %351 = math.exp %350 : vector<8x32xf32>
    %cst_195 = arith.constant 1.000000e+00 : f32
    %352 = vector.broadcast %cst_195 : f32 to vector<8x32xf32>
    %353 = arith.addf %352, %351 : vector<8x32xf32>
    %354 = arith.divf %352, %353 : vector<8x32xf32>
    %c1_196 = arith.constant 1 : index
    %355 = arith.index_cast %342 : i32 to index
    %c0_197 = arith.constant 0 : index
    %356 = vector.load %arg14[%c1_196, %355, %c0_197] : memref<4x64x32xf32, #tpu.memory_space<vmem>>, vector<1x8x32xf32>
    %357 = vector.shape_cast %356 : vector<1x8x32xf32> to vector<8x32xf32>
    %c1_198 = arith.constant 1 : index
    %c0_199 = arith.constant 0 : index
    %c0_200 = arith.constant 0 : index
    %358 = vector.load %arg3[%c1_198, %c0_199, %c0_200] : memref<4x32x32xf32, #tpu.memory_space<vmem>>, vector<1x32x32xf32>
    %359 = vector.shape_cast %358 : vector<1x32x32xf32> to vector<32x32xf32>
    %cst_201 = arith.constant dense<0.000000e+00> : vector<8x32xf32>
    %360 = tpu.matmul %338, %359, %cst_201 {dimension_numbers = #tpu.dot_dimension_numbers<[1], [0], [0], [1], [0, 0, 1, 1], [], []>} : vector<8x32xf32>, vector<32x32xf32>, vector<8x32xf32> -> vector<8x32xf32>
    %361 = arith.addf %357, %360 : vector<8x32xf32>
    %362 = arith.negf %361 : vector<8x32xf32>
    %363 = math.exp %362 : vector<8x32xf32>
    %cst_202 = arith.constant 1.000000e+00 : f32
    %364 = vector.broadcast %cst_202 : f32 to vector<8x32xf32>
    %365 = arith.addf %364, %363 : vector<8x32xf32>
    %366 = arith.divf %364, %365 : vector<8x32xf32>
    %c2_203 = arith.constant 2 : index
    %367 = arith.index_cast %342 : i32 to index
    %c0_204 = arith.constant 0 : index
    %368 = vector.load %arg14[%c2_203, %367, %c0_204] : memref<4x64x32xf32, #tpu.memory_space<vmem>>, vector<1x8x32xf32>
    %369 = vector.shape_cast %368 : vector<1x8x32xf32> to vector<8x32xf32>
    %c2_205 = arith.constant 2 : index
    %c0_206 = arith.constant 0 : index
    %c0_207 = arith.constant 0 : index
    %370 = vector.load %arg3[%c2_205, %c0_206, %c0_207] : memref<4x32x32xf32, #tpu.memory_space<vmem>>, vector<1x32x32xf32>
    %371 = vector.shape_cast %370 : vector<1x32x32xf32> to vector<32x32xf32>
    %cst_208 = arith.constant dense<0.000000e+00> : vector<8x32xf32>
    %372 = tpu.matmul %338, %371, %cst_208 {dimension_numbers = #tpu.dot_dimension_numbers<[1], [0], [0], [1], [0, 0, 1, 1], [], []>} : vector<8x32xf32>, vector<32x32xf32>, vector<8x32xf32> -> vector<8x32xf32>
    %373 = arith.addf %369, %372 : vector<8x32xf32>
    %374 = math.tanh %373 : vector<8x32xf32>
    %c3_209 = arith.constant 3 : index
    %375 = arith.index_cast %342 : i32 to index
    %c0_210 = arith.constant 0 : index
    %376 = vector.load %arg14[%c3_209, %375, %c0_210] : memref<4x64x32xf32, #tpu.memory_space<vmem>>, vector<1x8x32xf32>
    %377 = vector.shape_cast %376 : vector<1x8x32xf32> to vector<8x32xf32>
    %c3_211 = arith.constant 3 : index
    %c0_212 = arith.constant 0 : index
    %c0_213 = arith.constant 0 : index
    %378 = vector.load %arg3[%c3_211, %c0_212, %c0_213] : memref<4x32x32xf32, #tpu.memory_space<vmem>>, vector<1x32x32xf32>
    %379 = vector.shape_cast %378 : vector<1x32x32xf32> to vector<32x32xf32>
    %cst_214 = arith.constant dense<0.000000e+00> : vector<8x32xf32>
    %380 = tpu.matmul %338, %379, %cst_214 {dimension_numbers = #tpu.dot_dimension_numbers<[1], [0], [0], [1], [0, 0, 1, 1], [], []>} : vector<8x32xf32>, vector<32x32xf32>, vector<8x32xf32> -> vector<8x32xf32>
    %381 = arith.addf %377, %380 : vector<8x32xf32>
    %382 = arith.negf %381 : vector<8x32xf32>
    %383 = math.exp %382 : vector<8x32xf32>
    %cst_215 = arith.constant 1.000000e+00 : f32
    %384 = vector.broadcast %cst_215 : f32 to vector<8x32xf32>
    %385 = arith.addf %384, %383 : vector<8x32xf32>
    %386 = arith.divf %384, %385 : vector<8x32xf32>
    %387 = arith.mulf %366, %336 : vector<8x32xf32>
    %388 = arith.mulf %354, %374 : vector<8x32xf32>
    %389 = arith.addf %387, %388 : vector<8x32xf32>
    %390 = math.tanh %389 : vector<8x32xf32>
    %391 = arith.mulf %386, %390 : vector<8x32xf32>
    %392 = arith.index_cast %342 : i32 to index
    %c0_216 = arith.constant 0 : index
    %393 = vector.load %arg15[%392, %c0_216] : memref<64x32xf32, #tpu.memory_space<vmem>>, vector<8x32xf32>
    tpu.vector_store %arg15[%392, %c0_216], %391 {strides = array<i32>} : memref<64x32xf32, #tpu.memory_space<vmem>>, vector<8x32xf32>,
    %c7_i32 = arith.constant 7 : i32
    %c8_i32_217 = arith.constant 8 : i32
    %394 = arith.muli %c7_i32, %c8_i32_217 : i32
    %395 = tpu.assume_multiple %394, 8 : i32
    %c0_218 = arith.constant 0 : index
    %396 = arith.index_cast %395 : i32 to index
    %c0_219 = arith.constant 0 : index
    %397 = vector.load %arg14[%c0_218, %396, %c0_219] : memref<4x64x32xf32, #tpu.memory_space<vmem>>, vector<1x8x32xf32>
    %398 = vector.shape_cast %397 : vector<1x8x32xf32> to vector<8x32xf32>
    %c0_220 = arith.constant 0 : index
    %c0_221 = arith.constant 0 : index
    %c0_222 = arith.constant 0 : index
    %399 = vector.load %arg3[%c0_220, %c0_221, %c0_222] : memref<4x32x32xf32, #tpu.memory_space<vmem>>, vector<1x32x32xf32>
    %400 = vector.shape_cast %399 : vector<1x32x32xf32> to vector<32x32xf32>
    %cst_223 = arith.constant dense<0.000000e+00> : vector<8x32xf32>
    %401 = tpu.matmul %391, %400, %cst_223 {dimension_numbers = #tpu.dot_dimension_numbers<[1], [0], [0], [1], [0, 0, 1, 1], [], []>} : vector<8x32xf32>, vector<32x32xf32>, vector<8x32xf32> -> vector<8x32xf32>
    %402 = arith.addf %398, %401 : vector<8x32xf32>
    %403 = arith.negf %402 : vector<8x32xf32>
    %404 = math.exp %403 : vector<8x32xf32>
    %cst_224 = arith.constant 1.000000e+00 : f32
    %405 = vector.broadcast %cst_224 : f32 to vector<8x32xf32>
    %406 = arith.addf %405, %404 : vector<8x32xf32>
    %407 = arith.divf %405, %406 : vector<8x32xf32>
    %c1_225 = arith.constant 1 : index
    %408 = arith.index_cast %395 : i32 to index
    %c0_226 = arith.constant 0 : index
    %409 = vector.load %arg14[%c1_225, %408, %c0_226] : memref<4x64x32xf32, #tpu.memory_space<vmem>>, vector<1x8x32xf32>
    %410 = vector.shape_cast %409 : vector<1x8x32xf32> to vector<8x32xf32>
    %c1_227 = arith.constant 1 : index
    %c0_228 = arith.constant 0 : index
    %c0_229 = arith.constant 0 : index
    %411 = vector.load %arg3[%c1_227, %c0_228, %c0_229] : memref<4x32x32xf32, #tpu.memory_space<vmem>>, vector<1x32x32xf32>
    %412 = vector.shape_cast %411 : vector<1x32x32xf32> to vector<32x32xf32>
    %cst_230 = arith.constant dense<0.000000e+00> : vector<8x32xf32>
    %413 = tpu.matmul %391, %412, %cst_230 {dimension_numbers = #tpu.dot_dimension_numbers<[1], [0], [0], [1], [0, 0, 1, 1], [], []>} : vector<8x32xf32>, vector<32x32xf32>, vector<8x32xf32> -> vector<8x32xf32>
    %414 = arith.addf %410, %413 : vector<8x32xf32>
    %415 = arith.negf %414 : vector<8x32xf32>
    %416 = math.exp %415 : vector<8x32xf32>
    %cst_231 = arith.constant 1.000000e+00 : f32
    %417 = vector.broadcast %cst_231 : f32 to vector<8x32xf32>
    %418 = arith.addf %417, %416 : vector<8x32xf32>
    %419 = arith.divf %417, %418 : vector<8x32xf32>
    %c2_232 = arith.constant 2 : index
    %420 = arith.index_cast %395 : i32 to index
    %c0_233 = arith.constant 0 : index
    %421 = vector.load %arg14[%c2_232, %420, %c0_233] : memref<4x64x32xf32, #tpu.memory_space<vmem>>, vector<1x8x32xf32>
    %422 = vector.shape_cast %421 : vector<1x8x32xf32> to vector<8x32xf32>
    %c2_234 = arith.constant 2 : index
    %c0_235 = arith.constant 0 : index
    %c0_236 = arith.constant 0 : index
    %423 = vector.load %arg3[%c2_234, %c0_235, %c0_236] : memref<4x32x32xf32, #tpu.memory_space<vmem>>, vector<1x32x32xf32>
    %424 = vector.shape_cast %423 : vector<1x32x32xf32> to vector<32x32xf32>
    %cst_237 = arith.constant dense<0.000000e+00> : vector<8x32xf32>
    %425 = tpu.matmul %391, %424, %cst_237 {dimension_numbers = #tpu.dot_dimension_numbers<[1], [0], [0], [1], [0, 0, 1, 1], [], []>} : vector<8x32xf32>, vector<32x32xf32>, vector<8x32xf32> -> vector<8x32xf32>
    %426 = arith.addf %422, %425 : vector<8x32xf32>
    %427 = math.tanh %426 : vector<8x32xf32>
    %c3_238 = arith.constant 3 : index
    %428 = arith.index_cast %395 : i32 to index
    %c0_239 = arith.constant 0 : index
    %429 = vector.load %arg14[%c3_238, %428, %c0_239] : memref<4x64x32xf32, #tpu.memory_space<vmem>>, vector<1x8x32xf32>
    %430 = vector.shape_cast %429 : vector<1x8x32xf32> to vector<8x32xf32>
    %c3_240 = arith.constant 3 : index
    %c0_241 = arith.constant 0 : index
    %c0_242 = arith.constant 0 : index
    %431 = vector.load %arg3[%c3_240, %c0_241, %c0_242] : memref<4x32x32xf32, #tpu.memory_space<vmem>>, vector<1x32x32xf32>
    %432 = vector.shape_cast %431 : vector<1x32x32xf32> to vector<32x32xf32>
    %cst_243 = arith.constant dense<0.000000e+00> : vector<8x32xf32>
    %433 = tpu.matmul %391, %432, %cst_243 {dimension_numbers = #tpu.dot_dimension_numbers<[1], [0], [0], [1], [0, 0, 1, 1], [], []>} : vector<8x32xf32>, vector<32x32xf32>, vector<8x32xf32> -> vector<8x32xf32>
    %434 = arith.addf %430, %433 : vector<8x32xf32>
    %435 = arith.negf %434 : vector<8x32xf32>
    %436 = math.exp %435 : vector<8x32xf32>
    %cst_244 = arith.constant 1.000000e+00 : f32
    %437 = vector.broadcast %cst_244 : f32 to vector<8x32xf32>
    %438 = arith.addf %437, %436 : vector<8x32xf32>
    %439 = arith.divf %437, %438 : vector<8x32xf32>
    %440 = arith.mulf %419, %389 : vector<8x32xf32>
    %441 = arith.mulf %407, %427 : vector<8x32xf32>
    %442 = arith.addf %440, %441 : vector<8x32xf32>
    %443 = math.tanh %442 : vector<8x32xf32>
    %444 = arith.mulf %439, %443 : vector<8x32xf32>
    %445 = arith.index_cast %395 : i32 to index
    %c0_245 = arith.constant 0 : index
    %446 = vector.load %arg15[%445, %c0_245] : memref<64x32xf32, #tpu.memory_space<vmem>>, vector<8x32xf32>
    tpu.vector_store %arg15[%445, %c0_245], %444 {strides = array<i32>} : memref<64x32xf32, #tpu.memory_space<vmem>>, vector<8x32xf32>,
    %c8_i32_246 = arith.constant 8 : i32
    %c0_247 = arith.constant 0 : index
    %c0_248 = arith.constant 0 : index
    %447 = vector.load %arg15[%c0_247, %c0_248] : memref<64x32xf32, #tpu.memory_space<vmem>>, vector<64x32xf32>
    %c0_249 = arith.constant 0 : index
    %c0_250 = arith.constant 0 : index
    %448 = vector.load %arg5[%c0_249, %c0_250] : memref<32x128xf32, #tpu.memory_space<vmem>>, vector<32x128xf32>
    %cst_251 = arith.constant dense<0.000000e+00> : vector<64x128xf32>
    %449 = tpu.matmul %447, %448, %cst_251 {dimension_numbers = #tpu.dot_dimension_numbers<[1], [0], [0], [1], [0, 0, 1, 1], [], []>} : vector<64x32xf32>, vector<32x128xf32>, vector<64x128xf32> -> vector<64x128xf32>
    %c0_252 = arith.constant 0 : index
    %c0_253 = arith.constant 0 : index
    %450 = vector.load %arg7[%c0_252, %c0_253] : memref<1x128xf32, #tpu.memory_space<vmem>>, vector<1x128xf32>
    %451 = vector.broadcast %450 : vector<1x128xf32> to vector<64x128xf32>
    %452 = arith.addf %449, %451 : vector<64x128xf32>
    %453 = vector.extract_strided_slice %452 {offsets = [0, 0], sizes = [64, 32], strides = [1, 1]} : vector<64x128xf32> to vector<64x32xf32>
    %c0_254 = arith.constant 0 : index
    %c0_255 = arith.constant 0 : index
    %c0_256 = arith.constant 0 : index
    %454 = vector.load %arg14[%c0_254, %c0_255, %c0_256] : memref<4x64x32xf32, #tpu.memory_space<vmem>>, vector<1x64x32xf32>
    %455 = vector.shape_cast %454 : vector<1x64x32xf32> to vector<64x32xf32>
    %456 = vector.shape_cast %453 : vector<64x32xf32> to vector<1x64x32xf32>
    tpu.vector_store %arg14[%c0_254, %c0_255, %c0_256], %456 {strides = array<i32>} : memref<4x64x32xf32, #tpu.memory_space<vmem>>, vector<1x64x32xf32>,
    %457 = vector.extract_strided_slice %452 {offsets = [0, 32], sizes = [64, 32], strides = [1, 1]} : vector<64x128xf32> to vector<64x32xf32>
    %c1_257 = arith.constant 1 : index
    %c0_258 = arith.constant 0 : index
    %c0_259 = arith.constant 0 : index
    %458 = vector.load %arg14[%c1_257, %c0_258, %c0_259] : memref<4x64x32xf32, #tpu.memory_space<vmem>>, vector<1x64x32xf32>
    %459 = vector.shape_cast %458 : vector<1x64x32xf32> to vector<64x32xf32>
    %460 = vector.shape_cast %457 : vector<64x32xf32> to vector<1x64x32xf32>
    tpu.vector_store %arg14[%c1_257, %c0_258, %c0_259], %460 {strides = array<i32>} : memref<4x64x32xf32, #tpu.memory_space<vmem>>, vector<1x64x32xf32>,
    %461 = vector.extract_strided_slice %452 {offsets = [0, 64], sizes = [64, 32], strides = [1, 1]} : vector<64x128xf32> to vector<64x32xf32>
    %c2_260 = arith.constant 2 : index
    %c0_261 = arith.constant 0 : index
    %c0_262 = arith.constant 0 : index
    %462 = vector.load %arg14[%c2_260, %c0_261, %c0_262] : memref<4x64x32xf32, #tpu.memory_space<vmem>>, vector<1x64x32xf32>
    %463 = vector.shape_cast %462 : vector<1x64x32xf32> to vector<64x32xf32>
    %464 = vector.shape_cast %461 : vector<64x32xf32> to vector<1x64x32xf32>
    tpu.vector_store %arg14[%c2_260, %c0_261, %c0_262], %464 {strides = array<i32>} : memref<4x64x32xf32, #tpu.memory_space<vmem>>, vector<1x64x32xf32>,
    %465 = vector.extract_strided_slice %452 {offsets = [0, 96], sizes = [64, 32], strides = [1, 1]} : vector<64x128xf32> to vector<64x32xf32>
    %c3_263 = arith.constant 3 : index
    %c0_264 = arith.constant 0 : index
    %c0_265 = arith.constant 0 : index
    %466 = vector.load %arg14[%c3_263, %c0_264, %c0_265] : memref<4x64x32xf32, #tpu.memory_space<vmem>>, vector<1x64x32xf32>
    %467 = vector.shape_cast %466 : vector<1x64x32xf32> to vector<64x32xf32>
    %468 = vector.shape_cast %465 : vector<64x32xf32> to vector<1x64x32xf32>
    tpu.vector_store %arg14[%c3_263, %c0_264, %c0_265], %468 {strides = array<i32>} : memref<4x64x32xf32, #tpu.memory_space<vmem>>, vector<1x64x32xf32>,
    %cst_266 = arith.constant 0.000000e+00 : f32
    %469 = vector.broadcast %cst_266 : f32 to vector<8x32xf32>
    %c0_i32_267 = arith.constant 0 : i32
    %c8_i32_268 = arith.constant 8 : i32
    %470 = arith.muli %c0_i32_267, %c8_i32_268 : i32
    %471 = tpu.assume_multiple %470, 8 : i32
    %c0_269 = arith.constant 0 : index
    %472 = arith.index_cast %471 : i32 to index
    %c0_270 = arith.constant 0 : index
    %473 = vector.load %arg14[%c0_269, %472, %c0_270] : memref<4x64x32xf32, #tpu.memory_space<vmem>>, vector<1x8x32xf32>
    %474 = vector.shape_cast %473 : vector<1x8x32xf32> to vector<8x32xf32>
    %c0_271 = arith.constant 0 : index
    %c0_272 = arith.constant 0 : index
    %c0_273 = arith.constant 0 : index
    %475 = vector.load %arg6[%c0_271, %c0_272, %c0_273] : memref<4x32x32xf32, #tpu.memory_space<vmem>>, vector<1x32x32xf32>
    %476 = vector.shape_cast %475 : vector<1x32x32xf32> to vector<32x32xf32>
    %cst_274 = arith.constant dense<0.000000e+00> : vector<8x32xf32>
    %477 = tpu.matmul %469, %476, %cst_274 {dimension_numbers = #tpu.dot_dimension_numbers<[1], [0], [0], [1], [0, 0, 1, 1], [], []>} : vector<8x32xf32>, vector<32x32xf32>, vector<8x32xf32> -> vector<8x32xf32>
    %478 = arith.addf %474, %477 : vector<8x32xf32>
    %479 = arith.negf %478 : vector<8x32xf32>
    %480 = math.exp %479 : vector<8x32xf32>
    %cst_275 = arith.constant 1.000000e+00 : f32
    %481 = vector.broadcast %cst_275 : f32 to vector<8x32xf32>
    %482 = arith.addf %481, %480 : vector<8x32xf32>
    %483 = arith.divf %481, %482 : vector<8x32xf32>
    %c1_276 = arith.constant 1 : index
    %484 = arith.index_cast %471 : i32 to index
    %c0_277 = arith.constant 0 : index
    %485 = vector.load %arg14[%c1_276, %484, %c0_277] : memref<4x64x32xf32, #tpu.memory_space<vmem>>, vector<1x8x32xf32>
    %486 = vector.shape_cast %485 : vector<1x8x32xf32> to vector<8x32xf32>
    %c1_278 = arith.constant 1 : index
    %c0_279 = arith.constant 0 : index
    %c0_280 = arith.constant 0 : index
    %487 = vector.load %arg6[%c1_278, %c0_279, %c0_280] : memref<4x32x32xf32, #tpu.memory_space<vmem>>, vector<1x32x32xf32>
    %488 = vector.shape_cast %487 : vector<1x32x32xf32> to vector<32x32xf32>
    %cst_281 = arith.constant dense<0.000000e+00> : vector<8x32xf32>
    %489 = tpu.matmul %469, %488, %cst_281 {dimension_numbers = #tpu.dot_dimension_numbers<[1], [0], [0], [1], [0, 0, 1, 1], [], []>} : vector<8x32xf32>, vector<32x32xf32>, vector<8x32xf32> -> vector<8x32xf32>
    %490 = arith.addf %486, %489 : vector<8x32xf32>
    %491 = arith.negf %490 : vector<8x32xf32>
    %492 = math.exp %491 : vector<8x32xf32>
    %cst_282 = arith.constant 1.000000e+00 : f32
    %493 = vector.broadcast %cst_282 : f32 to vector<8x32xf32>
    %494 = arith.addf %493, %492 : vector<8x32xf32>
    %495 = arith.divf %493, %494 : vector<8x32xf32>
    %c2_283 = arith.constant 2 : index
    %496 = arith.index_cast %471 : i32 to index
    %c0_284 = arith.constant 0 : index
    %497 = vector.load %arg14[%c2_283, %496, %c0_284] : memref<4x64x32xf32, #tpu.memory_space<vmem>>, vector<1x8x32xf32>
    %498 = vector.shape_cast %497 : vector<1x8x32xf32> to vector<8x32xf32>
    %c2_285 = arith.constant 2 : index
    %c0_286 = arith.constant 0 : index
    %c0_287 = arith.constant 0 : index
    %499 = vector.load %arg6[%c2_285, %c0_286, %c0_287] : memref<4x32x32xf32, #tpu.memory_space<vmem>>, vector<1x32x32xf32>
    %500 = vector.shape_cast %499 : vector<1x32x32xf32> to vector<32x32xf32>
    %cst_288 = arith.constant dense<0.000000e+00> : vector<8x32xf32>
    %501 = tpu.matmul %469, %500, %cst_288 {dimension_numbers = #tpu.dot_dimension_numbers<[1], [0], [0], [1], [0, 0, 1, 1], [], []>} : vector<8x32xf32>, vector<32x32xf32>, vector<8x32xf32> -> vector<8x32xf32>
    %502 = arith.addf %498, %501 : vector<8x32xf32>
    %503 = math.tanh %502 : vector<8x32xf32>
    %c3_289 = arith.constant 3 : index
    %504 = arith.index_cast %471 : i32 to index
    %c0_290 = arith.constant 0 : index
    %505 = vector.load %arg14[%c3_289, %504, %c0_290] : memref<4x64x32xf32, #tpu.memory_space<vmem>>, vector<1x8x32xf32>
    %506 = vector.shape_cast %505 : vector<1x8x32xf32> to vector<8x32xf32>
    %c3_291 = arith.constant 3 : index
    %c0_292 = arith.constant 0 : index
    %c0_293 = arith.constant 0 : index
    %507 = vector.load %arg6[%c3_291, %c0_292, %c0_293] : memref<4x32x32xf32, #tpu.memory_space<vmem>>, vector<1x32x32xf32>
    %508 = vector.shape_cast %507 : vector<1x32x32xf32> to vector<32x32xf32>
    %cst_294 = arith.constant dense<0.000000e+00> : vector<8x32xf32>
    %509 = tpu.matmul %469, %508, %cst_294 {dimension_numbers = #tpu.dot_dimension_numbers<[1], [0], [0], [1], [0, 0, 1, 1], [], []>} : vector<8x32xf32>, vector<32x32xf32>, vector<8x32xf32> -> vector<8x32xf32>
    %510 = arith.addf %506, %509 : vector<8x32xf32>
    %511 = arith.negf %510 : vector<8x32xf32>
    %512 = math.exp %511 : vector<8x32xf32>
    %cst_295 = arith.constant 1.000000e+00 : f32
    %513 = vector.broadcast %cst_295 : f32 to vector<8x32xf32>
    %514 = arith.addf %513, %512 : vector<8x32xf32>
    %515 = arith.divf %513, %514 : vector<8x32xf32>
    %516 = arith.mulf %495, %469 : vector<8x32xf32>
    %517 = arith.mulf %483, %503 : vector<8x32xf32>
    %518 = arith.addf %516, %517 : vector<8x32xf32>
    %519 = math.tanh %518 : vector<8x32xf32>
    %520 = arith.mulf %515, %519 : vector<8x32xf32>
    %521 = arith.index_cast %471 : i32 to index
    %c0_296 = arith.constant 0 : index
    %522 = vector.load %arg16[%521, %c0_296] : memref<64x32xf32, #tpu.memory_space<vmem>>, vector<8x32xf32>
    tpu.vector_store %arg16[%521, %c0_296], %520 {strides = array<i32>} : memref<64x32xf32, #tpu.memory_space<vmem>>, vector<8x32xf32>,
    %c1_i32_297 = arith.constant 1 : i32
    %c8_i32_298 = arith.constant 8 : i32
    %523 = arith.muli %c1_i32_297, %c8_i32_298 : i32
    %524 = tpu.assume_multiple %523, 8 : i32
    %c0_299 = arith.constant 0 : index
    %525 = arith.index_cast %524 : i32 to index
    %c0_300 = arith.constant 0 : index
    %526 = vector.load %arg14[%c0_299, %525, %c0_300] : memref<4x64x32xf32, #tpu.memory_space<vmem>>, vector<1x8x32xf32>
    %527 = vector.shape_cast %526 : vector<1x8x32xf32> to vector<8x32xf32>
    %c0_301 = arith.constant 0 : index
    %c0_302 = arith.constant 0 : index
    %c0_303 = arith.constant 0 : index
    %528 = vector.load %arg6[%c0_301, %c0_302, %c0_303] : memref<4x32x32xf32, #tpu.memory_space<vmem>>, vector<1x32x32xf32>
    %529 = vector.shape_cast %528 : vector<1x32x32xf32> to vector<32x32xf32>
    %cst_304 = arith.constant dense<0.000000e+00> : vector<8x32xf32>
    %530 = tpu.matmul %520, %529, %cst_304 {dimension_numbers = #tpu.dot_dimension_numbers<[1], [0], [0], [1], [0, 0, 1, 1], [], []>} : vector<8x32xf32>, vector<32x32xf32>, vector<8x32xf32> -> vector<8x32xf32>
    %531 = arith.addf %527, %530 : vector<8x32xf32>
    %532 = arith.negf %531 : vector<8x32xf32>
    %533 = math.exp %532 : vector<8x32xf32>
    %cst_305 = arith.constant 1.000000e+00 : f32
    %534 = vector.broadcast %cst_305 : f32 to vector<8x32xf32>
    %535 = arith.addf %534, %533 : vector<8x32xf32>
    %536 = arith.divf %534, %535 : vector<8x32xf32>
    %c1_306 = arith.constant 1 : index
    %537 = arith.index_cast %524 : i32 to index
    %c0_307 = arith.constant 0 : index
    %538 = vector.load %arg14[%c1_306, %537, %c0_307] : memref<4x64x32xf32, #tpu.memory_space<vmem>>, vector<1x8x32xf32>
    %539 = vector.shape_cast %538 : vector<1x8x32xf32> to vector<8x32xf32>
    %c1_308 = arith.constant 1 : index
    %c0_309 = arith.constant 0 : index
    %c0_310 = arith.constant 0 : index
    %540 = vector.load %arg6[%c1_308, %c0_309, %c0_310] : memref<4x32x32xf32, #tpu.memory_space<vmem>>, vector<1x32x32xf32>
    %541 = vector.shape_cast %540 : vector<1x32x32xf32> to vector<32x32xf32>
    %cst_311 = arith.constant dense<0.000000e+00> : vector<8x32xf32>
    %542 = tpu.matmul %520, %541, %cst_311 {dimension_numbers = #tpu.dot_dimension_numbers<[1], [0], [0], [1], [0, 0, 1, 1], [], []>} : vector<8x32xf32>, vector<32x32xf32>, vector<8x32xf32> -> vector<8x32xf32>
    %543 = arith.addf %539, %542 : vector<8x32xf32>
    %544 = arith.negf %543 : vector<8x32xf32>
    %545 = math.exp %544 : vector<8x32xf32>
    %cst_312 = arith.constant 1.000000e+00 : f32
    %546 = vector.broadcast %cst_312 : f32 to vector<8x32xf32>
    %547 = arith.addf %546, %545 : vector<8x32xf32>
    %548 = arith.divf %546, %547 : vector<8x32xf32>
    %c2_313 = arith.constant 2 : index
    %549 = arith.index_cast %524 : i32 to index
    %c0_314 = arith.constant 0 : index
    %550 = vector.load %arg14[%c2_313, %549, %c0_314] : memref<4x64x32xf32, #tpu.memory_space<vmem>>, vector<1x8x32xf32>
    %551 = vector.shape_cast %550 : vector<1x8x32xf32> to vector<8x32xf32>
    %c2_315 = arith.constant 2 : index
    %c0_316 = arith.constant 0 : index
    %c0_317 = arith.constant 0 : index
    %552 = vector.load %arg6[%c2_315, %c0_316, %c0_317] : memref<4x32x32xf32, #tpu.memory_space<vmem>>, vector<1x32x32xf32>
    %553 = vector.shape_cast %552 : vector<1x32x32xf32> to vector<32x32xf32>
    %cst_318 = arith.constant dense<0.000000e+00> : vector<8x32xf32>
    %554 = tpu.matmul %520, %553, %cst_318 {dimension_numbers = #tpu.dot_dimension_numbers<[1], [0], [0], [1], [0, 0, 1, 1], [], []>} : vector<8x32xf32>, vector<32x32xf32>, vector<8x32xf32> -> vector<8x32xf32>
    %555 = arith.addf %551, %554 : vector<8x32xf32>
    %556 = math.tanh %555 : vector<8x32xf32>
    %c3_319 = arith.constant 3 : index
    %557 = arith.index_cast %524 : i32 to index
    %c0_320 = arith.constant 0 : index
    %558 = vector.load %arg14[%c3_319, %557, %c0_320] : memref<4x64x32xf32, #tpu.memory_space<vmem>>, vector<1x8x32xf32>
    %559 = vector.shape_cast %558 : vector<1x8x32xf32> to vector<8x32xf32>
    %c3_321 = arith.constant 3 : index
    %c0_322 = arith.constant 0 : index
    %c0_323 = arith.constant 0 : index
    %560 = vector.load %arg6[%c3_321, %c0_322, %c0_323] : memref<4x32x32xf32, #tpu.memory_space<vmem>>, vector<1x32x32xf32>
    %561 = vector.shape_cast %560 : vector<1x32x32xf32> to vector<32x32xf32>
    %cst_324 = arith.constant dense<0.000000e+00> : vector<8x32xf32>
    %562 = tpu.matmul %520, %561, %cst_324 {dimension_numbers = #tpu.dot_dimension_numbers<[1], [0], [0], [1], [0, 0, 1, 1], [], []>} : vector<8x32xf32>, vector<32x32xf32>, vector<8x32xf32> -> vector<8x32xf32>
    %563 = arith.addf %559, %562 : vector<8x32xf32>
    %564 = arith.negf %563 : vector<8x32xf32>
    %565 = math.exp %564 : vector<8x32xf32>
    %cst_325 = arith.constant 1.000000e+00 : f32
    %566 = vector.broadcast %cst_325 : f32 to vector<8x32xf32>
    %567 = arith.addf %566, %565 : vector<8x32xf32>
    %568 = arith.divf %566, %567 : vector<8x32xf32>
    %569 = arith.mulf %548, %518 : vector<8x32xf32>
    %570 = arith.mulf %536, %556 : vector<8x32xf32>
    %571 = arith.addf %569, %570 : vector<8x32xf32>
    %572 = math.tanh %571 : vector<8x32xf32>
    %573 = arith.mulf %568, %572 : vector<8x32xf32>
    %574 = arith.index_cast %524 : i32 to index
    %c0_326 = arith.constant 0 : index
    %575 = vector.load %arg16[%574, %c0_326] : memref<64x32xf32, #tpu.memory_space<vmem>>, vector<8x32xf32>
    tpu.vector_store %arg16[%574, %c0_326], %573 {strides = array<i32>} : memref<64x32xf32, #tpu.memory_space<vmem>>, vector<8x32xf32>,
    %c2_i32_327 = arith.constant 2 : i32
    %c8_i32_328 = arith.constant 8 : i32
    %576 = arith.muli %c2_i32_327, %c8_i32_328 : i32
    %577 = tpu.assume_multiple %576, 8 : i32
    %c0_329 = arith.constant 0 : index
    %578 = arith.index_cast %577 : i32 to index
    %c0_330 = arith.constant 0 : index
    %579 = vector.load %arg14[%c0_329, %578, %c0_330] : memref<4x64x32xf32, #tpu.memory_space<vmem>>, vector<1x8x32xf32>
    %580 = vector.shape_cast %579 : vector<1x8x32xf32> to vector<8x32xf32>
    %c0_331 = arith.constant 0 : index
    %c0_332 = arith.constant 0 : index
    %c0_333 = arith.constant 0 : index
    %581 = vector.load %arg6[%c0_331, %c0_332, %c0_333] : memref<4x32x32xf32, #tpu.memory_space<vmem>>, vector<1x32x32xf32>
    %582 = vector.shape_cast %581 : vector<1x32x32xf32> to vector<32x32xf32>
    %cst_334 = arith.constant dense<0.000000e+00> : vector<8x32xf32>
    %583 = tpu.matmul %573, %582, %cst_334 {dimension_numbers = #tpu.dot_dimension_numbers<[1], [0], [0], [1], [0, 0, 1, 1], [], []>} : vector<8x32xf32>, vector<32x32xf32>, vector<8x32xf32> -> vector<8x32xf32>
    %584 = arith.addf %580, %583 : vector<8x32xf32>
    %585 = arith.negf %584 : vector<8x32xf32>
    %586 = math.exp %585 : vector<8x32xf32>
    %cst_335 = arith.constant 1.000000e+00 : f32
    %587 = vector.broadcast %cst_335 : f32 to vector<8x32xf32>
    %588 = arith.addf %587, %586 : vector<8x32xf32>
    %589 = arith.divf %587, %588 : vector<8x32xf32>
    %c1_336 = arith.constant 1 : index
    %590 = arith.index_cast %577 : i32 to index
    %c0_337 = arith.constant 0 : index
    %591 = vector.load %arg14[%c1_336, %590, %c0_337] : memref<4x64x32xf32, #tpu.memory_space<vmem>>, vector<1x8x32xf32>
    %592 = vector.shape_cast %591 : vector<1x8x32xf32> to vector<8x32xf32>
    %c1_338 = arith.constant 1 : index
    %c0_339 = arith.constant 0 : index
    %c0_340 = arith.constant 0 : index
    %593 = vector.load %arg6[%c1_338, %c0_339, %c0_340] : memref<4x32x32xf32, #tpu.memory_space<vmem>>, vector<1x32x32xf32>
    %594 = vector.shape_cast %593 : vector<1x32x32xf32> to vector<32x32xf32>
    %cst_341 = arith.constant dense<0.000000e+00> : vector<8x32xf32>
    %595 = tpu.matmul %573, %594, %cst_341 {dimension_numbers = #tpu.dot_dimension_numbers<[1], [0], [0], [1], [0, 0, 1, 1], [], []>} : vector<8x32xf32>, vector<32x32xf32>, vector<8x32xf32> -> vector<8x32xf32>
    %596 = arith.addf %592, %595 : vector<8x32xf32>
    %597 = arith.negf %596 : vector<8x32xf32>
    %598 = math.exp %597 : vector<8x32xf32>
    %cst_342 = arith.constant 1.000000e+00 : f32
    %599 = vector.broadcast %cst_342 : f32 to vector<8x32xf32>
    %600 = arith.addf %599, %598 : vector<8x32xf32>
    %601 = arith.divf %599, %600 : vector<8x32xf32>
    %c2_343 = arith.constant 2 : index
    %602 = arith.index_cast %577 : i32 to index
    %c0_344 = arith.constant 0 : index
    %603 = vector.load %arg14[%c2_343, %602, %c0_344] : memref<4x64x32xf32, #tpu.memory_space<vmem>>, vector<1x8x32xf32>
    %604 = vector.shape_cast %603 : vector<1x8x32xf32> to vector<8x32xf32>
    %c2_345 = arith.constant 2 : index
    %c0_346 = arith.constant 0 : index
    %c0_347 = arith.constant 0 : index
    %605 = vector.load %arg6[%c2_345, %c0_346, %c0_347] : memref<4x32x32xf32, #tpu.memory_space<vmem>>, vector<1x32x32xf32>
    %606 = vector.shape_cast %605 : vector<1x32x32xf32> to vector<32x32xf32>
    %cst_348 = arith.constant dense<0.000000e+00> : vector<8x32xf32>
    %607 = tpu.matmul %573, %606, %cst_348 {dimension_numbers = #tpu.dot_dimension_numbers<[1], [0], [0], [1], [0, 0, 1, 1], [], []>} : vector<8x32xf32>, vector<32x32xf32>, vector<8x32xf32> -> vector<8x32xf32>
    %608 = arith.addf %604, %607 : vector<8x32xf32>
    %609 = math.tanh %608 : vector<8x32xf32>
    %c3_349 = arith.constant 3 : index
    %610 = arith.index_cast %577 : i32 to index
    %c0_350 = arith.constant 0 : index
    %611 = vector.load %arg14[%c3_349, %610, %c0_350] : memref<4x64x32xf32, #tpu.memory_space<vmem>>, vector<1x8x32xf32>
    %612 = vector.shape_cast %611 : vector<1x8x32xf32> to vector<8x32xf32>
    %c3_351 = arith.constant 3 : index
    %c0_352 = arith.constant 0 : index
    %c0_353 = arith.constant 0 : index
    %613 = vector.load %arg6[%c3_351, %c0_352, %c0_353] : memref<4x32x32xf32, #tpu.memory_space<vmem>>, vector<1x32x32xf32>
    %614 = vector.shape_cast %613 : vector<1x32x32xf32> to vector<32x32xf32>
    %cst_354 = arith.constant dense<0.000000e+00> : vector<8x32xf32>
    %615 = tpu.matmul %573, %614, %cst_354 {dimension_numbers = #tpu.dot_dimension_numbers<[1], [0], [0], [1], [0, 0, 1, 1], [], []>} : vector<8x32xf32>, vector<32x32xf32>, vector<8x32xf32> -> vector<8x32xf32>
    %616 = arith.addf %612, %615 : vector<8x32xf32>
    %617 = arith.negf %616 : vector<8x32xf32>
    %618 = math.exp %617 : vector<8x32xf32>
    %cst_355 = arith.constant 1.000000e+00 : f32
    %619 = vector.broadcast %cst_355 : f32 to vector<8x32xf32>
    %620 = arith.addf %619, %618 : vector<8x32xf32>
    %621 = arith.divf %619, %620 : vector<8x32xf32>
    %622 = arith.mulf %601, %571 : vector<8x32xf32>
    %623 = arith.mulf %589, %609 : vector<8x32xf32>
    %624 = arith.addf %622, %623 : vector<8x32xf32>
    %625 = math.tanh %624 : vector<8x32xf32>
    %626 = arith.mulf %621, %625 : vector<8x32xf32>
    %627 = arith.index_cast %577 : i32 to index
    %c0_356 = arith.constant 0 : index
    %628 = vector.load %arg16[%627, %c0_356] : memref<64x32xf32, #tpu.memory_space<vmem>>, vector<8x32xf32>
    tpu.vector_store %arg16[%627, %c0_356], %626 {strides = array<i32>} : memref<64x32xf32, #tpu.memory_space<vmem>>, vector<8x32xf32>,
    %c3_i32_357 = arith.constant 3 : i32
    %c8_i32_358 = arith.constant 8 : i32
    %629 = arith.muli %c3_i32_357, %c8_i32_358 : i32
    %630 = tpu.assume_multiple %629, 8 : i32
    %c0_359 = arith.constant 0 : index
    %631 = arith.index_cast %630 : i32 to index
    %c0_360 = arith.constant 0 : index
    %632 = vector.load %arg14[%c0_359, %631, %c0_360] : memref<4x64x32xf32, #tpu.memory_space<vmem>>, vector<1x8x32xf32>
    %633 = vector.shape_cast %632 : vector<1x8x32xf32> to vector<8x32xf32>
    %c0_361 = arith.constant 0 : index
    %c0_362 = arith.constant 0 : index
    %c0_363 = arith.constant 0 : index
    %634 = vector.load %arg6[%c0_361, %c0_362, %c0_363] : memref<4x32x32xf32, #tpu.memory_space<vmem>>, vector<1x32x32xf32>
    %635 = vector.shape_cast %634 : vector<1x32x32xf32> to vector<32x32xf32>
    %cst_364 = arith.constant dense<0.000000e+00> : vector<8x32xf32>
    %636 = tpu.matmul %626, %635, %cst_364 {dimension_numbers = #tpu.dot_dimension_numbers<[1], [0], [0], [1], [0, 0, 1, 1], [], []>} : vector<8x32xf32>, vector<32x32xf32>, vector<8x32xf32> -> vector<8x32xf32>
    %637 = arith.addf %633, %636 : vector<8x32xf32>
    %638 = arith.negf %637 : vector<8x32xf32>
    %639 = math.exp %638 : vector<8x32xf32>
    %cst_365 = arith.constant 1.000000e+00 : f32
    %640 = vector.broadcast %cst_365 : f32 to vector<8x32xf32>
    %641 = arith.addf %640, %639 : vector<8x32xf32>
    %642 = arith.divf %640, %641 : vector<8x32xf32>
    %c1_366 = arith.constant 1 : index
    %643 = arith.index_cast %630 : i32 to index
    %c0_367 = arith.constant 0 : index
    %644 = vector.load %arg14[%c1_366, %643, %c0_367] : memref<4x64x32xf32, #tpu.memory_space<vmem>>, vector<1x8x32xf32>
    %645 = vector.shape_cast %644 : vector<1x8x32xf32> to vector<8x32xf32>
    %c1_368 = arith.constant 1 : index
    %c0_369 = arith.constant 0 : index
    %c0_370 = arith.constant 0 : index
    %646 = vector.load %arg6[%c1_368, %c0_369, %c0_370] : memref<4x32x32xf32, #tpu.memory_space<vmem>>, vector<1x32x32xf32>
    %647 = vector.shape_cast %646 : vector<1x32x32xf32> to vector<32x32xf32>
    %cst_371 = arith.constant dense<0.000000e+00> : vector<8x32xf32>
    %648 = tpu.matmul %626, %647, %cst_371 {dimension_numbers = #tpu.dot_dimension_numbers<[1], [0], [0], [1], [0, 0, 1, 1], [], []>} : vector<8x32xf32>, vector<32x32xf32>, vector<8x32xf32> -> vector<8x32xf32>
    %649 = arith.addf %645, %648 : vector<8x32xf32>
    %650 = arith.negf %649 : vector<8x32xf32>
    %651 = math.exp %650 : vector<8x32xf32>
    %cst_372 = arith.constant 1.000000e+00 : f32
    %652 = vector.broadcast %cst_372 : f32 to vector<8x32xf32>
    %653 = arith.addf %652, %651 : vector<8x32xf32>
    %654 = arith.divf %652, %653 : vector<8x32xf32>
    %c2_373 = arith.constant 2 : index
    %655 = arith.index_cast %630 : i32 to index
    %c0_374 = arith.constant 0 : index
    %656 = vector.load %arg14[%c2_373, %655, %c0_374] : memref<4x64x32xf32, #tpu.memory_space<vmem>>, vector<1x8x32xf32>
    %657 = vector.shape_cast %656 : vector<1x8x32xf32> to vector<8x32xf32>
    %c2_375 = arith.constant 2 : index
    %c0_376 = arith.constant 0 : index
    %c0_377 = arith.constant 0 : index
    %658 = vector.load %arg6[%c2_375, %c0_376, %c0_377] : memref<4x32x32xf32, #tpu.memory_space<vmem>>, vector<1x32x32xf32>
    %659 = vector.shape_cast %658 : vector<1x32x32xf32> to vector<32x32xf32>
    %cst_378 = arith.constant dense<0.000000e+00> : vector<8x32xf32>
    %660 = tpu.matmul %626, %659, %cst_378 {dimension_numbers = #tpu.dot_dimension_numbers<[1], [0], [0], [1], [0, 0, 1, 1], [], []>} : vector<8x32xf32>, vector<32x32xf32>, vector<8x32xf32> -> vector<8x32xf32>
    %661 = arith.addf %657, %660 : vector<8x32xf32>
    %662 = math.tanh %661 : vector<8x32xf32>
    %c3_379 = arith.constant 3 : index
    %663 = arith.index_cast %630 : i32 to index
    %c0_380 = arith.constant 0 : index
    %664 = vector.load %arg14[%c3_379, %663, %c0_380] : memref<4x64x32xf32, #tpu.memory_space<vmem>>, vector<1x8x32xf32>
    %665 = vector.shape_cast %664 : vector<1x8x32xf32> to vector<8x32xf32>
    %c3_381 = arith.constant 3 : index
    %c0_382 = arith.constant 0 : index
    %c0_383 = arith.constant 0 : index
    %666 = vector.load %arg6[%c3_381, %c0_382, %c0_383] : memref<4x32x32xf32, #tpu.memory_space<vmem>>, vector<1x32x32xf32>
    %667 = vector.shape_cast %666 : vector<1x32x32xf32> to vector<32x32xf32>
    %cst_384 = arith.constant dense<0.000000e+00> : vector<8x32xf32>
    %668 = tpu.matmul %626, %667, %cst_384 {dimension_numbers = #tpu.dot_dimension_numbers<[1], [0], [0], [1], [0, 0, 1, 1], [], []>} : vector<8x32xf32>, vector<32x32xf32>, vector<8x32xf32> -> vector<8x32xf32>
    %669 = arith.addf %665, %668 : vector<8x32xf32>
    %670 = arith.negf %669 : vector<8x32xf32>
    %671 = math.exp %670 : vector<8x32xf32>
    %cst_385 = arith.constant 1.000000e+00 : f32
    %672 = vector.broadcast %cst_385 : f32 to vector<8x32xf32>
    %673 = arith.addf %672, %671 : vector<8x32xf32>
    %674 = arith.divf %672, %673 : vector<8x32xf32>
    %675 = arith.mulf %654, %624 : vector<8x32xf32>
    %676 = arith.mulf %642, %662 : vector<8x32xf32>
    %677 = arith.addf %675, %676 : vector<8x32xf32>
    %678 = math.tanh %677 : vector<8x32xf32>
    %679 = arith.mulf %674, %678 : vector<8x32xf32>
    %680 = arith.index_cast %630 : i32 to index
    %c0_386 = arith.constant 0 : index
    %681 = vector.load %arg16[%680, %c0_386] : memref<64x32xf32, #tpu.memory_space<vmem>>, vector<8x32xf32>
    tpu.vector_store %arg16[%680, %c0_386], %679 {strides = array<i32>} : memref<64x32xf32, #tpu.memory_space<vmem>>, vector<8x32xf32>,
    %c4_i32_387 = arith.constant 4 : i32
    %c8_i32_388 = arith.constant 8 : i32
    %682 = arith.muli %c4_i32_387, %c8_i32_388 : i32
    %683 = tpu.assume_multiple %682, 8 : i32
    %c0_389 = arith.constant 0 : index
    %684 = arith.index_cast %683 : i32 to index
    %c0_390 = arith.constant 0 : index
    %685 = vector.load %arg14[%c0_389, %684, %c0_390] : memref<4x64x32xf32, #tpu.memory_space<vmem>>, vector<1x8x32xf32>
    %686 = vector.shape_cast %685 : vector<1x8x32xf32> to vector<8x32xf32>
    %c0_391 = arith.constant 0 : index
    %c0_392 = arith.constant 0 : index
    %c0_393 = arith.constant 0 : index
    %687 = vector.load %arg6[%c0_391, %c0_392, %c0_393] : memref<4x32x32xf32, #tpu.memory_space<vmem>>, vector<1x32x32xf32>
    %688 = vector.shape_cast %687 : vector<1x32x32xf32> to vector<32x32xf32>
    %cst_394 = arith.constant dense<0.000000e+00> : vector<8x32xf32>
    %689 = tpu.matmul %679, %688, %cst_394 {dimension_numbers = #tpu.dot_dimension_numbers<[1], [0], [0], [1], [0, 0, 1, 1], [], []>} : vector<8x32xf32>, vector<32x32xf32>, vector<8x32xf32> -> vector<8x32xf32>
    %690 = arith.addf %686, %689 : vector<8x32xf32>
    %691 = arith.negf %690 : vector<8x32xf32>
    %692 = math.exp %691 : vector<8x32xf32>
    %cst_395 = arith.constant 1.000000e+00 : f32
    %693 = vector.broadcast %cst_395 : f32 to vector<8x32xf32>
    %694 = arith.addf %693, %692 : vector<8x32xf32>
    %695 = arith.divf %693, %694 : vector<8x32xf32>
    %c1_396 = arith.constant 1 : index
    %696 = arith.index_cast %683 : i32 to index
    %c0_397 = arith.constant 0 : index
    %697 = vector.load %arg14[%c1_396, %696, %c0_397] : memref<4x64x32xf32, #tpu.memory_space<vmem>>, vector<1x8x32xf32>
    %698 = vector.shape_cast %697 : vector<1x8x32xf32> to vector<8x32xf32>
    %c1_398 = arith.constant 1 : index
    %c0_399 = arith.constant 0 : index
    %c0_400 = arith.constant 0 : index
    %699 = vector.load %arg6[%c1_398, %c0_399, %c0_400] : memref<4x32x32xf32, #tpu.memory_space<vmem>>, vector<1x32x32xf32>
    %700 = vector.shape_cast %699 : vector<1x32x32xf32> to vector<32x32xf32>
    %cst_401 = arith.constant dense<0.000000e+00> : vector<8x32xf32>
    %701 = tpu.matmul %679, %700, %cst_401 {dimension_numbers = #tpu.dot_dimension_numbers<[1], [0], [0], [1], [0, 0, 1, 1], [], []>} : vector<8x32xf32>, vector<32x32xf32>, vector<8x32xf32> -> vector<8x32xf32>
    %702 = arith.addf %698, %701 : vector<8x32xf32>
    %703 = arith.negf %702 : vector<8x32xf32>
    %704 = math.exp %703 : vector<8x32xf32>
    %cst_402 = arith.constant 1.000000e+00 : f32
    %705 = vector.broadcast %cst_402 : f32 to vector<8x32xf32>
    %706 = arith.addf %705, %704 : vector<8x32xf32>
    %707 = arith.divf %705, %706 : vector<8x32xf32>
    %c2_403 = arith.constant 2 : index
    %708 = arith.index_cast %683 : i32 to index
    %c0_404 = arith.constant 0 : index
    %709 = vector.load %arg14[%c2_403, %708, %c0_404] : memref<4x64x32xf32, #tpu.memory_space<vmem>>, vector<1x8x32xf32>
    %710 = vector.shape_cast %709 : vector<1x8x32xf32> to vector<8x32xf32>
    %c2_405 = arith.constant 2 : index
    %c0_406 = arith.constant 0 : index
    %c0_407 = arith.constant 0 : index
    %711 = vector.load %arg6[%c2_405, %c0_406, %c0_407] : memref<4x32x32xf32, #tpu.memory_space<vmem>>, vector<1x32x32xf32>
    %712 = vector.shape_cast %711 : vector<1x32x32xf32> to vector<32x32xf32>
    %cst_408 = arith.constant dense<0.000000e+00> : vector<8x32xf32>
    %713 = tpu.matmul %679, %712, %cst_408 {dimension_numbers = #tpu.dot_dimension_numbers<[1], [0], [0], [1], [0, 0, 1, 1], [], []>} : vector<8x32xf32>, vector<32x32xf32>, vector<8x32xf32> -> vector<8x32xf32>
    %714 = arith.addf %710, %713 : vector<8x32xf32>
    %715 = math.tanh %714 : vector<8x32xf32>
    %c3_409 = arith.constant 3 : index
    %716 = arith.index_cast %683 : i32 to index
    %c0_410 = arith.constant 0 : index
    %717 = vector.load %arg14[%c3_409, %716, %c0_410] : memref<4x64x32xf32, #tpu.memory_space<vmem>>, vector<1x8x32xf32>
    %718 = vector.shape_cast %717 : vector<1x8x32xf32> to vector<8x32xf32>
    %c3_411 = arith.constant 3 : index
    %c0_412 = arith.constant 0 : index
    %c0_413 = arith.constant 0 : index
    %719 = vector.load %arg6[%c3_411, %c0_412, %c0_413] : memref<4x32x32xf32, #tpu.memory_space<vmem>>, vector<1x32x32xf32>
    %720 = vector.shape_cast %719 : vector<1x32x32xf32> to vector<32x32xf32>
    %cst_414 = arith.constant dense<0.000000e+00> : vector<8x32xf32>
    %721 = tpu.matmul %679, %720, %cst_414 {dimension_numbers = #tpu.dot_dimension_numbers<[1], [0], [0], [1], [0, 0, 1, 1], [], []>} : vector<8x32xf32>, vector<32x32xf32>, vector<8x32xf32> -> vector<8x32xf32>
    %722 = arith.addf %718, %721 : vector<8x32xf32>
    %723 = arith.negf %722 : vector<8x32xf32>
    %724 = math.exp %723 : vector<8x32xf32>
    %cst_415 = arith.constant 1.000000e+00 : f32
    %725 = vector.broadcast %cst_415 : f32 to vector<8x32xf32>
    %726 = arith.addf %725, %724 : vector<8x32xf32>
    %727 = arith.divf %725, %726 : vector<8x32xf32>
    %728 = arith.mulf %707, %677 : vector<8x32xf32>
    %729 = arith.mulf %695, %715 : vector<8x32xf32>
    %730 = arith.addf %728, %729 : vector<8x32xf32>
    %731 = math.tanh %730 : vector<8x32xf32>
    %732 = arith.mulf %727, %731 : vector<8x32xf32>
    %733 = arith.index_cast %683 : i32 to index
    %c0_416 = arith.constant 0 : index
    %734 = vector.load %arg16[%733, %c0_416] : memref<64x32xf32, #tpu.memory_space<vmem>>, vector<8x32xf32>
    tpu.vector_store %arg16[%733, %c0_416], %732 {strides = array<i32>} : memref<64x32xf32, #tpu.memory_space<vmem>>, vector<8x32xf32>,
    %c5_i32_417 = arith.constant 5 : i32
    %c8_i32_418 = arith.constant 8 : i32
    %735 = arith.muli %c5_i32_417, %c8_i32_418 : i32
    %736 = tpu.assume_multiple %735, 8 : i32
    %c0_419 = arith.constant 0 : index
    %737 = arith.index_cast %736 : i32 to index
    %c0_420 = arith.constant 0 : index
    %738 = vector.load %arg14[%c0_419, %737, %c0_420] : memref<4x64x32xf32, #tpu.memory_space<vmem>>, vector<1x8x32xf32>
    %739 = vector.shape_cast %738 : vector<1x8x32xf32> to vector<8x32xf32>
    %c0_421 = arith.constant 0 : index
    %c0_422 = arith.constant 0 : index
    %c0_423 = arith.constant 0 : index
    %740 = vector.load %arg6[%c0_421, %c0_422, %c0_423] : memref<4x32x32xf32, #tpu.memory_space<vmem>>, vector<1x32x32xf32>
    %741 = vector.shape_cast %740 : vector<1x32x32xf32> to vector<32x32xf32>
    %cst_424 = arith.constant dense<0.000000e+00> : vector<8x32xf32>
    %742 = tpu.matmul %732, %741, %cst_424 {dimension_numbers = #tpu.dot_dimension_numbers<[1], [0], [0], [1], [0, 0, 1, 1], [], []>} : vector<8x32xf32>, vector<32x32xf32>, vector<8x32xf32> -> vector<8x32xf32>
    %743 = arith.addf %739, %742 : vector<8x32xf32>
    %744 = arith.negf %743 : vector<8x32xf32>
    %745 = math.exp %744 : vector<8x32xf32>
    %cst_425 = arith.constant 1.000000e+00 : f32
    %746 = vector.broadcast %cst_425 : f32 to vector<8x32xf32>
    %747 = arith.addf %746, %745 : vector<8x32xf32>
    %748 = arith.divf %746, %747 : vector<8x32xf32>
    %c1_426 = arith.constant 1 : index
    %749 = arith.index_cast %736 : i32 to index
    %c0_427 = arith.constant 0 : index
    %750 = vector.load %arg14[%c1_426, %749, %c0_427] : memref<4x64x32xf32, #tpu.memory_space<vmem>>, vector<1x8x32xf32>
    %751 = vector.shape_cast %750 : vector<1x8x32xf32> to vector<8x32xf32>
    %c1_428 = arith.constant 1 : index
    %c0_429 = arith.constant 0 : index
    %c0_430 = arith.constant 0 : index
    %752 = vector.load %arg6[%c1_428, %c0_429, %c0_430] : memref<4x32x32xf32, #tpu.memory_space<vmem>>, vector<1x32x32xf32>
    %753 = vector.shape_cast %752 : vector<1x32x32xf32> to vector<32x32xf32>
    %cst_431 = arith.constant dense<0.000000e+00> : vector<8x32xf32>
    %754 = tpu.matmul %732, %753, %cst_431 {dimension_numbers = #tpu.dot_dimension_numbers<[1], [0], [0], [1], [0, 0, 1, 1], [], []>} : vector<8x32xf32>, vector<32x32xf32>, vector<8x32xf32> -> vector<8x32xf32>
    %755 = arith.addf %751, %754 : vector<8x32xf32>
    %756 = arith.negf %755 : vector<8x32xf32>
    %757 = math.exp %756 : vector<8x32xf32>
    %cst_432 = arith.constant 1.000000e+00 : f32
    %758 = vector.broadcast %cst_432 : f32 to vector<8x32xf32>
    %759 = arith.addf %758, %757 : vector<8x32xf32>
    %760 = arith.divf %758, %759 : vector<8x32xf32>
    %c2_433 = arith.constant 2 : index
    %761 = arith.index_cast %736 : i32 to index
    %c0_434 = arith.constant 0 : index
    %762 = vector.load %arg14[%c2_433, %761, %c0_434] : memref<4x64x32xf32, #tpu.memory_space<vmem>>, vector<1x8x32xf32>
    %763 = vector.shape_cast %762 : vector<1x8x32xf32> to vector<8x32xf32>
    %c2_435 = arith.constant 2 : index
    %c0_436 = arith.constant 0 : index
    %c0_437 = arith.constant 0 : index
    %764 = vector.load %arg6[%c2_435, %c0_436, %c0_437] : memref<4x32x32xf32, #tpu.memory_space<vmem>>, vector<1x32x32xf32>
    %765 = vector.shape_cast %764 : vector<1x32x32xf32> to vector<32x32xf32>
    %cst_438 = arith.constant dense<0.000000e+00> : vector<8x32xf32>
    %766 = tpu.matmul %732, %765, %cst_438 {dimension_numbers = #tpu.dot_dimension_numbers<[1], [0], [0], [1], [0, 0, 1, 1], [], []>} : vector<8x32xf32>, vector<32x32xf32>, vector<8x32xf32> -> vector<8x32xf32>
    %767 = arith.addf %763, %766 : vector<8x32xf32>
    %768 = math.tanh %767 : vector<8x32xf32>
    %c3_439 = arith.constant 3 : index
    %769 = arith.index_cast %736 : i32 to index
    %c0_440 = arith.constant 0 : index
    %770 = vector.load %arg14[%c3_439, %769, %c0_440] : memref<4x64x32xf32, #tpu.memory_space<vmem>>, vector<1x8x32xf32>
    %771 = vector.shape_cast %770 : vector<1x8x32xf32> to vector<8x32xf32>
    %c3_441 = arith.constant 3 : index
    %c0_442 = arith.constant 0 : index
    %c0_443 = arith.constant 0 : index
    %772 = vector.load %arg6[%c3_441, %c0_442, %c0_443] : memref<4x32x32xf32, #tpu.memory_space<vmem>>, vector<1x32x32xf32>
    %773 = vector.shape_cast %772 : vector<1x32x32xf32> to vector<32x32xf32>
    %cst_444 = arith.constant dense<0.000000e+00> : vector<8x32xf32>
    %774 = tpu.matmul %732, %773, %cst_444 {dimension_numbers = #tpu.dot_dimension_numbers<[1], [0], [0], [1], [0, 0, 1, 1], [], []>} : vector<8x32xf32>, vector<32x32xf32>, vector<8x32xf32> -> vector<8x32xf32>
    %775 = arith.addf %771, %774 : vector<8x32xf32>
    %776 = arith.negf %775 : vector<8x32xf32>
    %777 = math.exp %776 : vector<8x32xf32>
    %cst_445 = arith.constant 1.000000e+00 : f32
    %778 = vector.broadcast %cst_445 : f32 to vector<8x32xf32>
    %779 = arith.addf %778, %777 : vector<8x32xf32>
    %780 = arith.divf %778, %779 : vector<8x32xf32>
    %781 = arith.mulf %760, %730 : vector<8x32xf32>
    %782 = arith.mulf %748, %768 : vector<8x32xf32>
    %783 = arith.addf %781, %782 : vector<8x32xf32>
    %784 = math.tanh %783 : vector<8x32xf32>
    %785 = arith.mulf %780, %784 : vector<8x32xf32>
    %786 = arith.index_cast %736 : i32 to index
    %c0_446 = arith.constant 0 : index
    %787 = vector.load %arg16[%786, %c0_446] : memref<64x32xf32, #tpu.memory_space<vmem>>, vector<8x32xf32>
    tpu.vector_store %arg16[%786, %c0_446], %785 {strides = array<i32>} : memref<64x32xf32, #tpu.memory_space<vmem>>, vector<8x32xf32>,
    %c6_i32_447 = arith.constant 6 : i32
    %c8_i32_448 = arith.constant 8 : i32
    %788 = arith.muli %c6_i32_447, %c8_i32_448 : i32
    %789 = tpu.assume_multiple %788, 8 : i32
    %c0_449 = arith.constant 0 : index
    %790 = arith.index_cast %789 : i32 to index
    %c0_450 = arith.constant 0 : index
    %791 = vector.load %arg14[%c0_449, %790, %c0_450] : memref<4x64x32xf32, #tpu.memory_space<vmem>>, vector<1x8x32xf32>
    %792 = vector.shape_cast %791 : vector<1x8x32xf32> to vector<8x32xf32>
    %c0_451 = arith.constant 0 : index
    %c0_452 = arith.constant 0 : index
    %c0_453 = arith.constant 0 : index
    %793 = vector.load %arg6[%c0_451, %c0_452, %c0_453] : memref<4x32x32xf32, #tpu.memory_space<vmem>>, vector<1x32x32xf32>
    %794 = vector.shape_cast %793 : vector<1x32x32xf32> to vector<32x32xf32>
    %cst_454 = arith.constant dense<0.000000e+00> : vector<8x32xf32>
    %795 = tpu.matmul %785, %794, %cst_454 {dimension_numbers = #tpu.dot_dimension_numbers<[1], [0], [0], [1], [0, 0, 1, 1], [], []>} : vector<8x32xf32>, vector<32x32xf32>, vector<8x32xf32> -> vector<8x32xf32>
    %796 = arith.addf %792, %795 : vector<8x32xf32>
    %797 = arith.negf %796 : vector<8x32xf32>
    %798 = math.exp %797 : vector<8x32xf32>
    %cst_455 = arith.constant 1.000000e+00 : f32
    %799 = vector.broadcast %cst_455 : f32 to vector<8x32xf32>
    %800 = arith.addf %799, %798 : vector<8x32xf32>
    %801 = arith.divf %799, %800 : vector<8x32xf32>
    %c1_456 = arith.constant 1 : index
    %802 = arith.index_cast %789 : i32 to index
    %c0_457 = arith.constant 0 : index
    %803 = vector.load %arg14[%c1_456, %802, %c0_457] : memref<4x64x32xf32, #tpu.memory_space<vmem>>, vector<1x8x32xf32>
    %804 = vector.shape_cast %803 : vector<1x8x32xf32> to vector<8x32xf32>
    %c1_458 = arith.constant 1 : index
    %c0_459 = arith.constant 0 : index
    %c0_460 = arith.constant 0 : index
    %805 = vector.load %arg6[%c1_458, %c0_459, %c0_460] : memref<4x32x32xf32, #tpu.memory_space<vmem>>, vector<1x32x32xf32>
    %806 = vector.shape_cast %805 : vector<1x32x32xf32> to vector<32x32xf32>
    %cst_461 = arith.constant dense<0.000000e+00> : vector<8x32xf32>
    %807 = tpu.matmul %785, %806, %cst_461 {dimension_numbers = #tpu.dot_dimension_numbers<[1], [0], [0], [1], [0, 0, 1, 1], [], []>} : vector<8x32xf32>, vector<32x32xf32>, vector<8x32xf32> -> vector<8x32xf32>
    %808 = arith.addf %804, %807 : vector<8x32xf32>
    %809 = arith.negf %808 : vector<8x32xf32>
    %810 = math.exp %809 : vector<8x32xf32>
    %cst_462 = arith.constant 1.000000e+00 : f32
    %811 = vector.broadcast %cst_462 : f32 to vector<8x32xf32>
    %812 = arith.addf %811, %810 : vector<8x32xf32>
    %813 = arith.divf %811, %812 : vector<8x32xf32>
    %c2_463 = arith.constant 2 : index
    %814 = arith.index_cast %789 : i32 to index
    %c0_464 = arith.constant 0 : index
    %815 = vector.load %arg14[%c2_463, %814, %c0_464] : memref<4x64x32xf32, #tpu.memory_space<vmem>>, vector<1x8x32xf32>
    %816 = vector.shape_cast %815 : vector<1x8x32xf32> to vector<8x32xf32>
    %c2_465 = arith.constant 2 : index
    %c0_466 = arith.constant 0 : index
    %c0_467 = arith.constant 0 : index
    %817 = vector.load %arg6[%c2_465, %c0_466, %c0_467] : memref<4x32x32xf32, #tpu.memory_space<vmem>>, vector<1x32x32xf32>
    %818 = vector.shape_cast %817 : vector<1x32x32xf32> to vector<32x32xf32>
    %cst_468 = arith.constant dense<0.000000e+00> : vector<8x32xf32>
    %819 = tpu.matmul %785, %818, %cst_468 {dimension_numbers = #tpu.dot_dimension_numbers<[1], [0], [0], [1], [0, 0, 1, 1], [], []>} : vector<8x32xf32>, vector<32x32xf32>, vector<8x32xf32> -> vector<8x32xf32>
    %820 = arith.addf %816, %819 : vector<8x32xf32>
    %821 = math.tanh %820 : vector<8x32xf32>
    %c3_469 = arith.constant 3 : index
    %822 = arith.index_cast %789 : i32 to index
    %c0_470 = arith.constant 0 : index
    %823 = vector.load %arg14[%c3_469, %822, %c0_470] : memref<4x64x32xf32, #tpu.memory_space<vmem>>, vector<1x8x32xf32>
    %824 = vector.shape_cast %823 : vector<1x8x32xf32> to vector<8x32xf32>
    %c3_471 = arith.constant 3 : index
    %c0_472 = arith.constant 0 : index
    %c0_473 = arith.constant 0 : index
    %825 = vector.load %arg6[%c3_471, %c0_472, %c0_473] : memref<4x32x32xf32, #tpu.memory_space<vmem>>, vector<1x32x32xf32>
    %826 = vector.shape_cast %825 : vector<1x32x32xf32> to vector<32x32xf32>
    %cst_474 = arith.constant dense<0.000000e+00> : vector<8x32xf32>
    %827 = tpu.matmul %785, %826, %cst_474 {dimension_numbers = #tpu.dot_dimension_numbers<[1], [0], [0], [1], [0, 0, 1, 1], [], []>} : vector<8x32xf32>, vector<32x32xf32>, vector<8x32xf32> -> vector<8x32xf32>
    %828 = arith.addf %824, %827 : vector<8x32xf32>
    %829 = arith.negf %828 : vector<8x32xf32>
    %830 = math.exp %829 : vector<8x32xf32>
    %cst_475 = arith.constant 1.000000e+00 : f32
    %831 = vector.broadcast %cst_475 : f32 to vector<8x32xf32>
    %832 = arith.addf %831, %830 : vector<8x32xf32>
    %833 = arith.divf %831, %832 : vector<8x32xf32>
    %834 = arith.mulf %813, %783 : vector<8x32xf32>
    %835 = arith.mulf %801, %821 : vector<8x32xf32>
    %836 = arith.addf %834, %835 : vector<8x32xf32>
    %837 = math.tanh %836 : vector<8x32xf32>
    %838 = arith.mulf %833, %837 : vector<8x32xf32>
    %839 = arith.index_cast %789 : i32 to index
    %c0_476 = arith.constant 0 : index
    %840 = vector.load %arg16[%839, %c0_476] : memref<64x32xf32, #tpu.memory_space<vmem>>, vector<8x32xf32>
    tpu.vector_store %arg16[%839, %c0_476], %838 {strides = array<i32>} : memref<64x32xf32, #tpu.memory_space<vmem>>, vector<8x32xf32>,
    %c7_i32_477 = arith.constant 7 : i32
    %c8_i32_478 = arith.constant 8 : i32
    %841 = arith.muli %c7_i32_477, %c8_i32_478 : i32
    %842 = tpu.assume_multiple %841, 8 : i32
    %c0_479 = arith.constant 0 : index
    %843 = arith.index_cast %842 : i32 to index
    %c0_480 = arith.constant 0 : index
    %844 = vector.load %arg14[%c0_479, %843, %c0_480] : memref<4x64x32xf32, #tpu.memory_space<vmem>>, vector<1x8x32xf32>
    %845 = vector.shape_cast %844 : vector<1x8x32xf32> to vector<8x32xf32>
    %c0_481 = arith.constant 0 : index
    %c0_482 = arith.constant 0 : index
    %c0_483 = arith.constant 0 : index
    %846 = vector.load %arg6[%c0_481, %c0_482, %c0_483] : memref<4x32x32xf32, #tpu.memory_space<vmem>>, vector<1x32x32xf32>
    %847 = vector.shape_cast %846 : vector<1x32x32xf32> to vector<32x32xf32>
    %cst_484 = arith.constant dense<0.000000e+00> : vector<8x32xf32>
    %848 = tpu.matmul %838, %847, %cst_484 {dimension_numbers = #tpu.dot_dimension_numbers<[1], [0], [0], [1], [0, 0, 1, 1], [], []>} : vector<8x32xf32>, vector<32x32xf32>, vector<8x32xf32> -> vector<8x32xf32>
    %849 = arith.addf %845, %848 : vector<8x32xf32>
    %850 = arith.negf %849 : vector<8x32xf32>
    %851 = math.exp %850 : vector<8x32xf32>
    %cst_485 = arith.constant 1.000000e+00 : f32
    %852 = vector.broadcast %cst_485 : f32 to vector<8x32xf32>
    %853 = arith.addf %852, %851 : vector<8x32xf32>
    %854 = arith.divf %852, %853 : vector<8x32xf32>
    %c1_486 = arith.constant 1 : index
    %855 = arith.index_cast %842 : i32 to index
    %c0_487 = arith.constant 0 : index
    %856 = vector.load %arg14[%c1_486, %855, %c0_487] : memref<4x64x32xf32, #tpu.memory_space<vmem>>, vector<1x8x32xf32>
    %857 = vector.shape_cast %856 : vector<1x8x32xf32> to vector<8x32xf32>
    %c1_488 = arith.constant 1 : index
    %c0_489 = arith.constant 0 : index
    %c0_490 = arith.constant 0 : index
    %858 = vector.load %arg6[%c1_488, %c0_489, %c0_490] : memref<4x32x32xf32, #tpu.memory_space<vmem>>, vector<1x32x32xf32>
    %859 = vector.shape_cast %858 : vector<1x32x32xf32> to vector<32x32xf32>
    %cst_491 = arith.constant dense<0.000000e+00> : vector<8x32xf32>
    %860 = tpu.matmul %838, %859, %cst_491 {dimension_numbers = #tpu.dot_dimension_numbers<[1], [0], [0], [1], [0, 0, 1, 1], [], []>} : vector<8x32xf32>, vector<32x32xf32>, vector<8x32xf32> -> vector<8x32xf32>
    %861 = arith.addf %857, %860 : vector<8x32xf32>
    %862 = arith.negf %861 : vector<8x32xf32>
    %863 = math.exp %862 : vector<8x32xf32>
    %cst_492 = arith.constant 1.000000e+00 : f32
    %864 = vector.broadcast %cst_492 : f32 to vector<8x32xf32>
    %865 = arith.addf %864, %863 : vector<8x32xf32>
    %866 = arith.divf %864, %865 : vector<8x32xf32>
    %c2_493 = arith.constant 2 : index
    %867 = arith.index_cast %842 : i32 to index
    %c0_494 = arith.constant 0 : index
    %868 = vector.load %arg14[%c2_493, %867, %c0_494] : memref<4x64x32xf32, #tpu.memory_space<vmem>>, vector<1x8x32xf32>
    %869 = vector.shape_cast %868 : vector<1x8x32xf32> to vector<8x32xf32>
    %c2_495 = arith.constant 2 : index
    %c0_496 = arith.constant 0 : index
    %c0_497 = arith.constant 0 : index
    %870 = vector.load %arg6[%c2_495, %c0_496, %c0_497] : memref<4x32x32xf32, #tpu.memory_space<vmem>>, vector<1x32x32xf32>
    %871 = vector.shape_cast %870 : vector<1x32x32xf32> to vector<32x32xf32>
    %cst_498 = arith.constant dense<0.000000e+00> : vector<8x32xf32>
    %872 = tpu.matmul %838, %871, %cst_498 {dimension_numbers = #tpu.dot_dimension_numbers<[1], [0], [0], [1], [0, 0, 1, 1], [], []>} : vector<8x32xf32>, vector<32x32xf32>, vector<8x32xf32> -> vector<8x32xf32>
    %873 = arith.addf %869, %872 : vector<8x32xf32>
    %874 = math.tanh %873 : vector<8x32xf32>
    %c3_499 = arith.constant 3 : index
    %875 = arith.index_cast %842 : i32 to index
    %c0_500 = arith.constant 0 : index
    %876 = vector.load %arg14[%c3_499, %875, %c0_500] : memref<4x64x32xf32, #tpu.memory_space<vmem>>, vector<1x8x32xf32>
    %877 = vector.shape_cast %876 : vector<1x8x32xf32> to vector<8x32xf32>
    %c3_501 = arith.constant 3 : index
    %c0_502 = arith.constant 0 : index
    %c0_503 = arith.constant 0 : index
    %878 = vector.load %arg6[%c3_501, %c0_502, %c0_503] : memref<4x32x32xf32, #tpu.memory_space<vmem>>, vector<1x32x32xf32>
    %879 = vector.shape_cast %878 : vector<1x32x32xf32> to vector<32x32xf32>
    %cst_504 = arith.constant dense<0.000000e+00> : vector<8x32xf32>
    %880 = tpu.matmul %838, %879, %cst_504 {dimension_numbers = #tpu.dot_dimension_numbers<[1], [0], [0], [1], [0, 0, 1, 1], [], []>} : vector<8x32xf32>, vector<32x32xf32>, vector<8x32xf32> -> vector<8x32xf32>
    %881 = arith.addf %877, %880 : vector<8x32xf32>
    %882 = arith.negf %881 : vector<8x32xf32>
    %883 = math.exp %882 : vector<8x32xf32>
    %cst_505 = arith.constant 1.000000e+00 : f32
    %884 = vector.broadcast %cst_505 : f32 to vector<8x32xf32>
    %885 = arith.addf %884, %883 : vector<8x32xf32>
    %886 = arith.divf %884, %885 : vector<8x32xf32>
    %887 = arith.mulf %866, %836 : vector<8x32xf32>
    %888 = arith.mulf %854, %874 : vector<8x32xf32>
    %889 = arith.addf %887, %888 : vector<8x32xf32>
    %890 = math.tanh %889 : vector<8x32xf32>
    %891 = arith.mulf %886, %890 : vector<8x32xf32>
    %892 = arith.index_cast %842 : i32 to index
    %c0_506 = arith.constant 0 : index
    %893 = vector.load %arg16[%892, %c0_506] : memref<64x32xf32, #tpu.memory_space<vmem>>, vector<8x32xf32>
    tpu.vector_store %arg16[%892, %c0_506], %891 {strides = array<i32>} : memref<64x32xf32, #tpu.memory_space<vmem>>, vector<8x32xf32>,
    %c8_i32_507 = arith.constant 8 : i32
    %c0_508 = arith.constant 0 : index
    %c0_509 = arith.constant 0 : index
    %894 = vector.load %arg16[%c0_508, %c0_509] : memref<64x32xf32, #tpu.memory_space<vmem>>, vector<64x32xf32>
    %c0_510 = arith.constant 0 : index
    %c0_511 = arith.constant 0 : index
    %895 = vector.load %arg8[%c0_510, %c0_511] : memref<32x128xf32, #tpu.memory_space<vmem>>, vector<32x128xf32>
    %cst_512 = arith.constant dense<0.000000e+00> : vector<64x128xf32>
    %896 = tpu.matmul %894, %895, %cst_512 {dimension_numbers = #tpu.dot_dimension_numbers<[1], [0], [0], [1], [0, 0, 1, 1], [], []>} : vector<64x32xf32>, vector<32x128xf32>, vector<64x128xf32> -> vector<64x128xf32>
    %c0_513 = arith.constant 0 : index
    %c0_514 = arith.constant 0 : index
    %897 = vector.load %arg10[%c0_513, %c0_514] : memref<1x128xf32, #tpu.memory_space<vmem>>, vector<1x128xf32>
    %898 = vector.broadcast %897 : vector<1x128xf32> to vector<64x128xf32>
    %899 = arith.addf %896, %898 : vector<64x128xf32>
    %900 = vector.extract_strided_slice %899 {offsets = [0, 0], sizes = [64, 32], strides = [1, 1]} : vector<64x128xf32> to vector<64x32xf32>
    %c0_515 = arith.constant 0 : index
    %c0_516 = arith.constant 0 : index
    %c0_517 = arith.constant 0 : index
    %901 = vector.load %arg14[%c0_515, %c0_516, %c0_517] : memref<4x64x32xf32, #tpu.memory_space<vmem>>, vector<1x64x32xf32>
    %902 = vector.shape_cast %901 : vector<1x64x32xf32> to vector<64x32xf32>
    %903 = vector.shape_cast %900 : vector<64x32xf32> to vector<1x64x32xf32>
    tpu.vector_store %arg14[%c0_515, %c0_516, %c0_517], %903 {strides = array<i32>} : memref<4x64x32xf32, #tpu.memory_space<vmem>>, vector<1x64x32xf32>,
    %904 = vector.extract_strided_slice %899 {offsets = [0, 32], sizes = [64, 32], strides = [1, 1]} : vector<64x128xf32> to vector<64x32xf32>
    %c1_518 = arith.constant 1 : index
    %c0_519 = arith.constant 0 : index
    %c0_520 = arith.constant 0 : index
    %905 = vector.load %arg14[%c1_518, %c0_519, %c0_520] : memref<4x64x32xf32, #tpu.memory_space<vmem>>, vector<1x64x32xf32>
    %906 = vector.shape_cast %905 : vector<1x64x32xf32> to vector<64x32xf32>
    %907 = vector.shape_cast %904 : vector<64x32xf32> to vector<1x64x32xf32>
    tpu.vector_store %arg14[%c1_518, %c0_519, %c0_520], %907 {strides = array<i32>} : memref<4x64x32xf32, #tpu.memory_space<vmem>>, vector<1x64x32xf32>,
    %908 = vector.extract_strided_slice %899 {offsets = [0, 64], sizes = [64, 32], strides = [1, 1]} : vector<64x128xf32> to vector<64x32xf32>
    %c2_521 = arith.constant 2 : index
    %c0_522 = arith.constant 0 : index
    %c0_523 = arith.constant 0 : index
    %909 = vector.load %arg14[%c2_521, %c0_522, %c0_523] : memref<4x64x32xf32, #tpu.memory_space<vmem>>, vector<1x64x32xf32>
    %910 = vector.shape_cast %909 : vector<1x64x32xf32> to vector<64x32xf32>
    %911 = vector.shape_cast %908 : vector<64x32xf32> to vector<1x64x32xf32>
    tpu.vector_store %arg14[%c2_521, %c0_522, %c0_523], %911 {strides = array<i32>} : memref<4x64x32xf32, #tpu.memory_space<vmem>>, vector<1x64x32xf32>,
    %912 = vector.extract_strided_slice %899 {offsets = [0, 96], sizes = [64, 32], strides = [1, 1]} : vector<64x128xf32> to vector<64x32xf32>
    %c3_524 = arith.constant 3 : index
    %c0_525 = arith.constant 0 : index
    %c0_526 = arith.constant 0 : index
    %913 = vector.load %arg14[%c3_524, %c0_525, %c0_526] : memref<4x64x32xf32, #tpu.memory_space<vmem>>, vector<1x64x32xf32>
    %914 = vector.shape_cast %913 : vector<1x64x32xf32> to vector<64x32xf32>
    %915 = vector.shape_cast %912 : vector<64x32xf32> to vector<1x64x32xf32>
    tpu.vector_store %arg14[%c3_524, %c0_525, %c0_526], %915 {strides = array<i32>} : memref<4x64x32xf32, #tpu.memory_space<vmem>>, vector<1x64x32xf32>,
    %cst_527 = arith.constant 0.000000e+00 : f32
    %916 = vector.broadcast %cst_527 : f32 to vector<8x32xf32>
    %c0_i32_528 = arith.constant 0 : i32
    %c8_i32_529 = arith.constant 8 : i32
    %917 = arith.muli %c0_i32_528, %c8_i32_529 : i32
    %918 = tpu.assume_multiple %917, 8 : i32
    %c0_530 = arith.constant 0 : index
    %919 = arith.index_cast %918 : i32 to index
    %c0_531 = arith.constant 0 : index
    %920 = vector.load %arg14[%c0_530, %919, %c0_531] : memref<4x64x32xf32, #tpu.memory_space<vmem>>, vector<1x8x32xf32>
    %921 = vector.shape_cast %920 : vector<1x8x32xf32> to vector<8x32xf32>
    %c0_532 = arith.constant 0 : index
    %c0_533 = arith.constant 0 : index
    %c0_534 = arith.constant 0 : index
    %922 = vector.load %arg9[%c0_532, %c0_533, %c0_534] : memref<4x32x32xf32, #tpu.memory_space<vmem>>, vector<1x32x32xf32>
    %923 = vector.shape_cast %922 : vector<1x32x32xf32> to vector<32x32xf32>
    %cst_535 = arith.constant dense<0.000000e+00> : vector<8x32xf32>
    %924 = tpu.matmul %916, %923, %cst_535 {dimension_numbers = #tpu.dot_dimension_numbers<[1], [0], [0], [1], [0, 0, 1, 1], [], []>} : vector<8x32xf32>, vector<32x32xf32>, vector<8x32xf32> -> vector<8x32xf32>
    %925 = arith.addf %921, %924 : vector<8x32xf32>
    %926 = arith.negf %925 : vector<8x32xf32>
    %927 = math.exp %926 : vector<8x32xf32>
    %cst_536 = arith.constant 1.000000e+00 : f32
    %928 = vector.broadcast %cst_536 : f32 to vector<8x32xf32>
    %929 = arith.addf %928, %927 : vector<8x32xf32>
    %930 = arith.divf %928, %929 : vector<8x32xf32>
    %c1_537 = arith.constant 1 : index
    %931 = arith.index_cast %918 : i32 to index
    %c0_538 = arith.constant 0 : index
    %932 = vector.load %arg14[%c1_537, %931, %c0_538] : memref<4x64x32xf32, #tpu.memory_space<vmem>>, vector<1x8x32xf32>
    %933 = vector.shape_cast %932 : vector<1x8x32xf32> to vector<8x32xf32>
    %c1_539 = arith.constant 1 : index
    %c0_540 = arith.constant 0 : index
    %c0_541 = arith.constant 0 : index
    %934 = vector.load %arg9[%c1_539, %c0_540, %c0_541] : memref<4x32x32xf32, #tpu.memory_space<vmem>>, vector<1x32x32xf32>
    %935 = vector.shape_cast %934 : vector<1x32x32xf32> to vector<32x32xf32>
    %cst_542 = arith.constant dense<0.000000e+00> : vector<8x32xf32>
    %936 = tpu.matmul %916, %935, %cst_542 {dimension_numbers = #tpu.dot_dimension_numbers<[1], [0], [0], [1], [0, 0, 1, 1], [], []>} : vector<8x32xf32>, vector<32x32xf32>, vector<8x32xf32> -> vector<8x32xf32>
    %937 = arith.addf %933, %936 : vector<8x32xf32>
    %938 = arith.negf %937 : vector<8x32xf32>
    %939 = math.exp %938 : vector<8x32xf32>
    %cst_543 = arith.constant 1.000000e+00 : f32
    %940 = vector.broadcast %cst_543 : f32 to vector<8x32xf32>
    %941 = arith.addf %940, %939 : vector<8x32xf32>
    %942 = arith.divf %940, %941 : vector<8x32xf32>
    %c2_544 = arith.constant 2 : index
    %943 = arith.index_cast %918 : i32 to index
    %c0_545 = arith.constant 0 : index
    %944 = vector.load %arg14[%c2_544, %943, %c0_545] : memref<4x64x32xf32, #tpu.memory_space<vmem>>, vector<1x8x32xf32>
    %945 = vector.shape_cast %944 : vector<1x8x32xf32> to vector<8x32xf32>
    %c2_546 = arith.constant 2 : index
    %c0_547 = arith.constant 0 : index
    %c0_548 = arith.constant 0 : index
    %946 = vector.load %arg9[%c2_546, %c0_547, %c0_548] : memref<4x32x32xf32, #tpu.memory_space<vmem>>, vector<1x32x32xf32>
    %947 = vector.shape_cast %946 : vector<1x32x32xf32> to vector<32x32xf32>
    %cst_549 = arith.constant dense<0.000000e+00> : vector<8x32xf32>
    %948 = tpu.matmul %916, %947, %cst_549 {dimension_numbers = #tpu.dot_dimension_numbers<[1], [0], [0], [1], [0, 0, 1, 1], [], []>} : vector<8x32xf32>, vector<32x32xf32>, vector<8x32xf32> -> vector<8x32xf32>
    %949 = arith.addf %945, %948 : vector<8x32xf32>
    %950 = math.tanh %949 : vector<8x32xf32>
    %c3_550 = arith.constant 3 : index
    %951 = arith.index_cast %918 : i32 to index
    %c0_551 = arith.constant 0 : index
    %952 = vector.load %arg14[%c3_550, %951, %c0_551] : memref<4x64x32xf32, #tpu.memory_space<vmem>>, vector<1x8x32xf32>
    %953 = vector.shape_cast %952 : vector<1x8x32xf32> to vector<8x32xf32>
    %c3_552 = arith.constant 3 : index
    %c0_553 = arith.constant 0 : index
    %c0_554 = arith.constant 0 : index
    %954 = vector.load %arg9[%c3_552, %c0_553, %c0_554] : memref<4x32x32xf32, #tpu.memory_space<vmem>>, vector<1x32x32xf32>
    %955 = vector.shape_cast %954 : vector<1x32x32xf32> to vector<32x32xf32>
    %cst_555 = arith.constant dense<0.000000e+00> : vector<8x32xf32>
    %956 = tpu.matmul %916, %955, %cst_555 {dimension_numbers = #tpu.dot_dimension_numbers<[1], [0], [0], [1], [0, 0, 1, 1], [], []>} : vector<8x32xf32>, vector<32x32xf32>, vector<8x32xf32> -> vector<8x32xf32>
    %957 = arith.addf %953, %956 : vector<8x32xf32>
    %958 = arith.negf %957 : vector<8x32xf32>
    %959 = math.exp %958 : vector<8x32xf32>
    %cst_556 = arith.constant 1.000000e+00 : f32
    %960 = vector.broadcast %cst_556 : f32 to vector<8x32xf32>
    %961 = arith.addf %960, %959 : vector<8x32xf32>
    %962 = arith.divf %960, %961 : vector<8x32xf32>
    %963 = arith.mulf %942, %916 : vector<8x32xf32>
    %964 = arith.mulf %930, %950 : vector<8x32xf32>
    %965 = arith.addf %963, %964 : vector<8x32xf32>
    %966 = math.tanh %965 : vector<8x32xf32>
    %967 = arith.mulf %962, %966 : vector<8x32xf32>
    %968 = arith.index_cast %918 : i32 to index
    %c0_557 = arith.constant 0 : index
    %969 = vector.load %arg15[%968, %c0_557] : memref<64x32xf32, #tpu.memory_space<vmem>>, vector<8x32xf32>
    tpu.vector_store %arg15[%968, %c0_557], %967 {strides = array<i32>} : memref<64x32xf32, #tpu.memory_space<vmem>>, vector<8x32xf32>,
    %c1_i32_558 = arith.constant 1 : i32
    %c8_i32_559 = arith.constant 8 : i32
    %970 = arith.muli %c1_i32_558, %c8_i32_559 : i32
    %971 = tpu.assume_multiple %970, 8 : i32
    %c0_560 = arith.constant 0 : index
    %972 = arith.index_cast %971 : i32 to index
    %c0_561 = arith.constant 0 : index
    %973 = vector.load %arg14[%c0_560, %972, %c0_561] : memref<4x64x32xf32, #tpu.memory_space<vmem>>, vector<1x8x32xf32>
    %974 = vector.shape_cast %973 : vector<1x8x32xf32> to vector<8x32xf32>
    %c0_562 = arith.constant 0 : index
    %c0_563 = arith.constant 0 : index
    %c0_564 = arith.constant 0 : index
    %975 = vector.load %arg9[%c0_562, %c0_563, %c0_564] : memref<4x32x32xf32, #tpu.memory_space<vmem>>, vector<1x32x32xf32>
    %976 = vector.shape_cast %975 : vector<1x32x32xf32> to vector<32x32xf32>
    %cst_565 = arith.constant dense<0.000000e+00> : vector<8x32xf32>
    %977 = tpu.matmul %967, %976, %cst_565 {dimension_numbers = #tpu.dot_dimension_numbers<[1], [0], [0], [1], [0, 0, 1, 1], [], []>} : vector<8x32xf32>, vector<32x32xf32>, vector<8x32xf32> -> vector<8x32xf32>
    %978 = arith.addf %974, %977 : vector<8x32xf32>
    %979 = arith.negf %978 : vector<8x32xf32>
    %980 = math.exp %979 : vector<8x32xf32>
    %cst_566 = arith.constant 1.000000e+00 : f32
    %981 = vector.broadcast %cst_566 : f32 to vector<8x32xf32>
    %982 = arith.addf %981, %980 : vector<8x32xf32>
    %983 = arith.divf %981, %982 : vector<8x32xf32>
    %c1_567 = arith.constant 1 : index
    %984 = arith.index_cast %971 : i32 to index
    %c0_568 = arith.constant 0 : index
    %985 = vector.load %arg14[%c1_567, %984, %c0_568] : memref<4x64x32xf32, #tpu.memory_space<vmem>>, vector<1x8x32xf32>
    %986 = vector.shape_cast %985 : vector<1x8x32xf32> to vector<8x32xf32>
    %c1_569 = arith.constant 1 : index
    %c0_570 = arith.constant 0 : index
    %c0_571 = arith.constant 0 : index
    %987 = vector.load %arg9[%c1_569, %c0_570, %c0_571] : memref<4x32x32xf32, #tpu.memory_space<vmem>>, vector<1x32x32xf32>
    %988 = vector.shape_cast %987 : vector<1x32x32xf32> to vector<32x32xf32>
    %cst_572 = arith.constant dense<0.000000e+00> : vector<8x32xf32>
    %989 = tpu.matmul %967, %988, %cst_572 {dimension_numbers = #tpu.dot_dimension_numbers<[1], [0], [0], [1], [0, 0, 1, 1], [], []>} : vector<8x32xf32>, vector<32x32xf32>, vector<8x32xf32> -> vector<8x32xf32>
    %990 = arith.addf %986, %989 : vector<8x32xf32>
    %991 = arith.negf %990 : vector<8x32xf32>
    %992 = math.exp %991 : vector<8x32xf32>
    %cst_573 = arith.constant 1.000000e+00 : f32
    %993 = vector.broadcast %cst_573 : f32 to vector<8x32xf32>
    %994 = arith.addf %993, %992 : vector<8x32xf32>
    %995 = arith.divf %993, %994 : vector<8x32xf32>
    %c2_574 = arith.constant 2 : index
    %996 = arith.index_cast %971 : i32 to index
    %c0_575 = arith.constant 0 : index
    %997 = vector.load %arg14[%c2_574, %996, %c0_575] : memref<4x64x32xf32, #tpu.memory_space<vmem>>, vector<1x8x32xf32>
    %998 = vector.shape_cast %997 : vector<1x8x32xf32> to vector<8x32xf32>
    %c2_576 = arith.constant 2 : index
    %c0_577 = arith.constant 0 : index
    %c0_578 = arith.constant 0 : index
    %999 = vector.load %arg9[%c2_576, %c0_577, %c0_578] : memref<4x32x32xf32, #tpu.memory_space<vmem>>, vector<1x32x32xf32>
    %1000 = vector.shape_cast %999 : vector<1x32x32xf32> to vector<32x32xf32>
    %cst_579 = arith.constant dense<0.000000e+00> : vector<8x32xf32>
    %1001 = tpu.matmul %967, %1000, %cst_579 {dimension_numbers = #tpu.dot_dimension_numbers<[1], [0], [0], [1], [0, 0, 1, 1], [], []>} : vector<8x32xf32>, vector<32x32xf32>, vector<8x32xf32> -> vector<8x32xf32>
    %1002 = arith.addf %998, %1001 : vector<8x32xf32>
    %1003 = math.tanh %1002 : vector<8x32xf32>
    %c3_580 = arith.constant 3 : index
    %1004 = arith.index_cast %971 : i32 to index
    %c0_581 = arith.constant 0 : index
    %1005 = vector.load %arg14[%c3_580, %1004, %c0_581] : memref<4x64x32xf32, #tpu.memory_space<vmem>>, vector<1x8x32xf32>
    %1006 = vector.shape_cast %1005 : vector<1x8x32xf32> to vector<8x32xf32>
    %c3_582 = arith.constant 3 : index
    %c0_583 = arith.constant 0 : index
    %c0_584 = arith.constant 0 : index
    %1007 = vector.load %arg9[%c3_582, %c0_583, %c0_584] : memref<4x32x32xf32, #tpu.memory_space<vmem>>, vector<1x32x32xf32>
    %1008 = vector.shape_cast %1007 : vector<1x32x32xf32> to vector<32x32xf32>
    %cst_585 = arith.constant dense<0.000000e+00> : vector<8x32xf32>
    %1009 = tpu.matmul %967, %1008, %cst_585 {dimension_numbers = #tpu.dot_dimension_numbers<[1], [0], [0], [1], [0, 0, 1, 1], [], []>} : vector<8x32xf32>, vector<32x32xf32>, vector<8x32xf32> -> vector<8x32xf32>
    %1010 = arith.addf %1006, %1009 : vector<8x32xf32>
    %1011 = arith.negf %1010 : vector<8x32xf32>
    %1012 = math.exp %1011 : vector<8x32xf32>
    %cst_586 = arith.constant 1.000000e+00 : f32
    %1013 = vector.broadcast %cst_586 : f32 to vector<8x32xf32>
    %1014 = arith.addf %1013, %1012 : vector<8x32xf32>
    %1015 = arith.divf %1013, %1014 : vector<8x32xf32>
    %1016 = arith.mulf %995, %965 : vector<8x32xf32>
    %1017 = arith.mulf %983, %1003 : vector<8x32xf32>
    %1018 = arith.addf %1016, %1017 : vector<8x32xf32>
    %1019 = math.tanh %1018 : vector<8x32xf32>
    %1020 = arith.mulf %1015, %1019 : vector<8x32xf32>
    %1021 = arith.index_cast %971 : i32 to index
    %c0_587 = arith.constant 0 : index
    %1022 = vector.load %arg15[%1021, %c0_587] : memref<64x32xf32, #tpu.memory_space<vmem>>, vector<8x32xf32>
    tpu.vector_store %arg15[%1021, %c0_587], %1020 {strides = array<i32>} : memref<64x32xf32, #tpu.memory_space<vmem>>, vector<8x32xf32>,
    %c2_i32_588 = arith.constant 2 : i32
    %c8_i32_589 = arith.constant 8 : i32
    %1023 = arith.muli %c2_i32_588, %c8_i32_589 : i32
    %1024 = tpu.assume_multiple %1023, 8 : i32
    %c0_590 = arith.constant 0 : index
    %1025 = arith.index_cast %1024 : i32 to index
    %c0_591 = arith.constant 0 : index
    %1026 = vector.load %arg14[%c0_590, %1025, %c0_591] : memref<4x64x32xf32, #tpu.memory_space<vmem>>, vector<1x8x32xf32>
    %1027 = vector.shape_cast %1026 : vector<1x8x32xf32> to vector<8x32xf32>
    %c0_592 = arith.constant 0 : index
    %c0_593 = arith.constant 0 : index
    %c0_594 = arith.constant 0 : index
    %1028 = vector.load %arg9[%c0_592, %c0_593, %c0_594] : memref<4x32x32xf32, #tpu.memory_space<vmem>>, vector<1x32x32xf32>
    %1029 = vector.shape_cast %1028 : vector<1x32x32xf32> to vector<32x32xf32>
    %cst_595 = arith.constant dense<0.000000e+00> : vector<8x32xf32>
    %1030 = tpu.matmul %1020, %1029, %cst_595 {dimension_numbers = #tpu.dot_dimension_numbers<[1], [0], [0], [1], [0, 0, 1, 1], [], []>} : vector<8x32xf32>, vector<32x32xf32>, vector<8x32xf32> -> vector<8x32xf32>
    %1031 = arith.addf %1027, %1030 : vector<8x32xf32>
    %1032 = arith.negf %1031 : vector<8x32xf32>
    %1033 = math.exp %1032 : vector<8x32xf32>
    %cst_596 = arith.constant 1.000000e+00 : f32
    %1034 = vector.broadcast %cst_596 : f32 to vector<8x32xf32>
    %1035 = arith.addf %1034, %1033 : vector<8x32xf32>
    %1036 = arith.divf %1034, %1035 : vector<8x32xf32>
    %c1_597 = arith.constant 1 : index
    %1037 = arith.index_cast %1024 : i32 to index
    %c0_598 = arith.constant 0 : index
    %1038 = vector.load %arg14[%c1_597, %1037, %c0_598] : memref<4x64x32xf32, #tpu.memory_space<vmem>>, vector<1x8x32xf32>
    %1039 = vector.shape_cast %1038 : vector<1x8x32xf32> to vector<8x32xf32>
    %c1_599 = arith.constant 1 : index
    %c0_600 = arith.constant 0 : index
    %c0_601 = arith.constant 0 : index
    %1040 = vector.load %arg9[%c1_599, %c0_600, %c0_601] : memref<4x32x32xf32, #tpu.memory_space<vmem>>, vector<1x32x32xf32>
    %1041 = vector.shape_cast %1040 : vector<1x32x32xf32> to vector<32x32xf32>
    %cst_602 = arith.constant dense<0.000000e+00> : vector<8x32xf32>
    %1042 = tpu.matmul %1020, %1041, %cst_602 {dimension_numbers = #tpu.dot_dimension_numbers<[1], [0], [0], [1], [0, 0, 1, 1], [], []>} : vector<8x32xf32>, vector<32x32xf32>, vector<8x32xf32> -> vector<8x32xf32>
    %1043 = arith.addf %1039, %1042 : vector<8x32xf32>
    %1044 = arith.negf %1043 : vector<8x32xf32>
    %1045 = math.exp %1044 : vector<8x32xf32>
    %cst_603 = arith.constant 1.000000e+00 : f32
    %1046 = vector.broadcast %cst_603 : f32 to vector<8x32xf32>
    %1047 = arith.addf %1046, %1045 : vector<8x32xf32>
    %1048 = arith.divf %1046, %1047 : vector<8x32xf32>
    %c2_604 = arith.constant 2 : index
    %1049 = arith.index_cast %1024 : i32 to index
    %c0_605 = arith.constant 0 : index
    %1050 = vector.load %arg14[%c2_604, %1049, %c0_605] : memref<4x64x32xf32, #tpu.memory_space<vmem>>, vector<1x8x32xf32>
    %1051 = vector.shape_cast %1050 : vector<1x8x32xf32> to vector<8x32xf32>
    %c2_606 = arith.constant 2 : index
    %c0_607 = arith.constant 0 : index
    %c0_608 = arith.constant 0 : index
    %1052 = vector.load %arg9[%c2_606, %c0_607, %c0_608] : memref<4x32x32xf32, #tpu.memory_space<vmem>>, vector<1x32x32xf32>
    %1053 = vector.shape_cast %1052 : vector<1x32x32xf32> to vector<32x32xf32>
    %cst_609 = arith.constant dense<0.000000e+00> : vector<8x32xf32>
    %1054 = tpu.matmul %1020, %1053, %cst_609 {dimension_numbers = #tpu.dot_dimension_numbers<[1], [0], [0], [1], [0, 0, 1, 1], [], []>} : vector<8x32xf32>, vector<32x32xf32>, vector<8x32xf32> -> vector<8x32xf32>
    %1055 = arith.addf %1051, %1054 : vector<8x32xf32>
    %1056 = math.tanh %1055 : vector<8x32xf32>
    %c3_610 = arith.constant 3 : index
    %1057 = arith.index_cast %1024 : i32 to index
    %c0_611 = arith.constant 0 : index
    %1058 = vector.load %arg14[%c3_610, %1057, %c0_611] : memref<4x64x32xf32, #tpu.memory_space<vmem>>, vector<1x8x32xf32>
    %1059 = vector.shape_cast %1058 : vector<1x8x32xf32> to vector<8x32xf32>
    %c3_612 = arith.constant 3 : index
    %c0_613 = arith.constant 0 : index
    %c0_614 = arith.constant 0 : index
    %1060 = vector.load %arg9[%c3_612, %c0_613, %c0_614] : memref<4x32x32xf32, #tpu.memory_space<vmem>>, vector<1x32x32xf32>
    %1061 = vector.shape_cast %1060 : vector<1x32x32xf32> to vector<32x32xf32>
    %cst_615 = arith.constant dense<0.000000e+00> : vector<8x32xf32>
    %1062 = tpu.matmul %1020, %1061, %cst_615 {dimension_numbers = #tpu.dot_dimension_numbers<[1], [0], [0], [1], [0, 0, 1, 1], [], []>} : vector<8x32xf32>, vector<32x32xf32>, vector<8x32xf32> -> vector<8x32xf32>
    %1063 = arith.addf %1059, %1062 : vector<8x32xf32>
    %1064 = arith.negf %1063 : vector<8x32xf32>
    %1065 = math.exp %1064 : vector<8x32xf32>
    %cst_616 = arith.constant 1.000000e+00 : f32
    %1066 = vector.broadcast %cst_616 : f32 to vector<8x32xf32>
    %1067 = arith.addf %1066, %1065 : vector<8x32xf32>
    %1068 = arith.divf %1066, %1067 : vector<8x32xf32>
    %1069 = arith.mulf %1048, %1018 : vector<8x32xf32>
    %1070 = arith.mulf %1036, %1056 : vector<8x32xf32>
    %1071 = arith.addf %1069, %1070 : vector<8x32xf32>
    %1072 = math.tanh %1071 : vector<8x32xf32>
    %1073 = arith.mulf %1068, %1072 : vector<8x32xf32>
    %1074 = arith.index_cast %1024 : i32 to index
    %c0_617 = arith.constant 0 : index
    %1075 = vector.load %arg15[%1074, %c0_617] : memref<64x32xf32, #tpu.memory_space<vmem>>, vector<8x32xf32>
    tpu.vector_store %arg15[%1074, %c0_617], %1073 {strides = array<i32>} : memref<64x32xf32, #tpu.memory_space<vmem>>, vector<8x32xf32>,
    %c3_i32_618 = arith.constant 3 : i32
    %c8_i32_619 = arith.constant 8 : i32
    %1076 = arith.muli %c3_i32_618, %c8_i32_619 : i32
    %1077 = tpu.assume_multiple %1076, 8 : i32
    %c0_620 = arith.constant 0 : index
    %1078 = arith.index_cast %1077 : i32 to index
    %c0_621 = arith.constant 0 : index
    %1079 = vector.load %arg14[%c0_620, %1078, %c0_621] : memref<4x64x32xf32, #tpu.memory_space<vmem>>, vector<1x8x32xf32>
    %1080 = vector.shape_cast %1079 : vector<1x8x32xf32> to vector<8x32xf32>
    %c0_622 = arith.constant 0 : index
    %c0_623 = arith.constant 0 : index
    %c0_624 = arith.constant 0 : index
    %1081 = vector.load %arg9[%c0_622, %c0_623, %c0_624] : memref<4x32x32xf32, #tpu.memory_space<vmem>>, vector<1x32x32xf32>
    %1082 = vector.shape_cast %1081 : vector<1x32x32xf32> to vector<32x32xf32>
    %cst_625 = arith.constant dense<0.000000e+00> : vector<8x32xf32>
    %1083 = tpu.matmul %1073, %1082, %cst_625 {dimension_numbers = #tpu.dot_dimension_numbers<[1], [0], [0], [1], [0, 0, 1, 1], [], []>} : vector<8x32xf32>, vector<32x32xf32>, vector<8x32xf32> -> vector<8x32xf32>
    %1084 = arith.addf %1080, %1083 : vector<8x32xf32>
    %1085 = arith.negf %1084 : vector<8x32xf32>
    %1086 = math.exp %1085 : vector<8x32xf32>
    %cst_626 = arith.constant 1.000000e+00 : f32
    %1087 = vector.broadcast %cst_626 : f32 to vector<8x32xf32>
    %1088 = arith.addf %1087, %1086 : vector<8x32xf32>
    %1089 = arith.divf %1087, %1088 : vector<8x32xf32>
    %c1_627 = arith.constant 1 : index
    %1090 = arith.index_cast %1077 : i32 to index
    %c0_628 = arith.constant 0 : index
    %1091 = vector.load %arg14[%c1_627, %1090, %c0_628] : memref<4x64x32xf32, #tpu.memory_space<vmem>>, vector<1x8x32xf32>
    %1092 = vector.shape_cast %1091 : vector<1x8x32xf32> to vector<8x32xf32>
    %c1_629 = arith.constant 1 : index
    %c0_630 = arith.constant 0 : index
    %c0_631 = arith.constant 0 : index
    %1093 = vector.load %arg9[%c1_629, %c0_630, %c0_631] : memref<4x32x32xf32, #tpu.memory_space<vmem>>, vector<1x32x32xf32>
    %1094 = vector.shape_cast %1093 : vector<1x32x32xf32> to vector<32x32xf32>
    %cst_632 = arith.constant dense<0.000000e+00> : vector<8x32xf32>
    %1095 = tpu.matmul %1073, %1094, %cst_632 {dimension_numbers = #tpu.dot_dimension_numbers<[1], [0], [0], [1], [0, 0, 1, 1], [], []>} : vector<8x32xf32>, vector<32x32xf32>, vector<8x32xf32> -> vector<8x32xf32>
    %1096 = arith.addf %1092, %1095 : vector<8x32xf32>
    %1097 = arith.negf %1096 : vector<8x32xf32>
    %1098 = math.exp %1097 : vector<8x32xf32>
    %cst_633 = arith.constant 1.000000e+00 : f32
    %1099 = vector.broadcast %cst_633 : f32 to vector<8x32xf32>
    %1100 = arith.addf %1099, %1098 : vector<8x32xf32>
    %1101 = arith.divf %1099, %1100 : vector<8x32xf32>
    %c2_634 = arith.constant 2 : index
    %1102 = arith.index_cast %1077 : i32 to index
    %c0_635 = arith.constant 0 : index
    %1103 = vector.load %arg14[%c2_634, %1102, %c0_635] : memref<4x64x32xf32, #tpu.memory_space<vmem>>, vector<1x8x32xf32>
    %1104 = vector.shape_cast %1103 : vector<1x8x32xf32> to vector<8x32xf32>
    %c2_636 = arith.constant 2 : index
    %c0_637 = arith.constant 0 : index
    %c0_638 = arith.constant 0 : index
    %1105 = vector.load %arg9[%c2_636, %c0_637, %c0_638] : memref<4x32x32xf32, #tpu.memory_space<vmem>>, vector<1x32x32xf32>
    %1106 = vector.shape_cast %1105 : vector<1x32x32xf32> to vector<32x32xf32>
    %cst_639 = arith.constant dense<0.000000e+00> : vector<8x32xf32>
    %1107 = tpu.matmul %1073, %1106, %cst_639 {dimension_numbers = #tpu.dot_dimension_numbers<[1], [0], [0], [1], [0, 0, 1, 1], [], []>} : vector<8x32xf32>, vector<32x32xf32>, vector<8x32xf32> -> vector<8x32xf32>
    %1108 = arith.addf %1104, %1107 : vector<8x32xf32>
    %1109 = math.tanh %1108 : vector<8x32xf32>
    %c3_640 = arith.constant 3 : index
    %1110 = arith.index_cast %1077 : i32 to index
    %c0_641 = arith.constant 0 : index
    %1111 = vector.load %arg14[%c3_640, %1110, %c0_641] : memref<4x64x32xf32, #tpu.memory_space<vmem>>, vector<1x8x32xf32>
    %1112 = vector.shape_cast %1111 : vector<1x8x32xf32> to vector<8x32xf32>
    %c3_642 = arith.constant 3 : index
    %c0_643 = arith.constant 0 : index
    %c0_644 = arith.constant 0 : index
    %1113 = vector.load %arg9[%c3_642, %c0_643, %c0_644] : memref<4x32x32xf32, #tpu.memory_space<vmem>>, vector<1x32x32xf32>
    %1114 = vector.shape_cast %1113 : vector<1x32x32xf32> to vector<32x32xf32>
    %cst_645 = arith.constant dense<0.000000e+00> : vector<8x32xf32>
    %1115 = tpu.matmul %1073, %1114, %cst_645 {dimension_numbers = #tpu.dot_dimension_numbers<[1], [0], [0], [1], [0, 0, 1, 1], [], []>} : vector<8x32xf32>, vector<32x32xf32>, vector<8x32xf32> -> vector<8x32xf32>
    %1116 = arith.addf %1112, %1115 : vector<8x32xf32>
    %1117 = arith.negf %1116 : vector<8x32xf32>
    %1118 = math.exp %1117 : vector<8x32xf32>
    %cst_646 = arith.constant 1.000000e+00 : f32
    %1119 = vector.broadcast %cst_646 : f32 to vector<8x32xf32>
    %1120 = arith.addf %1119, %1118 : vector<8x32xf32>
    %1121 = arith.divf %1119, %1120 : vector<8x32xf32>
    %1122 = arith.mulf %1101, %1071 : vector<8x32xf32>
    %1123 = arith.mulf %1089, %1109 : vector<8x32xf32>
    %1124 = arith.addf %1122, %1123 : vector<8x32xf32>
    %1125 = math.tanh %1124 : vector<8x32xf32>
    %1126 = arith.mulf %1121, %1125 : vector<8x32xf32>
    %1127 = arith.index_cast %1077 : i32 to index
    %c0_647 = arith.constant 0 : index
    %1128 = vector.load %arg15[%1127, %c0_647] : memref<64x32xf32, #tpu.memory_space<vmem>>, vector<8x32xf32>
    tpu.vector_store %arg15[%1127, %c0_647], %1126 {strides = array<i32>} : memref<64x32xf32, #tpu.memory_space<vmem>>, vector<8x32xf32>,
    %c4_i32_648 = arith.constant 4 : i32
    %c8_i32_649 = arith.constant 8 : i32
    %1129 = arith.muli %c4_i32_648, %c8_i32_649 : i32
    %1130 = tpu.assume_multiple %1129, 8 : i32
    %c0_650 = arith.constant 0 : index
    %1131 = arith.index_cast %1130 : i32 to index
    %c0_651 = arith.constant 0 : index
    %1132 = vector.load %arg14[%c0_650, %1131, %c0_651] : memref<4x64x32xf32, #tpu.memory_space<vmem>>, vector<1x8x32xf32>
    %1133 = vector.shape_cast %1132 : vector<1x8x32xf32> to vector<8x32xf32>
    %c0_652 = arith.constant 0 : index
    %c0_653 = arith.constant 0 : index
    %c0_654 = arith.constant 0 : index
    %1134 = vector.load %arg9[%c0_652, %c0_653, %c0_654] : memref<4x32x32xf32, #tpu.memory_space<vmem>>, vector<1x32x32xf32>
    %1135 = vector.shape_cast %1134 : vector<1x32x32xf32> to vector<32x32xf32>
    %cst_655 = arith.constant dense<0.000000e+00> : vector<8x32xf32>
    %1136 = tpu.matmul %1126, %1135, %cst_655 {dimension_numbers = #tpu.dot_dimension_numbers<[1], [0], [0], [1], [0, 0, 1, 1], [], []>} : vector<8x32xf32>, vector<32x32xf32>, vector<8x32xf32> -> vector<8x32xf32>
    %1137 = arith.addf %1133, %1136 : vector<8x32xf32>
    %1138 = arith.negf %1137 : vector<8x32xf32>
    %1139 = math.exp %1138 : vector<8x32xf32>
    %cst_656 = arith.constant 1.000000e+00 : f32
    %1140 = vector.broadcast %cst_656 : f32 to vector<8x32xf32>
    %1141 = arith.addf %1140, %1139 : vector<8x32xf32>
    %1142 = arith.divf %1140, %1141 : vector<8x32xf32>
    %c1_657 = arith.constant 1 : index
    %1143 = arith.index_cast %1130 : i32 to index
    %c0_658 = arith.constant 0 : index
    %1144 = vector.load %arg14[%c1_657, %1143, %c0_658] : memref<4x64x32xf32, #tpu.memory_space<vmem>>, vector<1x8x32xf32>
    %1145 = vector.shape_cast %1144 : vector<1x8x32xf32> to vector<8x32xf32>
    %c1_659 = arith.constant 1 : index
    %c0_660 = arith.constant 0 : index
    %c0_661 = arith.constant 0 : index
    %1146 = vector.load %arg9[%c1_659, %c0_660, %c0_661] : memref<4x32x32xf32, #tpu.memory_space<vmem>>, vector<1x32x32xf32>
    %1147 = vector.shape_cast %1146 : vector<1x32x32xf32> to vector<32x32xf32>
    %cst_662 = arith.constant dense<0.000000e+00> : vector<8x32xf32>
    %1148 = tpu.matmul %1126, %1147, %cst_662 {dimension_numbers = #tpu.dot_dimension_numbers<[1], [0], [0], [1], [0, 0, 1, 1], [], []>} : vector<8x32xf32>, vector<32x32xf32>, vector<8x32xf32> -> vector<8x32xf32>
    %1149 = arith.addf %1145, %1148 : vector<8x32xf32>
    %1150 = arith.negf %1149 : vector<8x32xf32>
    %1151 = math.exp %1150 : vector<8x32xf32>
    %cst_663 = arith.constant 1.000000e+00 : f32
    %1152 = vector.broadcast %cst_663 : f32 to vector<8x32xf32>
    %1153 = arith.addf %1152, %1151 : vector<8x32xf32>
    %1154 = arith.divf %1152, %1153 : vector<8x32xf32>
    %c2_664 = arith.constant 2 : index
    %1155 = arith.index_cast %1130 : i32 to index
    %c0_665 = arith.constant 0 : index
    %1156 = vector.load %arg14[%c2_664, %1155, %c0_665] : memref<4x64x32xf32, #tpu.memory_space<vmem>>, vector<1x8x32xf32>
    %1157 = vector.shape_cast %1156 : vector<1x8x32xf32> to vector<8x32xf32>
    %c2_666 = arith.constant 2 : index
    %c0_667 = arith.constant 0 : index
    %c0_668 = arith.constant 0 : index
    %1158 = vector.load %arg9[%c2_666, %c0_667, %c0_668] : memref<4x32x32xf32, #tpu.memory_space<vmem>>, vector<1x32x32xf32>
    %1159 = vector.shape_cast %1158 : vector<1x32x32xf32> to vector<32x32xf32>
    %cst_669 = arith.constant dense<0.000000e+00> : vector<8x32xf32>
    %1160 = tpu.matmul %1126, %1159, %cst_669 {dimension_numbers = #tpu.dot_dimension_numbers<[1], [0], [0], [1], [0, 0, 1, 1], [], []>} : vector<8x32xf32>, vector<32x32xf32>, vector<8x32xf32> -> vector<8x32xf32>
    %1161 = arith.addf %1157, %1160 : vector<8x32xf32>
    %1162 = math.tanh %1161 : vector<8x32xf32>
    %c3_670 = arith.constant 3 : index
    %1163 = arith.index_cast %1130 : i32 to index
    %c0_671 = arith.constant 0 : index
    %1164 = vector.load %arg14[%c3_670, %1163, %c0_671] : memref<4x64x32xf32, #tpu.memory_space<vmem>>, vector<1x8x32xf32>
    %1165 = vector.shape_cast %1164 : vector<1x8x32xf32> to vector<8x32xf32>
    %c3_672 = arith.constant 3 : index
    %c0_673 = arith.constant 0 : index
    %c0_674 = arith.constant 0 : index
    %1166 = vector.load %arg9[%c3_672, %c0_673, %c0_674] : memref<4x32x32xf32, #tpu.memory_space<vmem>>, vector<1x32x32xf32>
    %1167 = vector.shape_cast %1166 : vector<1x32x32xf32> to vector<32x32xf32>
    %cst_675 = arith.constant dense<0.000000e+00> : vector<8x32xf32>
    %1168 = tpu.matmul %1126, %1167, %cst_675 {dimension_numbers = #tpu.dot_dimension_numbers<[1], [0], [0], [1], [0, 0, 1, 1], [], []>} : vector<8x32xf32>, vector<32x32xf32>, vector<8x32xf32> -> vector<8x32xf32>
    %1169 = arith.addf %1165, %1168 : vector<8x32xf32>
    %1170 = arith.negf %1169 : vector<8x32xf32>
    %1171 = math.exp %1170 : vector<8x32xf32>
    %cst_676 = arith.constant 1.000000e+00 : f32
    %1172 = vector.broadcast %cst_676 : f32 to vector<8x32xf32>
    %1173 = arith.addf %1172, %1171 : vector<8x32xf32>
    %1174 = arith.divf %1172, %1173 : vector<8x32xf32>
    %1175 = arith.mulf %1154, %1124 : vector<8x32xf32>
    %1176 = arith.mulf %1142, %1162 : vector<8x32xf32>
    %1177 = arith.addf %1175, %1176 : vector<8x32xf32>
    %1178 = math.tanh %1177 : vector<8x32xf32>
    %1179 = arith.mulf %1174, %1178 : vector<8x32xf32>
    %1180 = arith.index_cast %1130 : i32 to index
    %c0_677 = arith.constant 0 : index
    %1181 = vector.load %arg15[%1180, %c0_677] : memref<64x32xf32, #tpu.memory_space<vmem>>, vector<8x32xf32>
    tpu.vector_store %arg15[%1180, %c0_677], %1179 {strides = array<i32>} : memref<64x32xf32, #tpu.memory_space<vmem>>, vector<8x32xf32>,
    %c5_i32_678 = arith.constant 5 : i32
    %c8_i32_679 = arith.constant 8 : i32
    %1182 = arith.muli %c5_i32_678, %c8_i32_679 : i32
    %1183 = tpu.assume_multiple %1182, 8 : i32
    %c0_680 = arith.constant 0 : index
    %1184 = arith.index_cast %1183 : i32 to index
    %c0_681 = arith.constant 0 : index
    %1185 = vector.load %arg14[%c0_680, %1184, %c0_681] : memref<4x64x32xf32, #tpu.memory_space<vmem>>, vector<1x8x32xf32>
    %1186 = vector.shape_cast %1185 : vector<1x8x32xf32> to vector<8x32xf32>
    %c0_682 = arith.constant 0 : index
    %c0_683 = arith.constant 0 : index
    %c0_684 = arith.constant 0 : index
    %1187 = vector.load %arg9[%c0_682, %c0_683, %c0_684] : memref<4x32x32xf32, #tpu.memory_space<vmem>>, vector<1x32x32xf32>
    %1188 = vector.shape_cast %1187 : vector<1x32x32xf32> to vector<32x32xf32>
    %cst_685 = arith.constant dense<0.000000e+00> : vector<8x32xf32>
    %1189 = tpu.matmul %1179, %1188, %cst_685 {dimension_numbers = #tpu.dot_dimension_numbers<[1], [0], [0], [1], [0, 0, 1, 1], [], []>} : vector<8x32xf32>, vector<32x32xf32>, vector<8x32xf32> -> vector<8x32xf32>
    %1190 = arith.addf %1186, %1189 : vector<8x32xf32>
    %1191 = arith.negf %1190 : vector<8x32xf32>
    %1192 = math.exp %1191 : vector<8x32xf32>
    %cst_686 = arith.constant 1.000000e+00 : f32
    %1193 = vector.broadcast %cst_686 : f32 to vector<8x32xf32>
    %1194 = arith.addf %1193, %1192 : vector<8x32xf32>
    %1195 = arith.divf %1193, %1194 : vector<8x32xf32>
    %c1_687 = arith.constant 1 : index
    %1196 = arith.index_cast %1183 : i32 to index
    %c0_688 = arith.constant 0 : index
    %1197 = vector.load %arg14[%c1_687, %1196, %c0_688] : memref<4x64x32xf32, #tpu.memory_space<vmem>>, vector<1x8x32xf32>
    %1198 = vector.shape_cast %1197 : vector<1x8x32xf32> to vector<8x32xf32>
    %c1_689 = arith.constant 1 : index
    %c0_690 = arith.constant 0 : index
    %c0_691 = arith.constant 0 : index
    %1199 = vector.load %arg9[%c1_689, %c0_690, %c0_691] : memref<4x32x32xf32, #tpu.memory_space<vmem>>, vector<1x32x32xf32>
    %1200 = vector.shape_cast %1199 : vector<1x32x32xf32> to vector<32x32xf32>
    %cst_692 = arith.constant dense<0.000000e+00> : vector<8x32xf32>
    %1201 = tpu.matmul %1179, %1200, %cst_692 {dimension_numbers = #tpu.dot_dimension_numbers<[1], [0], [0], [1], [0, 0, 1, 1], [], []>} : vector<8x32xf32>, vector<32x32xf32>, vector<8x32xf32> -> vector<8x32xf32>
    %1202 = arith.addf %1198, %1201 : vector<8x32xf32>
    %1203 = arith.negf %1202 : vector<8x32xf32>
    %1204 = math.exp %1203 : vector<8x32xf32>
    %cst_693 = arith.constant 1.000000e+00 : f32
    %1205 = vector.broadcast %cst_693 : f32 to vector<8x32xf32>
    %1206 = arith.addf %1205, %1204 : vector<8x32xf32>
    %1207 = arith.divf %1205, %1206 : vector<8x32xf32>
    %c2_694 = arith.constant 2 : index
    %1208 = arith.index_cast %1183 : i32 to index
    %c0_695 = arith.constant 0 : index
    %1209 = vector.load %arg14[%c2_694, %1208, %c0_695] : memref<4x64x32xf32, #tpu.memory_space<vmem>>, vector<1x8x32xf32>
    %1210 = vector.shape_cast %1209 : vector<1x8x32xf32> to vector<8x32xf32>
    %c2_696 = arith.constant 2 : index
    %c0_697 = arith.constant 0 : index
    %c0_698 = arith.constant 0 : index
    %1211 = vector.load %arg9[%c2_696, %c0_697, %c0_698] : memref<4x32x32xf32, #tpu.memory_space<vmem>>, vector<1x32x32xf32>
    %1212 = vector.shape_cast %1211 : vector<1x32x32xf32> to vector<32x32xf32>
    %cst_699 = arith.constant dense<0.000000e+00> : vector<8x32xf32>
    %1213 = tpu.matmul %1179, %1212, %cst_699 {dimension_numbers = #tpu.dot_dimension_numbers<[1], [0], [0], [1], [0, 0, 1, 1], [], []>} : vector<8x32xf32>, vector<32x32xf32>, vector<8x32xf32> -> vector<8x32xf32>
    %1214 = arith.addf %1210, %1213 : vector<8x32xf32>
    %1215 = math.tanh %1214 : vector<8x32xf32>
    %c3_700 = arith.constant 3 : index
    %1216 = arith.index_cast %1183 : i32 to index
    %c0_701 = arith.constant 0 : index
    %1217 = vector.load %arg14[%c3_700, %1216, %c0_701] : memref<4x64x32xf32, #tpu.memory_space<vmem>>, vector<1x8x32xf32>
    %1218 = vector.shape_cast %1217 : vector<1x8x32xf32> to vector<8x32xf32>
    %c3_702 = arith.constant 3 : index
    %c0_703 = arith.constant 0 : index
    %c0_704 = arith.constant 0 : index
    %1219 = vector.load %arg9[%c3_702, %c0_703, %c0_704] : memref<4x32x32xf32, #tpu.memory_space<vmem>>, vector<1x32x32xf32>
    %1220 = vector.shape_cast %1219 : vector<1x32x32xf32> to vector<32x32xf32>
    %cst_705 = arith.constant dense<0.000000e+00> : vector<8x32xf32>
    %1221 = tpu.matmul %1179, %1220, %cst_705 {dimension_numbers = #tpu.dot_dimension_numbers<[1], [0], [0], [1], [0, 0, 1, 1], [], []>} : vector<8x32xf32>, vector<32x32xf32>, vector<8x32xf32> -> vector<8x32xf32>
    %1222 = arith.addf %1218, %1221 : vector<8x32xf32>
    %1223 = arith.negf %1222 : vector<8x32xf32>
    %1224 = math.exp %1223 : vector<8x32xf32>
    %cst_706 = arith.constant 1.000000e+00 : f32
    %1225 = vector.broadcast %cst_706 : f32 to vector<8x32xf32>
    %1226 = arith.addf %1225, %1224 : vector<8x32xf32>
    %1227 = arith.divf %1225, %1226 : vector<8x32xf32>
    %1228 = arith.mulf %1207, %1177 : vector<8x32xf32>
    %1229 = arith.mulf %1195, %1215 : vector<8x32xf32>
    %1230 = arith.addf %1228, %1229 : vector<8x32xf32>
    %1231 = math.tanh %1230 : vector<8x32xf32>
    %1232 = arith.mulf %1227, %1231 : vector<8x32xf32>
    %1233 = arith.index_cast %1183 : i32 to index
    %c0_707 = arith.constant 0 : index
    %1234 = vector.load %arg15[%1233, %c0_707] : memref<64x32xf32, #tpu.memory_space<vmem>>, vector<8x32xf32>
    tpu.vector_store %arg15[%1233, %c0_707], %1232 {strides = array<i32>} : memref<64x32xf32, #tpu.memory_space<vmem>>, vector<8x32xf32>,
    %c6_i32_708 = arith.constant 6 : i32
    %c8_i32_709 = arith.constant 8 : i32
    %1235 = arith.muli %c6_i32_708, %c8_i32_709 : i32
    %1236 = tpu.assume_multiple %1235, 8 : i32
    %c0_710 = arith.constant 0 : index
    %1237 = arith.index_cast %1236 : i32 to index
    %c0_711 = arith.constant 0 : index
    %1238 = vector.load %arg14[%c0_710, %1237, %c0_711] : memref<4x64x32xf32, #tpu.memory_space<vmem>>, vector<1x8x32xf32>
    %1239 = vector.shape_cast %1238 : vector<1x8x32xf32> to vector<8x32xf32>
    %c0_712 = arith.constant 0 : index
    %c0_713 = arith.constant 0 : index
    %c0_714 = arith.constant 0 : index
    %1240 = vector.load %arg9[%c0_712, %c0_713, %c0_714] : memref<4x32x32xf32, #tpu.memory_space<vmem>>, vector<1x32x32xf32>
    %1241 = vector.shape_cast %1240 : vector<1x32x32xf32> to vector<32x32xf32>
    %cst_715 = arith.constant dense<0.000000e+00> : vector<8x32xf32>
    %1242 = tpu.matmul %1232, %1241, %cst_715 {dimension_numbers = #tpu.dot_dimension_numbers<[1], [0], [0], [1], [0, 0, 1, 1], [], []>} : vector<8x32xf32>, vector<32x32xf32>, vector<8x32xf32> -> vector<8x32xf32>
    %1243 = arith.addf %1239, %1242 : vector<8x32xf32>
    %1244 = arith.negf %1243 : vector<8x32xf32>
    %1245 = math.exp %1244 : vector<8x32xf32>
    %cst_716 = arith.constant 1.000000e+00 : f32
    %1246 = vector.broadcast %cst_716 : f32 to vector<8x32xf32>
    %1247 = arith.addf %1246, %1245 : vector<8x32xf32>
    %1248 = arith.divf %1246, %1247 : vector<8x32xf32>
    %c1_717 = arith.constant 1 : index
    %1249 = arith.index_cast %1236 : i32 to index
    %c0_718 = arith.constant 0 : index
    %1250 = vector.load %arg14[%c1_717, %1249, %c0_718] : memref<4x64x32xf32, #tpu.memory_space<vmem>>, vector<1x8x32xf32>
    %1251 = vector.shape_cast %1250 : vector<1x8x32xf32> to vector<8x32xf32>
    %c1_719 = arith.constant 1 : index
    %c0_720 = arith.constant 0 : index
    %c0_721 = arith.constant 0 : index
    %1252 = vector.load %arg9[%c1_719, %c0_720, %c0_721] : memref<4x32x32xf32, #tpu.memory_space<vmem>>, vector<1x32x32xf32>
    %1253 = vector.shape_cast %1252 : vector<1x32x32xf32> to vector<32x32xf32>
    %cst_722 = arith.constant dense<0.000000e+00> : vector<8x32xf32>
    %1254 = tpu.matmul %1232, %1253, %cst_722 {dimension_numbers = #tpu.dot_dimension_numbers<[1], [0], [0], [1], [0, 0, 1, 1], [], []>} : vector<8x32xf32>, vector<32x32xf32>, vector<8x32xf32> -> vector<8x32xf32>
    %1255 = arith.addf %1251, %1254 : vector<8x32xf32>
    %1256 = arith.negf %1255 : vector<8x32xf32>
    %1257 = math.exp %1256 : vector<8x32xf32>
    %cst_723 = arith.constant 1.000000e+00 : f32
    %1258 = vector.broadcast %cst_723 : f32 to vector<8x32xf32>
    %1259 = arith.addf %1258, %1257 : vector<8x32xf32>
    %1260 = arith.divf %1258, %1259 : vector<8x32xf32>
    %c2_724 = arith.constant 2 : index
    %1261 = arith.index_cast %1236 : i32 to index
    %c0_725 = arith.constant 0 : index
    %1262 = vector.load %arg14[%c2_724, %1261, %c0_725] : memref<4x64x32xf32, #tpu.memory_space<vmem>>, vector<1x8x32xf32>
    %1263 = vector.shape_cast %1262 : vector<1x8x32xf32> to vector<8x32xf32>
    %c2_726 = arith.constant 2 : index
    %c0_727 = arith.constant 0 : index
    %c0_728 = arith.constant 0 : index
    %1264 = vector.load %arg9[%c2_726, %c0_727, %c0_728] : memref<4x32x32xf32, #tpu.memory_space<vmem>>, vector<1x32x32xf32>
    %1265 = vector.shape_cast %1264 : vector<1x32x32xf32> to vector<32x32xf32>
    %cst_729 = arith.constant dense<0.000000e+00> : vector<8x32xf32>
    %1266 = tpu.matmul %1232, %1265, %cst_729 {dimension_numbers = #tpu.dot_dimension_numbers<[1], [0], [0], [1], [0, 0, 1, 1], [], []>} : vector<8x32xf32>, vector<32x32xf32>, vector<8x32xf32> -> vector<8x32xf32>
    %1267 = arith.addf %1263, %1266 : vector<8x32xf32>
    %1268 = math.tanh %1267 : vector<8x32xf32>
    %c3_730 = arith.constant 3 : index
    %1269 = arith.index_cast %1236 : i32 to index
    %c0_731 = arith.constant 0 : index
    %1270 = vector.load %arg14[%c3_730, %1269, %c0_731] : memref<4x64x32xf32, #tpu.memory_space<vmem>>, vector<1x8x32xf32>
    %1271 = vector.shape_cast %1270 : vector<1x8x32xf32> to vector<8x32xf32>
    %c3_732 = arith.constant 3 : index
    %c0_733 = arith.constant 0 : index
    %c0_734 = arith.constant 0 : index
    %1272 = vector.load %arg9[%c3_732, %c0_733, %c0_734] : memref<4x32x32xf32, #tpu.memory_space<vmem>>, vector<1x32x32xf32>
    %1273 = vector.shape_cast %1272 : vector<1x32x32xf32> to vector<32x32xf32>
    %cst_735 = arith.constant dense<0.000000e+00> : vector<8x32xf32>
    %1274 = tpu.matmul %1232, %1273, %cst_735 {dimension_numbers = #tpu.dot_dimension_numbers<[1], [0], [0], [1], [0, 0, 1, 1], [], []>} : vector<8x32xf32>, vector<32x32xf32>, vector<8x32xf32> -> vector<8x32xf32>
    %1275 = arith.addf %1271, %1274 : vector<8x32xf32>
    %1276 = arith.negf %1275 : vector<8x32xf32>
    %1277 = math.exp %1276 : vector<8x32xf32>
    %cst_736 = arith.constant 1.000000e+00 : f32
    %1278 = vector.broadcast %cst_736 : f32 to vector<8x32xf32>
    %1279 = arith.addf %1278, %1277 : vector<8x32xf32>
    %1280 = arith.divf %1278, %1279 : vector<8x32xf32>
    %1281 = arith.mulf %1260, %1230 : vector<8x32xf32>
    %1282 = arith.mulf %1248, %1268 : vector<8x32xf32>
    %1283 = arith.addf %1281, %1282 : vector<8x32xf32>
    %1284 = math.tanh %1283 : vector<8x32xf32>
    %1285 = arith.mulf %1280, %1284 : vector<8x32xf32>
    %1286 = arith.index_cast %1236 : i32 to index
    %c0_737 = arith.constant 0 : index
    %1287 = vector.load %arg15[%1286, %c0_737] : memref<64x32xf32, #tpu.memory_space<vmem>>, vector<8x32xf32>
    tpu.vector_store %arg15[%1286, %c0_737], %1285 {strides = array<i32>} : memref<64x32xf32, #tpu.memory_space<vmem>>, vector<8x32xf32>,
    %c7_i32_738 = arith.constant 7 : i32
    %c8_i32_739 = arith.constant 8 : i32
    %1288 = arith.muli %c7_i32_738, %c8_i32_739 : i32
    %1289 = tpu.assume_multiple %1288, 8 : i32
    %c0_740 = arith.constant 0 : index
    %1290 = arith.index_cast %1289 : i32 to index
    %c0_741 = arith.constant 0 : index
    %1291 = vector.load %arg14[%c0_740, %1290, %c0_741] : memref<4x64x32xf32, #tpu.memory_space<vmem>>, vector<1x8x32xf32>
    %1292 = vector.shape_cast %1291 : vector<1x8x32xf32> to vector<8x32xf32>
    %c0_742 = arith.constant 0 : index
    %c0_743 = arith.constant 0 : index
    %c0_744 = arith.constant 0 : index
    %1293 = vector.load %arg9[%c0_742, %c0_743, %c0_744] : memref<4x32x32xf32, #tpu.memory_space<vmem>>, vector<1x32x32xf32>
    %1294 = vector.shape_cast %1293 : vector<1x32x32xf32> to vector<32x32xf32>
    %cst_745 = arith.constant dense<0.000000e+00> : vector<8x32xf32>
    %1295 = tpu.matmul %1285, %1294, %cst_745 {dimension_numbers = #tpu.dot_dimension_numbers<[1], [0], [0], [1], [0, 0, 1, 1], [], []>} : vector<8x32xf32>, vector<32x32xf32>, vector<8x32xf32> -> vector<8x32xf32>
    %1296 = arith.addf %1292, %1295 : vector<8x32xf32>
    %1297 = arith.negf %1296 : vector<8x32xf32>
    %1298 = math.exp %1297 : vector<8x32xf32>
    %cst_746 = arith.constant 1.000000e+00 : f32
    %1299 = vector.broadcast %cst_746 : f32 to vector<8x32xf32>
    %1300 = arith.addf %1299, %1298 : vector<8x32xf32>
    %1301 = arith.divf %1299, %1300 : vector<8x32xf32>
    %c1_747 = arith.constant 1 : index
    %1302 = arith.index_cast %1289 : i32 to index
    %c0_748 = arith.constant 0 : index
    %1303 = vector.load %arg14[%c1_747, %1302, %c0_748] : memref<4x64x32xf32, #tpu.memory_space<vmem>>, vector<1x8x32xf32>
    %1304 = vector.shape_cast %1303 : vector<1x8x32xf32> to vector<8x32xf32>
    %c1_749 = arith.constant 1 : index
    %c0_750 = arith.constant 0 : index
    %c0_751 = arith.constant 0 : index
    %1305 = vector.load %arg9[%c1_749, %c0_750, %c0_751] : memref<4x32x32xf32, #tpu.memory_space<vmem>>, vector<1x32x32xf32>
    %1306 = vector.shape_cast %1305 : vector<1x32x32xf32> to vector<32x32xf32>
    %cst_752 = arith.constant dense<0.000000e+00> : vector<8x32xf32>
    %1307 = tpu.matmul %1285, %1306, %cst_752 {dimension_numbers = #tpu.dot_dimension_numbers<[1], [0], [0], [1], [0, 0, 1, 1], [], []>} : vector<8x32xf32>, vector<32x32xf32>, vector<8x32xf32> -> vector<8x32xf32>
    %1308 = arith.addf %1304, %1307 : vector<8x32xf32>
    %1309 = arith.negf %1308 : vector<8x32xf32>
    %1310 = math.exp %1309 : vector<8x32xf32>
    %cst_753 = arith.constant 1.000000e+00 : f32
    %1311 = vector.broadcast %cst_753 : f32 to vector<8x32xf32>
    %1312 = arith.addf %1311, %1310 : vector<8x32xf32>
    %1313 = arith.divf %1311, %1312 : vector<8x32xf32>
    %c2_754 = arith.constant 2 : index
    %1314 = arith.index_cast %1289 : i32 to index
    %c0_755 = arith.constant 0 : index
    %1315 = vector.load %arg14[%c2_754, %1314, %c0_755] : memref<4x64x32xf32, #tpu.memory_space<vmem>>, vector<1x8x32xf32>
    %1316 = vector.shape_cast %1315 : vector<1x8x32xf32> to vector<8x32xf32>
    %c2_756 = arith.constant 2 : index
    %c0_757 = arith.constant 0 : index
    %c0_758 = arith.constant 0 : index
    %1317 = vector.load %arg9[%c2_756, %c0_757, %c0_758] : memref<4x32x32xf32, #tpu.memory_space<vmem>>, vector<1x32x32xf32>
    %1318 = vector.shape_cast %1317 : vector<1x32x32xf32> to vector<32x32xf32>
    %cst_759 = arith.constant dense<0.000000e+00> : vector<8x32xf32>
    %1319 = tpu.matmul %1285, %1318, %cst_759 {dimension_numbers = #tpu.dot_dimension_numbers<[1], [0], [0], [1], [0, 0, 1, 1], [], []>} : vector<8x32xf32>, vector<32x32xf32>, vector<8x32xf32> -> vector<8x32xf32>
    %1320 = arith.addf %1316, %1319 : vector<8x32xf32>
    %1321 = math.tanh %1320 : vector<8x32xf32>
    %c3_760 = arith.constant 3 : index
    %1322 = arith.index_cast %1289 : i32 to index
    %c0_761 = arith.constant 0 : index
    %1323 = vector.load %arg14[%c3_760, %1322, %c0_761] : memref<4x64x32xf32, #tpu.memory_space<vmem>>, vector<1x8x32xf32>
    %1324 = vector.shape_cast %1323 : vector<1x8x32xf32> to vector<8x32xf32>
    %c3_762 = arith.constant 3 : index
    %c0_763 = arith.constant 0 : index
    %c0_764 = arith.constant 0 : index
    %1325 = vector.load %arg9[%c3_762, %c0_763, %c0_764] : memref<4x32x32xf32, #tpu.memory_space<vmem>>, vector<1x32x32xf32>
    %1326 = vector.shape_cast %1325 : vector<1x32x32xf32> to vector<32x32xf32>
    %cst_765 = arith.constant dense<0.000000e+00> : vector<8x32xf32>
    %1327 = tpu.matmul %1285, %1326, %cst_765 {dimension_numbers = #tpu.dot_dimension_numbers<[1], [0], [0], [1], [0, 0, 1, 1], [], []>} : vector<8x32xf32>, vector<32x32xf32>, vector<8x32xf32> -> vector<8x32xf32>
    %1328 = arith.addf %1324, %1327 : vector<8x32xf32>
    %1329 = arith.negf %1328 : vector<8x32xf32>
    %1330 = math.exp %1329 : vector<8x32xf32>
    %cst_766 = arith.constant 1.000000e+00 : f32
    %1331 = vector.broadcast %cst_766 : f32 to vector<8x32xf32>
    %1332 = arith.addf %1331, %1330 : vector<8x32xf32>
    %1333 = arith.divf %1331, %1332 : vector<8x32xf32>
    %1334 = arith.mulf %1313, %1283 : vector<8x32xf32>
    %1335 = arith.mulf %1301, %1321 : vector<8x32xf32>
    %1336 = arith.addf %1334, %1335 : vector<8x32xf32>
    %1337 = math.tanh %1336 : vector<8x32xf32>
    %1338 = arith.mulf %1333, %1337 : vector<8x32xf32>
    %1339 = arith.index_cast %1289 : i32 to index
    %c0_767 = arith.constant 0 : index
    %1340 = vector.load %arg15[%1339, %c0_767] : memref<64x32xf32, #tpu.memory_space<vmem>>, vector<8x32xf32>
    tpu.vector_store %arg15[%1339, %c0_767], %1338 {strides = array<i32>} : memref<64x32xf32, #tpu.memory_space<vmem>>, vector<8x32xf32>,
    %c8_i32_768 = arith.constant 8 : i32
    %c0_769 = arith.constant 0 : index
    %c0_770 = arith.constant 0 : index
    %1341 = vector.load %arg15[%c0_769, %c0_770] : memref<64x32xf32, #tpu.memory_space<vmem>>, vector<64x32xf32>
    %c0_771 = arith.constant 0 : index
    %c0_772 = arith.constant 0 : index
    %1342 = vector.load %arg11[%c0_771, %c0_772] : memref<32x1xf32, #tpu.memory_space<vmem>>, vector<32x1xf32>
    %cst_773 = arith.constant dense<0.000000e+00> : vector<64x1xf32>
    %1343 = tpu.matmul %1341, %1342, %cst_773 {dimension_numbers = #tpu.dot_dimension_numbers<[1], [0], [0], [1], [0, 0, 1, 1], [], []>} : vector<64x32xf32>, vector<32x1xf32>, vector<64x1xf32> -> vector<64x1xf32>
    %c0_774 = arith.constant 0 : index
    %c0_775 = arith.constant 0 : index
    %1344 = vector.load %arg12[%c0_774, %c0_775] : memref<1x1xf32, #tpu.memory_space<vmem>>, vector<1x1xf32>
    %1345 = vector.broadcast %1344 : vector<1x1xf32> to vector<64x1xf32>
    %1346 = arith.addf %1343, %1345 : vector<64x1xf32>
    %c0_776 = arith.constant 0 : index
    %c0_777 = arith.constant 0 : index
    %1347 = vector.load %arg13[%c0_776, %c0_777] : memref<64x1xf32, #tpu.memory_space<vmem>>, vector<64x1xf32>
    tpu.vector_store %arg13[%c0_776, %c0_777], %1346 {strides = array<i32>} : memref<64x1xf32, #tpu.memory_space<vmem>>, vector<64x1xf32>,
    return
  }
  func.func @transform_0(%arg0: i32) -> (i32, i32) {
    %c0_i32 = arith.constant 0 : i32
    %c0_i32_0 = arith.constant 0 : i32
    %c0_i32_1 = arith.constant 0 : i32
    return %c0_i32, %c0_i32_0 : i32, i32
  }
  func.func @transform_1(%arg0: i32) -> (i32, i32) {
    %c0_i32 = arith.constant 0 : i32
    %c0_i32_0 = arith.constant 0 : i32
    %c0_i32_1 = arith.constant 0 : i32
    return %c0_i32, %c0_i32_0 : i32, i32
  }
  func.func @transform_2(%arg0: i32) -> (i32, i32, i32) {
    %c0_i32 = arith.constant 0 : i32
    %c0_i32_0 = arith.constant 0 : i32
    %c0_i32_1 = arith.constant 0 : i32
    %c0_i32_2 = arith.constant 0 : i32
    return %c0_i32, %c0_i32_0, %c0_i32_1 : i32, i32, i32
  }
  func.func @transform_3(%arg0: i32) -> (i32, i32) {
    %c0_i32 = arith.constant 0 : i32
    %c0_i32_0 = arith.constant 0 : i32
    %c0_i32_1 = arith.constant 0 : i32
    return %c0_i32, %c0_i32_0 : i32, i32
  }
  func.func @transform_4(%arg0: i32) -> (i32, i32) {
    %c0_i32 = arith.constant 0 : i32
    %c0_i32_0 = arith.constant 0 : i32
    %c0_i32_1 = arith.constant 0 : i32
    return %c0_i32, %c0_i32_0 : i32, i32
  }
  func.func @transform_5(%arg0: i32) -> (i32, i32, i32) {
    %c0_i32 = arith.constant 0 : i32
    %c0_i32_0 = arith.constant 0 : i32
    %c0_i32_1 = arith.constant 0 : i32
    %c0_i32_2 = arith.constant 0 : i32
    return %c0_i32, %c0_i32_0, %c0_i32_1 : i32, i32, i32
  }
  func.func @transform_6(%arg0: i32) -> (i32, i32) {
    %c0_i32 = arith.constant 0 : i32
    %c0_i32_0 = arith.constant 0 : i32
    %c0_i32_1 = arith.constant 0 : i32
    return %c0_i32, %c0_i32_0 : i32, i32
  }
  func.func @transform_7(%arg0: i32) -> (i32, i32) {
    %c0_i32 = arith.constant 0 : i32
    %c0_i32_0 = arith.constant 0 : i32
    %c0_i32_1 = arith.constant 0 : i32
    return %c0_i32, %c0_i32_0 : i32, i32
  }
  func.func @transform_8(%arg0: i32) -> (i32, i32, i32) {
    %c0_i32 = arith.constant 0 : i32
    %c0_i32_0 = arith.constant 0 : i32
    %c0_i32_1 = arith.constant 0 : i32
    %c0_i32_2 = arith.constant 0 : i32
    return %c0_i32, %c0_i32_0, %c0_i32_1 : i32, i32, i32
  }
  func.func @transform_9(%arg0: i32) -> (i32, i32) {
    %c0_i32 = arith.constant 0 : i32
    %c0_i32_0 = arith.constant 0 : i32
    %c0_i32_1 = arith.constant 0 : i32
    return %c0_i32, %c0_i32_0 : i32, i32
  }
  func.func @transform_10(%arg0: i32) -> (i32, i32) {
    %c0_i32 = arith.constant 0 : i32
    %c0_i32_0 = arith.constant 0 : i32
    %c0_i32_1 = arith.constant 0 : i32
    return %c0_i32, %c0_i32_0 : i32, i32
  }
  func.func @transform_11(%arg0: i32) -> (i32, i32) {
    %c0_i32 = arith.constant 0 : i32
    %c0_i32_0 = arith.constant 0 : i32
    %c0_i32_1 = arith.constant 0 : i32
    return %c0_i32, %c0_i32_0 : i32, i32
  }
  func.func @transform_12(%arg0: i32) -> (i32, i32) {
    %c0_i32 = arith.constant 0 : i32
    %c0_i32_0 = arith.constant 0 : i32
    %c0_i32_1 = arith.constant 0 : i32
    return %c0_i32, %c0_i32_0 : i32, i32
  }
}

</mosaic_0001>

<llo_original>
// kernel: lstm_reg_forward.1
$region0: #{lstm_reg_forward.1}
  #allocation0 [shape = 'u32[]', space=smem, size = 0x4, offset = 0x4, fixed_abs, tag = 'smem constant byte address 0x4 - core index']
  #allocation1 [shape = 'u32[72,128]{1,0:T(1,128)}', space=vmem, size = 0x9000, scoped, tag = 'internal scratch']
  #allocation2 [shape = 'f32[4,64,32]{2,1,0:T(8,128)}', space=vmem, size = 0x20000, scoped, tag = 'scratch operand']
  #allocation3 [shape = 'f32[64,32]{1,0:T(8,128)}', space=vmem, size = 0x8000, scoped, tag = 'scratch operand']
  #allocation4 [shape = 'f32[64,32]{1,0:T(8,128)}', space=vmem, size = 0x8000, scoped, tag = 'scratch operand']
  #allocation5 [shape = 'f32[1,1]{1,0:T(1,128)S(1)}', space=vmem, size = 0x200, scoped, tag = 'scoped memory for lstm_reg_forward.1']
  %s0 = inlined_call_operand.vmem [shape: f32[64,8], index: 0, kind: input, shape index: {}]
  %s1 = inlined_call_operand.vmem [shape: f32[8,128], index: 1, kind: input, shape index: {}]
  %s2 = inlined_call_operand.vmem [shape: f32[4,32,32], index: 2, kind: input, shape index: {}]
  %s3 = inlined_call_operand.vmem [shape: f32[1,128], index: 3, kind: input, shape index: {}]
  %s4 = inlined_call_operand.vmem [shape: f32[32,128], index: 4, kind: input, shape index: {}]
  %s5 = inlined_call_operand.vmem [shape: f32[4,32,32], index: 5, kind: input, shape index: {}]
  %s6 = inlined_call_operand.vmem [shape: f32[1,128], index: 6, kind: input, shape index: {}]
  %s7 = inlined_call_operand.vmem [shape: f32[32,128], index: 7, kind: input, shape index: {}]
  %s8 = inlined_call_operand.vmem [shape: f32[4,32,32], index: 8, kind: input, shape index: {}]
  %s9 = inlined_call_operand.vmem [shape: f32[1,128], index: 9, kind: input, shape index: {}]
  %s10 = inlined_call_operand.vmem [shape: f32[32,1], index: 10, kind: input, shape index: {}]
  %s11 = inlined_call_operand.<no memory space> [shape: f32[1,1], index: 11, kind: input, shape index: {}]
  %s12 = inlined_call_operand.vmem [shape: f32[64,1], index: 12, kind: output, shape index: {}]
  %s13 = sld [smem:[#allocation0]]
  $region58: #{lstm_reg_forward.1} parent=0
    _
  %s15 = ssub.s32 1, %s13
  %s16 = scalar_select 0, %s15, %s13
  %v17 = vstv %s11
  %18 = vst [vmem:[#allocation5] sm:$0x1] %v17
  // Predicated region
  $region2: #{lstm_reg_forward.1} parent=0 // pred_check
    _
  $region3: #{lstm_reg_forward.1} parent=0 // pred_check_branch
    %20 = sbr.rel (0) target = $region5
  $region4: #{lstm_reg_forward.1} parent=0 // pred_region
    _
  $region5: #{lstm_reg_forward.1} parent=0 // pred_fallthru
    _
  // Predicated region
  $region6: #{lstm_reg_forward.1} parent=0 // pred_check
    _
  $region7: #{lstm_reg_forward.1} parent=0 // pred_check_branch
    %22 = sbr.rel (0) target = $region9
  $region8: #{lstm_reg_forward.1} parent=0 // pred_region
    _
  $region9: #{lstm_reg_forward.1} parent=0 // pred_fallthru
    _
  // Predicated region
  $region10: #{lstm_reg_forward.1} parent=0 // pred_check
    _
  $region11: #{lstm_reg_forward.1} parent=0 // pred_check_branch
    %24 = sbr.rel (0) target = $region13
  $region12: #{lstm_reg_forward.1} parent=0 // pred_region
    _
  $region13: #{lstm_reg_forward.1} parent=0 // pred_fallthru
    _
  // Predicated region
  $region14: #{lstm_reg_forward.1} parent=0 // pred_check
    _
  $region15: #{lstm_reg_forward.1} parent=0 // pred_check_branch
    %26 = sbr.rel (0) target = $region17
  $region16: #{lstm_reg_forward.1} parent=0 // pred_region
    _
  $region17: #{lstm_reg_forward.1} parent=0 // pred_fallthru
    _
  // Predicated region
  $region18: #{lstm_reg_forward.1} parent=0 // pred_check
    _
  $region19: #{lstm_reg_forward.1} parent=0 // pred_check_branch
    %28 = sbr.rel (0) target = $region21
  $region20: #{lstm_reg_forward.1} parent=0 // pred_region
    _
  $region21: #{lstm_reg_forward.1} parent=0 // pred_fallthru
    _
  // Predicated region
  $region22: #{lstm_reg_forward.1} parent=0 // pred_check
    _
  $region23: #{lstm_reg_forward.1} parent=0 // pred_check_branch
    %30 = sbr.rel (0) target = $region25
  $region24: #{lstm_reg_forward.1} parent=0 // pred_region
    _
  $region25: #{lstm_reg_forward.1} parent=0 // pred_fallthru
    _
  // Predicated region
  $region26: #{lstm_reg_forward.1} parent=0 // pred_check
    _
  $region27: #{lstm_reg_forward.1} parent=0 // pred_check_branch
    %32 = sbr.rel (0) target = $region29
  $region28: #{lstm_reg_forward.1} parent=0 // pred_region
    _
  $region29: #{lstm_reg_forward.1} parent=0 // pred_fallthru
    _
  // Predicated region
  $region30: #{lstm_reg_forward.1} parent=0 // pred_check
    _
  $region31: #{lstm_reg_forward.1} parent=0 // pred_check_branch
    %34 = sbr.rel (0) target = $region33
  $region32: #{lstm_reg_forward.1} parent=0 // pred_region
    _
  $region33: #{lstm_reg_forward.1} parent=0 // pred_fallthru
    _
  // Predicated region
  $region34: #{lstm_reg_forward.1} parent=0 // pred_check
    _
  $region35: #{lstm_reg_forward.1} parent=0 // pred_check_branch
    %36 = sbr.rel (0) target = $region37
  $region36: #{lstm_reg_forward.1} parent=0 // pred_region
    _
  $region37: #{lstm_reg_forward.1} parent=0 // pred_fallthru
    _
  // Predicated region
  $region38: #{lstm_reg_forward.1} parent=0 // pred_check
    _
  $region39: #{lstm_reg_forward.1} parent=0 // pred_check_branch
    %38 = sbr.rel (0) target = $region41
  $region40: #{lstm_reg_forward.1} parent=0 // pred_region
    _
  $region41: #{lstm_reg_forward.1} parent=0 // pred_fallthru
    _
  // Predicated region
  $region42: #{lstm_reg_forward.1} parent=0 // pred_check
    _
  $region43: #{lstm_reg_forward.1} parent=0 // pred_check_branch
    %40 = sbr.rel (0) target = $region45
  $region44: #{lstm_reg_forward.1} parent=0 // pred_region
    _
  $region45: #{lstm_reg_forward.1} parent=0 // pred_fallthru
    _
  // Predicated region
  $region46: #{lstm_reg_forward.1} parent=0 // pred_check
    _
  $region47: #{lstm_reg_forward.1} parent=0 // pred_check_branch
    %42 = sbr.rel (0) target = $region49
  $region48: #{lstm_reg_forward.1} parent=0 // pred_region
    _
  $region49: #{lstm_reg_forward.1} parent=0 // pred_fallthru
    _
  %v43 = vld [vmem:[%s0] sm:$0xff]
  %v44 = vld [vmem:[%s0 + $0x8] sm:$0xff]
  %v45 = vld [vmem:[%s0 + $0x10] sm:$0xff]
  %v46 = vld [vmem:[%s0 + $0x18] sm:$0xff]
  %v47 = vld [vmem:[%s0 + $0x20] sm:$0xff]
  %v48 = vld [vmem:[%s0 + $0x28] sm:$0xff]
  %v49 = vld [vmem:[%s0 + $0x30] sm:$0xff]
  %v50 = vld [vmem:[%s0 + $0x38] sm:$0xff]
  %v51 = vld [vmem:[%s1] sm:$0xff]
  %v52 = vld [vmem:[%s3] sm:$0x1]
  %v54 = vperm.slane %v52, 0
  %vm56 = vcmask 64512
  %v58 = vsel %vm56, %v43, 0
  %v61 = vsel %vm56, %v44, 0
  %v64 = vsel %vm56, %v45, 0
  %v67 = vsel %vm56, %v46, 0
  %v70 = vsel %vm56, %v47, 0
  %v73 = vsel %vm56, %v48, 0
  %v76 = vsel %vm56, %v49, 0
  %v79 = vsel %vm56, %v50, 0
  %81 = vmatpush.msra.mxu0 0.0
  %82 = vmatpush.msra.mxu0 0.0
  %83 = vmatpush.msra.mxu0 0.0
  %84 = vmatpush.msra.mxu0 0.0
  %85 = vmatpush.msra.mxu0 0.0
  %86 = vmatpush.msra.mxu0 0.0
  %87 = vmatpush.msra.mxu0 0.0
  %88 = vmatpush.msra.mxu0 0.0
  %89 = vmatpush.msra.mxu0 0.0
  %90 = vmatpush.msra.mxu0 0.0
  %91 = vmatpush.msra.mxu0 0.0
  %92 = vmatpush.msra.mxu0 0.0
  %93 = vmatpush.msra.mxu0 0.0
  %94 = vmatpush.msra.mxu0 0.0
  %95 = vmatpush.msra.mxu0 0.0
  %96 = vmatpush.msra.mxu0 %v51
  %97 = vmatmul.f32.gmra.mxu0 %v58
  %v98 = vpop.f32.mrf.mxu0
  %v99 = vadd.f32 %v54, %v98
  %100 = vmatmul.f32.gmra.mxu0 %v61
  %v101 = vpop.f32.mrf.mxu0
  %v102 = vadd.f32 %v54, %v101
  %103 = vmatmul.f32.gmra.mxu0 %v64
  %v104 = vpop.f32.mrf.mxu0
  %v105 = vadd.f32 %v54, %v104
  %106 = vmatmul.f32.gmra.mxu0 %v67
  %v107 = vpop.f32.mrf.mxu0
  %v108 = vadd.f32 %v54, %v107
  %109 = vmatmul.f32.gmra.mxu0 %v70
  %v110 = vpop.f32.mrf.mxu0
  %v111 = vadd.f32 %v54, %v110
  %112 = vmatmul.f32.gmra.mxu0 %v73
  %v113 = vpop.f32.mrf.mxu0
  %v114 = vadd.f32 %v54, %v113
  %115 = vmatmul.f32.gmra.mxu0 %v76
  %v116 = vpop.f32.mrf.mxu0
  %v117 = vadd.f32 %v54, %v116
  %118 = vmatmul.f32.gmra.mxu0 %v79
  %v119 = vpop.f32.mrf.mxu0
  %v120 = vadd.f32 %v54, %v119
  %121 = vdwg.mxu0
  %vm122 = vcmask 261120
  %123 = vst.msk [vmem:[#allocation2] sm:$0xff] %vm122, %v99
  %124 = vst.msk [vmem:[#allocation2 + $0x8] sm:$0xff] %vm122, %v102
  %125 = vst.msk [vmem:[#allocation2 + $0x10] sm:$0xff] %vm122, %v105
  %126 = vst.msk [vmem:[#allocation2 + $0x18] sm:$0xff] %vm122, %v108
  %127 = vst.msk [vmem:[#allocation2 + $0x20] sm:$0xff] %vm122, %v111
  %128 = vst.msk [vmem:[#allocation2 + $0x28] sm:$0xff] %vm122, %v114
  %129 = vst.msk [vmem:[#allocation2 + $0x30] sm:$0xff] %vm122, %v117
  %130 = vst.msk [vmem:[#allocation2 + $0x38] sm:$0xff] %vm122, %v120
  %139 = vrot.lane.b32.xlu0 %v99, 96
  %v140 = vpop.permute.xlu0 %139
  %141 = vrot.lane.b32.xlu0 %v102, 96
  %v142 = vpop.permute.xlu0 %141
  %143 = vrot.lane.b32.xlu0 %v105, 96
  %v144 = vpop.permute.xlu0 %143
  %145 = vrot.lane.b32.xlu0 %v108, 96
  %v146 = vpop.permute.xlu0 %145
  %147 = vrot.lane.b32.xlu0 %v111, 96
  %v148 = vpop.permute.xlu0 %147
  %149 = vrot.lane.b32.xlu0 %v114, 96
  %v150 = vpop.permute.xlu0 %149
  %151 = vrot.lane.b32.xlu0 %v117, 96
  %v152 = vpop.permute.xlu0 %151
  %153 = vrot.lane.b32.xlu0 %v120, 96
  %v154 = vpop.permute.xlu0 %153
  %s163 = scalar_lea.vmem [#allocation2], 64
  %164 = vst.msk [vmem:[%s163] sm:$0xff] %vm122, %v140
  %165 = vst.msk [vmem:[%s163 + $0x8] sm:$0xff] %vm122, %v142
  %166 = vst.msk [vmem:[%s163 + $0x10] sm:$0xff] %vm122, %v144
  %167 = vst.msk [vmem:[%s163 + $0x18] sm:$0xff] %vm122, %v146
  %168 = vst.msk [vmem:[%s163 + $0x20] sm:$0xff] %vm122, %v148
  %169 = vst.msk [vmem:[%s163 + $0x28] sm:$0xff] %vm122, %v150
  %170 = vst.msk [vmem:[%s163 + $0x30] sm:$0xff] %vm122, %v152
  %171 = vst.msk [vmem:[%s163 + $0x38] sm:$0xff] %vm122, %v154
  %172 = vrot.lane.b32.xlu0 %v99, 64
  %v173 = vpop.permute.xlu0 %172
  %174 = vrot.lane.b32.xlu0 %v102, 64
  %v175 = vpop.permute.xlu0 %174
  %176 = vrot.lane.b32.xlu0 %v105, 64
  %v177 = vpop.permute.xlu0 %176
  %178 = vrot.lane.b32.xlu0 %v108, 64
  %v179 = vpop.permute.xlu0 %178
  %180 = vrot.lane.b32.xlu0 %v111, 64
  %v181 = vpop.permute.xlu0 %180
  %182 = vrot.lane.b32.xlu0 %v114, 64
  %v183 = vpop.permute.xlu0 %182
  %184 = vrot.lane.b32.xlu0 %v117, 64
  %v185 = vpop.permute.xlu0 %184
  %186 = vrot.lane.b32.xlu0 %v120, 64
  %v187 = vpop.permute.xlu0 %186
  %s196 = scalar_lea.vmem [#allocation2], 128
  %197 = vst.msk [vmem:[%s196] sm:$0xff] %vm122, %v173
  %198 = vst.msk [vmem:[%s196 + $0x8] sm:$0xff] %vm122, %v175
  %199 = vst.msk [vmem:[%s196 + $0x10] sm:$0xff] %vm122, %v177
  %200 = vst.msk [vmem:[%s196 + $0x18] sm:$0xff] %vm122, %v179
  %201 = vst.msk [vmem:[%s196 + $0x20] sm:$0xff] %vm122, %v181
  %202 = vst.msk [vmem:[%s196 + $0x28] sm:$0xff] %vm122, %v183
  %203 = vst.msk [vmem:[%s196 + $0x30] sm:$0xff] %vm122, %v185
  %204 = vst.msk [vmem:[%s196 + $0x38] sm:$0xff] %vm122, %v187
  %205 = vrot.lane.b32.xlu0 %v99, 32
  %v206 = vpop.permute.xlu0 %205
  %207 = vrot.lane.b32.xlu0 %v102, 32
  %v208 = vpop.permute.xlu0 %207
  %209 = vrot.lane.b32.xlu0 %v105, 32
  %v210 = vpop.permute.xlu0 %209
  %211 = vrot.lane.b32.xlu0 %v108, 32
  %v212 = vpop.permute.xlu0 %211
  %213 = vrot.lane.b32.xlu0 %v111, 32
  %v214 = vpop.permute.xlu0 %213
  %215 = vrot.lane.b32.xlu0 %v114, 32
  %v216 = vpop.permute.xlu0 %215
  %217 = vrot.lane.b32.xlu0 %v117, 32
  %v218 = vpop.permute.xlu0 %217
  %219 = vrot.lane.b32.xlu0 %v120, 32
  %v220 = vpop.permute.xlu0 %219
  %s229 = scalar_lea.vmem [#allocation2], 192
  %230 = vst.msk [vmem:[%s229] sm:$0xff] %vm122, %v206
  %231 = vst.msk [vmem:[%s229 + $0x8] sm:$0xff] %vm122, %v208
  %232 = vst.msk [vmem:[%s229 + $0x10] sm:$0xff] %vm122, %v210
  %233 = vst.msk [vmem:[%s229 + $0x18] sm:$0xff] %vm122, %v212
  %234 = vst.msk [vmem:[%s229 + $0x20] sm:$0xff] %vm122, %v214
  %235 = vst.msk [vmem:[%s229 + $0x28] sm:$0xff] %vm122, %v216
  %236 = vst.msk [vmem:[%s229 + $0x30] sm:$0xff] %vm122, %v218
  %237 = vst.msk [vmem:[%s229 + $0x38] sm:$0xff] %vm122, %v220
  %v238 = vld [vmem:[#allocation2] sm:$0xff]
  %v239 = vld [vmem:[%s2] sm:$0xff]
  %v240 = vld [vmem:[%s2 + $0x8] sm:$0xff]
  %v241 = vld [vmem:[%s2 + $0x10] sm:$0xff]
  %v242 = vld [vmem:[%s2 + $0x18] sm:$0xff]
  %v244 = vsel %vm122, 0.0, 0
  %246 = vmatpush.msra.mxu0 0.0
  %247 = vmatpush.msra.mxu0 0.0
  %248 = vmatpush.msra.mxu0 0.0
  %249 = vmatpush.msra.mxu0 0.0
  %250 = vmatpush.msra.mxu0 0.0
  %251 = vmatpush.msra.mxu0 0.0
  %252 = vmatpush.msra.mxu0 0.0
  %253 = vmatpush.msra.mxu0 0.0
  %254 = vmatpush.msra.mxu0 0.0
  %255 = vmatpush.msra.mxu0 0.0
  %256 = vmatpush.msra.mxu0 0.0
  %257 = vmatpush.msra.mxu0 0.0
  %258 = vmatpush.msra.mxu0 %v242
  %259 = vmatpush.msra.mxu0 %v241
  %260 = vmatpush.msra.mxu0 %v240
  %261 = vmatpush.msra.mxu0 %v239
  %262 = vmatmul.f32.gmra.mxu0 %v244
  %v263 = vpop.f32.mrf.mxu0
  %v264 = vadd.f32 0.0, %v263
  %265 = vdwg.mxu0
  %v266 = vadd.f32 %v238, %v264
  %v267 = vxor.u32 %v266, 2147483648
  %v268 = vmul.f32 %v267, 1.442695
  %v269 = vpow.pop %v268
  %v270 = vadd.f32 %v269, 1.0
  %v271 = vrcp.pop %v270
  %v272 = vmul.f32 %v270, %v271
  %v273 = vsub.f32 1.0, %v272
  %v274 = vmul.f32 %v271, %v273
  %v275 = vadd.f32 %v271, %v274
  %vm276 = vweird.f32 %v270
  %vm277 = vweird.f32 %v271
  %vm278 = vmor %vm276, %vm277
  %v279 = vsel %vm278, %v271, %v275
  %v280 = vand.u32 2147483647, %v270
  %vm281 = vcmp.eq.f32.partialorder %v280, 8.507059e+37
  %v282 = vand.u32 %v270, 2147483648
  %v283 = vor.u32 1.1754944e-38, %v282
  %v284 = vsel %vm281, %v283, %v279
  %v285 = vmul.f32 1.0, %v284
  %s286 = sadd.s32 0, 64
  %s287 = scalar_lea.vmem [#allocation2], %s286
  %v288 = vld [vmem:[%s287] sm:$0xff]
  %s289 = scalar_lea.vmem %s2, 32
  %v290 = vld [vmem:[%s289] sm:$0xff]
  %v291 = vld [vmem:[%s289 + $0x8] sm:$0xff]
  %v292 = vld [vmem:[%s289 + $0x10] sm:$0xff]
  %v293 = vld [vmem:[%s289 + $0x18] sm:$0xff]
  %294 = vmatpush.msra.mxu0 0.0
  %295 = vmatpush.msra.mxu0 0.0
  %296 = vmatpush.msra.mxu0 0.0
  %297 = vmatpush.msra.mxu0 0.0
  %298 = vmatpush.msra.mxu0 0.0
  %299 = vmatpush.msra.mxu0 0.0
  %300 = vmatpush.msra.mxu0 0.0
  %301 = vmatpush.msra.mxu0 0.0
  %302 = vmatpush.msra.mxu0 0.0
  %303 = vmatpush.msra.mxu0 0.0
  %304 = vmatpush.msra.mxu0 0.0
  %305 = vmatpush.msra.mxu0 0.0
  %306 = vmatpush.msra.mxu0 %v293
  %307 = vmatpush.msra.mxu0 %v292
  %308 = vmatpush.msra.mxu0 %v291
  %309 = vmatpush.msra.mxu0 %v290
  %310 = vmatmul.f32.gmra.mxu0 %v244
  %v311 = vpop.f32.mrf.mxu0
  %v312 = vadd.f32 0.0, %v311
  %313 = vdwg.mxu0
  %v314 = vadd.f32 %v288, %v312
  %v315 = vxor.u32 %v314, 2147483648
  %v316 = vmul.f32 %v315, 1.442695
  %v317 = vpow.pop %v316
  %v318 = vadd.f32 %v317, 1.0
  %v319 = vrcp.pop %v318
  %v320 = vmul.f32 %v318, %v319
  %v321 = vsub.f32 1.0, %v320
  %v322 = vmul.f32 %v319, %v321
  %v323 = vadd.f32 %v319, %v322
  %vm324 = vweird.f32 %v318
  %vm325 = vweird.f32 %v319
  %vm326 = vmor %vm324, %vm325
  %v327 = vsel %vm326, %v319, %v323
  %v328 = vand.u32 2147483647, %v318
  %vm329 = vcmp.eq.f32.partialorder %v328, 8.507059e+37
  %v330 = vand.u32 %v318, 2147483648
  %v331 = vor.u32 1.1754944e-38, %v330
  %v332 = vsel %vm329, %v331, %v327
  %v333 = vmul.f32 1.0, %v332
  %s334 = sadd.s32 0, 128
  %s335 = scalar_lea.vmem [#allocation2], %s334
  %v336 = vld [vmem:[%s335] sm:$0xff]
  %s337 = scalar_lea.vmem %s2, 64
  %v338 = vld [vmem:[%s337] sm:$0xff]
  %v339 = vld [vmem:[%s337 + $0x8] sm:$0xff]
  %v340 = vld [vmem:[%s337 + $0x10] sm:$0xff]
  %v341 = vld [vmem:[%s337 + $0x18] sm:$0xff]
  %342 = vmatpush.msra.mxu0 0.0
  %343 = vmatpush.msra.mxu0 0.0
  %344 = vmatpush.msra.mxu0 0.0
  %345 = vmatpush.msra.mxu0 0.0
  %346 = vmatpush.msra.mxu0 0.0
  %347 = vmatpush.msra.mxu0 0.0
  %348 = vmatpush.msra.mxu0 0.0
  %349 = vmatpush.msra.mxu0 0.0
  %350 = vmatpush.msra.mxu0 0.0
  %351 = vmatpush.msra.mxu0 0.0
  %352 = vmatpush.msra.mxu0 0.0
  %353 = vmatpush.msra.mxu0 0.0
  %354 = vmatpush.msra.mxu0 %v341
  %355 = vmatpush.msra.mxu0 %v340
  %356 = vmatpush.msra.mxu0 %v339
  %357 = vmatpush.msra.mxu0 %v338
  %358 = vmatmul.f32.gmra.mxu0 %v244
  %v359 = vpop.f32.mrf.mxu0
  %v360 = vadd.f32 0.0, %v359
  %361 = vdwg.mxu0
  %v362 = vadd.f32 %v336, %v360
  %v363 = vtanh.pop %v362
  %s364 = sadd.s32 0, 192
  %s365 = scalar_lea.vmem [#allocation2], %s364
  %v366 = vld [vmem:[%s365] sm:$0xff]
  %s367 = scalar_lea.vmem %s2, 96
  %v368 = vld [vmem:[%s367] sm:$0xff]
  %v369 = vld [vmem:[%s367 + $0x8] sm:$0xff]
  %v370 = vld [vmem:[%s367 + $0x10] sm:$0xff]
  %v371 = vld [vmem:[%s367 + $0x18] sm:$0xff]
  %372 = vmatpush.msra.mxu0 0.0
  %373 = vmatpush.msra.mxu0 0.0
  %374 = vmatpush.msra.mxu0 0.0
  %375 = vmatpush.msra.mxu0 0.0
  %376 = vmatpush.msra.mxu0 0.0
  %377 = vmatpush.msra.mxu0 0.0
  %378 = vmatpush.msra.mxu0 0.0
  %379 = vmatpush.msra.mxu0 0.0
  %380 = vmatpush.msra.mxu0 0.0
  %381 = vmatpush.msra.mxu0 0.0
  %382 = vmatpush.msra.mxu0 0.0
  %383 = vmatpush.msra.mxu0 0.0
  %384 = vmatpush.msra.mxu0 %v371
  %385 = vmatpush.msra.mxu0 %v370
  %386 = vmatpush.msra.mxu0 %v369
  %387 = vmatpush.msra.mxu0 %v368
  %388 = vmatmul.f32.gmra.mxu0 %v244
  %v389 = vpop.f32.mrf.mxu0
  %v390 = vadd.f32 0.0, %v389
  %391 = vdwg.mxu0
  %v392 = vadd.f32 %v366, %v390
  %v393 = vxor.u32 %v392, 2147483648
  %v394 = vmul.f32 %v393, 1.442695
  %v395 = vpow.pop %v394
  %v396 = vadd.f32 %v395, 1.0
  %v397 = vrcp.pop %v396
  %v398 = vmul.f32 %v396, %v397
  %v399 = vsub.f32 1.0, %v398
  %v400 = vmul.f32 %v397, %v399
  %v401 = vadd.f32 %v397, %v400
  %vm402 = vweird.f32 %v396
  %vm403 = vweird.f32 %v397
  %vm404 = vmor %vm402, %vm403
  %v405 = vsel %vm404, %v397, %v401
  %v406 = vand.u32 2147483647, %v396
  %vm407 = vcmp.eq.f32.partialorder %v406, 8.507059e+37
  %v408 = vand.u32 %v396, 2147483648
  %v409 = vor.u32 1.1754944e-38, %v408
  %v410 = vsel %vm407, %v409, %v405
  %v411 = vmul.f32 1.0, %v410
  %v412 = vmul.f32 %v333, 0.0
  %v413 = vmul.f32 %v285, %v363
  %v414 = vadd.f32 %v412, %v413
  %v415 = vtanh.pop %v414
  %v416 = vmul.f32 %v411, %v415
  %417 = vst.msk [vmem:[#allocation3] sm:$0xff] %vm122, %v416
  %s418 = scalar_lea.vmem [#allocation2], 8
  %v419 = vld [vmem:[%s418] sm:$0xff]
  %v420 = vld [vmem:[%s2] sm:$0xff]
  %v421 = vld [vmem:[%s2 + $0x8] sm:$0xff]
  %v422 = vld [vmem:[%s2 + $0x10] sm:$0xff]
  %v423 = vld [vmem:[%s2 + $0x18] sm:$0xff]
  %v425 = vsel %vm122, %v416, 0
  %427 = vmatpush.msra.mxu0 0.0
  %428 = vmatpush.msra.mxu0 0.0
  %429 = vmatpush.msra.mxu0 0.0
  %430 = vmatpush.msra.mxu0 0.0
  %431 = vmatpush.msra.mxu0 0.0
  %432 = vmatpush.msra.mxu0 0.0
  %433 = vmatpush.msra.mxu0 0.0
  %434 = vmatpush.msra.mxu0 0.0
  %435 = vmatpush.msra.mxu0 0.0
  %436 = vmatpush.msra.mxu0 0.0
  %437 = vmatpush.msra.mxu0 0.0
  %438 = vmatpush.msra.mxu0 0.0
  %439 = vmatpush.msra.mxu0 %v423
  %440 = vmatpush.msra.mxu0 %v422
  %441 = vmatpush.msra.mxu0 %v421
  %442 = vmatpush.msra.mxu0 %v420
  %443 = vmatmul.f32.gmra.mxu0 %v425
  %v444 = vpop.f32.mrf.mxu0
  %v445 = vadd.f32 0.0, %v444
  %446 = vdwg.mxu0
  %v447 = vadd.f32 %v419, %v445
  %v448 = vxor.u32 %v447, 2147483648
  %v449 = vmul.f32 %v448, 1.442695
  %v450 = vpow.pop %v449
  %v451 = vadd.f32 %v450, 1.0
  %v452 = vrcp.pop %v451
  %v453 = vmul.f32 %v451, %v452
  %v454 = vsub.f32 1.0, %v453
  %v455 = vmul.f32 %v452, %v454
  %v456 = vadd.f32 %v452, %v455
  %vm457 = vweird.f32 %v451
  %vm458 = vweird.f32 %v452
  %vm459 = vmor %vm457, %vm458
  %v460 = vsel %vm459, %v452, %v456
  %v461 = vand.u32 2147483647, %v451
  %vm462 = vcmp.eq.f32.partialorder %v461, 8.507059e+37
  %v463 = vand.u32 %v451, 2147483648
  %v464 = vor.u32 1.1754944e-38, %v463
  %v465 = vsel %vm462, %v464, %v460
  %v466 = vmul.f32 1.0, %v465
  %s467 = sadd.s32 8, 64
  %s468 = scalar_lea.vmem [#allocation2], %s467
  %v469 = vld [vmem:[%s468] sm:$0xff]
  %v470 = vld [vmem:[%s289] sm:$0xff]
  %v471 = vld [vmem:[%s289 + $0x8] sm:$0xff]
  %v472 = vld [vmem:[%s289 + $0x10] sm:$0xff]
  %v473 = vld [vmem:[%s289 + $0x18] sm:$0xff]
  %474 = vmatpush.msra.mxu0 0.0
  %475 = vmatpush.msra.mxu0 0.0
  %476 = vmatpush.msra.mxu0 0.0
  %477 = vmatpush.msra.mxu0 0.0
  %478 = vmatpush.msra.mxu0 0.0
  %479 = vmatpush.msra.mxu0 0.0
  %480 = vmatpush.msra.mxu0 0.0
  %481 = vmatpush.msra.mxu0 0.0
  %482 = vmatpush.msra.mxu0 0.0
  %483 = vmatpush.msra.mxu0 0.0
  %484 = vmatpush.msra.mxu0 0.0
  %485 = vmatpush.msra.mxu0 0.0
  %486 = vmatpush.msra.mxu0 %v473
  %487 = vmatpush.msra.mxu0 %v472
  %488 = vmatpush.msra.mxu0 %v471
  %489 = vmatpush.msra.mxu0 %v470
  %490 = vmatmul.f32.gmra.mxu0 %v425
  %v491 = vpop.f32.mrf.mxu0
  %v492 = vadd.f32 0.0, %v491
  %493 = vdwg.mxu0
  %v494 = vadd.f32 %v469, %v492
  %v495 = vxor.u32 %v494, 2147483648
  %v496 = vmul.f32 %v495, 1.442695
  %v497 = vpow.pop %v496
  %v498 = vadd.f32 %v497, 1.0
  %v499 = vrcp.pop %v498
  %v500 = vmul.f32 %v498, %v499
  %v501 = vsub.f32 1.0, %v500
  %v502 = vmul.f32 %v499, %v501
  %v503 = vadd.f32 %v499, %v502
  %vm504 = vweird.f32 %v498
  %vm505 = vweird.f32 %v499
  %vm506 = vmor %vm504, %vm505
  %v507 = vsel %vm506, %v499, %v503
  %v508 = vand.u32 2147483647, %v498
  %vm509 = vcmp.eq.f32.partialorder %v508, 8.507059e+37
  %v510 = vand.u32 %v498, 2147483648
  %v511 = vor.u32 1.1754944e-38, %v510
  %v512 = vsel %vm509, %v511, %v507
  %v513 = vmul.f32 1.0, %v512
  %s514 = sadd.s32 8, 128
  %s515 = scalar_lea.vmem [#allocation2], %s514
  %v516 = vld [vmem:[%s515] sm:$0xff]
  %v517 = vld [vmem:[%s337] sm:$0xff]
  %v518 = vld [vmem:[%s337 + $0x8] sm:$0xff]
  %v519 = vld [vmem:[%s337 + $0x10] sm:$0xff]
  %v520 = vld [vmem:[%s337 + $0x18] sm:$0xff]
  %521 = vmatpush.msra.mxu0 0.0
  %522 = vmatpush.msra.mxu0 0.0
  %523 = vmatpush.msra.mxu0 0.0
  %524 = vmatpush.msra.mxu0 0.0
  %525 = vmatpush.msra.mxu0 0.0
  %526 = vmatpush.msra.mxu0 0.0
  %527 = vmatpush.msra.mxu0 0.0
  %528 = vmatpush.msra.mxu0 0.0
  %529 = vmatpush.msra.mxu0 0.0
  %530 = vmatpush.msra.mxu0 0.0
  %531 = vmatpush.msra.mxu0 0.0
  %532 = vmatpush.msra.mxu0 0.0
  %533 = vmatpush.msra.mxu0 %v520
  %534 = vmatpush.msra.mxu0 %v519
  %535 = vmatpush.msra.mxu0 %v518
  %536 = vmatpush.msra.mxu0 %v517
  %537 = vmatmul.f32.gmra.mxu0 %v425
  %v538 = vpop.f32.mrf.mxu0
  %v539 = vadd.f32 0.0, %v538
  %540 = vdwg.mxu0
  %v541 = vadd.f32 %v516, %v539
  %v542 = vtanh.pop %v541
  %s543 = sadd.s32 8, 192
  %s544 = scalar_lea.vmem [#allocation2], %s543
  %v545 = vld [vmem:[%s544] sm:$0xff]
  %v546 = vld [vmem:[%s367] sm:$0xff]
  %v547 = vld [vmem:[%s367 + $0x8] sm:$0xff]
  %v548 = vld [vmem:[%s367 + $0x10] sm:$0xff]
  %v549 = vld [vmem:[%s367 + $0x18] sm:$0xff]
  %550 = vmatpush.msra.mxu0 0.0
  %551 = vmatpush.msra.mxu0 0.0
  %552 = vmatpush.msra.mxu0 0.0
  %553 = vmatpush.msra.mxu0 0.0
  %554 = vmatpush.msra.mxu0 0.0
  %555 = vmatpush.msra.mxu0 0.0
  %556 = vmatpush.msra.mxu0 0.0
  %557 = vmatpush.msra.mxu0 0.0
  %558 = vmatpush.msra.mxu0 0.0
  %559 = vmatpush.msra.mxu0 0.0
  %560 = vmatpush.msra.mxu0 0.0
  %561 = vmatpush.msra.mxu0 0.0
  %562 = vmatpush.msra.mxu0 %v549
  %563 = vmatpush.msra.mxu0 %v548
  %564 = vmatpush.msra.mxu0 %v547
  %565 = vmatpush.msra.mxu0 %v546
  %566 = vmatmul.f32.gmra.mxu0 %v425
  %v567 = vpop.f32.mrf.mxu0
  %v568 = vadd.f32 0.0, %v567
  %569 = vdwg.mxu0
  %v570 = vadd.f32 %v545, %v568
  %v571 = vxor.u32 %v570, 2147483648
  %v572 = vmul.f32 %v571, 1.442695
  %v573 = vpow.pop %v572
  %v574 = vadd.f32 %v573, 1.0
  %v575 = vrcp.pop %v574
  %v576 = vmul.f32 %v574, %v575
  %v577 = vsub.f32 1.0, %v576
  %v578 = vmul.f32 %v575, %v577
  %v579 = vadd.f32 %v575, %v578
  %vm580 = vweird.f32 %v574
  %vm581 = vweird.f32 %v575
  %vm582 = vmor %vm580, %vm581
  %v583 = vsel %vm582, %v575, %v579
  %v584 = vand.u32 2147483647, %v574
  %vm585 = vcmp.eq.f32.partialorder %v584, 8.507059e+37
  %v586 = vand.u32 %v574, 2147483648
  %v587 = vor.u32 1.1754944e-38, %v586
  %v588 = vsel %vm585, %v587, %v583
  %v589 = vmul.f32 1.0, %v588
  %v590 = vmul.f32 %v513, %v414
  %v591 = vmul.f32 %v466, %v542
  %v592 = vadd.f32 %v590, %v591
  %v593 = vtanh.pop %v592
  %v594 = vmul.f32 %v589, %v593
  %s595 = scalar_lea.vmem [#allocation3], 8
  %596 = vst.msk [vmem:[%s595] sm:$0xff] %vm122, %v594
  %s597 = scalar_lea.vmem [#allocation2], 16
  %v598 = vld [vmem:[%s597] sm:$0xff]
  %v599 = vld [vmem:[%s2] sm:$0xff]
  %v600 = vld [vmem:[%s2 + $0x8] sm:$0xff]
  %v601 = vld [vmem:[%s2 + $0x10] sm:$0xff]
  %v602 = vld [vmem:[%s2 + $0x18] sm:$0xff]
  %v604 = vsel %vm122, %v594, 0
  %606 = vmatpush.msra.mxu0 0.0
  %607 = vmatpush.msra.mxu0 0.0
  %608 = vmatpush.msra.mxu0 0.0
  %609 = vmatpush.msra.mxu0 0.0
  %610 = vmatpush.msra.mxu0 0.0
  %611 = vmatpush.msra.mxu0 0.0
  %612 = vmatpush.msra.mxu0 0.0
  %613 = vmatpush.msra.mxu0 0.0
  %614 = vmatpush.msra.mxu0 0.0
  %615 = vmatpush.msra.mxu0 0.0
  %616 = vmatpush.msra.mxu0 0.0
  %617 = vmatpush.msra.mxu0 0.0
  %618 = vmatpush.msra.mxu0 %v602
  %619 = vmatpush.msra.mxu0 %v601
  %620 = vmatpush.msra.mxu0 %v600
  %621 = vmatpush.msra.mxu0 %v599
  %622 = vmatmul.f32.gmra.mxu0 %v604
  %v623 = vpop.f32.mrf.mxu0
  %v624 = vadd.f32 0.0, %v623
  %625 = vdwg.mxu0
  %v626 = vadd.f32 %v598, %v624
  %v627 = vxor.u32 %v626, 2147483648
  %v628 = vmul.f32 %v627, 1.442695
  %v629 = vpow.pop %v628
  %v630 = vadd.f32 %v629, 1.0
  %v631 = vrcp.pop %v630
  %v632 = vmul.f32 %v630, %v631
  %v633 = vsub.f32 1.0, %v632
  %v634 = vmul.f32 %v631, %v633
  %v635 = vadd.f32 %v631, %v634
  %vm636 = vweird.f32 %v630
  %vm637 = vweird.f32 %v631
  %vm638 = vmor %vm636, %vm637
  %v639 = vsel %vm638, %v631, %v635
  %v640 = vand.u32 2147483647, %v630
  %vm641 = vcmp.eq.f32.partialorder %v640, 8.507059e+37
  %v642 = vand.u32 %v630, 2147483648
  %v643 = vor.u32 1.1754944e-38, %v642
  %v644 = vsel %vm641, %v643, %v639
  %v645 = vmul.f32 1.0, %v644
  %s646 = sadd.s32 16, 64
  %s647 = scalar_lea.vmem [#allocation2], %s646
  %v648 = vld [vmem:[%s647] sm:$0xff]
  %v649 = vld [vmem:[%s289] sm:$0xff]
  %v650 = vld [vmem:[%s289 + $0x8] sm:$0xff]
  %v651 = vld [vmem:[%s289 + $0x10] sm:$0xff]
  %v652 = vld [vmem:[%s289 + $0x18] sm:$0xff]
  %653 = vmatpush.msra.mxu0 0.0
  %654 = vmatpush.msra.mxu0 0.0
  %655 = vmatpush.msra.mxu0 0.0
  %656 = vmatpush.msra.mxu0 0.0
  %657 = vmatpush.msra.mxu0 0.0
  %658 = vmatpush.msra.mxu0 0.0
  %659 = vmatpush.msra.mxu0 0.0
  %660 = vmatpush.msra.mxu0 0.0
  %661 = vmatpush.msra.mxu0 0.0
  %662 = vmatpush.msra.mxu0 0.0
  %663 = vmatpush.msra.mxu0 0.0
  %664 = vmatpush.msra.mxu0 0.0
  %665 = vmatpush.msra.mxu0 %v652
  %666 = vmatpush.msra.mxu0 %v651
  %667 = vmatpush.msra.mxu0 %v650
  %668 = vmatpush.msra.mxu0 %v649
  %669 = vmatmul.f32.gmra.mxu0 %v604
  %v670 = vpop.f32.mrf.mxu0
  %v671 = vadd.f32 0.0, %v670
  %672 = vdwg.mxu0
  %v673 = vadd.f32 %v648, %v671
  %v674 = vxor.u32 %v673, 2147483648
  %v675 = vmul.f32 %v674, 1.442695
  %v676 = vpow.pop %v675
  %v677 = vadd.f32 %v676, 1.0
  %v678 = vrcp.pop %v677
  %v679 = vmul.f32 %v677, %v678
  %v680 = vsub.f32 1.0, %v679
  %v681 = vmul.f32 %v678, %v680
  %v682 = vadd.f32 %v678, %v681
  %vm683 = vweird.f32 %v677
  %vm684 = vweird.f32 %v678
  %vm685 = vmor %vm683, %vm684
  %v686 = vsel %vm685, %v678, %v682
  %v687 = vand.u32 2147483647, %v677
  %vm688 = vcmp.eq.f32.partialorder %v687, 8.507059e+37
  %v689 = vand.u32 %v677, 2147483648
  %v690 = vor.u32 1.1754944e-38, %v689
  %v691 = vsel %vm688, %v690, %v686
  %v692 = vmul.f32 1.0, %v691
  %s693 = sadd.s32 16, 128
  %s694 = scalar_lea.vmem [#allocation2], %s693
  %v695 = vld [vmem:[%s694] sm:$0xff]
  %v696 = vld [vmem:[%s337] sm:$0xff]
  %v697 = vld [vmem:[%s337 + $0x8] sm:$0xff]
  %v698 = vld [vmem:[%s337 + $0x10] sm:$0xff]
  %v699 = vld [vmem:[%s337 + $0x18] sm:$0xff]
  %700 = vmatpush.msra.mxu0 0.0
  %701 = vmatpush.msra.mxu0 0.0
  %702 = vmatpush.msra.mxu0 0.0
  %703 = vmatpush.msra.mxu0 0.0
  %704 = vmatpush.msra.mxu0 0.0
  %705 = vmatpush.msra.mxu0 0.0
  %706 = vmatpush.msra.mxu0 0.0
  %707 = vmatpush.msra.mxu0 0.0
  %708 = vmatpush.msra.mxu0 0.0
  %709 = vmatpush.msra.mxu0 0.0
  %710 = vmatpush.msra.mxu0 0.0
  %711 = vmatpush.msra.mxu0 0.0
  %712 = vmatpush.msra.mxu0 %v699
  %713 = vmatpush.msra.mxu0 %v698
  %714 = vmatpush.msra.mxu0 %v697
  %715 = vmatpush.msra.mxu0 %v696
  %716 = vmatmul.f32.gmra.mxu0 %v604
  %v717 = vpop.f32.mrf.mxu0
  %v718 = vadd.f32 0.0, %v717
  %719 = vdwg.mxu0
  %v720 = vadd.f32 %v695, %v718
  %v721 = vtanh.pop %v720
  %s722 = sadd.s32 16, 192
  %s723 = scalar_lea.vmem [#allocation2], %s722
  %v724 = vld [vmem:[%s723] sm:$0xff]
  %v725 = vld [vmem:[%s367] sm:$0xff]
  %v726 = vld [vmem:[%s367 + $0x8] sm:$0xff]
  %v727 = vld [vmem:[%s367 + $0x10] sm:$0xff]
  %v728 = vld [vmem:[%s367 + $0x18] sm:$0xff]
  %729 = vmatpush.msra.mxu0 0.0
  %730 = vmatpush.msra.mxu0 0.0
  %731 = vmatpush.msra.mxu0 0.0
  %732 = vmatpush.msra.mxu0 0.0
  %733 = vmatpush.msra.mxu0 0.0
  %734 = vmatpush.msra.mxu0 0.0
  %735 = vmatpush.msra.mxu0 0.0
  %736 = vmatpush.msra.mxu0 0.0
  %737 = vmatpush.msra.mxu0 0.0
  %738 = vmatpush.msra.mxu0 0.0
  %739 = vmatpush.msra.mxu0 0.0
  %740 = vmatpush.msra.mxu0 0.0
  %741 = vmatpush.msra.mxu0 %v728
  %742 = vmatpush.msra.mxu0 %v727
  %743 = vmatpush.msra.mxu0 %v726
  %744 = vmatpush.msra.mxu0 %v725
  %745 = vmatmul.f32.gmra.mxu0 %v604
  %v746 = vpop.f32.mrf.mxu0
  %v747 = vadd.f32 0.0, %v746
  %748 = vdwg.mxu0
  %v749 = vadd.f32 %v724, %v747
  %v750 = vxor.u32 %v749, 2147483648
  %v751 = vmul.f32 %v750, 1.442695
  %v752 = vpow.pop %v751
  %v753 = vadd.f32 %v752, 1.0
  %v754 = vrcp.pop %v753
  %v755 = vmul.f32 %v753, %v754
  %v756 = vsub.f32 1.0, %v755
  %v757 = vmul.f32 %v754, %v756
  %v758 = vadd.f32 %v754, %v757
  %vm759 = vweird.f32 %v753
  %vm760 = vweird.f32 %v754
  %vm761 = vmor %vm759, %vm760
  %v762 = vsel %vm761, %v754, %v758
  %v763 = vand.u32 2147483647, %v753
  %vm764 = vcmp.eq.f32.partialorder %v763, 8.507059e+37
  %v765 = vand.u32 %v753, 2147483648
  %v766 = vor.u32 1.1754944e-38, %v765
  %v767 = vsel %vm764, %v766, %v762
  %v768 = vmul.f32 1.0, %v767
  %v769 = vmul.f32 %v692, %v592
  %v770 = vmul.f32 %v645, %v721
  %v771 = vadd.f32 %v769, %v770
  %v772 = vtanh.pop %v771
  %v773 = vmul.f32 %v768, %v772
  %s774 = scalar_lea.vmem [#allocation3], 16
  %775 = vst.msk [vmem:[%s774] sm:$0xff] %vm122, %v773
  %s776 = scalar_lea.vmem [#allocation2], 24
  %v777 = vld [vmem:[%s776] sm:$0xff]
  %v778 = vld [vmem:[%s2] sm:$0xff]
  %v779 = vld [vmem:[%s2 + $0x8] sm:$0xff]
  %v780 = vld [vmem:[%s2 + $0x10] sm:$0xff]
  %v781 = vld [vmem:[%s2 + $0x18] sm:$0xff]
  %v783 = vsel %vm122, %v773, 0
  %785 = vmatpush.msra.mxu0 0.0
  %786 = vmatpush.msra.mxu0 0.0
  %787 = vmatpush.msra.mxu0 0.0
  %788 = vmatpush.msra.mxu0 0.0
  %789 = vmatpush.msra.mxu0 0.0
  %790 = vmatpush.msra.mxu0 0.0
  %791 = vmatpush.msra.mxu0 0.0
  %792 = vmatpush.msra.mxu0 0.0
  %793 = vmatpush.msra.mxu0 0.0
  %794 = vmatpush.msra.mxu0 0.0
  %795 = vmatpush.msra.mxu0 0.0
  %796 = vmatpush.msra.mxu0 0.0
  %797 = vmatpush.msra.mxu0 %v781
  %798 = vmatpush.msra.mxu0 %v780
  %799 = vmatpush.msra.mxu0 %v779
  %800 = vmatpush.msra.mxu0 %v778
  %801 = vmatmul.f32.gmra.mxu0 %v783
  %v802 = vpop.f32.mrf.mxu0
  %v803 = vadd.f32 0.0, %v802
  %804 = vdwg.mxu0
  %v805 = vadd.f32 %v777, %v803
  %v806 = vxor.u32 %v805, 2147483648
  %v807 = vmul.f32 %v806, 1.442695
  %v808 = vpow.pop %v807
  %v809 = vadd.f32 %v808, 1.0
  %v810 = vrcp.pop %v809
  %v811 = vmul.f32 %v809, %v810
  %v812 = vsub.f32 1.0, %v811
  %v813 = vmul.f32 %v810, %v812
  %v814 = vadd.f32 %v810, %v813
  %vm815 = vweird.f32 %v809
  %vm816 = vweird.f32 %v810
  %vm817 = vmor %vm815, %vm816
  %v818 = vsel %vm817, %v810, %v814
  %v819 = vand.u32 2147483647, %v809
  %vm820 = vcmp.eq.f32.partialorder %v819, 8.507059e+37
  %v821 = vand.u32 %v809, 2147483648
  %v822 = vor.u32 1.1754944e-38, %v821
  %v823 = vsel %vm820, %v822, %v818
  %v824 = vmul.f32 1.0, %v823
  %s825 = sadd.s32 24, 64
  %s826 = scalar_lea.vmem [#allocation2], %s825
  %v827 = vld [vmem:[%s826] sm:$0xff]
  %v828 = vld [vmem:[%s289] sm:$0xff]
  %v829 = vld [vmem:[%s289 + $0x8] sm:$0xff]
  %v830 = vld [vmem:[%s289 + $0x10] sm:$0xff]
  %v831 = vld [vmem:[%s289 + $0x18] sm:$0xff]
  %832 = vmatpush.msra.mxu0 0.0
  %833 = vmatpush.msra.mxu0 0.0
  %834 = vmatpush.msra.mxu0 0.0
  %835 = vmatpush.msra.mxu0 0.0
  %836 = vmatpush.msra.mxu0 0.0
  %837 = vmatpush.msra.mxu0 0.0
  %838 = vmatpush.msra.mxu0 0.0
  %839 = vmatpush.msra.mxu0 0.0
  %840 = vmatpush.msra.mxu0 0.0
  %841 = vmatpush.msra.mxu0 0.0
  %842 = vmatpush.msra.mxu0 0.0
  %843 = vmatpush.msra.mxu0 0.0
  %844 = vmatpush.msra.mxu0 %v831
  %845 = vmatpush.msra.mxu0 %v830
  %846 = vmatpush.msra.mxu0 %v829
  %847 = vmatpush.msra.mxu0 %v828
  %848 = vmatmul.f32.gmra.mxu0 %v783
  %v849 = vpop.f32.mrf.mxu0
  %v850 = vadd.f32 0.0, %v849
  %851 = vdwg.mxu0
  %v852 = vadd.f32 %v827, %v850
  %v853 = vxor.u32 %v852, 2147483648
  %v854 = vmul.f32 %v853, 1.442695
  %v855 = vpow.pop %v854
  %v856 = vadd.f32 %v855, 1.0
  %v857 = vrcp.pop %v856
  %v858 = vmul.f32 %v856, %v857
  %v859 = vsub.f32 1.0, %v858
  %v860 = vmul.f32 %v857, %v859
  %v861 = vadd.f32 %v857, %v860
  %vm862 = vweird.f32 %v856
  %vm863 = vweird.f32 %v857
  %vm864 = vmor %vm862, %vm863
  %v865 = vsel %vm864, %v857, %v861
  %v866 = vand.u32 2147483647, %v856
  %vm867 = vcmp.eq.f32.partialorder %v866, 8.507059e+37
  %v868 = vand.u32 %v856, 2147483648
  %v869 = vor.u32 1.1754944e-38, %v868
  %v870 = vsel %vm867, %v869, %v865
  %v871 = vmul.f32 1.0, %v870
  %s872 = sadd.s32 24, 128
  %s873 = scalar_lea.vmem [#allocation2], %s872
  %v874 = vld [vmem:[%s873] sm:$0xff]
  %v875 = vld [vmem:[%s337] sm:$0xff]
  %v876 = vld [vmem:[%s337 + $0x8] sm:$0xff]
  %v877 = vld [vmem:[%s337 + $0x10] sm:$0xff]
  %v878 = vld [vmem:[%s337 + $0x18] sm:$0xff]
  %879 = vmatpush.msra.mxu0 0.0
  %880 = vmatpush.msra.mxu0 0.0
  %881 = vmatpush.msra.mxu0 0.0
  %882 = vmatpush.msra.mxu0 0.0
  %883 = vmatpush.msra.mxu0 0.0
  %884 = vmatpush.msra.mxu0 0.0
  %885 = vmatpush.msra.mxu0 0.0
  %886 = vmatpush.msra.mxu0 0.0
  %887 = vmatpush.msra.mxu0 0.0
  %888 = vmatpush.msra.mxu0 0.0
  %889 = vmatpush.msra.mxu0 0.0
  %890 = vmatpush.msra.mxu0 0.0
  %891 = vmatpush.msra.mxu0 %v878
  %892 = vmatpush.msra.mxu0 %v877
  %893 = vmatpush.msra.mxu0 %v876
  %894 = vmatpush.msra.mxu0 %v875
  %895 = vmatmul.f32.gmra.mxu0 %v783
  %v896 = vpop.f32.mrf.mxu0
  %v897 = vadd.f32 0.0, %v896
  %898 = vdwg.mxu0
  %v899 = vadd.f32 %v874, %v897
  %v900 = vtanh.pop %v899
  %s901 = sadd.s32 24, 192
  %s902 = scalar_lea.vmem [#allocation2], %s901
  %v903 = vld [vmem:[%s902] sm:$0xff]
  %v904 = vld [vmem:[%s367] sm:$0xff]
  %v905 = vld [vmem:[%s367 + $0x8] sm:$0xff]
  %v906 = vld [vmem:[%s367 + $0x10] sm:$0xff]
  %v907 = vld [vmem:[%s367 + $0x18] sm:$0xff]
  %908 = vmatpush.msra.mxu0 0.0
  %909 = vmatpush.msra.mxu0 0.0
  %910 = vmatpush.msra.mxu0 0.0
  %911 = vmatpush.msra.mxu0 0.0
  %912 = vmatpush.msra.mxu0 0.0
  %913 = vmatpush.msra.mxu0 0.0
  %914 = vmatpush.msra.mxu0 0.0
  %915 = vmatpush.msra.mxu0 0.0
  %916 = vmatpush.msra.mxu0 0.0
  %917 = vmatpush.msra.mxu0 0.0
  %918 = vmatpush.msra.mxu0 0.0
  %919 = vmatpush.msra.mxu0 0.0
  %920 = vmatpush.msra.mxu0 %v907
  %921 = vmatpush.msra.mxu0 %v906
  %922 = vmatpush.msra.mxu0 %v905
  %923 = vmatpush.msra.mxu0 %v904
  %924 = vmatmul.f32.gmra.mxu0 %v783
  %v925 = vpop.f32.mrf.mxu0
  %v926 = vadd.f32 0.0, %v925
  %927 = vdwg.mxu0
  %v928 = vadd.f32 %v903, %v926
  %v929 = vxor.u32 %v928, 2147483648
  %v930 = vmul.f32 %v929, 1.442695
  %v931 = vpow.pop %v930
  %v932 = vadd.f32 %v931, 1.0
  %v933 = vrcp.pop %v932
  %v934 = vmul.f32 %v932, %v933
  %v935 = vsub.f32 1.0, %v934
  %v936 = vmul.f32 %v933, %v935
  %v937 = vadd.f32 %v933, %v936
  %vm938 = vweird.f32 %v932
  %vm939 = vweird.f32 %v933
  %vm940 = vmor %vm938, %vm939
  %v941 = vsel %vm940, %v933, %v937
  %v942 = vand.u32 2147483647, %v932
  %vm943 = vcmp.eq.f32.partialorder %v942, 8.507059e+37
  %v944 = vand.u32 %v932, 2147483648
  %v945 = vor.u32 1.1754944e-38, %v944
  %v946 = vsel %vm943, %v945, %v941
  %v947 = vmul.f32 1.0, %v946
  %v948 = vmul.f32 %v871, %v771
  %v949 = vmul.f32 %v824, %v900
  %v950 = vadd.f32 %v948, %v949
  %v951 = vtanh.pop %v950
  %v952 = vmul.f32 %v947, %v951
  %s953 = scalar_lea.vmem [#allocation3], 24
  %954 = vst.msk [vmem:[%s953] sm:$0xff] %vm122, %v952
  %s955 = scalar_lea.vmem [#allocation2], 32
  %v956 = vld [vmem:[%s955] sm:$0xff]
  %v957 = vld [vmem:[%s2] sm:$0xff]
  %v958 = vld [vmem:[%s2 + $0x8] sm:$0xff]
  %v959 = vld [vmem:[%s2 + $0x10] sm:$0xff]
  %v960 = vld [vmem:[%s2 + $0x18] sm:$0xff]
  %v962 = vsel %vm122, %v952, 0
  %964 = vmatpush.msra.mxu0 0.0
  %965 = vmatpush.msra.mxu0 0.0
  %966 = vmatpush.msra.mxu0 0.0
  %967 = vmatpush.msra.mxu0 0.0
  %968 = vmatpush.msra.mxu0 0.0
  %969 = vmatpush.msra.mxu0 0.0
  %970 = vmatpush.msra.mxu0 0.0
  %971 = vmatpush.msra.mxu0 0.0
  %972 = vmatpush.msra.mxu0 0.0
  %973 = vmatpush.msra.mxu0 0.0
  %974 = vmatpush.msra.mxu0 0.0
  %975 = vmatpush.msra.mxu0 0.0
  %976 = vmatpush.msra.mxu0 %v960
  %977 = vmatpush.msra.mxu0 %v959
  %978 = vmatpush.msra.mxu0 %v958
  %979 = vmatpush.msra.mxu0 %v957
  %980 = vmatmul.f32.gmra.mxu0 %v962
  %v981 = vpop.f32.mrf.mxu0
  %v982 = vadd.f32 0.0, %v981
  %983 = vdwg.mxu0
  %v984 = vadd.f32 %v956, %v982
  %v985 = vxor.u32 %v984, 2147483648
  %v986 = vmul.f32 %v985, 1.442695
  %v987 = vpow.pop %v986
  %v988 = vadd.f32 %v987, 1.0
  %v989 = vrcp.pop %v988
  %v990 = vmul.f32 %v988, %v989
  %v991 = vsub.f32 1.0, %v990
  %v992 = vmul.f32 %v989, %v991
  %v993 = vadd.f32 %v989, %v992
  %vm994 = vweird.f32 %v988
  %vm995 = vweird.f32 %v989
  %vm996 = vmor %vm994, %vm995
  %v997 = vsel %vm996, %v989, %v993
  %v998 = vand.u32 2147483647, %v988
  %vm999 = vcmp.eq.f32.partialorder %v998, 8.507059e+37
  %v1000 = vand.u32 %v988, 2147483648
  %v1001 = vor.u32 1.1754944e-38, %v1000
  %v1002 = vsel %vm999, %v1001, %v997
  %v1003 = vmul.f32 1.0, %v1002
  %s1004 = sadd.s32 32, 64
  %s1005 = scalar_lea.vmem [#allocation2], %s1004
  %v1006 = vld [vmem:[%s1005] sm:$0xff]
  %v1007 = vld [vmem:[%s289] sm:$0xff]
  %v1008 = vld [vmem:[%s289 + $0x8] sm:$0xff]
  %v1009 = vld [vmem:[%s289 + $0x10] sm:$0xff]
  %v1010 = vld [vmem:[%s289 + $0x18] sm:$0xff]
  %1011 = vmatpush.msra.mxu0 0.0
  %1012 = vmatpush.msra.mxu0 0.0
  %1013 = vmatpush.msra.mxu0 0.0
  %1014 = vmatpush.msra.mxu0 0.0
  %1015 = vmatpush.msra.mxu0 0.0
  %1016 = vmatpush.msra.mxu0 0.0
  %1017 = vmatpush.msra.mxu0 0.0
  %1018 = vmatpush.msra.mxu0 0.0
  %1019 = vmatpush.msra.mxu0 0.0
  %1020 = vmatpush.msra.mxu0 0.0
  %1021 = vmatpush.msra.mxu0 0.0
  %1022 = vmatpush.msra.mxu0 0.0
  %1023 = vmatpush.msra.mxu0 %v1010
  %1024 = vmatpush.msra.mxu0 %v1009
  %1025 = vmatpush.msra.mxu0 %v1008
  %1026 = vmatpush.msra.mxu0 %v1007
  %1027 = vmatmul.f32.gmra.mxu0 %v962
  %v1028 = vpop.f32.mrf.mxu0
  %v1029 = vadd.f32 0.0, %v1028
  %1030 = vdwg.mxu0
  %v1031 = vadd.f32 %v1006, %v1029
  %v1032 = vxor.u32 %v1031, 2147483648
  %v1033 = vmul.f32 %v1032, 1.442695
  %v1034 = vpow.pop %v1033
  %v1035 = vadd.f32 %v1034, 1.0
  %v1036 = vrcp.pop %v1035
  %v1037 = vmul.f32 %v1035, %v1036
  %v1038 = vsub.f32 1.0, %v1037
  %v1039 = vmul.f32 %v1036, %v1038
  %v1040 = vadd.f32 %v1036, %v1039
  %vm1041 = vweird.f32 %v1035
  %vm1042 = vweird.f32 %v1036
  %vm1043 = vmor %vm1041, %vm1042
  %v1044 = vsel %vm1043, %v1036, %v1040
  %v1045 = vand.u32 2147483647, %v1035
  %vm1046 = vcmp.eq.f32.partialorder %v1045, 8.507059e+37
  %v1047 = vand.u32 %v1035, 2147483648
  %v1048 = vor.u32 1.1754944e-38, %v1047
  %v1049 = vsel %vm1046, %v1048, %v1044
  %v1050 = vmul.f32 1.0, %v1049
  %s1051 = sadd.s32 32, 128
  %s1052 = scalar_lea.vmem [#allocation2], %s1051
  %v1053 = vld [vmem:[%s1052] sm:$0xff]
  %v1054 = vld [vmem:[%s337] sm:$0xff]
  %v1055 = vld [vmem:[%s337 + $0x8] sm:$0xff]
  %v1056 = vld [vmem:[%s337 + $0x10] sm:$0xff]
  %v1057 = vld [vmem:[%s337 + $0x18] sm:$0xff]
  %1058 = vmatpush.msra.mxu0 0.0
  %1059 = vmatpush.msra.mxu0 0.0
  %1060 = vmatpush.msra.mxu0 0.0
  %1061 = vmatpush.msra.mxu0 0.0
  %1062 = vmatpush.msra.mxu0 0.0
  %1063 = vmatpush.msra.mxu0 0.0
  %1064 = vmatpush.msra.mxu0 0.0
  %1065 = vmatpush.msra.mxu0 0.0
  %1066 = vmatpush.msra.mxu0 0.0
  %1067 = vmatpush.msra.mxu0 0.0
  %1068 = vmatpush.msra.mxu0 0.0
  %1069 = vmatpush.msra.mxu0 0.0
  %1070 = vmatpush.msra.mxu0 %v1057
  %1071 = vmatpush.msra.mxu0 %v1056
  %1072 = vmatpush.msra.mxu0 %v1055
  %1073 = vmatpush.msra.mxu0 %v1054
  %1074 = vmatmul.f32.gmra.mxu0 %v962
  %v1075 = vpop.f32.mrf.mxu0
  %v1076 = vadd.f32 0.0, %v1075
  %1077 = vdwg.mxu0
  %v1078 = vadd.f32 %v1053, %v1076
  %v1079 = vtanh.pop %v1078
  %s1080 = sadd.s32 32, 192
  %s1081 = scalar_lea.vmem [#allocation2], %s1080
  %v1082 = vld [vmem:[%s1081] sm:$0xff]
  %v1083 = vld [vmem:[%s367] sm:$0xff]
  %v1084 = vld [vmem:[%s367 + $0x8] sm:$0xff]
  %v1085 = vld [vmem:[%s367 + $0x10] sm:$0xff]
  %v1086 = vld [vmem:[%s367 + $0x18] sm:$0xff]
  %1087 = vmatpush.msra.mxu0 0.0
  %1088 = vmatpush.msra.mxu0 0.0
  %1089 = vmatpush.msra.mxu0 0.0
  %1090 = vmatpush.msra.mxu0 0.0
  %1091 = vmatpush.msra.mxu0 0.0
  %1092 = vmatpush.msra.mxu0 0.0
  %1093 = vmatpush.msra.mxu0 0.0
  %1094 = vmatpush.msra.mxu0 0.0
  %1095 = vmatpush.msra.mxu0 0.0
  %1096 = vmatpush.msra.mxu0 0.0
  %1097 = vmatpush.msra.mxu0 0.0
  %1098 = vmatpush.msra.mxu0 0.0
  %1099 = vmatpush.msra.mxu0 %v1086
  %1100 = vmatpush.msra.mxu0 %v1085
  %1101 = vmatpush.msra.mxu0 %v1084
  %1102 = vmatpush.msra.mxu0 %v1083
  %1103 = vmatmul.f32.gmra.mxu0 %v962
  %v1104 = vpop.f32.mrf.mxu0
  %v1105 = vadd.f32 0.0, %v1104
  %1106 = vdwg.mxu0
  %v1107 = vadd.f32 %v1082, %v1105
  %v1108 = vxor.u32 %v1107, 2147483648
  %v1109 = vmul.f32 %v1108, 1.442695
  %v1110 = vpow.pop %v1109
  %v1111 = vadd.f32 %v1110, 1.0
  %v1112 = vrcp.pop %v1111
  %v1113 = vmul.f32 %v1111, %v1112
  %v1114 = vsub.f32 1.0, %v1113
  %v1115 = vmul.f32 %v1112, %v1114
  %v1116 = vadd.f32 %v1112, %v1115
  %vm1117 = vweird.f32 %v1111
  %vm1118 = vweird.f32 %v1112
  %vm1119 = vmor %vm1117, %vm1118
  %v1120 = vsel %vm1119, %v1112, %v1116
  %v1121 = vand.u32 2147483647, %v1111
  %vm1122 = vcmp.eq.f32.partialorder %v1121, 8.507059e+37
  %v1123 = vand.u32 %v1111, 2147483648
  %v1124 = vor.u32 1.1754944e-38, %v1123
  %v1125 = vsel %vm1122, %v1124, %v1120
  %v1126 = vmul.f32 1.0, %v1125
  %v1127 = vmul.f32 %v1050, %v950
  %v1128 = vmul.f32 %v1003, %v1079
  %v1129 = vadd.f32 %v1127, %v1128
  %v1130 = vtanh.pop %v1129
  %v1131 = vmul.f32 %v1126, %v1130
  %s1132 = scalar_lea.vmem [#allocation3], 32
  %1133 = vst.msk [vmem:[%s1132] sm:$0xff] %vm122, %v1131
  %s1134 = scalar_lea.vmem [#allocation2], 40
  %v1135 = vld [vmem:[%s1134] sm:$0xff]
  %v1136 = vld [vmem:[%s2] sm:$0xff]
  %v1137 = vld [vmem:[%s2 + $0x8] sm:$0xff]
  %v1138 = vld [vmem:[%s2 + $0x10] sm:$0xff]
  %v1139 = vld [vmem:[%s2 + $0x18] sm:$0xff]
  %v1141 = vsel %vm122, %v1131, 0
  %1143 = vmatpush.msra.mxu0 0.0
  %1144 = vmatpush.msra.mxu0 0.0
  %1145 = vmatpush.msra.mxu0 0.0
  %1146 = vmatpush.msra.mxu0 0.0
  %1147 = vmatpush.msra.mxu0 0.0
  %1148 = vmatpush.msra.mxu0 0.0
  %1149 = vmatpush.msra.mxu0 0.0
  %1150 = vmatpush.msra.mxu0 0.0
  %1151 = vmatpush.msra.mxu0 0.0
  %1152 = vmatpush.msra.mxu0 0.0
  %1153 = vmatpush.msra.mxu0 0.0
  %1154 = vmatpush.msra.mxu0 0.0
  %1155 = vmatpush.msra.mxu0 %v1139
  %1156 = vmatpush.msra.mxu0 %v1138
  %1157 = vmatpush.msra.mxu0 %v1137
  %1158 = vmatpush.msra.mxu0 %v1136
  %1159 = vmatmul.f32.gmra.mxu0 %v1141
  %v1160 = vpop.f32.mrf.mxu0
  %v1161 = vadd.f32 0.0, %v1160
  %1162 = vdwg.mxu0
  %v1163 = vadd.f32 %v1135, %v1161
  %v1164 = vxor.u32 %v1163, 2147483648
  %v1165 = vmul.f32 %v1164, 1.442695
  %v1166 = vpow.pop %v1165
  %v1167 = vadd.f32 %v1166, 1.0
  %v1168 = vrcp.pop %v1167
  %v1169 = vmul.f32 %v1167, %v1168
  %v1170 = vsub.f32 1.0, %v1169
  %v1171 = vmul.f32 %v1168, %v1170
  %v1172 = vadd.f32 %v1168, %v1171
  %vm1173 = vweird.f32 %v1167
  %vm1174 = vweird.f32 %v1168
  %vm1175 = vmor %vm1173, %vm1174
  %v1176 = vsel %vm1175, %v1168, %v1172
  %v1177 = vand.u32 2147483647, %v1167
  %vm1178 = vcmp.eq.f32.partialorder %v1177, 8.507059e+37
  %v1179 = vand.u32 %v1167, 2147483648
  %v1180 = vor.u32 1.1754944e-38, %v1179
  %v1181 = vsel %vm1178, %v1180, %v1176
  %v1182 = vmul.f32 1.0, %v1181
  %s1183 = sadd.s32 40, 64
  %s1184 = scalar_lea.vmem [#allocation2], %s1183
  %v1185 = vld [vmem:[%s1184] sm:$0xff]
  %v1186 = vld [vmem:[%s289] sm:$0xff]
  %v1187 = vld [vmem:[%s289 + $0x8] sm:$0xff]
  %v1188 = vld [vmem:[%s289 + $0x10] sm:$0xff]
  %v1189 = vld [vmem:[%s289 + $0x18] sm:$0xff]
  %1190 = vmatpush.msra.mxu0 0.0
  %1191 = vmatpush.msra.mxu0 0.0
  %1192 = vmatpush.msra.mxu0 0.0
  %1193 = vmatpush.msra.mxu0 0.0
  %1194 = vmatpush.msra.mxu0 0.0
  %1195 = vmatpush.msra.mxu0 0.0
  %1196 = vmatpush.msra.mxu0 0.0
  %1197 = vmatpush.msra.mxu0 0.0
  %1198 = vmatpush.msra.mxu0 0.0
  %1199 = vmatpush.msra.mxu0 0.0
  %1200 = vmatpush.msra.mxu0 0.0
  %1201 = vmatpush.msra.mxu0 0.0
  %1202 = vmatpush.msra.mxu0 %v1189
  %1203 = vmatpush.msra.mxu0 %v1188
  %1204 = vmatpush.msra.mxu0 %v1187
  %1205 = vmatpush.msra.mxu0 %v1186
  %1206 = vmatmul.f32.gmra.mxu0 %v1141
  %v1207 = vpop.f32.mrf.mxu0
  %v1208 = vadd.f32 0.0, %v1207
  %1209 = vdwg.mxu0
  %v1210 = vadd.f32 %v1185, %v1208
  %v1211 = vxor.u32 %v1210, 2147483648
  %v1212 = vmul.f32 %v1211, 1.442695
  %v1213 = vpow.pop %v1212
  %v1214 = vadd.f32 %v1213, 1.0
  %v1215 = vrcp.pop %v1214
  %v1216 = vmul.f32 %v1214, %v1215
  %v1217 = vsub.f32 1.0, %v1216
  %v1218 = vmul.f32 %v1215, %v1217
  %v1219 = vadd.f32 %v1215, %v1218
  %vm1220 = vweird.f32 %v1214
  %vm1221 = vweird.f32 %v1215
  %vm1222 = vmor %vm1220, %vm1221
  %v1223 = vsel %vm1222, %v1215, %v1219
  %v1224 = vand.u32 2147483647, %v1214
  %vm1225 = vcmp.eq.f32.partialorder %v1224, 8.507059e+37
  %v1226 = vand.u32 %v1214, 2147483648
  %v1227 = vor.u32 1.1754944e-38, %v1226
  %v1228 = vsel %vm1225, %v1227, %v1223
  %v1229 = vmul.f32 1.0, %v1228
  %s1230 = sadd.s32 40, 128
  %s1231 = scalar_lea.vmem [#allocation2], %s1230
  %v1232 = vld [vmem:[%s1231] sm:$0xff]
  %v1233 = vld [vmem:[%s337] sm:$0xff]
  %v1234 = vld [vmem:[%s337 + $0x8] sm:$0xff]
  %v1235 = vld [vmem:[%s337 + $0x10] sm:$0xff]
  %v1236 = vld [vmem:[%s337 + $0x18] sm:$0xff]
  %1237 = vmatpush.msra.mxu0 0.0
  %1238 = vmatpush.msra.mxu0 0.0
  %1239 = vmatpush.msra.mxu0 0.0
  %1240 = vmatpush.msra.mxu0 0.0
  %1241 = vmatpush.msra.mxu0 0.0
  %1242 = vmatpush.msra.mxu0 0.0
  %1243 = vmatpush.msra.mxu0 0.0
  %1244 = vmatpush.msra.mxu0 0.0
  %1245 = vmatpush.msra.mxu0 0.0
  %1246 = vmatpush.msra.mxu0 0.0
  %1247 = vmatpush.msra.mxu0 0.0
  %1248 = vmatpush.msra.mxu0 0.0
  %1249 = vmatpush.msra.mxu0 %v1236
  %1250 = vmatpush.msra.mxu0 %v1235
  %1251 = vmatpush.msra.mxu0 %v1234
  %1252 = vmatpush.msra.mxu0 %v1233
  %1253 = vmatmul.f32.gmra.mxu0 %v1141
  %v1254 = vpop.f32.mrf.mxu0
  %v1255 = vadd.f32 0.0, %v1254
  %1256 = vdwg.mxu0
  %v1257 = vadd.f32 %v1232, %v1255
  %v1258 = vtanh.pop %v1257
  %s1259 = sadd.s32 40, 192
  %s1260 = scalar_lea.vmem [#allocation2], %s1259
  %v1261 = vld [vmem:[%s1260] sm:$0xff]
  %v1262 = vld [vmem:[%s367] sm:$0xff]
  %v1263 = vld [vmem:[%s367 + $0x8] sm:$0xff]
  %v1264 = vld [vmem:[%s367 + $0x10] sm:$0xff]
  %v1265 = vld [vmem:[%s367 + $0x18] sm:$0xff]
  %1266 = vmatpush.msra.mxu0 0.0
  %1267 = vmatpush.msra.mxu0 0.0
  %1268 = vmatpush.msra.mxu0 0.0
  %1269 = vmatpush.msra.mxu0 0.0
  %1270 = vmatpush.msra.mxu0 0.0
  %1271 = vmatpush.msra.mxu0 0.0
  %1272 = vmatpush.msra.mxu0 0.0
  %1273 = vmatpush.msra.mxu0 0.0
  %1274 = vmatpush.msra.mxu0 0.0
  %1275 = vmatpush.msra.mxu0 0.0
  %1276 = vmatpush.msra.mxu0 0.0
  %1277 = vmatpush.msra.mxu0 0.0
  %1278 = vmatpush.msra.mxu0 %v1265
  %1279 = vmatpush.msra.mxu0 %v1264
  %1280 = vmatpush.msra.mxu0 %v1263
  %1281 = vmatpush.msra.mxu0 %v1262
  %1282 = vmatmul.f32.gmra.mxu0 %v1141
  %v1283 = vpop.f32.mrf.mxu0
  %v1284 = vadd.f32 0.0, %v1283
  %1285 = vdwg.mxu0
  %v1286 = vadd.f32 %v1261, %v1284
  %v1287 = vxor.u32 %v1286, 2147483648
  %v1288 = vmul.f32 %v1287, 1.442695
  %v1289 = vpow.pop %v1288
  %v1290 = vadd.f32 %v1289, 1.0
  %v1291 = vrcp.pop %v1290
  %v1292 = vmul.f32 %v1290, %v1291
  %v1293 = vsub.f32 1.0, %v1292
  %v1294 = vmul.f32 %v1291, %v1293
  %v1295 = vadd.f32 %v1291, %v1294
  %vm1296 = vweird.f32 %v1290
  %vm1297 = vweird.f32 %v1291
  %vm1298 = vmor %vm1296, %vm1297
  %v1299 = vsel %vm1298, %v1291, %v1295
  %v1300 = vand.u32 2147483647, %v1290
  %vm1301 = vcmp.eq.f32.partialorder %v1300, 8.507059e+37
  %v1302 = vand.u32 %v1290, 2147483648
  %v1303 = vor.u32 1.1754944e-38, %v1302
  %v1304 = vsel %vm1301, %v1303, %v1299
  %v1305 = vmul.f32 1.0, %v1304
  %v1306 = vmul.f32 %v1229, %v1129
  %v1307 = vmul.f32 %v1182, %v1258
  %v1308 = vadd.f32 %v1306, %v1307
  %v1309 = vtanh.pop %v1308
  %v1310 = vmul.f32 %v1305, %v1309
  %s1311 = scalar_lea.vmem [#allocation3], 40
  %1312 = vst.msk [vmem:[%s1311] sm:$0xff] %vm122, %v1310
  %s1313 = scalar_lea.vmem [#allocation2], 48
  %v1314 = vld [vmem:[%s1313] sm:$0xff]
  %v1315 = vld [vmem:[%s2] sm:$0xff]
  %v1316 = vld [vmem:[%s2 + $0x8] sm:$0xff]
  %v1317 = vld [vmem:[%s2 + $0x10] sm:$0xff]
  %v1318 = vld [vmem:[%s2 + $0x18] sm:$0xff]
  %v1320 = vsel %vm122, %v1310, 0
  %1322 = vmatpush.msra.mxu0 0.0
  %1323 = vmatpush.msra.mxu0 0.0
  %1324 = vmatpush.msra.mxu0 0.0
  %1325 = vmatpush.msra.mxu0 0.0
  %1326 = vmatpush.msra.mxu0 0.0
  %1327 = vmatpush.msra.mxu0 0.0
  %1328 = vmatpush.msra.mxu0 0.0
  %1329 = vmatpush.msra.mxu0 0.0
  %1330 = vmatpush.msra.mxu0 0.0
  %1331 = vmatpush.msra.mxu0 0.0
  %1332 = vmatpush.msra.mxu0 0.0
  %1333 = vmatpush.msra.mxu0 0.0
  %1334 = vmatpush.msra.mxu0 %v1318
  %1335 = vmatpush.msra.mxu0 %v1317
  %1336 = vmatpush.msra.mxu0 %v1316
  %1337 = vmatpush.msra.mxu0 %v1315
  %1338 = vmatmul.f32.gmra.mxu0 %v1320
  %v1339 = vpop.f32.mrf.mxu0
  %v1340 = vadd.f32 0.0, %v1339
  %1341 = vdwg.mxu0
  %v1342 = vadd.f32 %v1314, %v1340
  %v1343 = vxor.u32 %v1342, 2147483648
  %v1344 = vmul.f32 %v1343, 1.442695
  %v1345 = vpow.pop %v1344
  %v1346 = vadd.f32 %v1345, 1.0
  %v1347 = vrcp.pop %v1346
  %v1348 = vmul.f32 %v1346, %v1347
  %v1349 = vsub.f32 1.0, %v1348
  %v1350 = vmul.f32 %v1347, %v1349
  %v1351 = vadd.f32 %v1347, %v1350
  %vm1352 = vweird.f32 %v1346
  %vm1353 = vweird.f32 %v1347
  %vm1354 = vmor %vm1352, %vm1353
  %v1355 = vsel %vm1354, %v1347, %v1351
  %v1356 = vand.u32 2147483647, %v1346
  %vm1357 = vcmp.eq.f32.partialorder %v1356, 8.507059e+37
  %v1358 = vand.u32 %v1346, 2147483648
  %v1359 = vor.u32 1.1754944e-38, %v1358
  %v1360 = vsel %vm1357, %v1359, %v1355
  %v1361 = vmul.f32 1.0, %v1360
  %s1362 = sadd.s32 48, 64
  %s1363 = scalar_lea.vmem [#allocation2], %s1362
  %v1364 = vld [vmem:[%s1363] sm:$0xff]
  %v1365 = vld [vmem:[%s289] sm:$0xff]
  %v1366 = vld [vmem:[%s289 + $0x8] sm:$0xff]
  %v1367 = vld [vmem:[%s289 + $0x10] sm:$0xff]
  %v1368 = vld [vmem:[%s289 + $0x18] sm:$0xff]
  %1369 = vmatpush.msra.mxu0 0.0
  %1370 = vmatpush.msra.mxu0 0.0
  %1371 = vmatpush.msra.mxu0 0.0
  %1372 = vmatpush.msra.mxu0 0.0
  %1373 = vmatpush.msra.mxu0 0.0
  %1374 = vmatpush.msra.mxu0 0.0
  %1375 = vmatpush.msra.mxu0 0.0
  %1376 = vmatpush.msra.mxu0 0.0
  %1377 = vmatpush.msra.mxu0 0.0
  %1378 = vmatpush.msra.mxu0 0.0
  %1379 = vmatpush.msra.mxu0 0.0
  %1380 = vmatpush.msra.mxu0 0.0
  %1381 = vmatpush.msra.mxu0 %v1368
  %1382 = vmatpush.msra.mxu0 %v1367
  %1383 = vmatpush.msra.mxu0 %v1366
  %1384 = vmatpush.msra.mxu0 %v1365
  %1385 = vmatmul.f32.gmra.mxu0 %v1320
  %v1386 = vpop.f32.mrf.mxu0
  %v1387 = vadd.f32 0.0, %v1386
  %1388 = vdwg.mxu0
  %v1389 = vadd.f32 %v1364, %v1387
  %v1390 = vxor.u32 %v1389, 2147483648
  %v1391 = vmul.f32 %v1390, 1.442695
  %v1392 = vpow.pop %v1391
  %v1393 = vadd.f32 %v1392, 1.0
  %v1394 = vrcp.pop %v1393
  %v1395 = vmul.f32 %v1393, %v1394
  %v1396 = vsub.f32 1.0, %v1395
  %v1397 = vmul.f32 %v1394, %v1396
  %v1398 = vadd.f32 %v1394, %v1397
  %vm1399 = vweird.f32 %v1393
  %vm1400 = vweird.f32 %v1394
  %vm1401 = vmor %vm1399, %vm1400
  %v1402 = vsel %vm1401, %v1394, %v1398
  %v1403 = vand.u32 2147483647, %v1393
  %vm1404 = vcmp.eq.f32.partialorder %v1403, 8.507059e+37
  %v1405 = vand.u32 %v1393, 2147483648
  %v1406 = vor.u32 1.1754944e-38, %v1405
  %v1407 = vsel %vm1404, %v1406, %v1402
  %v1408 = vmul.f32 1.0, %v1407
  %s1409 = sadd.s32 48, 128
  %s1410 = scalar_lea.vmem [#allocation2], %s1409
  %v1411 = vld [vmem:[%s1410] sm:$0xff]
  %v1412 = vld [vmem:[%s337] sm:$0xff]
  %v1413 = vld [vmem:[%s337 + $0x8] sm:$0xff]
  %v1414 = vld [vmem:[%s337 + $0x10] sm:$0xff]
  %v1415 = vld [vmem:[%s337 + $0x18] sm:$0xff]
  %1416 = vmatpush.msra.mxu0 0.0
  %1417 = vmatpush.msra.mxu0 0.0
  %1418 = vmatpush.msra.mxu0 0.0
  %1419 = vmatpush.msra.mxu0 0.0
  %1420 = vmatpush.msra.mxu0 0.0
  %1421 = vmatpush.msra.mxu0 0.0
  %1422 = vmatpush.msra.mxu0 0.0
  %1423 = vmatpush.msra.mxu0 0.0
  %1424 = vmatpush.msra.mxu0 0.0
  %1425 = vmatpush.msra.mxu0 0.0
  %1426 = vmatpush.msra.mxu0 0.0
  %1427 = vmatpush.msra.mxu0 0.0
  %1428 = vmatpush.msra.mxu0 %v1415
  %1429 = vmatpush.msra.mxu0 %v1414
  %1430 = vmatpush.msra.mxu0 %v1413
  %1431 = vmatpush.msra.mxu0 %v1412
  %1432 = vmatmul.f32.gmra.mxu0 %v1320
  %v1433 = vpop.f32.mrf.mxu0
  %v1434 = vadd.f32 0.0, %v1433
  %1435 = vdwg.mxu0
  %v1436 = vadd.f32 %v1411, %v1434
  %v1437 = vtanh.pop %v1436
  %s1438 = sadd.s32 48, 192
  %s1439 = scalar_lea.vmem [#allocation2], %s1438
  %v1440 = vld [vmem:[%s1439] sm:$0xff]
  %v1441 = vld [vmem:[%s367] sm:$0xff]
  %v1442 = vld [vmem:[%s367 + $0x8] sm:$0xff]
  %v1443 = vld [vmem:[%s367 + $0x10] sm:$0xff]
  %v1444 = vld [vmem:[%s367 + $0x18] sm:$0xff]
  %1445 = vmatpush.msra.mxu0 0.0
  %1446 = vmatpush.msra.mxu0 0.0
  %1447 = vmatpush.msra.mxu0 0.0
  %1448 = vmatpush.msra.mxu0 0.0
  %1449 = vmatpush.msra.mxu0 0.0
  %1450 = vmatpush.msra.mxu0 0.0
  %1451 = vmatpush.msra.mxu0 0.0
  %1452 = vmatpush.msra.mxu0 0.0
  %1453 = vmatpush.msra.mxu0 0.0
  %1454 = vmatpush.msra.mxu0 0.0
  %1455 = vmatpush.msra.mxu0 0.0
  %1456 = vmatpush.msra.mxu0 0.0
  %1457 = vmatpush.msra.mxu0 %v1444
  %1458 = vmatpush.msra.mxu0 %v1443
  %1459 = vmatpush.msra.mxu0 %v1442
  %1460 = vmatpush.msra.mxu0 %v1441
  %1461 = vmatmul.f32.gmra.mxu0 %v1320
  %v1462 = vpop.f32.mrf.mxu0
  %v1463 = vadd.f32 0.0, %v1462
  %1464 = vdwg.mxu0
  %v1465 = vadd.f32 %v1440, %v1463
  %v1466 = vxor.u32 %v1465, 2147483648
  %v1467 = vmul.f32 %v1466, 1.442695
  %v1468 = vpow.pop %v1467
  %v1469 = vadd.f32 %v1468, 1.0
  %v1470 = vrcp.pop %v1469
  %v1471 = vmul.f32 %v1469, %v1470
  %v1472 = vsub.f32 1.0, %v1471
  %v1473 = vmul.f32 %v1470, %v1472
  %v1474 = vadd.f32 %v1470, %v1473
  %vm1475 = vweird.f32 %v1469
  %vm1476 = vweird.f32 %v1470
  %vm1477 = vmor %vm1475, %vm1476
  %v1478 = vsel %vm1477, %v1470, %v1474
  %v1479 = vand.u32 2147483647, %v1469
  %vm1480 = vcmp.eq.f32.partialorder %v1479, 8.507059e+37
  %v1481 = vand.u32 %v1469, 2147483648
  %v1482 = vor.u32 1.1754944e-38, %v1481
  %v1483 = vsel %vm1480, %v1482, %v1478
  %v1484 = vmul.f32 1.0, %v1483
  %v1485 = vmul.f32 %v1408, %v1308
  %v1486 = vmul.f32 %v1361, %v1437
  %v1487 = vadd.f32 %v1485, %v1486
  %v1488 = vtanh.pop %v1487
  %v1489 = vmul.f32 %v1484, %v1488
  %s1490 = scalar_lea.vmem [#allocation3], 48
  %1491 = vst.msk [vmem:[%s1490] sm:$0xff] %vm122, %v1489
  %s1492 = scalar_lea.vmem [#allocation2], 56
  %v1493 = vld [vmem:[%s1492] sm:$0xff]
  %v1494 = vld [vmem:[%s2] sm:$0xff]
  %v1495 = vld [vmem:[%s2 + $0x8] sm:$0xff]
  %v1496 = vld [vmem:[%s2 + $0x10] sm:$0xff]
  %v1497 = vld [vmem:[%s2 + $0x18] sm:$0xff]
  %v1499 = vsel %vm122, %v1489, 0
  %1501 = vmatpush.msra.mxu0 0.0
  %1502 = vmatpush.msra.mxu0 0.0
  %1503 = vmatpush.msra.mxu0 0.0
  %1504 = vmatpush.msra.mxu0 0.0
  %1505 = vmatpush.msra.mxu0 0.0
  %1506 = vmatpush.msra.mxu0 0.0
  %1507 = vmatpush.msra.mxu0 0.0
  %1508 = vmatpush.msra.mxu0 0.0
  %1509 = vmatpush.msra.mxu0 0.0
  %1510 = vmatpush.msra.mxu0 0.0
  %1511 = vmatpush.msra.mxu0 0.0
  %1512 = vmatpush.msra.mxu0 0.0
  %1513 = vmatpush.msra.mxu0 %v1497
  %1514 = vmatpush.msra.mxu0 %v1496
  %1515 = vmatpush.msra.mxu0 %v1495
  %1516 = vmatpush.msra.mxu0 %v1494
  %1517 = vmatmul.f32.gmra.mxu0 %v1499
  %v1518 = vpop.f32.mrf.mxu0
  %v1519 = vadd.f32 0.0, %v1518
  %1520 = vdwg.mxu0
  %v1521 = vadd.f32 %v1493, %v1519
  %v1522 = vxor.u32 %v1521, 2147483648
  %v1523 = vmul.f32 %v1522, 1.442695
  %v1524 = vpow.pop %v1523
  %v1525 = vadd.f32 %v1524, 1.0
  %v1526 = vrcp.pop %v1525
  %v1527 = vmul.f32 %v1525, %v1526
  %v1528 = vsub.f32 1.0, %v1527
  %v1529 = vmul.f32 %v1526, %v1528
  %v1530 = vadd.f32 %v1526, %v1529
  %vm1531 = vweird.f32 %v1525
  %vm1532 = vweird.f32 %v1526
  %vm1533 = vmor %vm1531, %vm1532
  %v1534 = vsel %vm1533, %v1526, %v1530
  %v1535 = vand.u32 2147483647, %v1525
  %vm1536 = vcmp.eq.f32.partialorder %v1535, 8.507059e+37
  %v1537 = vand.u32 %v1525, 2147483648
  %v1538 = vor.u32 1.1754944e-38, %v1537
  %v1539 = vsel %vm1536, %v1538, %v1534
  %v1540 = vmul.f32 1.0, %v1539
  %s1541 = sadd.s32 56, 64
  %s1542 = scalar_lea.vmem [#allocation2], %s1541
  %v1543 = vld [vmem:[%s1542] sm:$0xff]
  %v1544 = vld [vmem:[%s289] sm:$0xff]
  %v1545 = vld [vmem:[%s289 + $0x8] sm:$0xff]
  %v1546 = vld [vmem:[%s289 + $0x10] sm:$0xff]
  %v1547 = vld [vmem:[%s289 + $0x18] sm:$0xff]
  %1548 = vmatpush.msra.mxu0 0.0
  %1549 = vmatpush.msra.mxu0 0.0
  %1550 = vmatpush.msra.mxu0 0.0
  %1551 = vmatpush.msra.mxu0 0.0
  %1552 = vmatpush.msra.mxu0 0.0
  %1553 = vmatpush.msra.mxu0 0.0
  %1554 = vmatpush.msra.mxu0 0.0
  %1555 = vmatpush.msra.mxu0 0.0
  %1556 = vmatpush.msra.mxu0 0.0
  %1557 = vmatpush.msra.mxu0 0.0
  %1558 = vmatpush.msra.mxu0 0.0
  %1559 = vmatpush.msra.mxu0 0.0
  %1560 = vmatpush.msra.mxu0 %v1547
  %1561 = vmatpush.msra.mxu0 %v1546
  %1562 = vmatpush.msra.mxu0 %v1545
  %1563 = vmatpush.msra.mxu0 %v1544
  %1564 = vmatmul.f32.gmra.mxu0 %v1499
  %v1565 = vpop.f32.mrf.mxu0
  %v1566 = vadd.f32 0.0, %v1565
  %1567 = vdwg.mxu0
  %v1568 = vadd.f32 %v1543, %v1566
  %v1569 = vxor.u32 %v1568, 2147483648
  %v1570 = vmul.f32 %v1569, 1.442695
  %v1571 = vpow.pop %v1570
  %v1572 = vadd.f32 %v1571, 1.0
  %v1573 = vrcp.pop %v1572
  %v1574 = vmul.f32 %v1572, %v1573
  %v1575 = vsub.f32 1.0, %v1574
  %v1576 = vmul.f32 %v1573, %v1575
  %v1577 = vadd.f32 %v1573, %v1576
  %vm1578 = vweird.f32 %v1572
  %vm1579 = vweird.f32 %v1573
  %vm1580 = vmor %vm1578, %vm1579
  %v1581 = vsel %vm1580, %v1573, %v1577
  %v1582 = vand.u32 2147483647, %v1572
  %vm1583 = vcmp.eq.f32.partialorder %v1582, 8.507059e+37
  %v1584 = vand.u32 %v1572, 2147483648
  %v1585 = vor.u32 1.1754944e-38, %v1584
  %v1586 = vsel %vm1583, %v1585, %v1581
  %v1587 = vmul.f32 1.0, %v1586
  %s1588 = sadd.s32 56, 128
  %s1589 = scalar_lea.vmem [#allocation2], %s1588
  %v1590 = vld [vmem:[%s1589] sm:$0xff]
  %v1591 = vld [vmem:[%s337] sm:$0xff]
  %v1592 = vld [vmem:[%s337 + $0x8] sm:$0xff]
  %v1593 = vld [vmem:[%s337 + $0x10] sm:$0xff]
  %v1594 = vld [vmem:[%s337 + $0x18] sm:$0xff]
  %1595 = vmatpush.msra.mxu0 0.0
  %1596 = vmatpush.msra.mxu0 0.0
  %1597 = vmatpush.msra.mxu0 0.0
  %1598 = vmatpush.msra.mxu0 0.0
  %1599 = vmatpush.msra.mxu0 0.0
  %1600 = vmatpush.msra.mxu0 0.0
  %1601 = vmatpush.msra.mxu0 0.0
  %1602 = vmatpush.msra.mxu0 0.0
  %1603 = vmatpush.msra.mxu0 0.0
  %1604 = vmatpush.msra.mxu0 0.0
  %1605 = vmatpush.msra.mxu0 0.0
  %1606 = vmatpush.msra.mxu0 0.0
  %1607 = vmatpush.msra.mxu0 %v1594
  %1608 = vmatpush.msra.mxu0 %v1593
  %1609 = vmatpush.msra.mxu0 %v1592
  %1610 = vmatpush.msra.mxu0 %v1591
  %1611 = vmatmul.f32.gmra.mxu0 %v1499
  %v1612 = vpop.f32.mrf.mxu0
  %v1613 = vadd.f32 0.0, %v1612
  %1614 = vdwg.mxu0
  %v1615 = vadd.f32 %v1590, %v1613
  %v1616 = vtanh.pop %v1615
  %s1617 = sadd.s32 56, 192
  %s1618 = scalar_lea.vmem [#allocation2], %s1617
  %v1619 = vld [vmem:[%s1618] sm:$0xff]
  %v1620 = vld [vmem:[%s367] sm:$0xff]
  %v1621 = vld [vmem:[%s367 + $0x8] sm:$0xff]
  %v1622 = vld [vmem:[%s367 + $0x10] sm:$0xff]
  %v1623 = vld [vmem:[%s367 + $0x18] sm:$0xff]
  %1624 = vmatpush.msra.mxu0 0.0
  %1625 = vmatpush.msra.mxu0 0.0
  %1626 = vmatpush.msra.mxu0 0.0
  %1627 = vmatpush.msra.mxu0 0.0
  %1628 = vmatpush.msra.mxu0 0.0
  %1629 = vmatpush.msra.mxu0 0.0
  %1630 = vmatpush.msra.mxu0 0.0
  %1631 = vmatpush.msra.mxu0 0.0
  %1632 = vmatpush.msra.mxu0 0.0
  %1633 = vmatpush.msra.mxu0 0.0
  %1634 = vmatpush.msra.mxu0 0.0
  %1635 = vmatpush.msra.mxu0 0.0
  %1636 = vmatpush.msra.mxu0 %v1623
  %1637 = vmatpush.msra.mxu0 %v1622
  %1638 = vmatpush.msra.mxu0 %v1621
  %1639 = vmatpush.msra.mxu0 %v1620
  %1640 = vmatmul.f32.gmra.mxu0 %v1499
  %v1641 = vpop.f32.mrf.mxu0
  %v1642 = vadd.f32 0.0, %v1641
  %1643 = vdwg.mxu0
  %v1644 = vadd.f32 %v1619, %v1642
  %v1645 = vxor.u32 %v1644, 2147483648
  %v1646 = vmul.f32 %v1645, 1.442695
  %v1647 = vpow.pop %v1646
  %v1648 = vadd.f32 %v1647, 1.0
  %v1649 = vrcp.pop %v1648
  %v1650 = vmul.f32 %v1648, %v1649
  %v1651 = vsub.f32 1.0, %v1650
  %v1652 = vmul.f32 %v1649, %v1651
  %v1653 = vadd.f32 %v1649, %v1652
  %vm1654 = vweird.f32 %v1648
  %vm1655 = vweird.f32 %v1649
  %vm1656 = vmor %vm1654, %vm1655
  %v1657 = vsel %vm1656, %v1649, %v1653
  %v1658 = vand.u32 2147483647, %v1648
  %vm1659 = vcmp.eq.f32.partialorder %v1658, 8.507059e+37
  %v1660 = vand.u32 %v1648, 2147483648
  %v1661 = vor.u32 1.1754944e-38, %v1660
  %v1662 = vsel %vm1659, %v1661, %v1657
  %v1663 = vmul.f32 1.0, %v1662
  %v1664 = vmul.f32 %v1587, %v1487
  %v1665 = vmul.f32 %v1540, %v1616
  %v1666 = vadd.f32 %v1664, %v1665
  %v1667 = vtanh.pop %v1666
  %v1668 = vmul.f32 %v1663, %v1667
  %s1669 = scalar_lea.vmem [#allocation3], 56
  %1670 = vst.msk [vmem:[%s1669] sm:$0xff] %vm122, %v1668
  %v1671 = vld [vmem:[#allocation3] sm:$0xff]
  %v1672 = vld [vmem:[#allocation3 + $0x8] sm:$0xff]
  %v1673 = vld [vmem:[#allocation3 + $0x10] sm:$0xff]
  %v1674 = vld [vmem:[#allocation3 + $0x18] sm:$0xff]
  %v1675 = vld [vmem:[#allocation3 + $0x20] sm:$0xff]
  %v1676 = vld [vmem:[#allocation3 + $0x28] sm:$0xff]
  %v1677 = vld [vmem:[#allocation3 + $0x30] sm:$0xff]
  %v1678 = vld [vmem:[#allocation3 + $0x38] sm:$0xff]
  %v1679 = vld [vmem:[%s4] sm:$0xff]
  %v1680 = vld [vmem:[%s4 + $0x8] sm:$0xff]
  %v1681 = vld [vmem:[%s4 + $0x10] sm:$0xff]
  %v1682 = vld [vmem:[%s4 + $0x18] sm:$0xff]
  %v1683 = vld [vmem:[%s6] sm:$0x1]
  %v1685 = vperm.slane %v1683, 0
  %v1688 = vsel %vm122, %v1671, 0
  %v1691 = vsel %vm122, %v1672, 0
  %v1694 = vsel %vm122, %v1673, 0
  %v1697 = vsel %vm122, %v1674, 0
  %v1700 = vsel %vm122, %v1675, 0
  %v1703 = vsel %vm122, %v1676, 0
  %v1706 = vsel %vm122, %v1677, 0
  %v1709 = vsel %vm122, %v1678, 0
  %1711 = vmatpush.msra.mxu0 0.0
  %1712 = vmatpush.msra.mxu0 0.0
  %1713 = vmatpush.msra.mxu0 0.0
  %1714 = vmatpush.msra.mxu0 0.0
  %1715 = vmatpush.msra.mxu0 0.0
  %1716 = vmatpush.msra.mxu0 0.0
  %1717 = vmatpush.msra.mxu0 0.0
  %1718 = vmatpush.msra.mxu0 0.0
  %1719 = vmatpush.msra.mxu0 0.0
  %1720 = vmatpush.msra.mxu0 0.0
  %1721 = vmatpush.msra.mxu0 0.0
  %1722 = vmatpush.msra.mxu0 0.0
  %1723 = vmatpush.msra.mxu0 %v1682
  %1724 = vmatpush.msra.mxu0 %v1681
  %1725 = vmatpush.msra.mxu0 %v1680
  %1726 = vmatpush.msra.mxu0 %v1679
  %1727 = vmatmul.f32.gmra.mxu0 %v1688
  %v1728 = vpop.f32.mrf.mxu0
  %v1729 = vadd.f32 %v1685, %v1728
  %1730 = vmatmul.f32.gmra.mxu0 %v1691
  %v1731 = vpop.f32.mrf.mxu0
  %v1732 = vadd.f32 %v1685, %v1731
  %1733 = vmatmul.f32.gmra.mxu0 %v1694
  %v1734 = vpop.f32.mrf.mxu0
  %v1735 = vadd.f32 %v1685, %v1734
  %1736 = vmatmul.f32.gmra.mxu0 %v1697
  %v1737 = vpop.f32.mrf.mxu0
  %v1738 = vadd.f32 %v1685, %v1737
  %1739 = vmatmul.f32.gmra.mxu0 %v1700
  %v1740 = vpop.f32.mrf.mxu0
  %v1741 = vadd.f32 %v1685, %v1740
  %1742 = vmatmul.f32.gmra.mxu0 %v1703
  %v1743 = vpop.f32.mrf.mxu0
  %v1744 = vadd.f32 %v1685, %v1743
  %1745 = vmatmul.f32.gmra.mxu0 %v1706
  %v1746 = vpop.f32.mrf.mxu0
  %v1747 = vadd.f32 %v1685, %v1746
  %1748 = vmatmul.f32.gmra.mxu0 %v1709
  %v1749 = vpop.f32.mrf.mxu0
  %v1750 = vadd.f32 %v1685, %v1749
  %1751 = vdwg.mxu0
  %1752 = vst.msk [vmem:[#allocation2] sm:$0xff] %vm122, %v1729
  %1753 = vst.msk [vmem:[#allocation2 + $0x8] sm:$0xff] %vm122, %v1732
  %1754 = vst.msk [vmem:[#allocation2 + $0x10] sm:$0xff] %vm122, %v1735
  %1755 = vst.msk [vmem:[#allocation2 + $0x18] sm:$0xff] %vm122, %v1738
  %1756 = vst.msk [vmem:[#allocation2 + $0x20] sm:$0xff] %vm122, %v1741
  %1757 = vst.msk [vmem:[#allocation2 + $0x28] sm:$0xff] %vm122, %v1744
  %1758 = vst.msk [vmem:[#allocation2 + $0x30] sm:$0xff] %vm122, %v1747
  %1759 = vst.msk [vmem:[#allocation2 + $0x38] sm:$0xff] %vm122, %v1750
  %1768 = vrot.lane.b32.xlu0 %v1729, 96
  %v1769 = vpop.permute.xlu0 %1768
  %1770 = vrot.lane.b32.xlu0 %v1732, 96
  %v1771 = vpop.permute.xlu0 %1770
  %1772 = vrot.lane.b32.xlu0 %v1735, 96
  %v1773 = vpop.permute.xlu0 %1772
  %1774 = vrot.lane.b32.xlu0 %v1738, 96
  %v1775 = vpop.permute.xlu0 %1774
  %1776 = vrot.lane.b32.xlu0 %v1741, 96
  %v1777 = vpop.permute.xlu0 %1776
  %1778 = vrot.lane.b32.xlu0 %v1744, 96
  %v1779 = vpop.permute.xlu0 %1778
  %1780 = vrot.lane.b32.xlu0 %v1747, 96
  %v1781 = vpop.permute.xlu0 %1780
  %1782 = vrot.lane.b32.xlu0 %v1750, 96
  %v1783 = vpop.permute.xlu0 %1782
  %1792 = vst.msk [vmem:[%s163] sm:$0xff] %vm122, %v1769
  %1793 = vst.msk [vmem:[%s163 + $0x8] sm:$0xff] %vm122, %v1771
  %1794 = vst.msk [vmem:[%s163 + $0x10] sm:$0xff] %vm122, %v1773
  %1795 = vst.msk [vmem:[%s163 + $0x18] sm:$0xff] %vm122, %v1775
  %1796 = vst.msk [vmem:[%s163 + $0x20] sm:$0xff] %vm122, %v1777
  %1797 = vst.msk [vmem:[%s163 + $0x28] sm:$0xff] %vm122, %v1779
  %1798 = vst.msk [vmem:[%s163 + $0x30] sm:$0xff] %vm122, %v1781
  %1799 = vst.msk [vmem:[%s163 + $0x38] sm:$0xff] %vm122, %v1783
  %1800 = vrot.lane.b32.xlu0 %v1729, 64
  %v1801 = vpop.permute.xlu0 %1800
  %1802 = vrot.lane.b32.xlu0 %v1732, 64
  %v1803 = vpop.permute.xlu0 %1802
  %1804 = vrot.lane.b32.xlu0 %v1735, 64
  %v1805 = vpop.permute.xlu0 %1804
  %1806 = vrot.lane.b32.xlu0 %v1738, 64
  %v1807 = vpop.permute.xlu0 %1806
  %1808 = vrot.lane.b32.xlu0 %v1741, 64
  %v1809 = vpop.permute.xlu0 %1808
  %1810 = vrot.lane.b32.xlu0 %v1744, 64
  %v1811 = vpop.permute.xlu0 %1810
  %1812 = vrot.lane.b32.xlu0 %v1747, 64
  %v1813 = vpop.permute.xlu0 %1812
  %1814 = vrot.lane.b32.xlu0 %v1750, 64
  %v1815 = vpop.permute.xlu0 %1814
  %1824 = vst.msk [vmem:[%s196] sm:$0xff] %vm122, %v1801
  %1825 = vst.msk [vmem:[%s196 + $0x8] sm:$0xff] %vm122, %v1803
  %1826 = vst.msk [vmem:[%s196 + $0x10] sm:$0xff] %vm122, %v1805
  %1827 = vst.msk [vmem:[%s196 + $0x18] sm:$0xff] %vm122, %v1807
  %1828 = vst.msk [vmem:[%s196 + $0x20] sm:$0xff] %vm122, %v1809
  %1829 = vst.msk [vmem:[%s196 + $0x28] sm:$0xff] %vm122, %v1811
  %1830 = vst.msk [vmem:[%s196 + $0x30] sm:$0xff] %vm122, %v1813
  %1831 = vst.msk [vmem:[%s196 + $0x38] sm:$0xff] %vm122, %v1815
  %1832 = vrot.lane.b32.xlu0 %v1729, 32
  %v1833 = vpop.permute.xlu0 %1832
  %1834 = vrot.lane.b32.xlu0 %v1732, 32
  %v1835 = vpop.permute.xlu0 %1834
  %1836 = vrot.lane.b32.xlu0 %v1735, 32
  %v1837 = vpop.permute.xlu0 %1836
  %1838 = vrot.lane.b32.xlu0 %v1738, 32
  %v1839 = vpop.permute.xlu0 %1838
  %1840 = vrot.lane.b32.xlu0 %v1741, 32
  %v1841 = vpop.permute.xlu0 %1840
  %1842 = vrot.lane.b32.xlu0 %v1744, 32
  %v1843 = vpop.permute.xlu0 %1842
  %1844 = vrot.lane.b32.xlu0 %v1747, 32
  %v1845 = vpop.permute.xlu0 %1844
  %1846 = vrot.lane.b32.xlu0 %v1750, 32
  %v1847 = vpop.permute.xlu0 %1846
  %1856 = vst.msk [vmem:[%s229] sm:$0xff] %vm122, %v1833
  %1857 = vst.msk [vmem:[%s229 + $0x8] sm:$0xff] %vm122, %v1835
  %1858 = vst.msk [vmem:[%s229 + $0x10] sm:$0xff] %vm122, %v1837
  %1859 = vst.msk [vmem:[%s229 + $0x18] sm:$0xff] %vm122, %v1839
  %1860 = vst.msk [vmem:[%s229 + $0x20] sm:$0xff] %vm122, %v1841
  %1861 = vst.msk [vmem:[%s229 + $0x28] sm:$0xff] %vm122, %v1843
  %1862 = vst.msk [vmem:[%s229 + $0x30] sm:$0xff] %vm122, %v1845
  %1863 = vst.msk [vmem:[%s229 + $0x38] sm:$0xff] %vm122, %v1847
  %v1864 = vld [vmem:[#allocation2] sm:$0xff]
  %v1865 = vld [vmem:[%s5] sm:$0xff]
  %v1866 = vld [vmem:[%s5 + $0x8] sm:$0xff]
  %v1867 = vld [vmem:[%s5 + $0x10] sm:$0xff]
  %v1868 = vld [vmem:[%s5 + $0x18] sm:$0xff]
  %1869 = vmatpush.msra.mxu0 0.0
  %1870 = vmatpush.msra.mxu0 0.0
  %1871 = vmatpush.msra.mxu0 0.0
  %1872 = vmatpush.msra.mxu0 0.0
  %1873 = vmatpush.msra.mxu0 0.0
  %1874 = vmatpush.msra.mxu0 0.0
  %1875 = vmatpush.msra.mxu0 0.0
  %1876 = vmatpush.msra.mxu0 0.0
  %1877 = vmatpush.msra.mxu0 0.0
  %1878 = vmatpush.msra.mxu0 0.0
  %1879 = vmatpush.msra.mxu0 0.0
  %1880 = vmatpush.msra.mxu0 0.0
  %1881 = vmatpush.msra.mxu0 %v1868
  %1882 = vmatpush.msra.mxu0 %v1867
  %1883 = vmatpush.msra.mxu0 %v1866
  %1884 = vmatpush.msra.mxu0 %v1865
  %1885 = vmatmul.f32.gmra.mxu0 %v244
  %v1886 = vpop.f32.mrf.mxu0
  %v1887 = vadd.f32 0.0, %v1886
  %1888 = vdwg.mxu0
  %v1889 = vadd.f32 %v1864, %v1887
  %v1890 = vxor.u32 %v1889, 2147483648
  %v1891 = vmul.f32 %v1890, 1.442695
  %v1892 = vpow.pop %v1891
  %v1893 = vadd.f32 %v1892, 1.0
  %v1894 = vrcp.pop %v1893
  %v1895 = vmul.f32 %v1893, %v1894
  %v1896 = vsub.f32 1.0, %v1895
  %v1897 = vmul.f32 %v1894, %v1896
  %v1898 = vadd.f32 %v1894, %v1897
  %vm1899 = vweird.f32 %v1893
  %vm1900 = vweird.f32 %v1894
  %vm1901 = vmor %vm1899, %vm1900
  %v1902 = vsel %vm1901, %v1894, %v1898
  %v1903 = vand.u32 2147483647, %v1893
  %vm1904 = vcmp.eq.f32.partialorder %v1903, 8.507059e+37
  %v1905 = vand.u32 %v1893, 2147483648
  %v1906 = vor.u32 1.1754944e-38, %v1905
  %v1907 = vsel %vm1904, %v1906, %v1902
  %v1908 = vmul.f32 1.0, %v1907
  %v1909 = vld [vmem:[%s287] sm:$0xff]
  %s1910 = scalar_lea.vmem %s5, 32
  %v1911 = vld [vmem:[%s1910] sm:$0xff]
  %v1912 = vld [vmem:[%s1910 + $0x8] sm:$0xff]
  %v1913 = vld [vmem:[%s1910 + $0x10] sm:$0xff]
  %v1914 = vld [vmem:[%s1910 + $0x18] sm:$0xff]
  %1915 = vmatpush.msra.mxu0 0.0
  %1916 = vmatpush.msra.mxu0 0.0
  %1917 = vmatpush.msra.mxu0 0.0
  %1918 = vmatpush.msra.mxu0 0.0
  %1919 = vmatpush.msra.mxu0 0.0
  %1920 = vmatpush.msra.mxu0 0.0
  %1921 = vmatpush.msra.mxu0 0.0
  %1922 = vmatpush.msra.mxu0 0.0
  %1923 = vmatpush.msra.mxu0 0.0
  %1924 = vmatpush.msra.mxu0 0.0
  %1925 = vmatpush.msra.mxu0 0.0
  %1926 = vmatpush.msra.mxu0 0.0
  %1927 = vmatpush.msra.mxu0 %v1914
  %1928 = vmatpush.msra.mxu0 %v1913
  %1929 = vmatpush.msra.mxu0 %v1912
  %1930 = vmatpush.msra.mxu0 %v1911
  %1931 = vmatmul.f32.gmra.mxu0 %v244
  %v1932 = vpop.f32.mrf.mxu0
  %v1933 = vadd.f32 0.0, %v1932
  %1934 = vdwg.mxu0
  %v1935 = vadd.f32 %v1909, %v1933
  %v1936 = vxor.u32 %v1935, 2147483648
  %v1937 = vmul.f32 %v1936, 1.442695
  %v1938 = vpow.pop %v1937
  %v1939 = vadd.f32 %v1938, 1.0
  %v1940 = vrcp.pop %v1939
  %v1941 = vmul.f32 %v1939, %v1940
  %v1942 = vsub.f32 1.0, %v1941
  %v1943 = vmul.f32 %v1940, %v1942
  %v1944 = vadd.f32 %v1940, %v1943
  %vm1945 = vweird.f32 %v1939
  %vm1946 = vweird.f32 %v1940
  %vm1947 = vmor %vm1945, %vm1946
  %v1948 = vsel %vm1947, %v1940, %v1944
  %v1949 = vand.u32 2147483647, %v1939
  %vm1950 = vcmp.eq.f32.partialorder %v1949, 8.507059e+37
  %v1951 = vand.u32 %v1939, 2147483648
  %v1952 = vor.u32 1.1754944e-38, %v1951
  %v1953 = vsel %vm1950, %v1952, %v1948
  %v1954 = vmul.f32 1.0, %v1953
  %v1955 = vld [vmem:[%s335] sm:$0xff]
  %s1956 = scalar_lea.vmem %s5, 64
  %v1957 = vld [vmem:[%s1956] sm:$0xff]
  %v1958 = vld [vmem:[%s1956 + $0x8] sm:$0xff]
  %v1959 = vld [vmem:[%s1956 + $0x10] sm:$0xff]
  %v1960 = vld [vmem:[%s1956 + $0x18] sm:$0xff]
  %1961 = vmatpush.msra.mxu0 0.0
  %1962 = vmatpush.msra.mxu0 0.0
  %1963 = vmatpush.msra.mxu0 0.0
  %1964 = vmatpush.msra.mxu0 0.0
  %1965 = vmatpush.msra.mxu0 0.0
  %1966 = vmatpush.msra.mxu0 0.0
  %1967 = vmatpush.msra.mxu0 0.0
  %1968 = vmatpush.msra.mxu0 0.0
  %1969 = vmatpush.msra.mxu0 0.0
  %1970 = vmatpush.msra.mxu0 0.0
  %1971 = vmatpush.msra.mxu0 0.0
  %1972 = vmatpush.msra.mxu0 0.0
  %1973 = vmatpush.msra.mxu0 %v1960
  %1974 = vmatpush.msra.mxu0 %v1959
  %1975 = vmatpush.msra.mxu0 %v1958
  %1976 = vmatpush.msra.mxu0 %v1957
  %1977 = vmatmul.f32.gmra.mxu0 %v244
  %v1978 = vpop.f32.mrf.mxu0
  %v1979 = vadd.f32 0.0, %v1978
  %1980 = vdwg.mxu0
  %v1981 = vadd.f32 %v1955, %v1979
  %v1982 = vtanh.pop %v1981
  %v1983 = vld [vmem:[%s365] sm:$0xff]
  %s1984 = scalar_lea.vmem %s5, 96
  %v1985 = vld [vmem:[%s1984] sm:$0xff]
  %v1986 = vld [vmem:[%s1984 + $0x8] sm:$0xff]
  %v1987 = vld [vmem:[%s1984 + $0x10] sm:$0xff]
  %v1988 = vld [vmem:[%s1984 + $0x18] sm:$0xff]
  %1989 = vmatpush.msra.mxu0 0.0
  %1990 = vmatpush.msra.mxu0 0.0
  %1991 = vmatpush.msra.mxu0 0.0
  %1992 = vmatpush.msra.mxu0 0.0
  %1993 = vmatpush.msra.mxu0 0.0
  %1994 = vmatpush.msra.mxu0 0.0
  %1995 = vmatpush.msra.mxu0 0.0
  %1996 = vmatpush.msra.mxu0 0.0
  %1997 = vmatpush.msra.mxu0 0.0
  %1998 = vmatpush.msra.mxu0 0.0
  %1999 = vmatpush.msra.mxu0 0.0
  %2000 = vmatpush.msra.mxu0 0.0
  %2001 = vmatpush.msra.mxu0 %v1988
  %2002 = vmatpush.msra.mxu0 %v1987
  %2003 = vmatpush.msra.mxu0 %v1986
  %2004 = vmatpush.msra.mxu0 %v1985
  %2005 = vmatmul.f32.gmra.mxu0 %v244
  %v2006 = vpop.f32.mrf.mxu0
  %v2007 = vadd.f32 0.0, %v2006
  %2008 = vdwg.mxu0
  %v2009 = vadd.f32 %v1983, %v2007
  %v2010 = vxor.u32 %v2009, 2147483648
  %v2011 = vmul.f32 %v2010, 1.442695
  %v2012 = vpow.pop %v2011
  %v2013 = vadd.f32 %v2012, 1.0
  %v2014 = vrcp.pop %v2013
  %v2015 = vmul.f32 %v2013, %v2014
  %v2016 = vsub.f32 1.0, %v2015
  %v2017 = vmul.f32 %v2014, %v2016
  %v2018 = vadd.f32 %v2014, %v2017
  %vm2019 = vweird.f32 %v2013
  %vm2020 = vweird.f32 %v2014
  %vm2021 = vmor %vm2019, %vm2020
  %v2022 = vsel %vm2021, %v2014, %v2018
  %v2023 = vand.u32 2147483647, %v2013
  %vm2024 = vcmp.eq.f32.partialorder %v2023, 8.507059e+37
  %v2025 = vand.u32 %v2013, 2147483648
  %v2026 = vor.u32 1.1754944e-38, %v2025
  %v2027 = vsel %vm2024, %v2026, %v2022
  %v2028 = vmul.f32 1.0, %v2027
  %v2029 = vmul.f32 %v1954, 0.0
  %v2030 = vmul.f32 %v1908, %v1982
  %v2031 = vadd.f32 %v2029, %v2030
  %v2032 = vtanh.pop %v2031
  %v2033 = vmul.f32 %v2028, %v2032
  %2034 = vst.msk [vmem:[#allocation4] sm:$0xff] %vm122, %v2033
  %v2035 = vld [vmem:[%s418] sm:$0xff]
  %v2036 = vld [vmem:[%s5] sm:$0xff]
  %v2037 = vld [vmem:[%s5 + $0x8] sm:$0xff]
  %v2038 = vld [vmem:[%s5 + $0x10] sm:$0xff]
  %v2039 = vld [vmem:[%s5 + $0x18] sm:$0xff]
  %v2041 = vsel %vm122, %v2033, 0
  %2043 = vmatpush.msra.mxu0 0.0
  %2044 = vmatpush.msra.mxu0 0.0
  %2045 = vmatpush.msra.mxu0 0.0
  %2046 = vmatpush.msra.mxu0 0.0
  %2047 = vmatpush.msra.mxu0 0.0
  %2048 = vmatpush.msra.mxu0 0.0
  %2049 = vmatpush.msra.mxu0 0.0
  %2050 = vmatpush.msra.mxu0 0.0
  %2051 = vmatpush.msra.mxu0 0.0
  %2052 = vmatpush.msra.mxu0 0.0
  %2053 = vmatpush.msra.mxu0 0.0
  %2054 = vmatpush.msra.mxu0 0.0
  %2055 = vmatpush.msra.mxu0 %v2039
  %2056 = vmatpush.msra.mxu0 %v2038
  %2057 = vmatpush.msra.mxu0 %v2037
  %2058 = vmatpush.msra.mxu0 %v2036
  %2059 = vmatmul.f32.gmra.mxu0 %v2041
  %v2060 = vpop.f32.mrf.mxu0
  %v2061 = vadd.f32 0.0, %v2060
  %2062 = vdwg.mxu0
  %v2063 = vadd.f32 %v2035, %v2061
  %v2064 = vxor.u32 %v2063, 2147483648
  %v2065 = vmul.f32 %v2064, 1.442695
  %v2066 = vpow.pop %v2065
  %v2067 = vadd.f32 %v2066, 1.0
  %v2068 = vrcp.pop %v2067
  %v2069 = vmul.f32 %v2067, %v2068
  %v2070 = vsub.f32 1.0, %v2069
  %v2071 = vmul.f32 %v2068, %v2070
  %v2072 = vadd.f32 %v2068, %v2071
  %vm2073 = vweird.f32 %v2067
  %vm2074 = vweird.f32 %v2068
  %vm2075 = vmor %vm2073, %vm2074
  %v2076 = vsel %vm2075, %v2068, %v2072
  %v2077 = vand.u32 2147483647, %v2067
  %vm2078 = vcmp.eq.f32.partialorder %v2077, 8.507059e+37
  %v2079 = vand.u32 %v2067, 2147483648
  %v2080 = vor.u32 1.1754944e-38, %v2079
  %v2081 = vsel %vm2078, %v2080, %v2076
  %v2082 = vmul.f32 1.0, %v2081
  %v2083 = vld [vmem:[%s468] sm:$0xff]
  %v2084 = vld [vmem:[%s1910] sm:$0xff]
  %v2085 = vld [vmem:[%s1910 + $0x8] sm:$0xff]
  %v2086 = vld [vmem:[%s1910 + $0x10] sm:$0xff]
  %v2087 = vld [vmem:[%s1910 + $0x18] sm:$0xff]
  %2088 = vmatpush.msra.mxu0 0.0
  %2089 = vmatpush.msra.mxu0 0.0
  %2090 = vmatpush.msra.mxu0 0.0
  %2091 = vmatpush.msra.mxu0 0.0
  %2092 = vmatpush.msra.mxu0 0.0
  %2093 = vmatpush.msra.mxu0 0.0
  %2094 = vmatpush.msra.mxu0 0.0
  %2095 = vmatpush.msra.mxu0 0.0
  %2096 = vmatpush.msra.mxu0 0.0
  %2097 = vmatpush.msra.mxu0 0.0
  %2098 = vmatpush.msra.mxu0 0.0
  %2099 = vmatpush.msra.mxu0 0.0
  %2100 = vmatpush.msra.mxu0 %v2087
  %2101 = vmatpush.msra.mxu0 %v2086
  %2102 = vmatpush.msra.mxu0 %v2085
  %2103 = vmatpush.msra.mxu0 %v2084
  %2104 = vmatmul.f32.gmra.mxu0 %v2041
  %v2105 = vpop.f32.mrf.mxu0
  %v2106 = vadd.f32 0.0, %v2105
  %2107 = vdwg.mxu0
  %v2108 = vadd.f32 %v2083, %v2106
  %v2109 = vxor.u32 %v2108, 2147483648
  %v2110 = vmul.f32 %v2109, 1.442695
  %v2111 = vpow.pop %v2110
  %v2112 = vadd.f32 %v2111, 1.0
  %v2113 = vrcp.pop %v2112
  %v2114 = vmul.f32 %v2112, %v2113
  %v2115 = vsub.f32 1.0, %v2114
  %v2116 = vmul.f32 %v2113, %v2115
  %v2117 = vadd.f32 %v2113, %v2116
  %vm2118 = vweird.f32 %v2112
  %vm2119 = vweird.f32 %v2113
  %vm2120 = vmor %vm2118, %vm2119
  %v2121 = vsel %vm2120, %v2113, %v2117
  %v2122 = vand.u32 2147483647, %v2112
  %vm2123 = vcmp.eq.f32.partialorder %v2122, 8.507059e+37
  %v2124 = vand.u32 %v2112, 2147483648
  %v2125 = vor.u32 1.1754944e-38, %v2124
  %v2126 = vsel %vm2123, %v2125, %v2121
  %v2127 = vmul.f32 1.0, %v2126
  %v2128 = vld [vmem:[%s515] sm:$0xff]
  %v2129 = vld [vmem:[%s1956] sm:$0xff]
  %v2130 = vld [vmem:[%s1956 + $0x8] sm:$0xff]
  %v2131 = vld [vmem:[%s1956 + $0x10] sm:$0xff]
  %v2132 = vld [vmem:[%s1956 + $0x18] sm:$0xff]
  %2133 = vmatpush.msra.mxu0 0.0
  %2134 = vmatpush.msra.mxu0 0.0
  %2135 = vmatpush.msra.mxu0 0.0
  %2136 = vmatpush.msra.mxu0 0.0
  %2137 = vmatpush.msra.mxu0 0.0
  %2138 = vmatpush.msra.mxu0 0.0
  %2139 = vmatpush.msra.mxu0 0.0
  %2140 = vmatpush.msra.mxu0 0.0
  %2141 = vmatpush.msra.mxu0 0.0
  %2142 = vmatpush.msra.mxu0 0.0
  %2143 = vmatpush.msra.mxu0 0.0
  %2144 = vmatpush.msra.mxu0 0.0
  %2145 = vmatpush.msra.mxu0 %v2132
  %2146 = vmatpush.msra.mxu0 %v2131
  %2147 = vmatpush.msra.mxu0 %v2130
  %2148 = vmatpush.msra.mxu0 %v2129
  %2149 = vmatmul.f32.gmra.mxu0 %v2041
  %v2150 = vpop.f32.mrf.mxu0
  %v2151 = vadd.f32 0.0, %v2150
  %2152 = vdwg.mxu0
  %v2153 = vadd.f32 %v2128, %v2151
  %v2154 = vtanh.pop %v2153
  %v2155 = vld [vmem:[%s544] sm:$0xff]
  %v2156 = vld [vmem:[%s1984] sm:$0xff]
  %v2157 = vld [vmem:[%s1984 + $0x8] sm:$0xff]
  %v2158 = vld [vmem:[%s1984 + $0x10] sm:$0xff]
  %v2159 = vld [vmem:[%s1984 + $0x18] sm:$0xff]
  %2160 = vmatpush.msra.mxu0 0.0
  %2161 = vmatpush.msra.mxu0 0.0
  %2162 = vmatpush.msra.mxu0 0.0
  %2163 = vmatpush.msra.mxu0 0.0
  %2164 = vmatpush.msra.mxu0 0.0
  %2165 = vmatpush.msra.mxu0 0.0
  %2166 = vmatpush.msra.mxu0 0.0
  %2167 = vmatpush.msra.mxu0 0.0
  %2168 = vmatpush.msra.mxu0 0.0
  %2169 = vmatpush.msra.mxu0 0.0
  %2170 = vmatpush.msra.mxu0 0.0
  %2171 = vmatpush.msra.mxu0 0.0
  %2172 = vmatpush.msra.mxu0 %v2159
  %2173 = vmatpush.msra.mxu0 %v2158
  %2174 = vmatpush.msra.mxu0 %v2157
  %2175 = vmatpush.msra.mxu0 %v2156
  %2176 = vmatmul.f32.gmra.mxu0 %v2041
  %v2177 = vpop.f32.mrf.mxu0
  %v2178 = vadd.f32 0.0, %v2177
  %2179 = vdwg.mxu0
  %v2180 = vadd.f32 %v2155, %v2178
  %v2181 = vxor.u32 %v2180, 2147483648
  %v2182 = vmul.f32 %v2181, 1.442695
  %v2183 = vpow.pop %v2182
  %v2184 = vadd.f32 %v2183, 1.0
  %v2185 = vrcp.pop %v2184
  %v2186 = vmul.f32 %v2184, %v2185
  %v2187 = vsub.f32 1.0, %v2186
  %v2188 = vmul.f32 %v2185, %v2187
  %v2189 = vadd.f32 %v2185, %v2188
  %vm2190 = vweird.f32 %v2184
  %vm2191 = vweird.f32 %v2185
  %vm2192 = vmor %vm2190, %vm2191
  %v2193 = vsel %vm2192, %v2185, %v2189
  %v2194 = vand.u32 2147483647, %v2184
  %vm2195 = vcmp.eq.f32.partialorder %v2194, 8.507059e+37
  %v2196 = vand.u32 %v2184, 2147483648
  %v2197 = vor.u32 1.1754944e-38, %v2196
  %v2198 = vsel %vm2195, %v2197, %v2193
  %v2199 = vmul.f32 1.0, %v2198
  %v2200 = vmul.f32 %v2127, %v2031
  %v2201 = vmul.f32 %v2082, %v2154
  %v2202 = vadd.f32 %v2200, %v2201
  %v2203 = vtanh.pop %v2202
  %v2204 = vmul.f32 %v2199, %v2203
  %s2205 = scalar_lea.vmem [#allocation4], 8
  %2206 = vst.msk [vmem:[%s2205] sm:$0xff] %vm122, %v2204
  %v2207 = vld [vmem:[%s597] sm:$0xff]
  %v2208 = vld [vmem:[%s5] sm:$0xff]
  %v2209 = vld [vmem:[%s5 + $0x8] sm:$0xff]
  %v2210 = vld [vmem:[%s5 + $0x10] sm:$0xff]
  %v2211 = vld [vmem:[%s5 + $0x18] sm:$0xff]
  %v2213 = vsel %vm122, %v2204, 0
  %2215 = vmatpush.msra.mxu0 0.0
  %2216 = vmatpush.msra.mxu0 0.0
  %2217 = vmatpush.msra.mxu0 0.0
  %2218 = vmatpush.msra.mxu0 0.0
  %2219 = vmatpush.msra.mxu0 0.0
  %2220 = vmatpush.msra.mxu0 0.0
  %2221 = vmatpush.msra.mxu0 0.0
  %2222 = vmatpush.msra.mxu0 0.0
  %2223 = vmatpush.msra.mxu0 0.0
  %2224 = vmatpush.msra.mxu0 0.0
  %2225 = vmatpush.msra.mxu0 0.0
  %2226 = vmatpush.msra.mxu0 0.0
  %2227 = vmatpush.msra.mxu0 %v2211
  %2228 = vmatpush.msra.mxu0 %v2210
  %2229 = vmatpush.msra.mxu0 %v2209
  %2230 = vmatpush.msra.mxu0 %v2208
  %2231 = vmatmul.f32.gmra.mxu0 %v2213
  %v2232 = vpop.f32.mrf.mxu0
  %v2233 = vadd.f32 0.0, %v2232
  %2234 = vdwg.mxu0
  %v2235 = vadd.f32 %v2207, %v2233
  %v2236 = vxor.u32 %v2235, 2147483648
  %v2237 = vmul.f32 %v2236, 1.442695
  %v2238 = vpow.pop %v2237
  %v2239 = vadd.f32 %v2238, 1.0
  %v2240 = vrcp.pop %v2239
  %v2241 = vmul.f32 %v2239, %v2240
  %v2242 = vsub.f32 1.0, %v2241
  %v2243 = vmul.f32 %v2240, %v2242
  %v2244 = vadd.f32 %v2240, %v2243
  %vm2245 = vweird.f32 %v2239
  %vm2246 = vweird.f32 %v2240
  %vm2247 = vmor %vm2245, %vm2246
  %v2248 = vsel %vm2247, %v2240, %v2244
  %v2249 = vand.u32 2147483647, %v2239
  %vm2250 = vcmp.eq.f32.partialorder %v2249, 8.507059e+37
  %v2251 = vand.u32 %v2239, 2147483648
  %v2252 = vor.u32 1.1754944e-38, %v2251
  %v2253 = vsel %vm2250, %v2252, %v2248
  %v2254 = vmul.f32 1.0, %v2253
  %v2255 = vld [vmem:[%s647] sm:$0xff]
  %v2256 = vld [vmem:[%s1910] sm:$0xff]
  %v2257 = vld [vmem:[%s1910 + $0x8] sm:$0xff]
  %v2258 = vld [vmem:[%s1910 + $0x10] sm:$0xff]
  %v2259 = vld [vmem:[%s1910 + $0x18] sm:$0xff]
  %2260 = vmatpush.msra.mxu0 0.0
  %2261 = vmatpush.msra.mxu0 0.0
  %2262 = vmatpush.msra.mxu0 0.0
  %2263 = vmatpush.msra.mxu0 0.0
  %2264 = vmatpush.msra.mxu0 0.0
  %2265 = vmatpush.msra.mxu0 0.0
  %2266 = vmatpush.msra.mxu0 0.0
  %2267 = vmatpush.msra.mxu0 0.0
  %2268 = vmatpush.msra.mxu0 0.0
  %2269 = vmatpush.msra.mxu0 0.0
  %2270 = vmatpush.msra.mxu0 0.0
  %2271 = vmatpush.msra.mxu0 0.0
  %2272 = vmatpush.msra.mxu0 %v2259
  %2273 = vmatpush.msra.mxu0 %v2258
  %2274 = vmatpush.msra.mxu0 %v2257
  %2275 = vmatpush.msra.mxu0 %v2256
  %2276 = vmatmul.f32.gmra.mxu0 %v2213
  %v2277 = vpop.f32.mrf.mxu0
  %v2278 = vadd.f32 0.0, %v2277
  %2279 = vdwg.mxu0
  %v2280 = vadd.f32 %v2255, %v2278
  %v2281 = vxor.u32 %v2280, 2147483648
  %v2282 = vmul.f32 %v2281, 1.442695
  %v2283 = vpow.pop %v2282
  %v2284 = vadd.f32 %v2283, 1.0
  %v2285 = vrcp.pop %v2284
  %v2286 = vmul.f32 %v2284, %v2285
  %v2287 = vsub.f32 1.0, %v2286
  %v2288 = vmul.f32 %v2285, %v2287
  %v2289 = vadd.f32 %v2285, %v2288
  %vm2290 = vweird.f32 %v2284
  %vm2291 = vweird.f32 %v2285
  %vm2292 = vmor %vm2290, %vm2291
  %v2293 = vsel %vm2292, %v2285, %v2289
  %v2294 = vand.u32 2147483647, %v2284
  %vm2295 = vcmp.eq.f32.partialorder %v2294, 8.507059e+37
  %v2296 = vand.u32 %v2284, 2147483648
  %v2297 = vor.u32 1.1754944e-38, %v2296
  %v2298 = vsel %vm2295, %v2297, %v2293
  %v2299 = vmul.f32 1.0, %v2298
  %v2300 = vld [vmem:[%s694] sm:$0xff]
  %v2301 = vld [vmem:[%s1956] sm:$0xff]
  %v2302 = vld [vmem:[%s1956 + $0x8] sm:$0xff]
  %v2303 = vld [vmem:[%s1956 + $0x10] sm:$0xff]
  %v2304 = vld [vmem:[%s1956 + $0x18] sm:$0xff]
  %2305 = vmatpush.msra.mxu0 0.0
  %2306 = vmatpush.msra.mxu0 0.0
  %2307 = vmatpush.msra.mxu0 0.0
  %2308 = vmatpush.msra.mxu0 0.0
  %2309 = vmatpush.msra.mxu0 0.0
  %2310 = vmatpush.msra.mxu0 0.0
  %2311 = vmatpush.msra.mxu0 0.0
  %2312 = vmatpush.msra.mxu0 0.0
  %2313 = vmatpush.msra.mxu0 0.0
  %2314 = vmatpush.msra.mxu0 0.0
  %2315 = vmatpush.msra.mxu0 0.0
  %2316 = vmatpush.msra.mxu0 0.0
  %2317 = vmatpush.msra.mxu0 %v2304
  %2318 = vmatpush.msra.mxu0 %v2303
  %2319 = vmatpush.msra.mxu0 %v2302
  %2320 = vmatpush.msra.mxu0 %v2301
  %2321 = vmatmul.f32.gmra.mxu0 %v2213
  %v2322 = vpop.f32.mrf.mxu0
  %v2323 = vadd.f32 0.0, %v2322
  %2324 = vdwg.mxu0
  %v2325 = vadd.f32 %v2300, %v2323
  %v2326 = vtanh.pop %v2325
  %v2327 = vld [vmem:[%s723] sm:$0xff]
  %v2328 = vld [vmem:[%s1984] sm:$0xff]
  %v2329 = vld [vmem:[%s1984 + $0x8] sm:$0xff]
  %v2330 = vld [vmem:[%s1984 + $0x10] sm:$0xff]
  %v2331 = vld [vmem:[%s1984 + $0x18] sm:$0xff]
  %2332 = vmatpush.msra.mxu0 0.0
  %2333 = vmatpush.msra.mxu0 0.0
  %2334 = vmatpush.msra.mxu0 0.0
  %2335 = vmatpush.msra.mxu0 0.0
  %2336 = vmatpush.msra.mxu0 0.0
  %2337 = vmatpush.msra.mxu0 0.0
  %2338 = vmatpush.msra.mxu0 0.0
  %2339 = vmatpush.msra.mxu0 0.0
  %2340 = vmatpush.msra.mxu0 0.0
  %2341 = vmatpush.msra.mxu0 0.0
  %2342 = vmatpush.msra.mxu0 0.0
  %2343 = vmatpush.msra.mxu0 0.0
  %2344 = vmatpush.msra.mxu0 %v2331
  %2345 = vmatpush.msra.mxu0 %v2330
  %2346 = vmatpush.msra.mxu0 %v2329
  %2347 = vmatpush.msra.mxu0 %v2328
  %2348 = vmatmul.f32.gmra.mxu0 %v2213
  %v2349 = vpop.f32.mrf.mxu0
  %v2350 = vadd.f32 0.0, %v2349
  %2351 = vdwg.mxu0
  %v2352 = vadd.f32 %v2327, %v2350
  %v2353 = vxor.u32 %v2352, 2147483648
  %v2354 = vmul.f32 %v2353, 1.442695
  %v2355 = vpow.pop %v2354
  %v2356 = vadd.f32 %v2355, 1.0
  %v2357 = vrcp.pop %v2356
  %v2358 = vmul.f32 %v2356, %v2357
  %v2359 = vsub.f32 1.0, %v2358
  %v2360 = vmul.f32 %v2357, %v2359
  %v2361 = vadd.f32 %v2357, %v2360
  %vm2362 = vweird.f32 %v2356
  %vm2363 = vweird.f32 %v2357
  %vm2364 = vmor %vm2362, %vm2363
  %v2365 = vsel %vm2364, %v2357, %v2361
  %v2366 = vand.u32 2147483647, %v2356
  %vm2367 = vcmp.eq.f32.partialorder %v2366, 8.507059e+37
  %v2368 = vand.u32 %v2356, 2147483648
  %v2369 = vor.u32 1.1754944e-38, %v2368
  %v2370 = vsel %vm2367, %v2369, %v2365
  %v2371 = vmul.f32 1.0, %v2370
  %v2372 = vmul.f32 %v2299, %v2202
  %v2373 = vmul.f32 %v2254, %v2326
  %v2374 = vadd.f32 %v2372, %v2373
  %v2375 = vtanh.pop %v2374
  %v2376 = vmul.f32 %v2371, %v2375
  %s2377 = scalar_lea.vmem [#allocation4], 16
  %2378 = vst.msk [vmem:[%s2377] sm:$0xff] %vm122, %v2376
  %v2379 = vld [vmem:[%s776] sm:$0xff]
  %v2380 = vld [vmem:[%s5] sm:$0xff]
  %v2381 = vld [vmem:[%s5 + $0x8] sm:$0xff]
  %v2382 = vld [vmem:[%s5 + $0x10] sm:$0xff]
  %v2383 = vld [vmem:[%s5 + $0x18] sm:$0xff]
  %v2385 = vsel %vm122, %v2376, 0
  %2387 = vmatpush.msra.mxu0 0.0
  %2388 = vmatpush.msra.mxu0 0.0
  %2389 = vmatpush.msra.mxu0 0.0
  %2390 = vmatpush.msra.mxu0 0.0
  %2391 = vmatpush.msra.mxu0 0.0
  %2392 = vmatpush.msra.mxu0 0.0
  %2393 = vmatpush.msra.mxu0 0.0
  %2394 = vmatpush.msra.mxu0 0.0
  %2395 = vmatpush.msra.mxu0 0.0
  %2396 = vmatpush.msra.mxu0 0.0
  %2397 = vmatpush.msra.mxu0 0.0
  %2398 = vmatpush.msra.mxu0 0.0
  %2399 = vmatpush.msra.mxu0 %v2383
  %2400 = vmatpush.msra.mxu0 %v2382
  %2401 = vmatpush.msra.mxu0 %v2381
  %2402 = vmatpush.msra.mxu0 %v2380
  %2403 = vmatmul.f32.gmra.mxu0 %v2385
  %v2404 = vpop.f32.mrf.mxu0
  %v2405 = vadd.f32 0.0, %v2404
  %2406 = vdwg.mxu0
  %v2407 = vadd.f32 %v2379, %v2405
  %v2408 = vxor.u32 %v2407, 2147483648
  %v2409 = vmul.f32 %v2408, 1.442695
  %v2410 = vpow.pop %v2409
  %v2411 = vadd.f32 %v2410, 1.0
  %v2412 = vrcp.pop %v2411
  %v2413 = vmul.f32 %v2411, %v2412
  %v2414 = vsub.f32 1.0, %v2413
  %v2415 = vmul.f32 %v2412, %v2414
  %v2416 = vadd.f32 %v2412, %v2415
  %vm2417 = vweird.f32 %v2411
  %vm2418 = vweird.f32 %v2412
  %vm2419 = vmor %vm2417, %vm2418
  %v2420 = vsel %vm2419, %v2412, %v2416
  %v2421 = vand.u32 2147483647, %v2411
  %vm2422 = vcmp.eq.f32.partialorder %v2421, 8.507059e+37
  %v2423 = vand.u32 %v2411, 2147483648
  %v2424 = vor.u32 1.1754944e-38, %v2423
  %v2425 = vsel %vm2422, %v2424, %v2420
  %v2426 = vmul.f32 1.0, %v2425
  %v2427 = vld [vmem:[%s826] sm:$0xff]
  %v2428 = vld [vmem:[%s1910] sm:$0xff]
  %v2429 = vld [vmem:[%s1910 + $0x8] sm:$0xff]
  %v2430 = vld [vmem:[%s1910 + $0x10] sm:$0xff]
  %v2431 = vld [vmem:[%s1910 + $0x18] sm:$0xff]
  %2432 = vmatpush.msra.mxu0 0.0
  %2433 = vmatpush.msra.mxu0 0.0
  %2434 = vmatpush.msra.mxu0 0.0
  %2435 = vmatpush.msra.mxu0 0.0
  %2436 = vmatpush.msra.mxu0 0.0
  %2437 = vmatpush.msra.mxu0 0.0
  %2438 = vmatpush.msra.mxu0 0.0
  %2439 = vmatpush.msra.mxu0 0.0
  %2440 = vmatpush.msra.mxu0 0.0
  %2441 = vmatpush.msra.mxu0 0.0
  %2442 = vmatpush.msra.mxu0 0.0
  %2443 = vmatpush.msra.mxu0 0.0
  %2444 = vmatpush.msra.mxu0 %v2431
  %2445 = vmatpush.msra.mxu0 %v2430
  %2446 = vmatpush.msra.mxu0 %v2429
  %2447 = vmatpush.msra.mxu0 %v2428
  %2448 = vmatmul.f32.gmra.mxu0 %v2385
  %v2449 = vpop.f32.mrf.mxu0
  %v2450 = vadd.f32 0.0, %v2449
  %2451 = vdwg.mxu0
  %v2452 = vadd.f32 %v2427, %v2450
  %v2453 = vxor.u32 %v2452, 2147483648
  %v2454 = vmul.f32 %v2453, 1.442695
  %v2455 = vpow.pop %v2454
  %v2456 = vadd.f32 %v2455, 1.0
  %v2457 = vrcp.pop %v2456
  %v2458 = vmul.f32 %v2456, %v2457
  %v2459 = vsub.f32 1.0, %v2458
  %v2460 = vmul.f32 %v2457, %v2459
  %v2461 = vadd.f32 %v2457, %v2460
  %vm2462 = vweird.f32 %v2456
  %vm2463 = vweird.f32 %v2457
  %vm2464 = vmor %vm2462, %vm2463
  %v2465 = vsel %vm2464, %v2457, %v2461
  %v2466 = vand.u32 2147483647, %v2456
  %vm2467 = vcmp.eq.f32.partialorder %v2466, 8.507059e+37
  %v2468 = vand.u32 %v2456, 2147483648
  %v2469 = vor.u32 1.1754944e-38, %v2468
  %v2470 = vsel %vm2467, %v2469, %v2465
  %v2471 = vmul.f32 1.0, %v2470
  %v2472 = vld [vmem:[%s873] sm:$0xff]
  %v2473 = vld [vmem:[%s1956] sm:$0xff]
  %v2474 = vld [vmem:[%s1956 + $0x8] sm:$0xff]
  %v2475 = vld [vmem:[%s1956 + $0x10] sm:$0xff]
  %v2476 = vld [vmem:[%s1956 + $0x18] sm:$0xff]
  %2477 = vmatpush.msra.mxu0 0.0
  %2478 = vmatpush.msra.mxu0 0.0
  %2479 = vmatpush.msra.mxu0 0.0
  %2480 = vmatpush.msra.mxu0 0.0
  %2481 = vmatpush.msra.mxu0 0.0
  %2482 = vmatpush.msra.mxu0 0.0
  %2483 = vmatpush.msra.mxu0 0.0
  %2484 = vmatpush.msra.mxu0 0.0
  %2485 = vmatpush.msra.mxu0 0.0
  %2486 = vmatpush.msra.mxu0 0.0
  %2487 = vmatpush.msra.mxu0 0.0
  %2488 = vmatpush.msra.mxu0 0.0
  %2489 = vmatpush.msra.mxu0 %v2476
  %2490 = vmatpush.msra.mxu0 %v2475
  %2491 = vmatpush.msra.mxu0 %v2474
  %2492 = vmatpush.msra.mxu0 %v2473
  %2493 = vmatmul.f32.gmra.mxu0 %v2385
  %v2494 = vpop.f32.mrf.mxu0
  %v2495 = vadd.f32 0.0, %v2494
  %2496 = vdwg.mxu0
  %v2497 = vadd.f32 %v2472, %v2495
  %v2498 = vtanh.pop %v2497
  %v2499 = vld [vmem:[%s902] sm:$0xff]
  %v2500 = vld [vmem:[%s1984] sm:$0xff]
  %v2501 = vld [vmem:[%s1984 + $0x8] sm:$0xff]
  %v2502 = vld [vmem:[%s1984 + $0x10] sm:$0xff]
  %v2503 = vld [vmem:[%s1984 + $0x18] sm:$0xff]
  %2504 = vmatpush.msra.mxu0 0.0
  %2505 = vmatpush.msra.mxu0 0.0
  %2506 = vmatpush.msra.mxu0 0.0
  %2507 = vmatpush.msra.mxu0 0.0
  %2508 = vmatpush.msra.mxu0 0.0
  %2509 = vmatpush.msra.mxu0 0.0
  %2510 = vmatpush.msra.mxu0 0.0
  %2511 = vmatpush.msra.mxu0 0.0
  %2512 = vmatpush.msra.mxu0 0.0
  %2513 = vmatpush.msra.mxu0 0.0
  %2514 = vmatpush.msra.mxu0 0.0
  %2515 = vmatpush.msra.mxu0 0.0
  %2516 = vmatpush.msra.mxu0 %v2503
  %2517 = vmatpush.msra.mxu0 %v2502
  %2518 = vmatpush.msra.mxu0 %v2501
  %2519 = vmatpush.msra.mxu0 %v2500
  %2520 = vmatmul.f32.gmra.mxu0 %v2385
  %v2521 = vpop.f32.mrf.mxu0
  %v2522 = vadd.f32 0.0, %v2521
  %2523 = vdwg.mxu0
  %v2524 = vadd.f32 %v2499, %v2522
  %v2525 = vxor.u32 %v2524, 2147483648
  %v2526 = vmul.f32 %v2525, 1.442695
  %v2527 = vpow.pop %v2526
  %v2528 = vadd.f32 %v2527, 1.0
  %v2529 = vrcp.pop %v2528
  %v2530 = vmul.f32 %v2528, %v2529
  %v2531 = vsub.f32 1.0, %v2530
  %v2532 = vmul.f32 %v2529, %v2531
  %v2533 = vadd.f32 %v2529, %v2532
  %vm2534 = vweird.f32 %v2528
  %vm2535 = vweird.f32 %v2529
  %vm2536 = vmor %vm2534, %vm2535
  %v2537 = vsel %vm2536, %v2529, %v2533
  %v2538 = vand.u32 2147483647, %v2528
  %vm2539 = vcmp.eq.f32.partialorder %v2538, 8.507059e+37
  %v2540 = vand.u32 %v2528, 2147483648
  %v2541 = vor.u32 1.1754944e-38, %v2540
  %v2542 = vsel %vm2539, %v2541, %v2537
  %v2543 = vmul.f32 1.0, %v2542
  %v2544 = vmul.f32 %v2471, %v2374
  %v2545 = vmul.f32 %v2426, %v2498
  %v2546 = vadd.f32 %v2544, %v2545
  %v2547 = vtanh.pop %v2546
  %v2548 = vmul.f32 %v2543, %v2547
  %s2549 = scalar_lea.vmem [#allocation4], 24
  %2550 = vst.msk [vmem:[%s2549] sm:$0xff] %vm122, %v2548
  %v2551 = vld [vmem:[%s955] sm:$0xff]
  %v2552 = vld [vmem:[%s5] sm:$0xff]
  %v2553 = vld [vmem:[%s5 + $0x8] sm:$0xff]
  %v2554 = vld [vmem:[%s5 + $0x10] sm:$0xff]
  %v2555 = vld [vmem:[%s5 + $0x18] sm:$0xff]
  %v2557 = vsel %vm122, %v2548, 0
  %2559 = vmatpush.msra.mxu0 0.0
  %2560 = vmatpush.msra.mxu0 0.0
  %2561 = vmatpush.msra.mxu0 0.0
  %2562 = vmatpush.msra.mxu0 0.0
  %2563 = vmatpush.msra.mxu0 0.0
  %2564 = vmatpush.msra.mxu0 0.0
  %2565 = vmatpush.msra.mxu0 0.0
  %2566 = vmatpush.msra.mxu0 0.0
  %2567 = vmatpush.msra.mxu0 0.0
  %2568 = vmatpush.msra.mxu0 0.0
  %2569 = vmatpush.msra.mxu0 0.0
  %2570 = vmatpush.msra.mxu0 0.0
  %2571 = vmatpush.msra.mxu0 %v2555
  %2572 = vmatpush.msra.mxu0 %v2554
  %2573 = vmatpush.msra.mxu0 %v2553
  %2574 = vmatpush.msra.mxu0 %v2552
  %2575 = vmatmul.f32.gmra.mxu0 %v2557
  %v2576 = vpop.f32.mrf.mxu0
  %v2577 = vadd.f32 0.0, %v2576
  %2578 = vdwg.mxu0
  %v2579 = vadd.f32 %v2551, %v2577
  %v2580 = vxor.u32 %v2579, 2147483648
  %v2581 = vmul.f32 %v2580, 1.442695
  %v2582 = vpow.pop %v2581
  %v2583 = vadd.f32 %v2582, 1.0
  %v2584 = vrcp.pop %v2583
  %v2585 = vmul.f32 %v2583, %v2584
  %v2586 = vsub.f32 1.0, %v2585
  %v2587 = vmul.f32 %v2584, %v2586
  %v2588 = vadd.f32 %v2584, %v2587
  %vm2589 = vweird.f32 %v2583
  %vm2590 = vweird.f32 %v2584
  %vm2591 = vmor %vm2589, %vm2590
  %v2592 = vsel %vm2591, %v2584, %v2588
  %v2593 = vand.u32 2147483647, %v2583
  %vm2594 = vcmp.eq.f32.partialorder %v2593, 8.507059e+37
  %v2595 = vand.u32 %v2583, 2147483648
  %v2596 = vor.u32 1.1754944e-38, %v2595
  %v2597 = vsel %vm2594, %v2596, %v2592
  %v2598 = vmul.f32 1.0, %v2597
  %v2599 = vld [vmem:[%s1005] sm:$0xff]
  %v2600 = vld [vmem:[%s1910] sm:$0xff]
  %v2601 = vld [vmem:[%s1910 + $0x8] sm:$0xff]
  %v2602 = vld [vmem:[%s1910 + $0x10] sm:$0xff]
  %v2603 = vld [vmem:[%s1910 + $0x18] sm:$0xff]
  %2604 = vmatpush.msra.mxu0 0.0
  %2605 = vmatpush.msra.mxu0 0.0
  %2606 = vmatpush.msra.mxu0 0.0
  %2607 = vmatpush.msra.mxu0 0.0
  %2608 = vmatpush.msra.mxu0 0.0
  %2609 = vmatpush.msra.mxu0 0.0
  %2610 = vmatpush.msra.mxu0 0.0
  %2611 = vmatpush.msra.mxu0 0.0
  %2612 = vmatpush.msra.mxu0 0.0
  %2613 = vmatpush.msra.mxu0 0.0
  %2614 = vmatpush.msra.mxu0 0.0
  %2615 = vmatpush.msra.mxu0 0.0
  %2616 = vmatpush.msra.mxu0 %v2603
  %2617 = vmatpush.msra.mxu0 %v2602
  %2618 = vmatpush.msra.mxu0 %v2601
  %2619 = vmatpush.msra.mxu0 %v2600
  %2620 = vmatmul.f32.gmra.mxu0 %v2557
  %v2621 = vpop.f32.mrf.mxu0
  %v2622 = vadd.f32 0.0, %v2621
  %2623 = vdwg.mxu0
  %v2624 = vadd.f32 %v2599, %v2622
  %v2625 = vxor.u32 %v2624, 2147483648
  %v2626 = vmul.f32 %v2625, 1.442695
  %v2627 = vpow.pop %v2626
  %v2628 = vadd.f32 %v2627, 1.0
  %v2629 = vrcp.pop %v2628
  %v2630 = vmul.f32 %v2628, %v2629
  %v2631 = vsub.f32 1.0, %v2630
  %v2632 = vmul.f32 %v2629, %v2631
  %v2633 = vadd.f32 %v2629, %v2632
  %vm2634 = vweird.f32 %v2628
  %vm2635 = vweird.f32 %v2629
  %vm2636 = vmor %vm2634, %vm2635
  %v2637 = vsel %vm2636, %v2629, %v2633
  %v2638 = vand.u32 2147483647, %v2628
  %vm2639 = vcmp.eq.f32.partialorder %v2638, 8.507059e+37
  %v2640 = vand.u32 %v2628, 2147483648
  %v2641 = vor.u32 1.1754944e-38, %v2640
  %v2642 = vsel %vm2639, %v2641, %v2637
  %v2643 = vmul.f32 1.0, %v2642
  %v2644 = vld [vmem:[%s1052] sm:$0xff]
  %v2645 = vld [vmem:[%s1956] sm:$0xff]
  %v2646 = vld [vmem:[%s1956 + $0x8] sm:$0xff]
  %v2647 = vld [vmem:[%s1956 + $0x10] sm:$0xff]
  %v2648 = vld [vmem:[%s1956 + $0x18] sm:$0xff]
  %2649 = vmatpush.msra.mxu0 0.0
  %2650 = vmatpush.msra.mxu0 0.0
  %2651 = vmatpush.msra.mxu0 0.0
  %2652 = vmatpush.msra.mxu0 0.0
  %2653 = vmatpush.msra.mxu0 0.0
  %2654 = vmatpush.msra.mxu0 0.0
  %2655 = vmatpush.msra.mxu0 0.0
  %2656 = vmatpush.msra.mxu0 0.0
  %2657 = vmatpush.msra.mxu0 0.0
  %2658 = vmatpush.msra.mxu0 0.0
  %2659 = vmatpush.msra.mxu0 0.0
  %2660 = vmatpush.msra.mxu0 0.0
  %2661 = vmatpush.msra.mxu0 %v2648
  %2662 = vmatpush.msra.mxu0 %v2647
  %2663 = vmatpush.msra.mxu0 %v2646
  %2664 = vmatpush.msra.mxu0 %v2645
  %2665 = vmatmul.f32.gmra.mxu0 %v2557
  %v2666 = vpop.f32.mrf.mxu0
  %v2667 = vadd.f32 0.0, %v2666
  %2668 = vdwg.mxu0
  %v2669 = vadd.f32 %v2644, %v2667
  %v2670 = vtanh.pop %v2669
  %v2671 = vld [vmem:[%s1081] sm:$0xff]
  %v2672 = vld [vmem:[%s1984] sm:$0xff]
  %v2673 = vld [vmem:[%s1984 + $0x8] sm:$0xff]
  %v2674 = vld [vmem:[%s1984 + $0x10] sm:$0xff]
  %v2675 = vld [vmem:[%s1984 + $0x18] sm:$0xff]
  %2676 = vmatpush.msra.mxu0 0.0
  %2677 = vmatpush.msra.mxu0 0.0
  %2678 = vmatpush.msra.mxu0 0.0
  %2679 = vmatpush.msra.mxu0 0.0
  %2680 = vmatpush.msra.mxu0 0.0
  %2681 = vmatpush.msra.mxu0 0.0
  %2682 = vmatpush.msra.mxu0 0.0
  %2683 = vmatpush.msra.mxu0 0.0
  %2684 = vmatpush.msra.mxu0 0.0
  %2685 = vmatpush.msra.mxu0 0.0
  %2686 = vmatpush.msra.mxu0 0.0
  %2687 = vmatpush.msra.mxu0 0.0
  %2688 = vmatpush.msra.mxu0 %v2675
  %2689 = vmatpush.msra.mxu0 %v2674
  %2690 = vmatpush.msra.mxu0 %v2673
  %2691 = vmatpush.msra.mxu0 %v2672
  %2692 = vmatmul.f32.gmra.mxu0 %v2557
  %v2693 = vpop.f32.mrf.mxu0
  %v2694 = vadd.f32 0.0, %v2693
  %2695 = vdwg.mxu0
  %v2696 = vadd.f32 %v2671, %v2694
  %v2697 = vxor.u32 %v2696, 2147483648
  %v2698 = vmul.f32 %v2697, 1.442695
  %v2699 = vpow.pop %v2698
  %v2700 = vadd.f32 %v2699, 1.0
  %v2701 = vrcp.pop %v2700
  %v2702 = vmul.f32 %v2700, %v2701
  %v2703 = vsub.f32 1.0, %v2702
  %v2704 = vmul.f32 %v2701, %v2703
  %v2705 = vadd.f32 %v2701, %v2704
  %vm2706 = vweird.f32 %v2700
  %vm2707 = vweird.f32 %v2701
  %vm2708 = vmor %vm2706, %vm2707
  %v2709 = vsel %vm2708, %v2701, %v2705
  %v2710 = vand.u32 2147483647, %v2700
  %vm2711 = vcmp.eq.f32.partialorder %v2710, 8.507059e+37
  %v2712 = vand.u32 %v2700, 2147483648
  %v2713 = vor.u32 1.1754944e-38, %v2712
  %v2714 = vsel %vm2711, %v2713, %v2709
  %v2715 = vmul.f32 1.0, %v2714
  %v2716 = vmul.f32 %v2643, %v2546
  %v2717 = vmul.f32 %v2598, %v2670
  %v2718 = vadd.f32 %v2716, %v2717
  %v2719 = vtanh.pop %v2718
  %v2720 = vmul.f32 %v2715, %v2719
  %s2721 = scalar_lea.vmem [#allocation4], 32
  %2722 = vst.msk [vmem:[%s2721] sm:$0xff] %vm122, %v2720
  %v2723 = vld [vmem:[%s1134] sm:$0xff]
  %v2724 = vld [vmem:[%s5] sm:$0xff]
  %v2725 = vld [vmem:[%s5 + $0x8] sm:$0xff]
  %v2726 = vld [vmem:[%s5 + $0x10] sm:$0xff]
  %v2727 = vld [vmem:[%s5 + $0x18] sm:$0xff]
  %v2729 = vsel %vm122, %v2720, 0
  %2731 = vmatpush.msra.mxu0 0.0
  %2732 = vmatpush.msra.mxu0 0.0
  %2733 = vmatpush.msra.mxu0 0.0
  %2734 = vmatpush.msra.mxu0 0.0
  %2735 = vmatpush.msra.mxu0 0.0
  %2736 = vmatpush.msra.mxu0 0.0
  %2737 = vmatpush.msra.mxu0 0.0
  %2738 = vmatpush.msra.mxu0 0.0
  %2739 = vmatpush.msra.mxu0 0.0
  %2740 = vmatpush.msra.mxu0 0.0
  %2741 = vmatpush.msra.mxu0 0.0
  %2742 = vmatpush.msra.mxu0 0.0
  %2743 = vmatpush.msra.mxu0 %v2727
  %2744 = vmatpush.msra.mxu0 %v2726
  %2745 = vmatpush.msra.mxu0 %v2725
  %2746 = vmatpush.msra.mxu0 %v2724
  %2747 = vmatmul.f32.gmra.mxu0 %v2729
  %v2748 = vpop.f32.mrf.mxu0
  %v2749 = vadd.f32 0.0, %v2748
  %2750 = vdwg.mxu0
  %v2751 = vadd.f32 %v2723, %v2749
  %v2752 = vxor.u32 %v2751, 2147483648
  %v2753 = vmul.f32 %v2752, 1.442695
  %v2754 = vpow.pop %v2753
  %v2755 = vadd.f32 %v2754, 1.0
  %v2756 = vrcp.pop %v2755
  %v2757 = vmul.f32 %v2755, %v2756
  %v2758 = vsub.f32 1.0, %v2757
  %v2759 = vmul.f32 %v2756, %v2758
  %v2760 = vadd.f32 %v2756, %v2759
  %vm2761 = vweird.f32 %v2755
  %vm2762 = vweird.f32 %v2756
  %vm2763 = vmor %vm2761, %vm2762
  %v2764 = vsel %vm2763, %v2756, %v2760
  %v2765 = vand.u32 2147483647, %v2755
  %vm2766 = vcmp.eq.f32.partialorder %v2765, 8.507059e+37
  %v2767 = vand.u32 %v2755, 2147483648
  %v2768 = vor.u32 1.1754944e-38, %v2767
  %v2769 = vsel %vm2766, %v2768, %v2764
  %v2770 = vmul.f32 1.0, %v2769
  %v2771 = vld [vmem:[%s1184] sm:$0xff]
  %v2772 = vld [vmem:[%s1910] sm:$0xff]
  %v2773 = vld [vmem:[%s1910 + $0x8] sm:$0xff]
  %v2774 = vld [vmem:[%s1910 + $0x10] sm:$0xff]
  %v2775 = vld [vmem:[%s1910 + $0x18] sm:$0xff]
  %2776 = vmatpush.msra.mxu0 0.0
  %2777 = vmatpush.msra.mxu0 0.0
  %2778 = vmatpush.msra.mxu0 0.0
  %2779 = vmatpush.msra.mxu0 0.0
  %2780 = vmatpush.msra.mxu0 0.0
  %2781 = vmatpush.msra.mxu0 0.0
  %2782 = vmatpush.msra.mxu0 0.0
  %2783 = vmatpush.msra.mxu0 0.0
  %2784 = vmatpush.msra.mxu0 0.0
  %2785 = vmatpush.msra.mxu0 0.0
  %2786 = vmatpush.msra.mxu0 0.0
  %2787 = vmatpush.msra.mxu0 0.0
  %2788 = vmatpush.msra.mxu0 %v2775
  %2789 = vmatpush.msra.mxu0 %v2774
  %2790 = vmatpush.msra.mxu0 %v2773
  %2791 = vmatpush.msra.mxu0 %v2772
  %2792 = vmatmul.f32.gmra.mxu0 %v2729
  %v2793 = vpop.f32.mrf.mxu0
  %v2794 = vadd.f32 0.0, %v2793
  %2795 = vdwg.mxu0
  %v2796 = vadd.f32 %v2771, %v2794
  %v2797 = vxor.u32 %v2796, 2147483648
  %v2798 = vmul.f32 %v2797, 1.442695
  %v2799 = vpow.pop %v2798
  %v2800 = vadd.f32 %v2799, 1.0
  %v2801 = vrcp.pop %v2800
  %v2802 = vmul.f32 %v2800, %v2801
  %v2803 = vsub.f32 1.0, %v2802
  %v2804 = vmul.f32 %v2801, %v2803
  %v2805 = vadd.f32 %v2801, %v2804
  %vm2806 = vweird.f32 %v2800
  %vm2807 = vweird.f32 %v2801
  %vm2808 = vmor %vm2806, %vm2807
  %v2809 = vsel %vm2808, %v2801, %v2805
  %v2810 = vand.u32 2147483647, %v2800
  %vm2811 = vcmp.eq.f32.partialorder %v2810, 8.507059e+37
  %v2812 = vand.u32 %v2800, 2147483648
  %v2813 = vor.u32 1.1754944e-38, %v2812
  %v2814 = vsel %vm2811, %v2813, %v2809
  %v2815 = vmul.f32 1.0, %v2814
  %v2816 = vld [vmem:[%s1231] sm:$0xff]
  %v2817 = vld [vmem:[%s1956] sm:$0xff]
  %v2818 = vld [vmem:[%s1956 + $0x8] sm:$0xff]
  %v2819 = vld [vmem:[%s1956 + $0x10] sm:$0xff]
  %v2820 = vld [vmem:[%s1956 + $0x18] sm:$0xff]
  %2821 = vmatpush.msra.mxu0 0.0
  %2822 = vmatpush.msra.mxu0 0.0
  %2823 = vmatpush.msra.mxu0 0.0
  %2824 = vmatpush.msra.mxu0 0.0
  %2825 = vmatpush.msra.mxu0 0.0
  %2826 = vmatpush.msra.mxu0 0.0
  %2827 = vmatpush.msra.mxu0 0.0
  %2828 = vmatpush.msra.mxu0 0.0
  %2829 = vmatpush.msra.mxu0 0.0
  %2830 = vmatpush.msra.mxu0 0.0
  %2831 = vmatpush.msra.mxu0 0.0
  %2832 = vmatpush.msra.mxu0 0.0
  %2833 = vmatpush.msra.mxu0 %v2820
  %2834 = vmatpush.msra.mxu0 %v2819
  %2835 = vmatpush.msra.mxu0 %v2818
  %2836 = vmatpush.msra.mxu0 %v2817
  %2837 = vmatmul.f32.gmra.mxu0 %v2729
  %v2838 = vpop.f32.mrf.mxu0
  %v2839 = vadd.f32 0.0, %v2838
  %2840 = vdwg.mxu0
  %v2841 = vadd.f32 %v2816, %v2839
  %v2842 = vtanh.pop %v2841
  %v2843 = vld [vmem:[%s1260] sm:$0xff]
  %v2844 = vld [vmem:[%s1984] sm:$0xff]
  %v2845 = vld [vmem:[%s1984 + $0x8] sm:$0xff]
  %v2846 = vld [vmem:[%s1984 + $0x10] sm:$0xff]
  %v2847 = vld [vmem:[%s1984 + $0x18] sm:$0xff]
  %2848 = vmatpush.msra.mxu0 0.0
  %2849 = vmatpush.msra.mxu0 0.0
  %2850 = vmatpush.msra.mxu0 0.0
  %2851 = vmatpush.msra.mxu0 0.0
  %2852 = vmatpush.msra.mxu0 0.0
  %2853 = vmatpush.msra.mxu0 0.0
  %2854 = vmatpush.msra.mxu0 0.0
  %2855 = vmatpush.msra.mxu0 0.0
  %2856 = vmatpush.msra.mxu0 0.0
  %2857 = vmatpush.msra.mxu0 0.0
  %2858 = vmatpush.msra.mxu0 0.0
  %2859 = vmatpush.msra.mxu0 0.0
  %2860 = vmatpush.msra.mxu0 %v2847
  %2861 = vmatpush.msra.mxu0 %v2846
  %2862 = vmatpush.msra.mxu0 %v2845
  %2863 = vmatpush.msra.mxu0 %v2844
  %2864 = vmatmul.f32.gmra.mxu0 %v2729
  %v2865 = vpop.f32.mrf.mxu0
  %v2866 = vadd.f32 0.0, %v2865
  %2867 = vdwg.mxu0
  %v2868 = vadd.f32 %v2843, %v2866
  %v2869 = vxor.u32 %v2868, 2147483648
  %v2870 = vmul.f32 %v2869, 1.442695
  %v2871 = vpow.pop %v2870
  %v2872 = vadd.f32 %v2871, 1.0
  %v2873 = vrcp.pop %v2872
  %v2874 = vmul.f32 %v2872, %v2873
  %v2875 = vsub.f32 1.0, %v2874
  %v2876 = vmul.f32 %v2873, %v2875
  %v2877 = vadd.f32 %v2873, %v2876
  %vm2878 = vweird.f32 %v2872
  %vm2879 = vweird.f32 %v2873
  %vm2880 = vmor %vm2878, %vm2879
  %v2881 = vsel %vm2880, %v2873, %v2877
  %v2882 = vand.u32 2147483647, %v2872
  %vm2883 = vcmp.eq.f32.partialorder %v2882, 8.507059e+37
  %v2884 = vand.u32 %v2872, 2147483648
  %v2885 = vor.u32 1.1754944e-38, %v2884
  %v2886 = vsel %vm2883, %v2885, %v2881
  %v2887 = vmul.f32 1.0, %v2886
  %v2888 = vmul.f32 %v2815, %v2718
  %v2889 = vmul.f32 %v2770, %v2842
  %v2890 = vadd.f32 %v2888, %v2889
  %v2891 = vtanh.pop %v2890
  %v2892 = vmul.f32 %v2887, %v2891
  %s2893 = scalar_lea.vmem [#allocation4], 40
  %2894 = vst.msk [vmem:[%s2893] sm:$0xff] %vm122, %v2892
  %v2895 = vld [vmem:[%s1313] sm:$0xff]
  %v2896 = vld [vmem:[%s5] sm:$0xff]
  %v2897 = vld [vmem:[%s5 + $0x8] sm:$0xff]
  %v2898 = vld [vmem:[%s5 + $0x10] sm:$0xff]
  %v2899 = vld [vmem:[%s5 + $0x18] sm:$0xff]
  %v2901 = vsel %vm122, %v2892, 0
  %2903 = vmatpush.msra.mxu0 0.0
  %2904 = vmatpush.msra.mxu0 0.0
  %2905 = vmatpush.msra.mxu0 0.0
  %2906 = vmatpush.msra.mxu0 0.0
  %2907 = vmatpush.msra.mxu0 0.0
  %2908 = vmatpush.msra.mxu0 0.0
  %2909 = vmatpush.msra.mxu0 0.0
  %2910 = vmatpush.msra.mxu0 0.0
  %2911 = vmatpush.msra.mxu0 0.0
  %2912 = vmatpush.msra.mxu0 0.0
  %2913 = vmatpush.msra.mxu0 0.0
  %2914 = vmatpush.msra.mxu0 0.0
  %2915 = vmatpush.msra.mxu0 %v2899
  %2916 = vmatpush.msra.mxu0 %v2898
  %2917 = vmatpush.msra.mxu0 %v2897
  %2918 = vmatpush.msra.mxu0 %v2896
  %2919 = vmatmul.f32.gmra.mxu0 %v2901
  %v2920 = vpop.f32.mrf.mxu0
  %v2921 = vadd.f32 0.0, %v2920
  %2922 = vdwg.mxu0
  %v2923 = vadd.f32 %v2895, %v2921
  %v2924 = vxor.u32 %v2923, 2147483648
  %v2925 = vmul.f32 %v2924, 1.442695
  %v2926 = vpow.pop %v2925
  %v2927 = vadd.f32 %v2926, 1.0
  %v2928 = vrcp.pop %v2927
  %v2929 = vmul.f32 %v2927, %v2928
  %v2930 = vsub.f32 1.0, %v2929
  %v2931 = vmul.f32 %v2928, %v2930
  %v2932 = vadd.f32 %v2928, %v2931
  %vm2933 = vweird.f32 %v2927
  %vm2934 = vweird.f32 %v2928
  %vm2935 = vmor %vm2933, %vm2934
  %v2936 = vsel %vm2935, %v2928, %v2932
  %v2937 = vand.u32 2147483647, %v2927
  %vm2938 = vcmp.eq.f32.partialorder %v2937, 8.507059e+37
  %v2939 = vand.u32 %v2927, 2147483648
  %v2940 = vor.u32 1.1754944e-38, %v2939
  %v2941 = vsel %vm2938, %v2940, %v2936
  %v2942 = vmul.f32 1.0, %v2941
  %v2943 = vld [vmem:[%s1363] sm:$0xff]
  %v2944 = vld [vmem:[%s1910] sm:$0xff]
  %v2945 = vld [vmem:[%s1910 + $0x8] sm:$0xff]
  %v2946 = vld [vmem:[%s1910 + $0x10] sm:$0xff]
  %v2947 = vld [vmem:[%s1910 + $0x18] sm:$0xff]
  %2948 = vmatpush.msra.mxu0 0.0
  %2949 = vmatpush.msra.mxu0 0.0
  %2950 = vmatpush.msra.mxu0 0.0
  %2951 = vmatpush.msra.mxu0 0.0
  %2952 = vmatpush.msra.mxu0 0.0
  %2953 = vmatpush.msra.mxu0 0.0
  %2954 = vmatpush.msra.mxu0 0.0
  %2955 = vmatpush.msra.mxu0 0.0
  %2956 = vmatpush.msra.mxu0 0.0
  %2957 = vmatpush.msra.mxu0 0.0
  %2958 = vmatpush.msra.mxu0 0.0
  %2959 = vmatpush.msra.mxu0 0.0
  %2960 = vmatpush.msra.mxu0 %v2947
  %2961 = vmatpush.msra.mxu0 %v2946
  %2962 = vmatpush.msra.mxu0 %v2945
  %2963 = vmatpush.msra.mxu0 %v2944
  %2964 = vmatmul.f32.gmra.mxu0 %v2901
  %v2965 = vpop.f32.mrf.mxu0
  %v2966 = vadd.f32 0.0, %v2965
  %2967 = vdwg.mxu0
  %v2968 = vadd.f32 %v2943, %v2966
  %v2969 = vxor.u32 %v2968, 2147483648
  %v2970 = vmul.f32 %v2969, 1.442695
  %v2971 = vpow.pop %v2970
  %v2972 = vadd.f32 %v2971, 1.0
  %v2973 = vrcp.pop %v2972
  %v2974 = vmul.f32 %v2972, %v2973
  %v2975 = vsub.f32 1.0, %v2974
  %v2976 = vmul.f32 %v2973, %v2975
  %v2977 = vadd.f32 %v2973, %v2976
  %vm2978 = vweird.f32 %v2972
  %vm2979 = vweird.f32 %v2973
  %vm2980 = vmor %vm2978, %vm2979
  %v2981 = vsel %vm2980, %v2973, %v2977
  %v2982 = vand.u32 2147483647, %v2972
  %vm2983 = vcmp.eq.f32.partialorder %v2982, 8.507059e+37
  %v2984 = vand.u32 %v2972, 2147483648
  %v2985 = vor.u32 1.1754944e-38, %v2984
  %v2986 = vsel %vm2983, %v2985, %v2981
  %v2987 = vmul.f32 1.0, %v2986
  %v2988 = vld [vmem:[%s1410] sm:$0xff]
  %v2989 = vld [vmem:[%s1956] sm:$0xff]
  %v2990 = vld [vmem:[%s1956 + $0x8] sm:$0xff]
  %v2991 = vld [vmem:[%s1956 + $0x10] sm:$0xff]
  %v2992 = vld [vmem:[%s1956 + $0x18] sm:$0xff]
  %2993 = vmatpush.msra.mxu0 0.0
  %2994 = vmatpush.msra.mxu0 0.0
  %2995 = vmatpush.msra.mxu0 0.0
  %2996 = vmatpush.msra.mxu0 0.0
  %2997 = vmatpush.msra.mxu0 0.0
  %2998 = vmatpush.msra.mxu0 0.0
  %2999 = vmatpush.msra.mxu0 0.0
  %3000 = vmatpush.msra.mxu0 0.0
  %3001 = vmatpush.msra.mxu0 0.0
  %3002 = vmatpush.msra.mxu0 0.0
  %3003 = vmatpush.msra.mxu0 0.0
  %3004 = vmatpush.msra.mxu0 0.0
  %3005 = vmatpush.msra.mxu0 %v2992
  %3006 = vmatpush.msra.mxu0 %v2991
  %3007 = vmatpush.msra.mxu0 %v2990
  %3008 = vmatpush.msra.mxu0 %v2989
  %3009 = vmatmul.f32.gmra.mxu0 %v2901
  %v3010 = vpop.f32.mrf.mxu0
  %v3011 = vadd.f32 0.0, %v3010
  %3012 = vdwg.mxu0
  %v3013 = vadd.f32 %v2988, %v3011
  %v3014 = vtanh.pop %v3013
  %v3015 = vld [vmem:[%s1439] sm:$0xff]
  %v3016 = vld [vmem:[%s1984] sm:$0xff]
  %v3017 = vld [vmem:[%s1984 + $0x8] sm:$0xff]
  %v3018 = vld [vmem:[%s1984 + $0x10] sm:$0xff]
  %v3019 = vld [vmem:[%s1984 + $0x18] sm:$0xff]
  %3020 = vmatpush.msra.mxu0 0.0
  %3021 = vmatpush.msra.mxu0 0.0
  %3022 = vmatpush.msra.mxu0 0.0
  %3023 = vmatpush.msra.mxu0 0.0
  %3024 = vmatpush.msra.mxu0 0.0
  %3025 = vmatpush.msra.mxu0 0.0
  %3026 = vmatpush.msra.mxu0 0.0
  %3027 = vmatpush.msra.mxu0 0.0
  %3028 = vmatpush.msra.mxu0 0.0
  %3029 = vmatpush.msra.mxu0 0.0
  %3030 = vmatpush.msra.mxu0 0.0
  %3031 = vmatpush.msra.mxu0 0.0
  %3032 = vmatpush.msra.mxu0 %v3019
  %3033 = vmatpush.msra.mxu0 %v3018
  %3034 = vmatpush.msra.mxu0 %v3017
  %3035 = vmatpush.msra.mxu0 %v3016
  %3036 = vmatmul.f32.gmra.mxu0 %v2901
  %v3037 = vpop.f32.mrf.mxu0
  %v3038 = vadd.f32 0.0, %v3037
  %3039 = vdwg.mxu0
  %v3040 = vadd.f32 %v3015, %v3038
  %v3041 = vxor.u32 %v3040, 2147483648
  %v3042 = vmul.f32 %v3041, 1.442695
  %v3043 = vpow.pop %v3042
  %v3044 = vadd.f32 %v3043, 1.0
  %v3045 = vrcp.pop %v3044
  %v3046 = vmul.f32 %v3044, %v3045
  %v3047 = vsub.f32 1.0, %v3046
  %v3048 = vmul.f32 %v3045, %v3047
  %v3049 = vadd.f32 %v3045, %v3048
  %vm3050 = vweird.f32 %v3044
  %vm3051 = vweird.f32 %v3045
  %vm3052 = vmor %vm3050, %vm3051
  %v3053 = vsel %vm3052, %v3045, %v3049
  %v3054 = vand.u32 2147483647, %v3044
  %vm3055 = vcmp.eq.f32.partialorder %v3054, 8.507059e+37
  %v3056 = vand.u32 %v3044, 2147483648
  %v3057 = vor.u32 1.1754944e-38, %v3056
  %v3058 = vsel %vm3055, %v3057, %v3053
  %v3059 = vmul.f32 1.0, %v3058
  %v3060 = vmul.f32 %v2987, %v2890
  %v3061 = vmul.f32 %v2942, %v3014
  %v3062 = vadd.f32 %v3060, %v3061
  %v3063 = vtanh.pop %v3062
  %v3064 = vmul.f32 %v3059, %v3063
  %s3065 = scalar_lea.vmem [#allocation4], 48
  %3066 = vst.msk [vmem:[%s3065] sm:$0xff] %vm122, %v3064
  %v3067 = vld [vmem:[%s1492] sm:$0xff]
  %v3068 = vld [vmem:[%s5] sm:$0xff]
  %v3069 = vld [vmem:[%s5 + $0x8] sm:$0xff]
  %v3070 = vld [vmem:[%s5 + $0x10] sm:$0xff]
  %v3071 = vld [vmem:[%s5 + $0x18] sm:$0xff]
  %v3073 = vsel %vm122, %v3064, 0
  %3075 = vmatpush.msra.mxu0 0.0
  %3076 = vmatpush.msra.mxu0 0.0
  %3077 = vmatpush.msra.mxu0 0.0
  %3078 = vmatpush.msra.mxu0 0.0
  %3079 = vmatpush.msra.mxu0 0.0
  %3080 = vmatpush.msra.mxu0 0.0
  %3081 = vmatpush.msra.mxu0 0.0
  %3082 = vmatpush.msra.mxu0 0.0
  %3083 = vmatpush.msra.mxu0 0.0
  %3084 = vmatpush.msra.mxu0 0.0
  %3085 = vmatpush.msra.mxu0 0.0
  %3086 = vmatpush.msra.mxu0 0.0
  %3087 = vmatpush.msra.mxu0 %v3071
  %3088 = vmatpush.msra.mxu0 %v3070
  %3089 = vmatpush.msra.mxu0 %v3069
  %3090 = vmatpush.msra.mxu0 %v3068
  %3091 = vmatmul.f32.gmra.mxu0 %v3073
  %v3092 = vpop.f32.mrf.mxu0
  %v3093 = vadd.f32 0.0, %v3092
  %3094 = vdwg.mxu0
  %v3095 = vadd.f32 %v3067, %v3093
  %v3096 = vxor.u32 %v3095, 2147483648
  %v3097 = vmul.f32 %v3096, 1.442695
  %v3098 = vpow.pop %v3097
  %v3099 = vadd.f32 %v3098, 1.0
  %v3100 = vrcp.pop %v3099
  %v3101 = vmul.f32 %v3099, %v3100
  %v3102 = vsub.f32 1.0, %v3101
  %v3103 = vmul.f32 %v3100, %v3102
  %v3104 = vadd.f32 %v3100, %v3103
  %vm3105 = vweird.f32 %v3099
  %vm3106 = vweird.f32 %v3100
  %vm3107 = vmor %vm3105, %vm3106
  %v3108 = vsel %vm3107, %v3100, %v3104
  %v3109 = vand.u32 2147483647, %v3099
  %vm3110 = vcmp.eq.f32.partialorder %v3109, 8.507059e+37
  %v3111 = vand.u32 %v3099, 2147483648
  %v3112 = vor.u32 1.1754944e-38, %v3111
  %v3113 = vsel %vm3110, %v3112, %v3108
  %v3114 = vmul.f32 1.0, %v3113
  %v3115 = vld [vmem:[%s1542] sm:$0xff]
  %v3116 = vld [vmem:[%s1910] sm:$0xff]
  %v3117 = vld [vmem:[%s1910 + $0x8] sm:$0xff]
  %v3118 = vld [vmem:[%s1910 + $0x10] sm:$0xff]
  %v3119 = vld [vmem:[%s1910 + $0x18] sm:$0xff]
  %3120 = vmatpush.msra.mxu0 0.0
  %3121 = vmatpush.msra.mxu0 0.0
  %3122 = vmatpush.msra.mxu0 0.0
  %3123 = vmatpush.msra.mxu0 0.0
  %3124 = vmatpush.msra.mxu0 0.0
  %3125 = vmatpush.msra.mxu0 0.0
  %3126 = vmatpush.msra.mxu0 0.0
  %3127 = vmatpush.msra.mxu0 0.0
  %3128 = vmatpush.msra.mxu0 0.0
  %3129 = vmatpush.msra.mxu0 0.0
  %3130 = vmatpush.msra.mxu0 0.0
  %3131 = vmatpush.msra.mxu0 0.0
  %3132 = vmatpush.msra.mxu0 %v3119
  %3133 = vmatpush.msra.mxu0 %v3118
  %3134 = vmatpush.msra.mxu0 %v3117
  %3135 = vmatpush.msra.mxu0 %v3116
  %3136 = vmatmul.f32.gmra.mxu0 %v3073
  %v3137 = vpop.f32.mrf.mxu0
  %v3138 = vadd.f32 0.0, %v3137
  %3139 = vdwg.mxu0
  %v3140 = vadd.f32 %v3115, %v3138
  %v3141 = vxor.u32 %v3140, 2147483648
  %v3142 = vmul.f32 %v3141, 1.442695
  %v3143 = vpow.pop %v3142
  %v3144 = vadd.f32 %v3143, 1.0
  %v3145 = vrcp.pop %v3144
  %v3146 = vmul.f32 %v3144, %v3145
  %v3147 = vsub.f32 1.0, %v3146
  %v3148 = vmul.f32 %v3145, %v3147
  %v3149 = vadd.f32 %v3145, %v3148
  %vm3150 = vweird.f32 %v3144
  %vm3151 = vweird.f32 %v3145
  %vm3152 = vmor %vm3150, %vm3151
  %v3153 = vsel %vm3152, %v3145, %v3149
  %v3154 = vand.u32 2147483647, %v3144
  %vm3155 = vcmp.eq.f32.partialorder %v3154, 8.507059e+37
  %v3156 = vand.u32 %v3144, 2147483648
  %v3157 = vor.u32 1.1754944e-38, %v3156
  %v3158 = vsel %vm3155, %v3157, %v3153
  %v3159 = vmul.f32 1.0, %v3158
  %v3160 = vld [vmem:[%s1589] sm:$0xff]
  %v3161 = vld [vmem:[%s1956] sm:$0xff]
  %v3162 = vld [vmem:[%s1956 + $0x8] sm:$0xff]
  %v3163 = vld [vmem:[%s1956 + $0x10] sm:$0xff]
  %v3164 = vld [vmem:[%s1956 + $0x18] sm:$0xff]
  %3165 = vmatpush.msra.mxu0 0.0
  %3166 = vmatpush.msra.mxu0 0.0
  %3167 = vmatpush.msra.mxu0 0.0
  %3168 = vmatpush.msra.mxu0 0.0
  %3169 = vmatpush.msra.mxu0 0.0
  %3170 = vmatpush.msra.mxu0 0.0
  %3171 = vmatpush.msra.mxu0 0.0
  %3172 = vmatpush.msra.mxu0 0.0
  %3173 = vmatpush.msra.mxu0 0.0
  %3174 = vmatpush.msra.mxu0 0.0
  %3175 = vmatpush.msra.mxu0 0.0
  %3176 = vmatpush.msra.mxu0 0.0
  %3177 = vmatpush.msra.mxu0 %v3164
  %3178 = vmatpush.msra.mxu0 %v3163
  %3179 = vmatpush.msra.mxu0 %v3162
  %3180 = vmatpush.msra.mxu0 %v3161
  %3181 = vmatmul.f32.gmra.mxu0 %v3073
  %v3182 = vpop.f32.mrf.mxu0
  %v3183 = vadd.f32 0.0, %v3182
  %3184 = vdwg.mxu0
  %v3185 = vadd.f32 %v3160, %v3183
  %v3186 = vtanh.pop %v3185
  %v3187 = vld [vmem:[%s1618] sm:$0xff]
  %v3188 = vld [vmem:[%s1984] sm:$0xff]
  %v3189 = vld [vmem:[%s1984 + $0x8] sm:$0xff]
  %v3190 = vld [vmem:[%s1984 + $0x10] sm:$0xff]
  %v3191 = vld [vmem:[%s1984 + $0x18] sm:$0xff]
  %3192 = vmatpush.msra.mxu0 0.0
  %3193 = vmatpush.msra.mxu0 0.0
  %3194 = vmatpush.msra.mxu0 0.0
  %3195 = vmatpush.msra.mxu0 0.0
  %3196 = vmatpush.msra.mxu0 0.0
  %3197 = vmatpush.msra.mxu0 0.0
  %3198 = vmatpush.msra.mxu0 0.0
  %3199 = vmatpush.msra.mxu0 0.0
  %3200 = vmatpush.msra.mxu0 0.0
  %3201 = vmatpush.msra.mxu0 0.0
  %3202 = vmatpush.msra.mxu0 0.0
  %3203 = vmatpush.msra.mxu0 0.0
  %3204 = vmatpush.msra.mxu0 %v3191
  %3205 = vmatpush.msra.mxu0 %v3190
  %3206 = vmatpush.msra.mxu0 %v3189
  %3207 = vmatpush.msra.mxu0 %v3188
  %3208 = vmatmul.f32.gmra.mxu0 %v3073
  %v3209 = vpop.f32.mrf.mxu0
  %v3210 = vadd.f32 0.0, %v3209
  %3211 = vdwg.mxu0
  %v3212 = vadd.f32 %v3187, %v3210
  %v3213 = vxor.u32 %v3212, 2147483648
  %v3214 = vmul.f32 %v3213, 1.442695
  %v3215 = vpow.pop %v3214
  %v3216 = vadd.f32 %v3215, 1.0
  %v3217 = vrcp.pop %v3216
  %v3218 = vmul.f32 %v3216, %v3217
  %v3219 = vsub.f32 1.0, %v3218
  %v3220 = vmul.f32 %v3217, %v3219
  %v3221 = vadd.f32 %v3217, %v3220
  %vm3222 = vweird.f32 %v3216
  %vm3223 = vweird.f32 %v3217
  %vm3224 = vmor %vm3222, %vm3223
  %v3225 = vsel %vm3224, %v3217, %v3221
  %v3226 = vand.u32 2147483647, %v3216
  %vm3227 = vcmp.eq.f32.partialorder %v3226, 8.507059e+37
  %v3228 = vand.u32 %v3216, 2147483648
  %v3229 = vor.u32 1.1754944e-38, %v3228
  %v3230 = vsel %vm3227, %v3229, %v3225
  %v3231 = vmul.f32 1.0, %v3230
  %v3232 = vmul.f32 %v3159, %v3062
  %v3233 = vmul.f32 %v3114, %v3186
  %v3234 = vadd.f32 %v3232, %v3233
  %v3235 = vtanh.pop %v3234
  %v3236 = vmul.f32 %v3231, %v3235
  %s3237 = scalar_lea.vmem [#allocation4], 56
  %3238 = vst.msk [vmem:[%s3237] sm:$0xff] %vm122, %v3236
  %v3239 = vld [vmem:[#allocation4] sm:$0xff]
  %v3240 = vld [vmem:[#allocation4 + $0x8] sm:$0xff]
  %v3241 = vld [vmem:[#allocation4 + $0x10] sm:$0xff]
  %v3242 = vld [vmem:[#allocation4 + $0x18] sm:$0xff]
  %v3243 = vld [vmem:[#allocation4 + $0x20] sm:$0xff]
  %v3244 = vld [vmem:[#allocation4 + $0x28] sm:$0xff]
  %v3245 = vld [vmem:[#allocation4 + $0x30] sm:$0xff]
  %v3246 = vld [vmem:[#allocation4 + $0x38] sm:$0xff]
  %v3247 = vld [vmem:[%s7] sm:$0xff]
  %v3248 = vld [vmem:[%s7 + $0x8] sm:$0xff]
  %v3249 = vld [vmem:[%s7 + $0x10] sm:$0xff]
  %v3250 = vld [vmem:[%s7 + $0x18] sm:$0xff]
  %v3251 = vld [vmem:[%s9] sm:$0x1]
  %v3253 = vperm.slane %v3251, 0
  %v3256 = vsel %vm122, %v3239, 0
  %v3259 = vsel %vm122, %v3240, 0
  %v3262 = vsel %vm122, %v3241, 0
  %v3265 = vsel %vm122, %v3242, 0
  %v3268 = vsel %vm122, %v3243, 0
  %v3271 = vsel %vm122, %v3244, 0
  %v3274 = vsel %vm122, %v3245, 0
  %v3277 = vsel %vm122, %v3246, 0
  %3279 = vmatpush.msra.mxu0 0.0
  %3280 = vmatpush.msra.mxu0 0.0
  %3281 = vmatpush.msra.mxu0 0.0
  %3282 = vmatpush.msra.mxu0 0.0
  %3283 = vmatpush.msra.mxu0 0.0
  %3284 = vmatpush.msra.mxu0 0.0
  %3285 = vmatpush.msra.mxu0 0.0
  %3286 = vmatpush.msra.mxu0 0.0
  %3287 = vmatpush.msra.mxu0 0.0
  %3288 = vmatpush.msra.mxu0 0.0
  %3289 = vmatpush.msra.mxu0 0.0
  %3290 = vmatpush.msra.mxu0 0.0
  %3291 = vmatpush.msra.mxu0 %v3250
  %3292 = vmatpush.msra.mxu0 %v3249
  %3293 = vmatpush.msra.mxu0 %v3248
  %3294 = vmatpush.msra.mxu0 %v3247
  %3295 = vmatmul.f32.gmra.mxu0 %v3256
  %v3296 = vpop.f32.mrf.mxu0
  %v3297 = vadd.f32 %v3253, %v3296
  %3298 = vmatmul.f32.gmra.mxu0 %v3259
  %v3299 = vpop.f32.mrf.mxu0
  %v3300 = vadd.f32 %v3253, %v3299
  %3301 = vmatmul.f32.gmra.mxu0 %v3262
  %v3302 = vpop.f32.mrf.mxu0
  %v3303 = vadd.f32 %v3253, %v3302
  %3304 = vmatmul.f32.gmra.mxu0 %v3265
  %v3305 = vpop.f32.mrf.mxu0
  %v3306 = vadd.f32 %v3253, %v3305
  %3307 = vmatmul.f32.gmra.mxu0 %v3268
  %v3308 = vpop.f32.mrf.mxu0
  %v3309 = vadd.f32 %v3253, %v3308
  %3310 = vmatmul.f32.gmra.mxu0 %v3271
  %v3311 = vpop.f32.mrf.mxu0
  %v3312 = vadd.f32 %v3253, %v3311
  %3313 = vmatmul.f32.gmra.mxu0 %v3274
  %v3314 = vpop.f32.mrf.mxu0
  %v3315 = vadd.f32 %v3253, %v3314
  %3316 = vmatmul.f32.gmra.mxu0 %v3277
  %v3317 = vpop.f32.mrf.mxu0
  %v3318 = vadd.f32 %v3253, %v3317
  %3319 = vdwg.mxu0
  %3320 = vst.msk [vmem:[#allocation2] sm:$0xff] %vm122, %v3297
  %3321 = vst.msk [vmem:[#allocation2 + $0x8] sm:$0xff] %vm122, %v3300
  %3322 = vst.msk [vmem:[#allocation2 + $0x10] sm:$0xff] %vm122, %v3303
  %3323 = vst.msk [vmem:[#allocation2 + $0x18] sm:$0xff] %vm122, %v3306
  %3324 = vst.msk [vmem:[#allocation2 + $0x20] sm:$0xff] %vm122, %v3309
  %3325 = vst.msk [vmem:[#allocation2 + $0x28] sm:$0xff] %vm122, %v3312
  %3326 = vst.msk [vmem:[#allocation2 + $0x30] sm:$0xff] %vm122, %v3315
  %3327 = vst.msk [vmem:[#allocation2 + $0x38] sm:$0xff] %vm122, %v3318
  %3336 = vrot.lane.b32.xlu0 %v3297, 96
  %v3337 = vpop.permute.xlu0 %3336
  %3338 = vrot.lane.b32.xlu0 %v3300, 96
  %v3339 = vpop.permute.xlu0 %3338
  %3340 = vrot.lane.b32.xlu0 %v3303, 96
  %v3341 = vpop.permute.xlu0 %3340
  %3342 = vrot.lane.b32.xlu0 %v3306, 96
  %v3343 = vpop.permute.xlu0 %3342
  %3344 = vrot.lane.b32.xlu0 %v3309, 96
  %v3345 = vpop.permute.xlu0 %3344
  %3346 = vrot.lane.b32.xlu0 %v3312, 96
  %v3347 = vpop.permute.xlu0 %3346
  %3348 = vrot.lane.b32.xlu0 %v3315, 96
  %v3349 = vpop.permute.xlu0 %3348
  %3350 = vrot.lane.b32.xlu0 %v3318, 96
  %v3351 = vpop.permute.xlu0 %3350
  %3360 = vst.msk [vmem:[%s163] sm:$0xff] %vm122, %v3337
  %3361 = vst.msk [vmem:[%s163 + $0x8] sm:$0xff] %vm122, %v3339
  %3362 = vst.msk [vmem:[%s163 + $0x10] sm:$0xff] %vm122, %v3341
  %3363 = vst.msk [vmem:[%s163 + $0x18] sm:$0xff] %vm122, %v3343
  %3364 = vst.msk [vmem:[%s163 + $0x20] sm:$0xff] %vm122, %v3345
  %3365 = vst.msk [vmem:[%s163 + $0x28] sm:$0xff] %vm122, %v3347
  %3366 = vst.msk [vmem:[%s163 + $0x30] sm:$0xff] %vm122, %v3349
  %3367 = vst.msk [vmem:[%s163 + $0x38] sm:$0xff] %vm122, %v3351
  %3368 = vrot.lane.b32.xlu0 %v3297, 64
  %v3369 = vpop.permute.xlu0 %3368
  %3370 = vrot.lane.b32.xlu0 %v3300, 64
  %v3371 = vpop.permute.xlu0 %3370
  %3372 = vrot.lane.b32.xlu0 %v3303, 64
  %v3373 = vpop.permute.xlu0 %3372
  %3374 = vrot.lane.b32.xlu0 %v3306, 64
  %v3375 = vpop.permute.xlu0 %3374
  %3376 = vrot.lane.b32.xlu0 %v3309, 64
  %v3377 = vpop.permute.xlu0 %3376
  %3378 = vrot.lane.b32.xlu0 %v3312, 64
  %v3379 = vpop.permute.xlu0 %3378
  %3380 = vrot.lane.b32.xlu0 %v3315, 64
  %v3381 = vpop.permute.xlu0 %3380
  %3382 = vrot.lane.b32.xlu0 %v3318, 64
  %v3383 = vpop.permute.xlu0 %3382
  %3392 = vst.msk [vmem:[%s196] sm:$0xff] %vm122, %v3369
  %3393 = vst.msk [vmem:[%s196 + $0x8] sm:$0xff] %vm122, %v3371
  %3394 = vst.msk [vmem:[%s196 + $0x10] sm:$0xff] %vm122, %v3373
  %3395 = vst.msk [vmem:[%s196 + $0x18] sm:$0xff] %vm122, %v3375
  %3396 = vst.msk [vmem:[%s196 + $0x20] sm:$0xff] %vm122, %v3377
  %3397 = vst.msk [vmem:[%s196 + $0x28] sm:$0xff] %vm122, %v3379
  %3398 = vst.msk [vmem:[%s196 + $0x30] sm:$0xff] %vm122, %v3381
  %3399 = vst.msk [vmem:[%s196 + $0x38] sm:$0xff] %vm122, %v3383
  %3400 = vrot.lane.b32.xlu0 %v3297, 32
  %v3401 = vpop.permute.xlu0 %3400
  %3402 = vrot.lane.b32.xlu0 %v3300, 32
  %v3403 = vpop.permute.xlu0 %3402
  %3404 = vrot.lane.b32.xlu0 %v3303, 32
  %v3405 = vpop.permute.xlu0 %3404
  %3406 = vrot.lane.b32.xlu0 %v3306, 32
  %v3407 = vpop.permute.xlu0 %3406
  %3408 = vrot.lane.b32.xlu0 %v3309, 32
  %v3409 = vpop.permute.xlu0 %3408
  %3410 = vrot.lane.b32.xlu0 %v3312, 32
  %v3411 = vpop.permute.xlu0 %3410
  %3412 = vrot.lane.b32.xlu0 %v3315, 32
  %v3413 = vpop.permute.xlu0 %3412
  %3414 = vrot.lane.b32.xlu0 %v3318, 32
  %v3415 = vpop.permute.xlu0 %3414
  %3424 = vst.msk [vmem:[%s229] sm:$0xff] %vm122, %v3401
  %3425 = vst.msk [vmem:[%s229 + $0x8] sm:$0xff] %vm122, %v3403
  %3426 = vst.msk [vmem:[%s229 + $0x10] sm:$0xff] %vm122, %v3405
  %3427 = vst.msk [vmem:[%s229 + $0x18] sm:$0xff] %vm122, %v3407
  %3428 = vst.msk [vmem:[%s229 + $0x20] sm:$0xff] %vm122, %v3409
  %3429 = vst.msk [vmem:[%s229 + $0x28] sm:$0xff] %vm122, %v3411
  %3430 = vst.msk [vmem:[%s229 + $0x30] sm:$0xff] %vm122, %v3413
  %3431 = vst.msk [vmem:[%s229 + $0x38] sm:$0xff] %vm122, %v3415
  %v3432 = vld [vmem:[#allocation2] sm:$0xff]
  %v3433 = vld [vmem:[%s8] sm:$0xff]
  %v3434 = vld [vmem:[%s8 + $0x8] sm:$0xff]
  %v3435 = vld [vmem:[%s8 + $0x10] sm:$0xff]
  %v3436 = vld [vmem:[%s8 + $0x18] sm:$0xff]
  %3437 = vmatpush.msra.mxu0 0.0
  %3438 = vmatpush.msra.mxu0 0.0
  %3439 = vmatpush.msra.mxu0 0.0
  %3440 = vmatpush.msra.mxu0 0.0
  %3441 = vmatpush.msra.mxu0 0.0
  %3442 = vmatpush.msra.mxu0 0.0
  %3443 = vmatpush.msra.mxu0 0.0
  %3444 = vmatpush.msra.mxu0 0.0
  %3445 = vmatpush.msra.mxu0 0.0
  %3446 = vmatpush.msra.mxu0 0.0
  %3447 = vmatpush.msra.mxu0 0.0
  %3448 = vmatpush.msra.mxu0 0.0
  %3449 = vmatpush.msra.mxu0 %v3436
  %3450 = vmatpush.msra.mxu0 %v3435
  %3451 = vmatpush.msra.mxu0 %v3434
  %3452 = vmatpush.msra.mxu0 %v3433
  %3453 = vmatmul.f32.gmra.mxu0 %v244
  %v3454 = vpop.f32.mrf.mxu0
  %v3455 = vadd.f32 0.0, %v3454
  %3456 = vdwg.mxu0
  %v3457 = vadd.f32 %v3432, %v3455
  %v3458 = vxor.u32 %v3457, 2147483648
  %v3459 = vmul.f32 %v3458, 1.442695
  %v3460 = vpow.pop %v3459
  %v3461 = vadd.f32 %v3460, 1.0
  %v3462 = vrcp.pop %v3461
  %v3463 = vmul.f32 %v3461, %v3462
  %v3464 = vsub.f32 1.0, %v3463
  %v3465 = vmul.f32 %v3462, %v3464
  %v3466 = vadd.f32 %v3462, %v3465
  %vm3467 = vweird.f32 %v3461
  %vm3468 = vweird.f32 %v3462
  %vm3469 = vmor %vm3467, %vm3468
  %v3470 = vsel %vm3469, %v3462, %v3466
  %v3471 = vand.u32 2147483647, %v3461
  %vm3472 = vcmp.eq.f32.partialorder %v3471, 8.507059e+37
  %v3473 = vand.u32 %v3461, 2147483648
  %v3474 = vor.u32 1.1754944e-38, %v3473
  %v3475 = vsel %vm3472, %v3474, %v3470
  %v3476 = vmul.f32 1.0, %v3475
  %v3477 = vld [vmem:[%s287] sm:$0xff]
  %s3478 = scalar_lea.vmem %s8, 32
  %v3479 = vld [vmem:[%s3478] sm:$0xff]
  %v3480 = vld [vmem:[%s3478 + $0x8] sm:$0xff]
  %v3481 = vld [vmem:[%s3478 + $0x10] sm:$0xff]
  %v3482 = vld [vmem:[%s3478 + $0x18] sm:$0xff]
  %3483 = vmatpush.msra.mxu0 0.0
  %3484 = vmatpush.msra.mxu0 0.0
  %3485 = vmatpush.msra.mxu0 0.0
  %3486 = vmatpush.msra.mxu0 0.0
  %3487 = vmatpush.msra.mxu0 0.0
  %3488 = vmatpush.msra.mxu0 0.0
  %3489 = vmatpush.msra.mxu0 0.0
  %3490 = vmatpush.msra.mxu0 0.0
  %3491 = vmatpush.msra.mxu0 0.0
  %3492 = vmatpush.msra.mxu0 0.0
  %3493 = vmatpush.msra.mxu0 0.0
  %3494 = vmatpush.msra.mxu0 0.0
  %3495 = vmatpush.msra.mxu0 %v3482
  %3496 = vmatpush.msra.mxu0 %v3481
  %3497 = vmatpush.msra.mxu0 %v3480
  %3498 = vmatpush.msra.mxu0 %v3479
  %3499 = vmatmul.f32.gmra.mxu0 %v244
  %v3500 = vpop.f32.mrf.mxu0
  %v3501 = vadd.f32 0.0, %v3500
  %3502 = vdwg.mxu0
  %v3503 = vadd.f32 %v3477, %v3501
  %v3504 = vxor.u32 %v3503, 2147483648
  %v3505 = vmul.f32 %v3504, 1.442695
  %v3506 = vpow.pop %v3505
  %v3507 = vadd.f32 %v3506, 1.0
  %v3508 = vrcp.pop %v3507
  %v3509 = vmul.f32 %v3507, %v3508
  %v3510 = vsub.f32 1.0, %v3509
  %v3511 = vmul.f32 %v3508, %v3510
  %v3512 = vadd.f32 %v3508, %v3511
  %vm3513 = vweird.f32 %v3507
  %vm3514 = vweird.f32 %v3508
  %vm3515 = vmor %vm3513, %vm3514
  %v3516 = vsel %vm3515, %v3508, %v3512
  %v3517 = vand.u32 2147483647, %v3507
  %vm3518 = vcmp.eq.f32.partialorder %v3517, 8.507059e+37
  %v3519 = vand.u32 %v3507, 2147483648
  %v3520 = vor.u32 1.1754944e-38, %v3519
  %v3521 = vsel %vm3518, %v3520, %v3516
  %v3522 = vmul.f32 1.0, %v3521
  %v3523 = vld [vmem:[%s335] sm:$0xff]
  %s3524 = scalar_lea.vmem %s8, 64
  %v3525 = vld [vmem:[%s3524] sm:$0xff]
  %v3526 = vld [vmem:[%s3524 + $0x8] sm:$0xff]
  %v3527 = vld [vmem:[%s3524 + $0x10] sm:$0xff]
  %v3528 = vld [vmem:[%s3524 + $0x18] sm:$0xff]
  %3529 = vmatpush.msra.mxu0 0.0
  %3530 = vmatpush.msra.mxu0 0.0
  %3531 = vmatpush.msra.mxu0 0.0
  %3532 = vmatpush.msra.mxu0 0.0
  %3533 = vmatpush.msra.mxu0 0.0
  %3534 = vmatpush.msra.mxu0 0.0
  %3535 = vmatpush.msra.mxu0 0.0
  %3536 = vmatpush.msra.mxu0 0.0
  %3537 = vmatpush.msra.mxu0 0.0
  %3538 = vmatpush.msra.mxu0 0.0
  %3539 = vmatpush.msra.mxu0 0.0
  %3540 = vmatpush.msra.mxu0 0.0
  %3541 = vmatpush.msra.mxu0 %v3528
  %3542 = vmatpush.msra.mxu0 %v3527
  %3543 = vmatpush.msra.mxu0 %v3526
  %3544 = vmatpush.msra.mxu0 %v3525
  %3545 = vmatmul.f32.gmra.mxu0 %v244
  %v3546 = vpop.f32.mrf.mxu0
  %v3547 = vadd.f32 0.0, %v3546
  %3548 = vdwg.mxu0
  %v3549 = vadd.f32 %v3523, %v3547
  %v3550 = vtanh.pop %v3549
  %v3551 = vld [vmem:[%s365] sm:$0xff]
  %s3552 = scalar_lea.vmem %s8, 96
  %v3553 = vld [vmem:[%s3552] sm:$0xff]
  %v3554 = vld [vmem:[%s3552 + $0x8] sm:$0xff]
  %v3555 = vld [vmem:[%s3552 + $0x10] sm:$0xff]
  %v3556 = vld [vmem:[%s3552 + $0x18] sm:$0xff]
  %3557 = vmatpush.msra.mxu0 0.0
  %3558 = vmatpush.msra.mxu0 0.0
  %3559 = vmatpush.msra.mxu0 0.0
  %3560 = vmatpush.msra.mxu0 0.0
  %3561 = vmatpush.msra.mxu0 0.0
  %3562 = vmatpush.msra.mxu0 0.0
  %3563 = vmatpush.msra.mxu0 0.0
  %3564 = vmatpush.msra.mxu0 0.0
  %3565 = vmatpush.msra.mxu0 0.0
  %3566 = vmatpush.msra.mxu0 0.0
  %3567 = vmatpush.msra.mxu0 0.0
  %3568 = vmatpush.msra.mxu0 0.0
  %3569 = vmatpush.msra.mxu0 %v3556
  %3570 = vmatpush.msra.mxu0 %v3555
  %3571 = vmatpush.msra.mxu0 %v3554
  %3572 = vmatpush.msra.mxu0 %v3553
  %3573 = vmatmul.f32.gmra.mxu0 %v244
  %v3574 = vpop.f32.mrf.mxu0
  %v3575 = vadd.f32 0.0, %v3574
  %3576 = vdwg.mxu0
  %v3577 = vadd.f32 %v3551, %v3575
  %v3578 = vxor.u32 %v3577, 2147483648
  %v3579 = vmul.f32 %v3578, 1.442695
  %v3580 = vpow.pop %v3579
  %v3581 = vadd.f32 %v3580, 1.0
  %v3582 = vrcp.pop %v3581
  %v3583 = vmul.f32 %v3581, %v3582
  %v3584 = vsub.f32 1.0, %v3583
  %v3585 = vmul.f32 %v3582, %v3584
  %v3586 = vadd.f32 %v3582, %v3585
  %vm3587 = vweird.f32 %v3581
  %vm3588 = vweird.f32 %v3582
  %vm3589 = vmor %vm3587, %vm3588
  %v3590 = vsel %vm3589, %v3582, %v3586
  %v3591 = vand.u32 2147483647, %v3581
  %vm3592 = vcmp.eq.f32.partialorder %v3591, 8.507059e+37
  %v3593 = vand.u32 %v3581, 2147483648
  %v3594 = vor.u32 1.1754944e-38, %v3593
  %v3595 = vsel %vm3592, %v3594, %v3590
  %v3596 = vmul.f32 1.0, %v3595
  %v3597 = vmul.f32 %v3522, 0.0
  %v3598 = vmul.f32 %v3476, %v3550
  %v3599 = vadd.f32 %v3597, %v3598
  %v3600 = vtanh.pop %v3599
  %v3601 = vmul.f32 %v3596, %v3600
  %3602 = vst.msk [vmem:[#allocation3] sm:$0xff] %vm122, %v3601
  %v3603 = vld [vmem:[%s418] sm:$0xff]
  %v3604 = vld [vmem:[%s8] sm:$0xff]
  %v3605 = vld [vmem:[%s8 + $0x8] sm:$0xff]
  %v3606 = vld [vmem:[%s8 + $0x10] sm:$0xff]
  %v3607 = vld [vmem:[%s8 + $0x18] sm:$0xff]
  %v3609 = vsel %vm122, %v3601, 0
  %3611 = vmatpush.msra.mxu0 0.0
  %3612 = vmatpush.msra.mxu0 0.0
  %3613 = vmatpush.msra.mxu0 0.0
  %3614 = vmatpush.msra.mxu0 0.0
  %3615 = vmatpush.msra.mxu0 0.0
  %3616 = vmatpush.msra.mxu0 0.0
  %3617 = vmatpush.msra.mxu0 0.0
  %3618 = vmatpush.msra.mxu0 0.0
  %3619 = vmatpush.msra.mxu0 0.0
  %3620 = vmatpush.msra.mxu0 0.0
  %3621 = vmatpush.msra.mxu0 0.0
  %3622 = vmatpush.msra.mxu0 0.0
  %3623 = vmatpush.msra.mxu0 %v3607
  %3624 = vmatpush.msra.mxu0 %v3606
  %3625 = vmatpush.msra.mxu0 %v3605
  %3626 = vmatpush.msra.mxu0 %v3604
  %3627 = vmatmul.f32.gmra.mxu0 %v3609
  %v3628 = vpop.f32.mrf.mxu0
  %v3629 = vadd.f32 0.0, %v3628
  %3630 = vdwg.mxu0
  %v3631 = vadd.f32 %v3603, %v3629
  %v3632 = vxor.u32 %v3631, 2147483648
  %v3633 = vmul.f32 %v3632, 1.442695
  %v3634 = vpow.pop %v3633
  %v3635 = vadd.f32 %v3634, 1.0
  %v3636 = vrcp.pop %v3635
  %v3637 = vmul.f32 %v3635, %v3636
  %v3638 = vsub.f32 1.0, %v3637
  %v3639 = vmul.f32 %v3636, %v3638
  %v3640 = vadd.f32 %v3636, %v3639
  %vm3641 = vweird.f32 %v3635
  %vm3642 = vweird.f32 %v3636
  %vm3643 = vmor %vm3641, %vm3642
  %v3644 = vsel %vm3643, %v3636, %v3640
  %v3645 = vand.u32 2147483647, %v3635
  %vm3646 = vcmp.eq.f32.partialorder %v3645, 8.507059e+37
  %v3647 = vand.u32 %v3635, 2147483648
  %v3648 = vor.u32 1.1754944e-38, %v3647
  %v3649 = vsel %vm3646, %v3648, %v3644
  %v3650 = vmul.f32 1.0, %v3649
  %v3651 = vld [vmem:[%s468] sm:$0xff]
  %v3652 = vld [vmem:[%s3478] sm:$0xff]
  %v3653 = vld [vmem:[%s3478 + $0x8] sm:$0xff]
  %v3654 = vld [vmem:[%s3478 + $0x10] sm:$0xff]
  %v3655 = vld [vmem:[%s3478 + $0x18] sm:$0xff]
  %3656 = vmatpush.msra.mxu0 0.0
  %3657 = vmatpush.msra.mxu0 0.0
  %3658 = vmatpush.msra.mxu0 0.0
  %3659 = vmatpush.msra.mxu0 0.0
  %3660 = vmatpush.msra.mxu0 0.0
  %3661 = vmatpush.msra.mxu0 0.0
  %3662 = vmatpush.msra.mxu0 0.0
  %3663 = vmatpush.msra.mxu0 0.0
  %3664 = vmatpush.msra.mxu0 0.0
  %3665 = vmatpush.msra.mxu0 0.0
  %3666 = vmatpush.msra.mxu0 0.0
  %3667 = vmatpush.msra.mxu0 0.0
  %3668 = vmatpush.msra.mxu0 %v3655
  %3669 = vmatpush.msra.mxu0 %v3654
  %3670 = vmatpush.msra.mxu0 %v3653
  %3671 = vmatpush.msra.mxu0 %v3652
  %3672 = vmatmul.f32.gmra.mxu0 %v3609
  %v3673 = vpop.f32.mrf.mxu0
  %v3674 = vadd.f32 0.0, %v3673
  %3675 = vdwg.mxu0
  %v3676 = vadd.f32 %v3651, %v3674
  %v3677 = vxor.u32 %v3676, 2147483648
  %v3678 = vmul.f32 %v3677, 1.442695
  %v3679 = vpow.pop %v3678
  %v3680 = vadd.f32 %v3679, 1.0
  %v3681 = vrcp.pop %v3680
  %v3682 = vmul.f32 %v3680, %v3681
  %v3683 = vsub.f32 1.0, %v3682
  %v3684 = vmul.f32 %v3681, %v3683
  %v3685 = vadd.f32 %v3681, %v3684
  %vm3686 = vweird.f32 %v3680
  %vm3687 = vweird.f32 %v3681
  %vm3688 = vmor %vm3686, %vm3687
  %v3689 = vsel %vm3688, %v3681, %v3685
  %v3690 = vand.u32 2147483647, %v3680
  %vm3691 = vcmp.eq.f32.partialorder %v3690, 8.507059e+37
  %v3692 = vand.u32 %v3680, 2147483648
  %v3693 = vor.u32 1.1754944e-38, %v3692
  %v3694 = vsel %vm3691, %v3693, %v3689
  %v3695 = vmul.f32 1.0, %v3694
  %v3696 = vld [vmem:[%s515] sm:$0xff]
  %v3697 = vld [vmem:[%s3524] sm:$0xff]
  %v3698 = vld [vmem:[%s3524 + $0x8] sm:$0xff]
  %v3699 = vld [vmem:[%s3524 + $0x10] sm:$0xff]
  %v3700 = vld [vmem:[%s3524 + $0x18] sm:$0xff]
  %3701 = vmatpush.msra.mxu0 0.0
  %3702 = vmatpush.msra.mxu0 0.0
  %3703 = vmatpush.msra.mxu0 0.0
  %3704 = vmatpush.msra.mxu0 0.0
  %3705 = vmatpush.msra.mxu0 0.0
  %3706 = vmatpush.msra.mxu0 0.0
  %3707 = vmatpush.msra.mxu0 0.0
  %3708 = vmatpush.msra.mxu0 0.0
  %3709 = vmatpush.msra.mxu0 0.0
  %3710 = vmatpush.msra.mxu0 0.0
  %3711 = vmatpush.msra.mxu0 0.0
  %3712 = vmatpush.msra.mxu0 0.0
  %3713 = vmatpush.msra.mxu0 %v3700
  %3714 = vmatpush.msra.mxu0 %v3699
  %3715 = vmatpush.msra.mxu0 %v3698
  %3716 = vmatpush.msra.mxu0 %v3697
  %3717 = vmatmul.f32.gmra.mxu0 %v3609
  %v3718 = vpop.f32.mrf.mxu0
  %v3719 = vadd.f32 0.0, %v3718
  %3720 = vdwg.mxu0
  %v3721 = vadd.f32 %v3696, %v3719
  %v3722 = vtanh.pop %v3721
  %v3723 = vld [vmem:[%s544] sm:$0xff]
  %v3724 = vld [vmem:[%s3552] sm:$0xff]
  %v3725 = vld [vmem:[%s3552 + $0x8] sm:$0xff]
  %v3726 = vld [vmem:[%s3552 + $0x10] sm:$0xff]
  %v3727 = vld [vmem:[%s3552 + $0x18] sm:$0xff]
  %3728 = vmatpush.msra.mxu0 0.0
  %3729 = vmatpush.msra.mxu0 0.0
  %3730 = vmatpush.msra.mxu0 0.0
  %3731 = vmatpush.msra.mxu0 0.0
  %3732 = vmatpush.msra.mxu0 0.0
  %3733 = vmatpush.msra.mxu0 0.0
  %3734 = vmatpush.msra.mxu0 0.0
  %3735 = vmatpush.msra.mxu0 0.0
  %3736 = vmatpush.msra.mxu0 0.0
  %3737 = vmatpush.msra.mxu0 0.0
  %3738 = vmatpush.msra.mxu0 0.0
  %3739 = vmatpush.msra.mxu0 0.0
  %3740 = vmatpush.msra.mxu0 %v3727
  %3741 = vmatpush.msra.mxu0 %v3726
  %3742 = vmatpush.msra.mxu0 %v3725
  %3743 = vmatpush.msra.mxu0 %v3724
  %3744 = vmatmul.f32.gmra.mxu0 %v3609
  %v3745 = vpop.f32.mrf.mxu0
  %v3746 = vadd.f32 0.0, %v3745
  %3747 = vdwg.mxu0
  %v3748 = vadd.f32 %v3723, %v3746
  %v3749 = vxor.u32 %v3748, 2147483648
  %v3750 = vmul.f32 %v3749, 1.442695
  %v3751 = vpow.pop %v3750
  %v3752 = vadd.f32 %v3751, 1.0
  %v3753 = vrcp.pop %v3752
  %v3754 = vmul.f32 %v3752, %v3753
  %v3755 = vsub.f32 1.0, %v3754
  %v3756 = vmul.f32 %v3753, %v3755
  %v3757 = vadd.f32 %v3753, %v3756
  %vm3758 = vweird.f32 %v3752
  %vm3759 = vweird.f32 %v3753
  %vm3760 = vmor %vm3758, %vm3759
  %v3761 = vsel %vm3760, %v3753, %v3757
  %v3762 = vand.u32 2147483647, %v3752
  %vm3763 = vcmp.eq.f32.partialorder %v3762, 8.507059e+37
  %v3764 = vand.u32 %v3752, 2147483648
  %v3765 = vor.u32 1.1754944e-38, %v3764
  %v3766 = vsel %vm3763, %v3765, %v3761
  %v3767 = vmul.f32 1.0, %v3766
  %v3768 = vmul.f32 %v3695, %v3599
  %v3769 = vmul.f32 %v3650, %v3722
  %v3770 = vadd.f32 %v3768, %v3769
  %v3771 = vtanh.pop %v3770
  %v3772 = vmul.f32 %v3767, %v3771
  %3773 = vst.msk [vmem:[%s595] sm:$0xff] %vm122, %v3772
  %v3774 = vld [vmem:[%s597] sm:$0xff]
  %v3775 = vld [vmem:[%s8] sm:$0xff]
  %v3776 = vld [vmem:[%s8 + $0x8] sm:$0xff]
  %v3777 = vld [vmem:[%s8 + $0x10] sm:$0xff]
  %v3778 = vld [vmem:[%s8 + $0x18] sm:$0xff]
  %v3780 = vsel %vm122, %v3772, 0
  %3782 = vmatpush.msra.mxu0 0.0
  %3783 = vmatpush.msra.mxu0 0.0
  %3784 = vmatpush.msra.mxu0 0.0
  %3785 = vmatpush.msra.mxu0 0.0
  %3786 = vmatpush.msra.mxu0 0.0
  %3787 = vmatpush.msra.mxu0 0.0
  %3788 = vmatpush.msra.mxu0 0.0
  %3789 = vmatpush.msra.mxu0 0.0
  %3790 = vmatpush.msra.mxu0 0.0
  %3791 = vmatpush.msra.mxu0 0.0
  %3792 = vmatpush.msra.mxu0 0.0
  %3793 = vmatpush.msra.mxu0 0.0
  %3794 = vmatpush.msra.mxu0 %v3778
  %3795 = vmatpush.msra.mxu0 %v3777
  %3796 = vmatpush.msra.mxu0 %v3776
  %3797 = vmatpush.msra.mxu0 %v3775
  %3798 = vmatmul.f32.gmra.mxu0 %v3780
  %v3799 = vpop.f32.mrf.mxu0
  %v3800 = vadd.f32 0.0, %v3799
  %3801 = vdwg.mxu0
  %v3802 = vadd.f32 %v3774, %v3800
  %v3803 = vxor.u32 %v3802, 2147483648
  %v3804 = vmul.f32 %v3803, 1.442695
  %v3805 = vpow.pop %v3804
  %v3806 = vadd.f32 %v3805, 1.0
  %v3807 = vrcp.pop %v3806
  %v3808 = vmul.f32 %v3806, %v3807
  %v3809 = vsub.f32 1.0, %v3808
  %v3810 = vmul.f32 %v3807, %v3809
  %v3811 = vadd.f32 %v3807, %v3810
  %vm3812 = vweird.f32 %v3806
  %vm3813 = vweird.f32 %v3807
  %vm3814 = vmor %vm3812, %vm3813
  %v3815 = vsel %vm3814, %v3807, %v3811
  %v3816 = vand.u32 2147483647, %v3806
  %vm3817 = vcmp.eq.f32.partialorder %v3816, 8.507059e+37
  %v3818 = vand.u32 %v3806, 2147483648
  %v3819 = vor.u32 1.1754944e-38, %v3818
  %v3820 = vsel %vm3817, %v3819, %v3815
  %v3821 = vmul.f32 1.0, %v3820
  %v3822 = vld [vmem:[%s647] sm:$0xff]
  %v3823 = vld [vmem:[%s3478] sm:$0xff]
  %v3824 = vld [vmem:[%s3478 + $0x8] sm:$0xff]
  %v3825 = vld [vmem:[%s3478 + $0x10] sm:$0xff]
  %v3826 = vld [vmem:[%s3478 + $0x18] sm:$0xff]
  %3827 = vmatpush.msra.mxu0 0.0
  %3828 = vmatpush.msra.mxu0 0.0
  %3829 = vmatpush.msra.mxu0 0.0
  %3830 = vmatpush.msra.mxu0 0.0
  %3831 = vmatpush.msra.mxu0 0.0
  %3832 = vmatpush.msra.mxu0 0.0
  %3833 = vmatpush.msra.mxu0 0.0
  %3834 = vmatpush.msra.mxu0 0.0
  %3835 = vmatpush.msra.mxu0 0.0
  %3836 = vmatpush.msra.mxu0 0.0
  %3837 = vmatpush.msra.mxu0 0.0
  %3838 = vmatpush.msra.mxu0 0.0
  %3839 = vmatpush.msra.mxu0 %v3826
  %3840 = vmatpush.msra.mxu0 %v3825
  %3841 = vmatpush.msra.mxu0 %v3824
  %3842 = vmatpush.msra.mxu0 %v3823
  %3843 = vmatmul.f32.gmra.mxu0 %v3780
  %v3844 = vpop.f32.mrf.mxu0
  %v3845 = vadd.f32 0.0, %v3844
  %3846 = vdwg.mxu0
  %v3847 = vadd.f32 %v3822, %v3845
  %v3848 = vxor.u32 %v3847, 2147483648
  %v3849 = vmul.f32 %v3848, 1.442695
  %v3850 = vpow.pop %v3849
  %v3851 = vadd.f32 %v3850, 1.0
  %v3852 = vrcp.pop %v3851
  %v3853 = vmul.f32 %v3851, %v3852
  %v3854 = vsub.f32 1.0, %v3853
  %v3855 = vmul.f32 %v3852, %v3854
  %v3856 = vadd.f32 %v3852, %v3855
  %vm3857 = vweird.f32 %v3851
  %vm3858 = vweird.f32 %v3852
  %vm3859 = vmor %vm3857, %vm3858
  %v3860 = vsel %vm3859, %v3852, %v3856
  %v3861 = vand.u32 2147483647, %v3851
  %vm3862 = vcmp.eq.f32.partialorder %v3861, 8.507059e+37
  %v3863 = vand.u32 %v3851, 2147483648
  %v3864 = vor.u32 1.1754944e-38, %v3863
  %v3865 = vsel %vm3862, %v3864, %v3860
  %v3866 = vmul.f32 1.0, %v3865
  %v3867 = vld [vmem:[%s694] sm:$0xff]
  %v3868 = vld [vmem:[%s3524] sm:$0xff]
  %v3869 = vld [vmem:[%s3524 + $0x8] sm:$0xff]
  %v3870 = vld [vmem:[%s3524 + $0x10] sm:$0xff]
  %v3871 = vld [vmem:[%s3524 + $0x18] sm:$0xff]
  %3872 = vmatpush.msra.mxu0 0.0
  %3873 = vmatpush.msra.mxu0 0.0
  %3874 = vmatpush.msra.mxu0 0.0
  %3875 = vmatpush.msra.mxu0 0.0
  %3876 = vmatpush.msra.mxu0 0.0
  %3877 = vmatpush.msra.mxu0 0.0
  %3878 = vmatpush.msra.mxu0 0.0
  %3879 = vmatpush.msra.mxu0 0.0
  %3880 = vmatpush.msra.mxu0 0.0
  %3881 = vmatpush.msra.mxu0 0.0
  %3882 = vmatpush.msra.mxu0 0.0
  %3883 = vmatpush.msra.mxu0 0.0
  %3884 = vmatpush.msra.mxu0 %v3871
  %3885 = vmatpush.msra.mxu0 %v3870
  %3886 = vmatpush.msra.mxu0 %v3869
  %3887 = vmatpush.msra.mxu0 %v3868
  %3888 = vmatmul.f32.gmra.mxu0 %v3780
  %v3889 = vpop.f32.mrf.mxu0
  %v3890 = vadd.f32 0.0, %v3889
  %3891 = vdwg.mxu0
  %v3892 = vadd.f32 %v3867, %v3890
  %v3893 = vtanh.pop %v3892
  %v3894 = vld [vmem:[%s723] sm:$0xff]
  %v3895 = vld [vmem:[%s3552] sm:$0xff]
  %v3896 = vld [vmem:[%s3552 + $0x8] sm:$0xff]
  %v3897 = vld [vmem:[%s3552 + $0x10] sm:$0xff]
  %v3898 = vld [vmem:[%s3552 + $0x18] sm:$0xff]
  %3899 = vmatpush.msra.mxu0 0.0
  %3900 = vmatpush.msra.mxu0 0.0
  %3901 = vmatpush.msra.mxu0 0.0
  %3902 = vmatpush.msra.mxu0 0.0
  %3903 = vmatpush.msra.mxu0 0.0
  %3904 = vmatpush.msra.mxu0 0.0
  %3905 = vmatpush.msra.mxu0 0.0
  %3906 = vmatpush.msra.mxu0 0.0
  %3907 = vmatpush.msra.mxu0 0.0
  %3908 = vmatpush.msra.mxu0 0.0
  %3909 = vmatpush.msra.mxu0 0.0
  %3910 = vmatpush.msra.mxu0 0.0
  %3911 = vmatpush.msra.mxu0 %v3898
  %3912 = vmatpush.msra.mxu0 %v3897
  %3913 = vmatpush.msra.mxu0 %v3896
  %3914 = vmatpush.msra.mxu0 %v3895
  %3915 = vmatmul.f32.gmra.mxu0 %v3780
  %v3916 = vpop.f32.mrf.mxu0
  %v3917 = vadd.f32 0.0, %v3916
  %3918 = vdwg.mxu0
  %v3919 = vadd.f32 %v3894, %v3917
  %v3920 = vxor.u32 %v3919, 2147483648
  %v3921 = vmul.f32 %v3920, 1.442695
  %v3922 = vpow.pop %v3921
  %v3923 = vadd.f32 %v3922, 1.0
  %v3924 = vrcp.pop %v3923
  %v3925 = vmul.f32 %v3923, %v3924
  %v3926 = vsub.f32 1.0, %v3925
  %v3927 = vmul.f32 %v3924, %v3926
  %v3928 = vadd.f32 %v3924, %v3927
  %vm3929 = vweird.f32 %v3923
  %vm3930 = vweird.f32 %v3924
  %vm3931 = vmor %vm3929, %vm3930
  %v3932 = vsel %vm3931, %v3924, %v3928
  %v3933 = vand.u32 2147483647, %v3923
  %vm3934 = vcmp.eq.f32.partialorder %v3933, 8.507059e+37
  %v3935 = vand.u32 %v3923, 2147483648
  %v3936 = vor.u32 1.1754944e-38, %v3935
  %v3937 = vsel %vm3934, %v3936, %v3932
  %v3938 = vmul.f32 1.0, %v3937
  %v3939 = vmul.f32 %v3866, %v3770
  %v3940 = vmul.f32 %v3821, %v3893
  %v3941 = vadd.f32 %v3939, %v3940
  %v3942 = vtanh.pop %v3941
  %v3943 = vmul.f32 %v3938, %v3942
  %3944 = vst.msk [vmem:[%s774] sm:$0xff] %vm122, %v3943
  %v3945 = vld [vmem:[%s776] sm:$0xff]
  %v3946 = vld [vmem:[%s8] sm:$0xff]
  %v3947 = vld [vmem:[%s8 + $0x8] sm:$0xff]
  %v3948 = vld [vmem:[%s8 + $0x10] sm:$0xff]
  %v3949 = vld [vmem:[%s8 + $0x18] sm:$0xff]
  %v3951 = vsel %vm122, %v3943, 0
  %3953 = vmatpush.msra.mxu0 0.0
  %3954 = vmatpush.msra.mxu0 0.0
  %3955 = vmatpush.msra.mxu0 0.0
  %3956 = vmatpush.msra.mxu0 0.0
  %3957 = vmatpush.msra.mxu0 0.0
  %3958 = vmatpush.msra.mxu0 0.0
  %3959 = vmatpush.msra.mxu0 0.0
  %3960 = vmatpush.msra.mxu0 0.0
  %3961 = vmatpush.msra.mxu0 0.0
  %3962 = vmatpush.msra.mxu0 0.0
  %3963 = vmatpush.msra.mxu0 0.0
  %3964 = vmatpush.msra.mxu0 0.0
  %3965 = vmatpush.msra.mxu0 %v3949
  %3966 = vmatpush.msra.mxu0 %v3948
  %3967 = vmatpush.msra.mxu0 %v3947
  %3968 = vmatpush.msra.mxu0 %v3946
  %3969 = vmatmul.f32.gmra.mxu0 %v3951
  %v3970 = vpop.f32.mrf.mxu0
  %v3971 = vadd.f32 0.0, %v3970
  %3972 = vdwg.mxu0
  %v3973 = vadd.f32 %v3945, %v3971
  %v3974 = vxor.u32 %v3973, 2147483648
  %v3975 = vmul.f32 %v3974, 1.442695
  %v3976 = vpow.pop %v3975
  %v3977 = vadd.f32 %v3976, 1.0
  %v3978 = vrcp.pop %v3977
  %v3979 = vmul.f32 %v3977, %v3978
  %v3980 = vsub.f32 1.0, %v3979
  %v3981 = vmul.f32 %v3978, %v3980
  %v3982 = vadd.f32 %v3978, %v3981
  %vm3983 = vweird.f32 %v3977
  %vm3984 = vweird.f32 %v3978
  %vm3985 = vmor %vm3983, %vm3984
  %v3986 = vsel %vm3985, %v3978, %v3982
  %v3987 = vand.u32 2147483647, %v3977
  %vm3988 = vcmp.eq.f32.partialorder %v3987, 8.507059e+37
  %v3989 = vand.u32 %v3977, 2147483648
  %v3990 = vor.u32 1.1754944e-38, %v3989
  %v3991 = vsel %vm3988, %v3990, %v3986
  %v3992 = vmul.f32 1.0, %v3991
  %v3993 = vld [vmem:[%s826] sm:$0xff]
  %v3994 = vld [vmem:[%s3478] sm:$0xff]
  %v3995 = vld [vmem:[%s3478 + $0x8] sm:$0xff]
  %v3996 = vld [vmem:[%s3478 + $0x10] sm:$0xff]
  %v3997 = vld [vmem:[%s3478 + $0x18] sm:$0xff]
  %3998 = vmatpush.msra.mxu0 0.0
  %3999 = vmatpush.msra.mxu0 0.0
  %4000 = vmatpush.msra.mxu0 0.0
  %4001 = vmatpush.msra.mxu0 0.0
  %4002 = vmatpush.msra.mxu0 0.0
  %4003 = vmatpush.msra.mxu0 0.0
  %4004 = vmatpush.msra.mxu0 0.0
  %4005 = vmatpush.msra.mxu0 0.0
  %4006 = vmatpush.msra.mxu0 0.0
  %4007 = vmatpush.msra.mxu0 0.0
  %4008 = vmatpush.msra.mxu0 0.0
  %4009 = vmatpush.msra.mxu0 0.0
  %4010 = vmatpush.msra.mxu0 %v3997
  %4011 = vmatpush.msra.mxu0 %v3996
  %4012 = vmatpush.msra.mxu0 %v3995
  %4013 = vmatpush.msra.mxu0 %v3994
  %4014 = vmatmul.f32.gmra.mxu0 %v3951
  %v4015 = vpop.f32.mrf.mxu0
  %v4016 = vadd.f32 0.0, %v4015
  %4017 = vdwg.mxu0
  %v4018 = vadd.f32 %v3993, %v4016
  %v4019 = vxor.u32 %v4018, 2147483648
  %v4020 = vmul.f32 %v4019, 1.442695
  %v4021 = vpow.pop %v4020
  %v4022 = vadd.f32 %v4021, 1.0
  %v4023 = vrcp.pop %v4022
  %v4024 = vmul.f32 %v4022, %v4023
  %v4025 = vsub.f32 1.0, %v4024
  %v4026 = vmul.f32 %v4023, %v4025
  %v4027 = vadd.f32 %v4023, %v4026
  %vm4028 = vweird.f32 %v4022
  %vm4029 = vweird.f32 %v4023
  %vm4030 = vmor %vm4028, %vm4029
  %v4031 = vsel %vm4030, %v4023, %v4027
  %v4032 = vand.u32 2147483647, %v4022
  %vm4033 = vcmp.eq.f32.partialorder %v4032, 8.507059e+37
  %v4034 = vand.u32 %v4022, 2147483648
  %v4035 = vor.u32 1.1754944e-38, %v4034
  %v4036 = vsel %vm4033, %v4035, %v4031
  %v4037 = vmul.f32 1.0, %v4036
  %v4038 = vld [vmem:[%s873] sm:$0xff]
  %v4039 = vld [vmem:[%s3524] sm:$0xff]
  %v4040 = vld [vmem:[%s3524 + $0x8] sm:$0xff]
  %v4041 = vld [vmem:[%s3524 + $0x10] sm:$0xff]
  %v4042 = vld [vmem:[%s3524 + $0x18] sm:$0xff]
  %4043 = vmatpush.msra.mxu0 0.0
  %4044 = vmatpush.msra.mxu0 0.0
  %4045 = vmatpush.msra.mxu0 0.0
  %4046 = vmatpush.msra.mxu0 0.0
  %4047 = vmatpush.msra.mxu0 0.0
  %4048 = vmatpush.msra.mxu0 0.0
  %4049 = vmatpush.msra.mxu0 0.0
  %4050 = vmatpush.msra.mxu0 0.0
  %4051 = vmatpush.msra.mxu0 0.0
  %4052 = vmatpush.msra.mxu0 0.0
  %4053 = vmatpush.msra.mxu0 0.0
  %4054 = vmatpush.msra.mxu0 0.0
  %4055 = vmatpush.msra.mxu0 %v4042
  %4056 = vmatpush.msra.mxu0 %v4041
  %4057 = vmatpush.msra.mxu0 %v4040
  %4058 = vmatpush.msra.mxu0 %v4039
  %4059 = vmatmul.f32.gmra.mxu0 %v3951
  %v4060 = vpop.f32.mrf.mxu0
  %v4061 = vadd.f32 0.0, %v4060
  %4062 = vdwg.mxu0
  %v4063 = vadd.f32 %v4038, %v4061
  %v4064 = vtanh.pop %v4063
  %v4065 = vld [vmem:[%s902] sm:$0xff]
  %v4066 = vld [vmem:[%s3552] sm:$0xff]
  %v4067 = vld [vmem:[%s3552 + $0x8] sm:$0xff]
  %v4068 = vld [vmem:[%s3552 + $0x10] sm:$0xff]
  %v4069 = vld [vmem:[%s3552 + $0x18] sm:$0xff]
  %4070 = vmatpush.msra.mxu0 0.0
  %4071 = vmatpush.msra.mxu0 0.0
  %4072 = vmatpush.msra.mxu0 0.0
  %4073 = vmatpush.msra.mxu0 0.0
  %4074 = vmatpush.msra.mxu0 0.0
  %4075 = vmatpush.msra.mxu0 0.0
  %4076 = vmatpush.msra.mxu0 0.0
  %4077 = vmatpush.msra.mxu0 0.0
  %4078 = vmatpush.msra.mxu0 0.0
  %4079 = vmatpush.msra.mxu0 0.0
  %4080 = vmatpush.msra.mxu0 0.0
  %4081 = vmatpush.msra.mxu0 0.0
  %4082 = vmatpush.msra.mxu0 %v4069
  %4083 = vmatpush.msra.mxu0 %v4068
  %4084 = vmatpush.msra.mxu0 %v4067
  %4085 = vmatpush.msra.mxu0 %v4066
  %4086 = vmatmul.f32.gmra.mxu0 %v3951
  %v4087 = vpop.f32.mrf.mxu0
  %v4088 = vadd.f32 0.0, %v4087
  %4089 = vdwg.mxu0
  %v4090 = vadd.f32 %v4065, %v4088
  %v4091 = vxor.u32 %v4090, 2147483648
  %v4092 = vmul.f32 %v4091, 1.442695
  %v4093 = vpow.pop %v4092
  %v4094 = vadd.f32 %v4093, 1.0
  %v4095 = vrcp.pop %v4094
  %v4096 = vmul.f32 %v4094, %v4095
  %v4097 = vsub.f32 1.0, %v4096
  %v4098 = vmul.f32 %v4095, %v4097
  %v4099 = vadd.f32 %v4095, %v4098
  %vm4100 = vweird.f32 %v4094
  %vm4101 = vweird.f32 %v4095
  %vm4102 = vmor %vm4100, %vm4101
  %v4103 = vsel %vm4102, %v4095, %v4099
  %v4104 = vand.u32 2147483647, %v4094
  %vm4105 = vcmp.eq.f32.partialorder %v4104, 8.507059e+37
  %v4106 = vand.u32 %v4094, 2147483648
  %v4107 = vor.u32 1.1754944e-38, %v4106
  %v4108 = vsel %vm4105, %v4107, %v4103
  %v4109 = vmul.f32 1.0, %v4108
  %v4110 = vmul.f32 %v4037, %v3941
  %v4111 = vmul.f32 %v3992, %v4064
  %v4112 = vadd.f32 %v4110, %v4111
  %v4113 = vtanh.pop %v4112
  %v4114 = vmul.f32 %v4109, %v4113
  %4115 = vst.msk [vmem:[%s953] sm:$0xff] %vm122, %v4114
  %v4116 = vld [vmem:[%s955] sm:$0xff]
  %v4117 = vld [vmem:[%s8] sm:$0xff]
  %v4118 = vld [vmem:[%s8 + $0x8] sm:$0xff]
  %v4119 = vld [vmem:[%s8 + $0x10] sm:$0xff]
  %v4120 = vld [vmem:[%s8 + $0x18] sm:$0xff]
  %v4122 = vsel %vm122, %v4114, 0
  %4124 = vmatpush.msra.mxu0 0.0
  %4125 = vmatpush.msra.mxu0 0.0
  %4126 = vmatpush.msra.mxu0 0.0
  %4127 = vmatpush.msra.mxu0 0.0
  %4128 = vmatpush.msra.mxu0 0.0
  %4129 = vmatpush.msra.mxu0 0.0
  %4130 = vmatpush.msra.mxu0 0.0
  %4131 = vmatpush.msra.mxu0 0.0
  %4132 = vmatpush.msra.mxu0 0.0
  %4133 = vmatpush.msra.mxu0 0.0
  %4134 = vmatpush.msra.mxu0 0.0
  %4135 = vmatpush.msra.mxu0 0.0
  %4136 = vmatpush.msra.mxu0 %v4120
  %4137 = vmatpush.msra.mxu0 %v4119
  %4138 = vmatpush.msra.mxu0 %v4118
  %4139 = vmatpush.msra.mxu0 %v4117
  %4140 = vmatmul.f32.gmra.mxu0 %v4122
  %v4141 = vpop.f32.mrf.mxu0
  %v4142 = vadd.f32 0.0, %v4141
  %4143 = vdwg.mxu0
  %v4144 = vadd.f32 %v4116, %v4142
  %v4145 = vxor.u32 %v4144, 2147483648
  %v4146 = vmul.f32 %v4145, 1.442695
  %v4147 = vpow.pop %v4146
  %v4148 = vadd.f32 %v4147, 1.0
  %v4149 = vrcp.pop %v4148
  %v4150 = vmul.f32 %v4148, %v4149
  %v4151 = vsub.f32 1.0, %v4150
  %v4152 = vmul.f32 %v4149, %v4151
  %v4153 = vadd.f32 %v4149, %v4152
  %vm4154 = vweird.f32 %v4148
  %vm4155 = vweird.f32 %v4149
  %vm4156 = vmor %vm4154, %vm4155
  %v4157 = vsel %vm4156, %v4149, %v4153
  %v4158 = vand.u32 2147483647, %v4148
  %vm4159 = vcmp.eq.f32.partialorder %v4158, 8.507059e+37
  %v4160 = vand.u32 %v4148, 2147483648
  %v4161 = vor.u32 1.1754944e-38, %v4160
  %v4162 = vsel %vm4159, %v4161, %v4157
  %v4163 = vmul.f32 1.0, %v4162
  %v4164 = vld [vmem:[%s1005] sm:$0xff]
  %v4165 = vld [vmem:[%s3478] sm:$0xff]
  %v4166 = vld [vmem:[%s3478 + $0x8] sm:$0xff]
  %v4167 = vld [vmem:[%s3478 + $0x10] sm:$0xff]
  %v4168 = vld [vmem:[%s3478 + $0x18] sm:$0xff]
  %4169 = vmatpush.msra.mxu0 0.0
  %4170 = vmatpush.msra.mxu0 0.0
  %4171 = vmatpush.msra.mxu0 0.0
  %4172 = vmatpush.msra.mxu0 0.0
  %4173 = vmatpush.msra.mxu0 0.0
  %4174 = vmatpush.msra.mxu0 0.0
  %4175 = vmatpush.msra.mxu0 0.0
  %4176 = vmatpush.msra.mxu0 0.0
  %4177 = vmatpush.msra.mxu0 0.0
  %4178 = vmatpush.msra.mxu0 0.0
  %4179 = vmatpush.msra.mxu0 0.0
  %4180 = vmatpush.msra.mxu0 0.0
  %4181 = vmatpush.msra.mxu0 %v4168
  %4182 = vmatpush.msra.mxu0 %v4167
  %4183 = vmatpush.msra.mxu0 %v4166
  %4184 = vmatpush.msra.mxu0 %v4165
  %4185 = vmatmul.f32.gmra.mxu0 %v4122
  %v4186 = vpop.f32.mrf.mxu0
  %v4187 = vadd.f32 0.0, %v4186
  %4188 = vdwg.mxu0
  %v4189 = vadd.f32 %v4164, %v4187
  %v4190 = vxor.u32 %v4189, 2147483648
  %v4191 = vmul.f32 %v4190, 1.442695
  %v4192 = vpow.pop %v4191
  %v4193 = vadd.f32 %v4192, 1.0
  %v4194 = vrcp.pop %v4193
  %v4195 = vmul.f32 %v4193, %v4194
  %v4196 = vsub.f32 1.0, %v4195
  %v4197 = vmul.f32 %v4194, %v4196
  %v4198 = vadd.f32 %v4194, %v4197
  %vm4199 = vweird.f32 %v4193
  %vm4200 = vweird.f32 %v4194
  %vm4201 = vmor %vm4199, %vm4200
  %v4202 = vsel %vm4201, %v4194, %v4198
  %v4203 = vand.u32 2147483647, %v4193
  %vm4204 = vcmp.eq.f32.partialorder %v4203, 8.507059e+37
  %v4205 = vand.u32 %v4193, 2147483648
  %v4206 = vor.u32 1.1754944e-38, %v4205
  %v4207 = vsel %vm4204, %v4206, %v4202
  %v4208 = vmul.f32 1.0, %v4207
  %v4209 = vld [vmem:[%s1052] sm:$0xff]
  %v4210 = vld [vmem:[%s3524] sm:$0xff]
  %v4211 = vld [vmem:[%s3524 + $0x8] sm:$0xff]
  %v4212 = vld [vmem:[%s3524 + $0x10] sm:$0xff]
  %v4213 = vld [vmem:[%s3524 + $0x18] sm:$0xff]
  %4214 = vmatpush.msra.mxu0 0.0
  %4215 = vmatpush.msra.mxu0 0.0
  %4216 = vmatpush.msra.mxu0 0.0
  %4217 = vmatpush.msra.mxu0 0.0
  %4218 = vmatpush.msra.mxu0 0.0
  %4219 = vmatpush.msra.mxu0 0.0
  %4220 = vmatpush.msra.mxu0 0.0
  %4221 = vmatpush.msra.mxu0 0.0
  %4222 = vmatpush.msra.mxu0 0.0
  %4223 = vmatpush.msra.mxu0 0.0
  %4224 = vmatpush.msra.mxu0 0.0
  %4225 = vmatpush.msra.mxu0 0.0
  %4226 = vmatpush.msra.mxu0 %v4213
  %4227 = vmatpush.msra.mxu0 %v4212
  %4228 = vmatpush.msra.mxu0 %v4211
  %4229 = vmatpush.msra.mxu0 %v4210
  %4230 = vmatmul.f32.gmra.mxu0 %v4122
  %v4231 = vpop.f32.mrf.mxu0
  %v4232 = vadd.f32 0.0, %v4231
  %4233 = vdwg.mxu0
  %v4234 = vadd.f32 %v4209, %v4232
  %v4235 = vtanh.pop %v4234
  %v4236 = vld [vmem:[%s1081] sm:$0xff]
  %v4237 = vld [vmem:[%s3552] sm:$0xff]
  %v4238 = vld [vmem:[%s3552 + $0x8] sm:$0xff]
  %v4239 = vld [vmem:[%s3552 + $0x10] sm:$0xff]
  %v4240 = vld [vmem:[%s3552 + $0x18] sm:$0xff]
  %4241 = vmatpush.msra.mxu0 0.0
  %4242 = vmatpush.msra.mxu0 0.0
  %4243 = vmatpush.msra.mxu0 0.0
  %4244 = vmatpush.msra.mxu0 0.0
  %4245 = vmatpush.msra.mxu0 0.0
  %4246 = vmatpush.msra.mxu0 0.0
  %4247 = vmatpush.msra.mxu0 0.0
  %4248 = vmatpush.msra.mxu0 0.0
  %4249 = vmatpush.msra.mxu0 0.0
  %4250 = vmatpush.msra.mxu0 0.0
  %4251 = vmatpush.msra.mxu0 0.0
  %4252 = vmatpush.msra.mxu0 0.0
  %4253 = vmatpush.msra.mxu0 %v4240
  %4254 = vmatpush.msra.mxu0 %v4239
  %4255 = vmatpush.msra.mxu0 %v4238
  %4256 = vmatpush.msra.mxu0 %v4237
  %4257 = vmatmul.f32.gmra.mxu0 %v4122
  %v4258 = vpop.f32.mrf.mxu0
  %v4259 = vadd.f32 0.0, %v4258
  %4260 = vdwg.mxu0
  %v4261 = vadd.f32 %v4236, %v4259
  %v4262 = vxor.u32 %v4261, 2147483648
  %v4263 = vmul.f32 %v4262, 1.442695
  %v4264 = vpow.pop %v4263
  %v4265 = vadd.f32 %v4264, 1.0
  %v4266 = vrcp.pop %v4265
  %v4267 = vmul.f32 %v4265, %v4266
  %v4268 = vsub.f32 1.0, %v4267
  %v4269 = vmul.f32 %v4266, %v4268
  %v4270 = vadd.f32 %v4266, %v4269
  %vm4271 = vweird.f32 %v4265
  %vm4272 = vweird.f32 %v4266
  %vm4273 = vmor %vm4271, %vm4272
  %v4274 = vsel %vm4273, %v4266, %v4270
  %v4275 = vand.u32 2147483647, %v4265
  %vm4276 = vcmp.eq.f32.partialorder %v4275, 8.507059e+37
  %v4277 = vand.u32 %v4265, 2147483648
  %v4278 = vor.u32 1.1754944e-38, %v4277
  %v4279 = vsel %vm4276, %v4278, %v4274
  %v4280 = vmul.f32 1.0, %v4279
  %v4281 = vmul.f32 %v4208, %v4112
  %v4282 = vmul.f32 %v4163, %v4235
  %v4283 = vadd.f32 %v4281, %v4282
  %v4284 = vtanh.pop %v4283
  %v4285 = vmul.f32 %v4280, %v4284
  %4286 = vst.msk [vmem:[%s1132] sm:$0xff] %vm122, %v4285
  %v4287 = vld [vmem:[%s1134] sm:$0xff]
  %v4288 = vld [vmem:[%s8] sm:$0xff]
  %v4289 = vld [vmem:[%s8 + $0x8] sm:$0xff]
  %v4290 = vld [vmem:[%s8 + $0x10] sm:$0xff]
  %v4291 = vld [vmem:[%s8 + $0x18] sm:$0xff]
  %v4293 = vsel %vm122, %v4285, 0
  %4295 = vmatpush.msra.mxu0 0.0
  %4296 = vmatpush.msra.mxu0 0.0
  %4297 = vmatpush.msra.mxu0 0.0
  %4298 = vmatpush.msra.mxu0 0.0
  %4299 = vmatpush.msra.mxu0 0.0
  %4300 = vmatpush.msra.mxu0 0.0
  %4301 = vmatpush.msra.mxu0 0.0
  %4302 = vmatpush.msra.mxu0 0.0
  %4303 = vmatpush.msra.mxu0 0.0
  %4304 = vmatpush.msra.mxu0 0.0
  %4305 = vmatpush.msra.mxu0 0.0
  %4306 = vmatpush.msra.mxu0 0.0
  %4307 = vmatpush.msra.mxu0 %v4291
  %4308 = vmatpush.msra.mxu0 %v4290
  %4309 = vmatpush.msra.mxu0 %v4289
  %4310 = vmatpush.msra.mxu0 %v4288
  %4311 = vmatmul.f32.gmra.mxu0 %v4293
  %v4312 = vpop.f32.mrf.mxu0
  %v4313 = vadd.f32 0.0, %v4312
  %4314 = vdwg.mxu0
  %v4315 = vadd.f32 %v4287, %v4313
  %v4316 = vxor.u32 %v4315, 2147483648
  %v4317 = vmul.f32 %v4316, 1.442695
  %v4318 = vpow.pop %v4317
  %v4319 = vadd.f32 %v4318, 1.0
  %v4320 = vrcp.pop %v4319
  %v4321 = vmul.f32 %v4319, %v4320
  %v4322 = vsub.f32 1.0, %v4321
  %v4323 = vmul.f32 %v4320, %v4322
  %v4324 = vadd.f32 %v4320, %v4323
  %vm4325 = vweird.f32 %v4319
  %vm4326 = vweird.f32 %v4320
  %vm4327 = vmor %vm4325, %vm4326
  %v4328 = vsel %vm4327, %v4320, %v4324
  %v4329 = vand.u32 2147483647, %v4319
  %vm4330 = vcmp.eq.f32.partialorder %v4329, 8.507059e+37
  %v4331 = vand.u32 %v4319, 2147483648
  %v4332 = vor.u32 1.1754944e-38, %v4331
  %v4333 = vsel %vm4330, %v4332, %v4328
  %v4334 = vmul.f32 1.0, %v4333
  %v4335 = vld [vmem:[%s1184] sm:$0xff]
  %v4336 = vld [vmem:[%s3478] sm:$0xff]
  %v4337 = vld [vmem:[%s3478 + $0x8] sm:$0xff]
  %v4338 = vld [vmem:[%s3478 + $0x10] sm:$0xff]
  %v4339 = vld [vmem:[%s3478 + $0x18] sm:$0xff]
  %4340 = vmatpush.msra.mxu0 0.0
  %4341 = vmatpush.msra.mxu0 0.0
  %4342 = vmatpush.msra.mxu0 0.0
  %4343 = vmatpush.msra.mxu0 0.0
  %4344 = vmatpush.msra.mxu0 0.0
  %4345 = vmatpush.msra.mxu0 0.0
  %4346 = vmatpush.msra.mxu0 0.0
  %4347 = vmatpush.msra.mxu0 0.0
  %4348 = vmatpush.msra.mxu0 0.0
  %4349 = vmatpush.msra.mxu0 0.0
  %4350 = vmatpush.msra.mxu0 0.0
  %4351 = vmatpush.msra.mxu0 0.0
  %4352 = vmatpush.msra.mxu0 %v4339
  %4353 = vmatpush.msra.mxu0 %v4338
  %4354 = vmatpush.msra.mxu0 %v4337
  %4355 = vmatpush.msra.mxu0 %v4336
  %4356 = vmatmul.f32.gmra.mxu0 %v4293
  %v4357 = vpop.f32.mrf.mxu0
  %v4358 = vadd.f32 0.0, %v4357
  %4359 = vdwg.mxu0
  %v4360 = vadd.f32 %v4335, %v4358
  %v4361 = vxor.u32 %v4360, 2147483648
  %v4362 = vmul.f32 %v4361, 1.442695
  %v4363 = vpow.pop %v4362
  %v4364 = vadd.f32 %v4363, 1.0
  %v4365 = vrcp.pop %v4364
  %v4366 = vmul.f32 %v4364, %v4365
  %v4367 = vsub.f32 1.0, %v4366
  %v4368 = vmul.f32 %v4365, %v4367
  %v4369 = vadd.f32 %v4365, %v4368
  %vm4370 = vweird.f32 %v4364
  %vm4371 = vweird.f32 %v4365
  %vm4372 = vmor %vm4370, %vm4371
  %v4373 = vsel %vm4372, %v4365, %v4369
  %v4374 = vand.u32 2147483647, %v4364
  %vm4375 = vcmp.eq.f32.partialorder %v4374, 8.507059e+37
  %v4376 = vand.u32 %v4364, 2147483648
  %v4377 = vor.u32 1.1754944e-38, %v4376
  %v4378 = vsel %vm4375, %v4377, %v4373
  %v4379 = vmul.f32 1.0, %v4378
  %v4380 = vld [vmem:[%s1231] sm:$0xff]
  %v4381 = vld [vmem:[%s3524] sm:$0xff]
  %v4382 = vld [vmem:[%s3524 + $0x8] sm:$0xff]
  %v4383 = vld [vmem:[%s3524 + $0x10] sm:$0xff]
  %v4384 = vld [vmem:[%s3524 + $0x18] sm:$0xff]
  %4385 = vmatpush.msra.mxu0 0.0
  %4386 = vmatpush.msra.mxu0 0.0
  %4387 = vmatpush.msra.mxu0 0.0
  %4388 = vmatpush.msra.mxu0 0.0
  %4389 = vmatpush.msra.mxu0 0.0
  %4390 = vmatpush.msra.mxu0 0.0
  %4391 = vmatpush.msra.mxu0 0.0
  %4392 = vmatpush.msra.mxu0 0.0
  %4393 = vmatpush.msra.mxu0 0.0
  %4394 = vmatpush.msra.mxu0 0.0
  %4395 = vmatpush.msra.mxu0 0.0
  %4396 = vmatpush.msra.mxu0 0.0
  %4397 = vmatpush.msra.mxu0 %v4384
  %4398 = vmatpush.msra.mxu0 %v4383
  %4399 = vmatpush.msra.mxu0 %v4382
  %4400 = vmatpush.msra.mxu0 %v4381
  %4401 = vmatmul.f32.gmra.mxu0 %v4293
  %v4402 = vpop.f32.mrf.mxu0
  %v4403 = vadd.f32 0.0, %v4402
  %4404 = vdwg.mxu0
  %v4405 = vadd.f32 %v4380, %v4403
  %v4406 = vtanh.pop %v4405
  %v4407 = vld [vmem:[%s1260] sm:$0xff]
  %v4408 = vld [vmem:[%s3552] sm:$0xff]
  %v4409 = vld [vmem:[%s3552 + $0x8] sm:$0xff]
  %v4410 = vld [vmem:[%s3552 + $0x10] sm:$0xff]
  %v4411 = vld [vmem:[%s3552 + $0x18] sm:$0xff]
  %4412 = vmatpush.msra.mxu0 0.0
  %4413 = vmatpush.msra.mxu0 0.0
  %4414 = vmatpush.msra.mxu0 0.0
  %4415 = vmatpush.msra.mxu0 0.0
  %4416 = vmatpush.msra.mxu0 0.0
  %4417 = vmatpush.msra.mxu0 0.0
  %4418 = vmatpush.msra.mxu0 0.0
  %4419 = vmatpush.msra.mxu0 0.0
  %4420 = vmatpush.msra.mxu0 0.0
  %4421 = vmatpush.msra.mxu0 0.0
  %4422 = vmatpush.msra.mxu0 0.0
  %4423 = vmatpush.msra.mxu0 0.0
  %4424 = vmatpush.msra.mxu0 %v4411
  %4425 = vmatpush.msra.mxu0 %v4410
  %4426 = vmatpush.msra.mxu0 %v4409
  %4427 = vmatpush.msra.mxu0 %v4408
  %4428 = vmatmul.f32.gmra.mxu0 %v4293
  %v4429 = vpop.f32.mrf.mxu0
  %v4430 = vadd.f32 0.0, %v4429
  %4431 = vdwg.mxu0
  %v4432 = vadd.f32 %v4407, %v4430
  %v4433 = vxor.u32 %v4432, 2147483648
  %v4434 = vmul.f32 %v4433, 1.442695
  %v4435 = vpow.pop %v4434
  %v4436 = vadd.f32 %v4435, 1.0
  %v4437 = vrcp.pop %v4436
  %v4438 = vmul.f32 %v4436, %v4437
  %v4439 = vsub.f32 1.0, %v4438
  %v4440 = vmul.f32 %v4437, %v4439
  %v4441 = vadd.f32 %v4437, %v4440
  %vm4442 = vweird.f32 %v4436
  %vm4443 = vweird.f32 %v4437
  %vm4444 = vmor %vm4442, %vm4443
  %v4445 = vsel %vm4444, %v4437, %v4441
  %v4446 = vand.u32 2147483647, %v4436
  %vm4447 = vcmp.eq.f32.partialorder %v4446, 8.507059e+37
  %v4448 = vand.u32 %v4436, 2147483648
  %v4449 = vor.u32 1.1754944e-38, %v4448
  %v4450 = vsel %vm4447, %v4449, %v4445
  %v4451 = vmul.f32 1.0, %v4450
  %v4452 = vmul.f32 %v4379, %v4283
  %v4453 = vmul.f32 %v4334, %v4406
  %v4454 = vadd.f32 %v4452, %v4453
  %v4455 = vtanh.pop %v4454
  %v4456 = vmul.f32 %v4451, %v4455
  %4457 = vst.msk [vmem:[%s1311] sm:$0xff] %vm122, %v4456
  %v4458 = vld [vmem:[%s1313] sm:$0xff]
  %v4459 = vld [vmem:[%s8] sm:$0xff]
  %v4460 = vld [vmem:[%s8 + $0x8] sm:$0xff]
  %v4461 = vld [vmem:[%s8 + $0x10] sm:$0xff]
  %v4462 = vld [vmem:[%s8 + $0x18] sm:$0xff]
  %v4464 = vsel %vm122, %v4456, 0
  %4466 = vmatpush.msra.mxu0 0.0
  %4467 = vmatpush.msra.mxu0 0.0
  %4468 = vmatpush.msra.mxu0 0.0
  %4469 = vmatpush.msra.mxu0 0.0
  %4470 = vmatpush.msra.mxu0 0.0
  %4471 = vmatpush.msra.mxu0 0.0
  %4472 = vmatpush.msra.mxu0 0.0
  %4473 = vmatpush.msra.mxu0 0.0
  %4474 = vmatpush.msra.mxu0 0.0
  %4475 = vmatpush.msra.mxu0 0.0
  %4476 = vmatpush.msra.mxu0 0.0
  %4477 = vmatpush.msra.mxu0 0.0
  %4478 = vmatpush.msra.mxu0 %v4462
  %4479 = vmatpush.msra.mxu0 %v4461
  %4480 = vmatpush.msra.mxu0 %v4460
  %4481 = vmatpush.msra.mxu0 %v4459
  %4482 = vmatmul.f32.gmra.mxu0 %v4464
  %v4483 = vpop.f32.mrf.mxu0
  %v4484 = vadd.f32 0.0, %v4483
  %4485 = vdwg.mxu0
  %v4486 = vadd.f32 %v4458, %v4484
  %v4487 = vxor.u32 %v4486, 2147483648
  %v4488 = vmul.f32 %v4487, 1.442695
  %v4489 = vpow.pop %v4488
  %v4490 = vadd.f32 %v4489, 1.0
  %v4491 = vrcp.pop %v4490
  %v4492 = vmul.f32 %v4490, %v4491
  %v4493 = vsub.f32 1.0, %v4492
  %v4494 = vmul.f32 %v4491, %v4493
  %v4495 = vadd.f32 %v4491, %v4494
  %vm4496 = vweird.f32 %v4490
  %vm4497 = vweird.f32 %v4491
  %vm4498 = vmor %vm4496, %vm4497
  %v4499 = vsel %vm4498, %v4491, %v4495
  %v4500 = vand.u32 2147483647, %v4490
  %vm4501 = vcmp.eq.f32.partialorder %v4500, 8.507059e+37
  %v4502 = vand.u32 %v4490, 2147483648
  %v4503 = vor.u32 1.1754944e-38, %v4502
  %v4504 = vsel %vm4501, %v4503, %v4499
  %v4505 = vmul.f32 1.0, %v4504
  %v4506 = vld [vmem:[%s1363] sm:$0xff]
  %v4507 = vld [vmem:[%s3478] sm:$0xff]
  %v4508 = vld [vmem:[%s3478 + $0x8] sm:$0xff]
  %v4509 = vld [vmem:[%s3478 + $0x10] sm:$0xff]
  %v4510 = vld [vmem:[%s3478 + $0x18] sm:$0xff]
  %4511 = vmatpush.msra.mxu0 0.0
  %4512 = vmatpush.msra.mxu0 0.0
  %4513 = vmatpush.msra.mxu0 0.0
  %4514 = vmatpush.msra.mxu0 0.0
  %4515 = vmatpush.msra.mxu0 0.0
  %4516 = vmatpush.msra.mxu0 0.0
  %4517 = vmatpush.msra.mxu0 0.0
  %4518 = vmatpush.msra.mxu0 0.0
  %4519 = vmatpush.msra.mxu0 0.0
  %4520 = vmatpush.msra.mxu0 0.0
  %4521 = vmatpush.msra.mxu0 0.0
  %4522 = vmatpush.msra.mxu0 0.0
  %4523 = vmatpush.msra.mxu0 %v4510
  %4524 = vmatpush.msra.mxu0 %v4509
  %4525 = vmatpush.msra.mxu0 %v4508
  %4526 = vmatpush.msra.mxu0 %v4507
  %4527 = vmatmul.f32.gmra.mxu0 %v4464
  %v4528 = vpop.f32.mrf.mxu0
  %v4529 = vadd.f32 0.0, %v4528
  %4530 = vdwg.mxu0
  %v4531 = vadd.f32 %v4506, %v4529
  %v4532 = vxor.u32 %v4531, 2147483648
  %v4533 = vmul.f32 %v4532, 1.442695
  %v4534 = vpow.pop %v4533
  %v4535 = vadd.f32 %v4534, 1.0
  %v4536 = vrcp.pop %v4535
  %v4537 = vmul.f32 %v4535, %v4536
  %v4538 = vsub.f32 1.0, %v4537
  %v4539 = vmul.f32 %v4536, %v4538
  %v4540 = vadd.f32 %v4536, %v4539
  %vm4541 = vweird.f32 %v4535
  %vm4542 = vweird.f32 %v4536
  %vm4543 = vmor %vm4541, %vm4542
  %v4544 = vsel %vm4543, %v4536, %v4540
  %v4545 = vand.u32 2147483647, %v4535
  %vm4546 = vcmp.eq.f32.partialorder %v4545, 8.507059e+37
  %v4547 = vand.u32 %v4535, 2147483648
  %v4548 = vor.u32 1.1754944e-38, %v4547
  %v4549 = vsel %vm4546, %v4548, %v4544
  %v4550 = vmul.f32 1.0, %v4549
  %v4551 = vld [vmem:[%s1410] sm:$0xff]
  %v4552 = vld [vmem:[%s3524] sm:$0xff]
  %v4553 = vld [vmem:[%s3524 + $0x8] sm:$0xff]
  %v4554 = vld [vmem:[%s3524 + $0x10] sm:$0xff]
  %v4555 = vld [vmem:[%s3524 + $0x18] sm:$0xff]
  %4556 = vmatpush.msra.mxu0 0.0
  %4557 = vmatpush.msra.mxu0 0.0
  %4558 = vmatpush.msra.mxu0 0.0
  %4559 = vmatpush.msra.mxu0 0.0
  %4560 = vmatpush.msra.mxu0 0.0
  %4561 = vmatpush.msra.mxu0 0.0
  %4562 = vmatpush.msra.mxu0 0.0
  %4563 = vmatpush.msra.mxu0 0.0
  %4564 = vmatpush.msra.mxu0 0.0
  %4565 = vmatpush.msra.mxu0 0.0
  %4566 = vmatpush.msra.mxu0 0.0
  %4567 = vmatpush.msra.mxu0 0.0
  %4568 = vmatpush.msra.mxu0 %v4555
  %4569 = vmatpush.msra.mxu0 %v4554
  %4570 = vmatpush.msra.mxu0 %v4553
  %4571 = vmatpush.msra.mxu0 %v4552
  %4572 = vmatmul.f32.gmra.mxu0 %v4464
  %v4573 = vpop.f32.mrf.mxu0
  %v4574 = vadd.f32 0.0, %v4573
  %4575 = vdwg.mxu0
  %v4576 = vadd.f32 %v4551, %v4574
  %v4577 = vtanh.pop %v4576
  %v4578 = vld [vmem:[%s1439] sm:$0xff]
  %v4579 = vld [vmem:[%s3552] sm:$0xff]
  %v4580 = vld [vmem:[%s3552 + $0x8] sm:$0xff]
  %v4581 = vld [vmem:[%s3552 + $0x10] sm:$0xff]
  %v4582 = vld [vmem:[%s3552 + $0x18] sm:$0xff]
  %4583 = vmatpush.msra.mxu0 0.0
  %4584 = vmatpush.msra.mxu0 0.0
  %4585 = vmatpush.msra.mxu0 0.0
  %4586 = vmatpush.msra.mxu0 0.0
  %4587 = vmatpush.msra.mxu0 0.0
  %4588 = vmatpush.msra.mxu0 0.0
  %4589 = vmatpush.msra.mxu0 0.0
  %4590 = vmatpush.msra.mxu0 0.0
  %4591 = vmatpush.msra.mxu0 0.0
  %4592 = vmatpush.msra.mxu0 0.0
  %4593 = vmatpush.msra.mxu0 0.0
  %4594 = vmatpush.msra.mxu0 0.0
  %4595 = vmatpush.msra.mxu0 %v4582
  %4596 = vmatpush.msra.mxu0 %v4581
  %4597 = vmatpush.msra.mxu0 %v4580
  %4598 = vmatpush.msra.mxu0 %v4579
  %4599 = vmatmul.f32.gmra.mxu0 %v4464
  %v4600 = vpop.f32.mrf.mxu0
  %v4601 = vadd.f32 0.0, %v4600
  %4602 = vdwg.mxu0
  %v4603 = vadd.f32 %v4578, %v4601
  %v4604 = vxor.u32 %v4603, 2147483648
  %v4605 = vmul.f32 %v4604, 1.442695
  %v4606 = vpow.pop %v4605
  %v4607 = vadd.f32 %v4606, 1.0
  %v4608 = vrcp.pop %v4607
  %v4609 = vmul.f32 %v4607, %v4608
  %v4610 = vsub.f32 1.0, %v4609
  %v4611 = vmul.f32 %v4608, %v4610
  %v4612 = vadd.f32 %v4608, %v4611
  %vm4613 = vweird.f32 %v4607
  %vm4614 = vweird.f32 %v4608
  %vm4615 = vmor %vm4613, %vm4614
  %v4616 = vsel %vm4615, %v4608, %v4612
  %v4617 = vand.u32 2147483647, %v4607
  %vm4618 = vcmp.eq.f32.partialorder %v4617, 8.507059e+37
  %v4619 = vand.u32 %v4607, 2147483648
  %v4620 = vor.u32 1.1754944e-38, %v4619
  %v4621 = vsel %vm4618, %v4620, %v4616
  %v4622 = vmul.f32 1.0, %v4621
  %v4623 = vmul.f32 %v4550, %v4454
  %v4624 = vmul.f32 %v4505, %v4577
  %v4625 = vadd.f32 %v4623, %v4624
  %v4626 = vtanh.pop %v4625
  %v4627 = vmul.f32 %v4622, %v4626
  %4628 = vst.msk [vmem:[%s1490] sm:$0xff] %vm122, %v4627
  %v4629 = vld [vmem:[%s1492] sm:$0xff]
  %v4630 = vld [vmem:[%s8] sm:$0xff]
  %v4631 = vld [vmem:[%s8 + $0x8] sm:$0xff]
  %v4632 = vld [vmem:[%s8 + $0x10] sm:$0xff]
  %v4633 = vld [vmem:[%s8 + $0x18] sm:$0xff]
  %v4635 = vsel %vm122, %v4627, 0
  %4637 = vmatpush.msra.mxu0 0.0
  %4638 = vmatpush.msra.mxu0 0.0
  %4639 = vmatpush.msra.mxu0 0.0
  %4640 = vmatpush.msra.mxu0 0.0
  %4641 = vmatpush.msra.mxu0 0.0
  %4642 = vmatpush.msra.mxu0 0.0
  %4643 = vmatpush.msra.mxu0 0.0
  %4644 = vmatpush.msra.mxu0 0.0
  %4645 = vmatpush.msra.mxu0 0.0
  %4646 = vmatpush.msra.mxu0 0.0
  %4647 = vmatpush.msra.mxu0 0.0
  %4648 = vmatpush.msra.mxu0 0.0
  %4649 = vmatpush.msra.mxu0 %v4633
  %4650 = vmatpush.msra.mxu0 %v4632
  %4651 = vmatpush.msra.mxu0 %v4631
  %4652 = vmatpush.msra.mxu0 %v4630
  %4653 = vmatmul.f32.gmra.mxu0 %v4635
  %v4654 = vpop.f32.mrf.mxu0
  %v4655 = vadd.f32 0.0, %v4654
  %4656 = vdwg.mxu0
  %v4657 = vadd.f32 %v4629, %v4655
  %v4658 = vxor.u32 %v4657, 2147483648
  %v4659 = vmul.f32 %v4658, 1.442695
  %v4660 = vpow.pop %v4659
  %v4661 = vadd.f32 %v4660, 1.0
  %v4662 = vrcp.pop %v4661
  %v4663 = vmul.f32 %v4661, %v4662
  %v4664 = vsub.f32 1.0, %v4663
  %v4665 = vmul.f32 %v4662, %v4664
  %v4666 = vadd.f32 %v4662, %v4665
  %vm4667 = vweird.f32 %v4661
  %vm4668 = vweird.f32 %v4662
  %vm4669 = vmor %vm4667, %vm4668
  %v4670 = vsel %vm4669, %v4662, %v4666
  %v4671 = vand.u32 2147483647, %v4661
  %vm4672 = vcmp.eq.f32.partialorder %v4671, 8.507059e+37
  %v4673 = vand.u32 %v4661, 2147483648
  %v4674 = vor.u32 1.1754944e-38, %v4673
  %v4675 = vsel %vm4672, %v4674, %v4670
  %v4676 = vmul.f32 1.0, %v4675
  %v4677 = vld [vmem:[%s1542] sm:$0xff]
  %v4678 = vld [vmem:[%s3478] sm:$0xff]
  %v4679 = vld [vmem:[%s3478 + $0x8] sm:$0xff]
  %v4680 = vld [vmem:[%s3478 + $0x10] sm:$0xff]
  %v4681 = vld [vmem:[%s3478 + $0x18] sm:$0xff]
  %4682 = vmatpush.msra.mxu0 0.0
  %4683 = vmatpush.msra.mxu0 0.0
  %4684 = vmatpush.msra.mxu0 0.0
  %4685 = vmatpush.msra.mxu0 0.0
  %4686 = vmatpush.msra.mxu0 0.0
  %4687 = vmatpush.msra.mxu0 0.0
  %4688 = vmatpush.msra.mxu0 0.0
  %4689 = vmatpush.msra.mxu0 0.0
  %4690 = vmatpush.msra.mxu0 0.0
  %4691 = vmatpush.msra.mxu0 0.0
  %4692 = vmatpush.msra.mxu0 0.0
  %4693 = vmatpush.msra.mxu0 0.0
  %4694 = vmatpush.msra.mxu0 %v4681
  %4695 = vmatpush.msra.mxu0 %v4680
  %4696 = vmatpush.msra.mxu0 %v4679
  %4697 = vmatpush.msra.mxu0 %v4678
  %4698 = vmatmul.f32.gmra.mxu0 %v4635
  %v4699 = vpop.f32.mrf.mxu0
  %v4700 = vadd.f32 0.0, %v4699
  %4701 = vdwg.mxu0
  %v4702 = vadd.f32 %v4677, %v4700
  %v4703 = vxor.u32 %v4702, 2147483648
  %v4704 = vmul.f32 %v4703, 1.442695
  %v4705 = vpow.pop %v4704
  %v4706 = vadd.f32 %v4705, 1.0
  %v4707 = vrcp.pop %v4706
  %v4708 = vmul.f32 %v4706, %v4707
  %v4709 = vsub.f32 1.0, %v4708
  %v4710 = vmul.f32 %v4707, %v4709
  %v4711 = vadd.f32 %v4707, %v4710
  %vm4712 = vweird.f32 %v4706
  %vm4713 = vweird.f32 %v4707
  %vm4714 = vmor %vm4712, %vm4713
  %v4715 = vsel %vm4714, %v4707, %v4711
  %v4716 = vand.u32 2147483647, %v4706
  %vm4717 = vcmp.eq.f32.partialorder %v4716, 8.507059e+37
  %v4718 = vand.u32 %v4706, 2147483648
  %v4719 = vor.u32 1.1754944e-38, %v4718
  %v4720 = vsel %vm4717, %v4719, %v4715
  %v4721 = vmul.f32 1.0, %v4720
  %v4722 = vld [vmem:[%s1589] sm:$0xff]
  %v4723 = vld [vmem:[%s3524] sm:$0xff]
  %v4724 = vld [vmem:[%s3524 + $0x8] sm:$0xff]
  %v4725 = vld [vmem:[%s3524 + $0x10] sm:$0xff]
  %v4726 = vld [vmem:[%s3524 + $0x18] sm:$0xff]
  %4727 = vmatpush.msra.mxu0 0.0
  %4728 = vmatpush.msra.mxu0 0.0
  %4729 = vmatpush.msra.mxu0 0.0
  %4730 = vmatpush.msra.mxu0 0.0
  %4731 = vmatpush.msra.mxu0 0.0
  %4732 = vmatpush.msra.mxu0 0.0
  %4733 = vmatpush.msra.mxu0 0.0
  %4734 = vmatpush.msra.mxu0 0.0
  %4735 = vmatpush.msra.mxu0 0.0
  %4736 = vmatpush.msra.mxu0 0.0
  %4737 = vmatpush.msra.mxu0 0.0
  %4738 = vmatpush.msra.mxu0 0.0
  %4739 = vmatpush.msra.mxu0 %v4726
  %4740 = vmatpush.msra.mxu0 %v4725
  %4741 = vmatpush.msra.mxu0 %v4724
  %4742 = vmatpush.msra.mxu0 %v4723
  %4743 = vmatmul.f32.gmra.mxu0 %v4635
  %v4744 = vpop.f32.mrf.mxu0
  %v4745 = vadd.f32 0.0, %v4744
  %4746 = vdwg.mxu0
  %v4747 = vadd.f32 %v4722, %v4745
  %v4748 = vtanh.pop %v4747
  %v4749 = vld [vmem:[%s1618] sm:$0xff]
  %v4750 = vld [vmem:[%s3552] sm:$0xff]
  %v4751 = vld [vmem:[%s3552 + $0x8] sm:$0xff]
  %v4752 = vld [vmem:[%s3552 + $0x10] sm:$0xff]
  %v4753 = vld [vmem:[%s3552 + $0x18] sm:$0xff]
  %4754 = vmatpush.msra.mxu0 0.0
  %4755 = vmatpush.msra.mxu0 0.0
  %4756 = vmatpush.msra.mxu0 0.0
  %4757 = vmatpush.msra.mxu0 0.0
  %4758 = vmatpush.msra.mxu0 0.0
  %4759 = vmatpush.msra.mxu0 0.0
  %4760 = vmatpush.msra.mxu0 0.0
  %4761 = vmatpush.msra.mxu0 0.0
  %4762 = vmatpush.msra.mxu0 0.0
  %4763 = vmatpush.msra.mxu0 0.0
  %4764 = vmatpush.msra.mxu0 0.0
  %4765 = vmatpush.msra.mxu0 0.0
  %4766 = vmatpush.msra.mxu0 %v4753
  %4767 = vmatpush.msra.mxu0 %v4752
  %4768 = vmatpush.msra.mxu0 %v4751
  %4769 = vmatpush.msra.mxu0 %v4750
  %4770 = vmatmul.f32.gmra.mxu0 %v4635
  %v4771 = vpop.f32.mrf.mxu0
  %v4772 = vadd.f32 0.0, %v4771
  %4773 = vdwg.mxu0
  %v4774 = vadd.f32 %v4749, %v4772
  %v4775 = vxor.u32 %v4774, 2147483648
  %v4776 = vmul.f32 %v4775, 1.442695
  %v4777 = vpow.pop %v4776
  %v4778 = vadd.f32 %v4777, 1.0
  %v4779 = vrcp.pop %v4778
  %v4780 = vmul.f32 %v4778, %v4779
  %v4781 = vsub.f32 1.0, %v4780
  %v4782 = vmul.f32 %v4779, %v4781
  %v4783 = vadd.f32 %v4779, %v4782
  %vm4784 = vweird.f32 %v4778
  %vm4785 = vweird.f32 %v4779
  %vm4786 = vmor %vm4784, %vm4785
  %v4787 = vsel %vm4786, %v4779, %v4783
  %v4788 = vand.u32 2147483647, %v4778
  %vm4789 = vcmp.eq.f32.partialorder %v4788, 8.507059e+37
  %v4790 = vand.u32 %v4778, 2147483648
  %v4791 = vor.u32 1.1754944e-38, %v4790
  %v4792 = vsel %vm4789, %v4791, %v4787
  %v4793 = vmul.f32 1.0, %v4792
  %v4794 = vmul.f32 %v4721, %v4625
  %v4795 = vmul.f32 %v4676, %v4748
  %v4796 = vadd.f32 %v4794, %v4795
  %v4797 = vtanh.pop %v4796
  %v4798 = vmul.f32 %v4793, %v4797
  %4799 = vst.msk [vmem:[%s1669] sm:$0xff] %vm122, %v4798
  %v4800 = vld [vmem:[#allocation3] sm:$0xff]
  %v4801 = vld [vmem:[#allocation3 + $0x8] sm:$0xff]
  %v4802 = vld [vmem:[#allocation3 + $0x10] sm:$0xff]
  %v4803 = vld [vmem:[#allocation3 + $0x18] sm:$0xff]
  %v4804 = vld [vmem:[#allocation3 + $0x20] sm:$0xff]
  %v4805 = vld [vmem:[#allocation3 + $0x28] sm:$0xff]
  %v4806 = vld [vmem:[#allocation3 + $0x30] sm:$0xff]
  %v4807 = vld [vmem:[#allocation3 + $0x38] sm:$0xff]
  %v4808 = vld [vmem:[%s10] sm:$0xff]
  %v4809 = vld [vmem:[%s10 + $0x8] sm:$0xff]
  %v4810 = vld [vmem:[%s10 + $0x10] sm:$0xff]
  %v4811 = vld [vmem:[%s10 + $0x18] sm:$0xff]
  %v4812 = vld [vmem:[#allocation5] sm:$0x1]
  %v4814 = vperm.slane %v4812, 0
  %v4817 = vsel %vm122, %v4800, 0
  %v4820 = vsel %vm122, %v4801, 0
  %v4823 = vsel %vm122, %v4802, 0
  %v4826 = vsel %vm122, %v4803, 0
  %v4829 = vsel %vm122, %v4804, 0
  %v4832 = vsel %vm122, %v4805, 0
  %v4835 = vsel %vm122, %v4806, 0
  %v4838 = vsel %vm122, %v4807, 0
  %4840 = vmatpush.msra.mxu0 0.0
  %4841 = vmatpush.msra.mxu0 0.0
  %4842 = vmatpush.msra.mxu0 0.0
  %4843 = vmatpush.msra.mxu0 0.0
  %4844 = vmatpush.msra.mxu0 0.0
  %4845 = vmatpush.msra.mxu0 0.0
  %4846 = vmatpush.msra.mxu0 0.0
  %4847 = vmatpush.msra.mxu0 0.0
  %4848 = vmatpush.msra.mxu0 0.0
  %4849 = vmatpush.msra.mxu0 0.0
  %4850 = vmatpush.msra.mxu0 0.0
  %4851 = vmatpush.msra.mxu0 0.0
  %4852 = vmatpush.msra.mxu0 %v4811
  %4853 = vmatpush.msra.mxu0 %v4810
  %4854 = vmatpush.msra.mxu0 %v4809
  %4855 = vmatpush.msra.mxu0 %v4808
  %4856 = vmatmul.f32.gmra.mxu0 %v4817
  %v4857 = vpop.f32.mrf.mxu0
  %v4858 = vadd.f32 %v4814, %v4857
  %4859 = vmatmul.f32.gmra.mxu0 %v4820
  %v4860 = vpop.f32.mrf.mxu0
  %v4861 = vadd.f32 %v4814, %v4860
  %4862 = vmatmul.f32.gmra.mxu0 %v4823
  %v4863 = vpop.f32.mrf.mxu0
  %v4864 = vadd.f32 %v4814, %v4863
  %4865 = vmatmul.f32.gmra.mxu0 %v4826
  %v4866 = vpop.f32.mrf.mxu0
  %v4867 = vadd.f32 %v4814, %v4866
  %4868 = vmatmul.f32.gmra.mxu0 %v4829
  %v4869 = vpop.f32.mrf.mxu0
  %v4870 = vadd.f32 %v4814, %v4869
  %4871 = vmatmul.f32.gmra.mxu0 %v4832
  %v4872 = vpop.f32.mrf.mxu0
  %v4873 = vadd.f32 %v4814, %v4872
  %4874 = vmatmul.f32.gmra.mxu0 %v4835
  %v4875 = vpop.f32.mrf.mxu0
  %v4876 = vadd.f32 %v4814, %v4875
  %4877 = vmatmul.f32.gmra.mxu0 %v4838
  %v4878 = vpop.f32.mrf.mxu0
  %v4879 = vadd.f32 %v4814, %v4878
  %4880 = vdwg.mxu0
  %vm4881 = vcmask 7168
  %4882 = vst.msk [vmem:[%s12] sm:$0xff] %vm4881, %v4858
  %4883 = vst.msk [vmem:[%s12 + $0x8] sm:$0xff] %vm4881, %v4861
  %4884 = vst.msk [vmem:[%s12 + $0x10] sm:$0xff] %vm4881, %v4864
  %4885 = vst.msk [vmem:[%s12 + $0x18] sm:$0xff] %vm4881, %v4867
  %4886 = vst.msk [vmem:[%s12 + $0x20] sm:$0xff] %vm4881, %v4870
  %4887 = vst.msk [vmem:[%s12 + $0x28] sm:$0xff] %vm4881, %v4873
  %4888 = vst.msk [vmem:[%s12 + $0x30] sm:$0xff] %vm4881, %v4876
  %4889 = vst.msk [vmem:[%s12 + $0x38] sm:$0xff] %vm4881, %v4879
  // Predicated region
  $region50: #{lstm_reg_forward.1} parent=0 // pred_check
    _
  $region51: #{lstm_reg_forward.1} parent=0 // pred_check_branch
    %4891 = sbr.rel (0) target = $region53
  $region52: #{lstm_reg_forward.1} parent=0 // pred_region
    _
  $region53: #{lstm_reg_forward.1} parent=0 // pred_fallthru
    _
  // Predicated region
  $region54: #{lstm_reg_forward.1} parent=0 // pred_check
    _
  $region55: #{lstm_reg_forward.1} parent=0 // pred_check_branch
    %4893 = sbr.rel (0) target = $region57
  $region56: #{lstm_reg_forward.1} parent=0 // pred_region
    _
  $region57: #{lstm_reg_forward.1} parent=0 // pred_fallthru
    _

</llo_original>
